<compile_context>
chip_gen: v7x
topology: tpu7x:2x2x1
jax: 0.10.0
libtpu: 0.0.40
codegen_flags: <defaults>
</compile_context>

<pallas_src>
import functools

import jax
import jax.numpy as jnp
from jax import lax
from jax.experimental import pallas as pl
from jax.experimental.pallas import tpu as pltpu


def _round_up(x, m):
    return ((x + m - 1) // m) * m


def _pad_last(x, target):
    pad = target - x.shape[-1]
    if pad <= 0:
        return x
    return jnp.pad(x, ((0, 0), (0, 0), (0, pad)))


# ----------------------------------------------------------------------------
# Bidirectional masked LSTM layer: input projection + both recurrences fused
# ----------------------------------------------------------------------------

def _bilstm_kernel(x_ref, m_ref, wih_ref, whh_ref, b_ref, o_ref, xg_ref, *,
                   hidden, seq_len):
    H = hidden
    T = seq_len
    Bc = x_ref.shape[1]
    D = x_ref.shape[2]
    G = 8 * H

    # Fused input projection for both directions and all gates in one MXU pass:
    # (T*Bc, D) @ (D, 8H), bias folded in; stored bf16 to halve the VMEM scratch.
    x2d = x_ref[...].astype(jnp.bfloat16).reshape(T * Bc, D)
    xg = jnp.dot(x2d, wih_ref[...], preferred_element_type=jnp.float32) + b_ref[...]
    xg_ref[...] = xg.astype(jnp.bfloat16).reshape(T, Bc, G)

    w_hh = whh_ref[...]                         # (2H, 8H) bf16, block-diag [fwd | bwd]

    def step(s, carry):
        h_f, c_f, h_b, c_b = carry              # each (Bc, H) f32
        tb = T - 1 - s
        # one recurrent matmul per step for BOTH directions (block-diag weights)
        hc = jnp.concatenate([h_f, h_b], axis=-1).astype(jnp.bfloat16)   # (Bc, 2H)
        r = jnp.dot(hc, w_hh, preferred_element_type=jnp.float32)        # (Bc, 8H)
        gf = xg_ref[s][:, 0:4 * H].astype(jnp.float32) + r[:, 0:4 * H]
        gb = xg_ref[tb][:, 4 * H:8 * H].astype(jnp.float32) + r[:, 4 * H:8 * H]
        # gate layout per direction: [i | f | o | g] -> one sigmoid + one tanh push
        sf = jax.nn.sigmoid(gf[:, 0:3 * H])
        tgf = jnp.tanh(gf[:, 3 * H:4 * H])
        sb = jax.nn.sigmoid(gb[:, 0:3 * H])
        tgb = jnp.tanh(gb[:, 3 * H:4 * H])
        mf = m_ref[s]                            # (Bc, 1), 1 = real token
        mb = m_ref[tb]
        # zero initial state -> MyLSTM's  h*m + h0*(1-m)  ==  h*m
        c_f = (sf[:, H:2 * H] * c_f + sf[:, 0:H] * tgf) * mf
        c_b = (sb[:, H:2 * H] * c_b + sb[:, 0:H] * tgb) * mb
        h_f = sf[:, 2 * H:3 * H] * jnp.tanh(c_f) * mf
        h_b = sb[:, 2 * H:3 * H] * jnp.tanh(c_b) * mb
        # write fwd/bwd halves of the VMEM-resident output block directly
        o_ref[s, :, 0:H] = h_f
        o_ref[tb, :, H:2 * H] = h_b
        return h_f, c_f, h_b, c_b

    zero = jnp.zeros((Bc, H), jnp.float32)
    carry = (zero, zero, zero, zero)
    if T <= 32:
        # full unroll for small static T: cross-iteration scheduler visibility
        for s in range(T):
            carry = step(s, carry)
    else:
        lax.fori_loop(0, T, step, carry)


def bilstm_layer(x_tm, mask_tb1, w_ih_bf16, w_hh_bf16, b, hidden, batch_chunk=8):
    """x_tm: (T, Bp, D) time-major inputs (Bp multiple of 8), mask_tb1: (T, Bp, 1),
       w_ih_bf16: (D, 8H), w_hh_bf16: (2H, 8H) block-diag, b: (8H,) -> (T, Bp, 2H)."""
    T, Bp, D = x_tm.shape
    Bc = min(batch_chunk, Bp)
    G = 8 * hidden
    return pl.pallas_call(
        functools.partial(_bilstm_kernel, hidden=hidden, seq_len=T),
        out_shape=jax.ShapeDtypeStruct((T, Bp, 2 * hidden), jnp.float32),
        grid=(Bp // Bc,),
        in_specs=[pl.BlockSpec((T, Bc, D), lambda i: (0, i, 0)),
                  pl.BlockSpec((T, Bc, 1), lambda i: (0, i, 0)),
                  pl.BlockSpec((D, G), lambda i: (0, 0)),
                  pl.BlockSpec((2 * hidden, G), lambda i: (0, 0)),
                  pl.BlockSpec((1, G), lambda i: (0, 0))],
        out_specs=pl.BlockSpec((T, Bc, 2 * hidden), lambda i: (0, i, 0)),
        scratch_shapes=[pltpu.VMEM((T, Bc, G), jnp.bfloat16)],
        compiler_params=pltpu.CompilerParams(dimension_semantics=("parallel",)),
    )(x_tm, mask_tb1, w_ih_bf16, w_hh_bf16, b.reshape(1, G))


# ----------------------------------------------------------------------------
# Fused multi-head attention (in_proj + attention + out_proj) + dep/head MLPs
# ----------------------------------------------------------------------------

def _mha_mlp_kernel(x_ref, inw_ref, inb_ref, outw_ref, outb_ref,
                    mlpw_ref, mlpb_ref, mask_ref, o_ref, *, num_heads, head_dim):
    E = num_heads * head_dim
    scale = 1.0 / float(head_dim) ** 0.5
    x = x_ref[0].astype(jnp.bfloat16)                                    # (T, E)
    qkv = jnp.dot(x, inw_ref[...], preferred_element_type=jnp.float32) + inb_ref[...]
    valid = mask_ref[0]                                                  # (1, T)

    ctx = []
    for h in range(num_heads):
        lo = h * head_dim
        q = qkv[:, lo:lo + head_dim].astype(jnp.bfloat16)
        k = qkv[:, E + lo:E + lo + head_dim].astype(jnp.bfloat16)
        v = qkv[:, 2 * E + lo:2 * E + lo + head_dim].astype(jnp.bfloat16)
        s = lax.dot_general(q, k, (((1,), (1,)), ((), ())),
                            preferred_element_type=jnp.float32) * scale   # (T, T)
        s = jnp.where(valid > 0.5, s, -1e30)                             # key padding
        s = s - jnp.max(s, axis=-1, keepdims=True)
        p = jnp.exp(s)
        p = p * pl.reciprocal(jnp.sum(p, axis=-1, keepdims=True), approx=True)
        ctx.append(jnp.dot(p.astype(jnp.bfloat16), v,
                           preferred_element_type=jnp.float32))

    # single full-contraction (E) output projection instead of nh rank-head_dim ones
    ctx = jnp.concatenate(ctx, axis=-1).astype(jnp.bfloat16)             # (T, E)
    attn = jnp.dot(ctx, outw_ref[...],
                   preferred_element_type=jnp.float32) + outb_ref[...]
    # fused dep|head NonLinear: LeakyReLU(0.1)(attn @ [W_dep | W_head] + b)
    y = jnp.dot(attn.astype(jnp.bfloat16), mlpw_ref[...],
                preferred_element_type=jnp.float32) + mlpb_ref[...]
    o_ref[0] = jnp.where(y >= 0, y, 0.1 * y)


def pallas_mha_mlp(x, in_w, in_b, out_w, out_b, mlp_w, mlp_b, key_valid,
                   num_heads, head_dim):
    """x: (B, T, E); key_valid: (B, 1, T) float (1 = real token) -> (B, T, 2*mlp_out)."""
    B, T, E = x.shape
    N = mlp_w.shape[1]
    return pl.pallas_call(
        functools.partial(_mha_mlp_kernel, num_heads=num_heads, head_dim=head_dim),
        out_shape=jax.ShapeDtypeStruct((B, T, N), jnp.float32),
        grid=(B,),
        in_specs=[pl.BlockSpec((1, T, E), lambda b: (b, 0, 0)),
                  pl.BlockSpec((E, 3 * E), lambda b: (0, 0)),
                  pl.BlockSpec((1, 3 * E), lambda b: (0, 0)),
                  pl.BlockSpec((E, E), lambda b: (0, 0)),
                  pl.BlockSpec((1, E), lambda b: (0, 0)),
                  pl.BlockSpec((E, N), lambda b: (0, 0)),
                  pl.BlockSpec((1, N), lambda b: (0, 0)),
                  pl.BlockSpec((1, 1, T), lambda b: (b, 0, 0))],
        out_specs=pl.BlockSpec((1, T, N), lambda b: (b, 0, 0)),
        compiler_params=pltpu.CompilerParams(dimension_semantics=("parallel",)),
    )(x, in_w, in_b.reshape(1, 3 * E), out_w, out_b.reshape(1, E),
      mlp_w, mlp_b.reshape(1, N), key_valid)


# ----------------------------------------------------------------------------
# Biaffine scorer, tiled over (batch, out_features): out[b,o,j,i] = head_j.U[o].dep_i
# ----------------------------------------------------------------------------

def _biaffine_kernel(d_ref, h_ref, u_ref, o_ref):
    d = d_ref[0].astype(jnp.bfloat16)              # (L, D1p) dep (+bias, padded)
    h = h_ref[0].astype(jnp.bfloat16)              # (L, D2p) head (+bias, padded)
    u = u_ref[0]                                   # (D1p, D2p) bf16 (pre-cast)
    du = jnp.dot(d, u, preferred_element_type=jnp.float32)          # (L, D2p)
    o_ref[0, 0] = lax.dot_general(h, du.astype(jnp.bfloat16),
                                  (((1,), (1,)), ((), ())),
                                  preferred_element_type=jnp.float32)


def pallas_biaffine(dep_aug, head_aug, u_r, out_features):
    """dep_aug: (B,L,D1p), head_aug: (B,L,D2p), u_r: (O,D1p,D2p) bf16 -> (B,O,L,L)."""
    B, L, D1p = dep_aug.shape
    D2p = head_aug.shape[2]
    return pl.pallas_call(
        _biaffine_kernel,
        out_shape=jax.ShapeDtypeStruct((B, out_features, L, L), jnp.float32),
        grid=(B, out_features),
        in_specs=[pl.BlockSpec((1, L, D1p), lambda b, o: (b, 0, 0)),
                  pl.BlockSpec((1, L, D2p), lambda b, o: (b, 0, 0)),
                  pl.BlockSpec((1, D1p, D2p), lambda b, o: (o, 0, 0))],
        out_specs=pl.BlockSpec((1, 1, L, L), lambda b, o: (b, o, 0, 0)),
        compiler_params=pltpu.CompilerParams(
            dimension_semantics=("parallel", "parallel")),
    )(dep_aug, head_aug, u_r)


def prep_biaffine_u(u, d1p, d2p):
    """u: (O, D2, D1) -> (O, D1p, D2p) bf16, zero-padded; u_r[o,d1,d2] = u[o,d2,d1]."""
    O, D2, D1 = u.shape
    ur = jnp.transpose(u, (0, 2, 1))
    ur = jnp.pad(ur, ((0, 0), (0, d1p - D1), (0, d2p - D2)))
    return ur.astype(jnp.bfloat16)


# ----------------------------------------------------------------------------
# Model wrapper (glue in plain JAX; hot paths in Pallas)
# ----------------------------------------------------------------------------

class Config:
    def __init__(self, **kw):
        self.__dict__.update(kw)


class Vocab:
    def __init__(self, **kw):
        self.__dict__.update(kw)


def init_params(key, cfg, vocab):
    ks = iter(jax.random.split(key, 32))

    def nrm(shape, scale=0.1):
        return scale * jax.random.normal(next(ks), shape, dtype=jnp.float32)

    H = cfg.lstm_hiddens
    E = 2 * H
    mlp_out = cfg.mlp_arc_size + cfg.mlp_rel_size

    lstm_layers = []
    in_dim = cfg.word_dims + cfg.tag_dims
    for _ in range(cfg.lstm_layers):
        # fused gate layout: columns [fwd i,f,o,g | bwd i,f,o,g]
        # (a PyTorch i,f,g,o checkpoint would be column-permuted into this layout)
        w_hh = jnp.zeros((2 * H, 8 * H), jnp.float32)
        w_hh = w_hh.at[:H, :4 * H].set(nrm((H, 4 * H)))      # fwd recurrent block
        w_hh = w_hh.at[H:, 4 * H:].set(nrm((H, 4 * H)))      # bwd recurrent block
        lstm_layers.append(dict(
            w_ih=nrm((in_dim, 8 * H)),     # fused [fwd | bwd] input projection
            w_hh=w_hh,                     # block-diag -> one recurrent matmul/step
            b=nrm((8 * H,)),               # combined b_ih + b_hh for both directions
        ))
        in_dim = 2 * H

    params = dict(
        # word_embed is initialized to zeros in the PyTorch module
        word_embed=jnp.zeros((vocab.vocab_size, cfg.word_dims), jnp.float32),
        extword_embed=nrm((vocab.extvocab_size, cfg.word_dims)),   # "pretrained"
        tag_embed=nrm((vocab.tag_size, cfg.tag_dims), 1.0),        # np.random.randn
        lstm=lstm_layers,
        mha=dict(in_w=nrm((E, 3 * E)), in_b=nrm((3 * E,)),
                 out_w=nrm((E, E)), out_b=nrm((E,))),
        # fused NonLinear MLPs: columns = [dep (arc+rel) | head (arc+rel)]
        mlp_w=nrm((E, 2 * mlp_out)),
        mlp_b=nrm((2 * mlp_out,)),
        # Biaffine U[o, d2(head), d1(dep)]: arc bias=(True, False), rel bias=(True, True)
        arc_U=nrm((1, cfg.mlp_arc_size, cfg.mlp_arc_size + 1)),
        rel_U=nrm((vocab.rel_size, cfg.mlp_rel_size + 1, cfg.mlp_rel_size + 1)),
    )
    return params


def attention_parser_forward(params, cfg, words, extwords, tags, masks):
    B, T = words.shape
    H = cfg.lstm_hiddens
    E = 2 * H
    nh = cfg.num_heads_atten
    dh = E // nh
    arc_size = cfg.mlp_arc_size
    rel_size = cfg.mlp_rel_size
    mlp_size = arc_size + rel_size

    # --- embeddings (gathers = glue) ---
    x_embed = params["word_embed"][words] + params["extword_embed"][extwords]
    x_tag = params["tag_embed"][tags]
    x_lex = jnp.concatenate([x_embed, x_tag], axis=2)          # (B, T, word+tag)

    # --- bidirectional masked LSTM (MyLSTM, eval mode), time-major ---
    # pad batch (sublane axis of the time-major layout) to a multiple of 8
    Bp = _round_up(B, 8)
    if Bp != B:
        x_lex = jnp.pad(x_lex, ((0, Bp - B), (0, 0), (0, 0)))
        masks_p = jnp.pad(masks, ((0, Bp - B), (0, 0)))
    else:
        masks_p = masks
    layer_in = jnp.transpose(x_lex, (1, 0, 2))                 # (T, Bp, D)
    mask_tb1 = jnp.transpose(masks_p, (1, 0)).reshape(T, Bp, 1)
    for l in range(cfg.lstm_layers):
        p = params["lstm"][l]
        layer_in = bilstm_layer(layer_in, mask_tb1,
                                p["w_ih"].astype(jnp.bfloat16),   # pre-cast weights
                                p["w_hh"].astype(jnp.bfloat16),
                                p["b"], H)                        # (T, Bp, 2H)
    outputs = jnp.transpose(layer_in, (1, 0, 2))[:B]           # (B, T, 2H)

    # --- fused MultiheadAttention + dep/head NonLinear MLPs ---
    key_valid = masks.reshape(B, 1, T)
    mha = params["mha"]
    mlp = pallas_mha_mlp(outputs,
                         mha["in_w"].astype(jnp.bfloat16), mha["in_b"],
                         mha["out_w"].astype(jnp.bfloat16), mha["out_b"],
                         params["mlp_w"].astype(jnp.bfloat16), params["mlp_b"],
                         key_valid, nh, dh)
    x_all_dep = mlp[..., :mlp_size]
    x_all_head = mlp[..., mlp_size:]

    # torch.split(..., 100, dim=2) then cat of leading chunks == contiguous slice
    x_arc_dep, x_rel_dep = x_all_dep[..., :arc_size], x_all_dep[..., arc_size:]
    x_arc_head, x_rel_head = x_all_head[..., :arc_size], x_all_head[..., arc_size:]

    # --- Biaffine scorers (add bias columns, zero-pad lanes to multiples of 128) ---
    ones = jnp.ones((B, T, 1), jnp.float32)
    d1_arc, d2_arc = _round_up(arc_size + 1, 128), _round_up(arc_size, 128)
    d1_rel = d2_rel = _round_up(rel_size + 1, 128)

    arc_dep_p = _pad_last(jnp.concatenate([x_arc_dep, ones], axis=2), d1_arc)
    arc_head_p = _pad_last(x_arc_head, d2_arc)                 # arc bias=(True, False)
    rel_dep_p = _pad_last(jnp.concatenate([x_rel_dep, ones], axis=2), d1_rel)
    rel_head_p = _pad_last(jnp.concatenate([x_rel_head, ones], axis=2), d2_rel)

    arc_u = prep_biaffine_u(params["arc_U"], d1_arc, d2_arc)
    rel_u = prep_biaffine_u(params["rel_U"], d1_rel, d2_rel)
    n_rel = params["rel_U"].shape[0]

    arc_logit = pallas_biaffine(arc_dep_p, arc_head_p, arc_u, 1).reshape(B, T, T)
    rel_logit = pallas_biaffine(rel_dep_p, rel_head_p, rel_u, n_rel)
    # kernel output stays lane-dense (B, O, L_head, L_dep); the transpose below only
    # restores the PyTorch layout (B, L_head, L_dep, O) - drop it if the consumer
    # can take the lane-dense layout (saves a full HBM pass over the largest output).
    rel_logit = jnp.transpose(rel_logit, (0, 2, 3, 1))

    return arc_logit, rel_logit


# ----------------------------------------------------------------------------
# Main
# ----------------------------------------------------------------------------

if __name__ == "__main__":
    cfg = Config(word_dims=16, tag_dims=16,
                 lstm_hiddens=32, lstm_layers=2,
                 num_heads_atten=4,
                 mlp_arc_size=200, mlp_rel_size=100,
                 dropout_emb=0.33, dropout_lstm_input=0.33,
                 dropout_lstm_hidden=0.33, dropout_mlp=0.33)
    vocab = Vocab(vocab_size=20, extvocab_size=20, tag_size=10, rel_size=5)

    key = jax.random.PRNGKey(0)
    pkey, ikey = jax.random.split(key)
    params = init_params(pkey, cfg, vocab)

    B, T = 2, 8
    k1, k2, k3 = jax.random.split(ikey, 3)
    words = jax.random.randint(k1, (B, T), 1, vocab.vocab_size)
    extwords = jax.random.randint(k2, (B, T), 1, vocab.extvocab_size)
    tags = jax.random.randint(k3, (B, T), 1, vocab.tag_size)
    lengths = jnp.array([8, 6])
    masks = (jnp.arange(T)[None, :] < lengths[:, None]).astype(jnp.float32)

    @jax.jit
    def run(p, w, e, t, m):
        return attention_parser_forward(p, cfg, w, e, t, m)

    arc_logit, rel_logit = jax.block_until_ready(
        run(params, words, extwords, tags, masks))

    assert arc_logit.shape == (B, T, T)
    assert rel_logit.shape == (B, T, T, vocab.rel_size)
    assert jnp.all(jnp.isfinite(arc_logit)) and jnp.all(jnp.isfinite(rel_logit))
    print("KERNEL_OK")
</pallas_src>

<mosaic_0001>
module attributes {stable_mosaic.version = 11 : i64} {
  func.func @_bilstm_kernel(%arg0: i32, %arg1: memref<8x8x32xf32, #tpu.memory_space<vmem>>, %arg2: memref<8x8x1xf32, #tpu.memory_space<vmem>>, %arg3: memref<32x256xbf16, #tpu.memory_space<vmem>>, %arg4: memref<64x256xbf16, #tpu.memory_space<vmem>>, %arg5: memref<1x256xf32, #tpu.memory_space<vmem>>, %arg6: memref<8x8x64xf32, #tpu.memory_space<vmem>>, %arg7: memref<8x8x256xbf16, #tpu.memory_space<vmem>>) attributes {dimension_semantics = [#tpu.dimension_semantics<parallel>], iteration_bounds = array<i64: 1>, scalar_prefetch = 0 : i64, scratch_operands = 1 : i64, tpu.core_type = #tpu.core_type<tc>, window_params = [{transform_indices = @transform_0, window_bounds = array<i64: 8, 8, 32>}, {transform_indices = @transform_1, window_bounds = array<i64: 8, 8, 1>}, {pipeline_mode = #tpu.pipeline_mode<synchronous>, transform_indices = @transform_2, window_bounds = array<i64: 32, 256>}, {pipeline_mode = #tpu.pipeline_mode<synchronous>, transform_indices = @transform_3, window_bounds = array<i64: 64, 256>}, {pipeline_mode = #tpu.pipeline_mode<synchronous>, transform_indices = @transform_4, window_bounds = array<i64: 1, 256>}, {transform_indices = @transform_5, window_bounds = array<i64: 8, 8, 64>}]} {
    %c0 = arith.constant 0 : index
    %c0_0 = arith.constant 0 : index
    %c0_1 = arith.constant 0 : index
    %0 = vector.load %arg1[%c0, %c0_0, %c0_1] : memref<8x8x32xf32, #tpu.memory_space<vmem>>, vector<8x8x32xf32>
    %1 = arith.truncf %0 : vector<8x8x32xf32> to vector<8x8x32xbf16>
    %2 = vector.shape_cast %1 : vector<8x8x32xbf16> to vector<64x32xbf16>
    %c0_2 = arith.constant 0 : index
    %c0_3 = arith.constant 0 : index
    %3 = vector.load %arg3[%c0_2, %c0_3] : memref<32x256xbf16, #tpu.memory_space<vmem>>, vector<32x256xbf16>
    %cst = arith.constant dense<0.000000e+00> : vector<64x256xf32>
    %4 = tpu.matmul %2, %3, %cst {dimension_numbers = #tpu.dot_dimension_numbers<[1], [0], [0], [1], [0, 0, 1, 1], [], []>} : vector<64x32xbf16>, vector<32x256xbf16>, vector<64x256xf32> -> vector<64x256xf32>
    %c0_4 = arith.constant 0 : index
    %c0_5 = arith.constant 0 : index
    %5 = vector.load %arg5[%c0_4, %c0_5] : memref<1x256xf32, #tpu.memory_space<vmem>>, vector<1x256xf32>
    %6 = vector.broadcast %5 : vector<1x256xf32> to vector<64x256xf32>
    %7 = arith.addf %4, %6 : vector<64x256xf32>
    %8 = arith.truncf %7 : vector<64x256xf32> to vector<64x256xbf16>
    %9 = vector.shape_cast %8 : vector<64x256xbf16> to vector<8x8x256xbf16>
    %c0_6 = arith.constant 0 : index
    %c0_7 = arith.constant 0 : index
    %c0_8 = arith.constant 0 : index
    %10 = vector.load %arg7[%c0_6, %c0_7, %c0_8] : memref<8x8x256xbf16, #tpu.memory_space<vmem>>, vector<8x8x256xbf16>
    tpu.vector_store %arg7[%c0_6, %c0_7, %c0_8], %9 {strides = array<i32>} : memref<8x8x256xbf16, #tpu.memory_space<vmem>>, vector<8x8x256xbf16>,
    %c0_9 = arith.constant 0 : index
    %c0_10 = arith.constant 0 : index
    %11 = vector.load %arg4[%c0_9, %c0_10] : memref<64x256xbf16, #tpu.memory_space<vmem>>, vector<64x256xbf16>
    %cst_11 = arith.constant 0.000000e+00 : f32
    %12 = vector.broadcast %cst_11 : f32 to vector<8x32xf32>
    %13 = tpu.concatenate %12, %12 in 1 : vector<8x32xf32>, vector<8x32xf32> -> vector<8x64xf32>
    %14 = arith.truncf %13 : vector<8x64xf32> to vector<8x64xbf16>
    %cst_12 = arith.constant dense<0.000000e+00> : vector<8x256xf32>
    %15 = tpu.matmul %14, %11, %cst_12 {dimension_numbers = #tpu.dot_dimension_numbers<[1], [0], [0], [1], [0, 0, 1, 1], [], []>} : vector<8x64xbf16>, vector<64x256xbf16>, vector<8x256xf32> -> vector<8x256xf32>
    %c0_13 = arith.constant 0 : index
    %c0_14 = arith.constant 0 : index
    %c0_15 = arith.constant 0 : index
    %16 = vector.load %arg7[%c0_13, %c0_14, %c0_15] : memref<8x8x256xbf16, #tpu.memory_space<vmem>>, vector<1x8x256xbf16>
    %17 = vector.shape_cast %16 : vector<1x8x256xbf16> to vector<8x256xbf16>
    %18 = vector.extract_strided_slice %17 {offsets = [0, 0], sizes = [8, 128], strides = [1, 1]} : vector<8x256xbf16> to vector<8x128xbf16>
    %19 = arith.extf %18 : vector<8x128xbf16> to vector<8x128xf32>
    %20 = vector.extract_strided_slice %15 {offsets = [0, 0], sizes = [8, 128], strides = [1, 1]} : vector<8x256xf32> to vector<8x128xf32>
    %21 = arith.addf %19, %20 : vector<8x128xf32>
    %c7 = arith.constant 7 : index
    %c0_16 = arith.constant 0 : index
    %c0_17 = arith.constant 0 : index
    %22 = vector.load %arg7[%c7, %c0_16, %c0_17] : memref<8x8x256xbf16, #tpu.memory_space<vmem>>, vector<1x8x256xbf16>
    %23 = vector.shape_cast %22 : vector<1x8x256xbf16> to vector<8x256xbf16>
    %24 = vector.extract_strided_slice %23 {offsets = [0, 128], sizes = [8, 128], strides = [1, 1]} : vector<8x256xbf16> to vector<8x128xbf16>
    %25 = arith.extf %24 : vector<8x128xbf16> to vector<8x128xf32>
    %26 = vector.extract_strided_slice %15 {offsets = [0, 128], sizes = [8, 128], strides = [1, 1]} : vector<8x256xf32> to vector<8x128xf32>
    %27 = arith.addf %25, %26 : vector<8x128xf32>
    %28 = vector.extract_strided_slice %21 {offsets = [0, 0], sizes = [8, 96], strides = [1, 1]} : vector<8x128xf32> to vector<8x96xf32>
    %29 = arith.negf %28 : vector<8x96xf32>
    %30 = math.exp %29 : vector<8x96xf32>
    %cst_18 = arith.constant 1.000000e+00 : f32
    %31 = vector.broadcast %cst_18 : f32 to vector<8x96xf32>
    %32 = arith.addf %31, %30 : vector<8x96xf32>
    %33 = arith.divf %31, %32 : vector<8x96xf32>
    %34 = vector.extract_strided_slice %21 {offsets = [0, 96], sizes = [8, 32], strides = [1, 1]} : vector<8x128xf32> to vector<8x32xf32>
    %35 = math.tanh %34 : vector<8x32xf32>
    %36 = vector.extract_strided_slice %27 {offsets = [0, 0], sizes = [8, 96], strides = [1, 1]} : vector<8x128xf32> to vector<8x96xf32>
    %37 = arith.negf %36 : vector<8x96xf32>
    %38 = math.exp %37 : vector<8x96xf32>
    %cst_19 = arith.constant 1.000000e+00 : f32
    %39 = vector.broadcast %cst_19 : f32 to vector<8x96xf32>
    %40 = arith.addf %39, %38 : vector<8x96xf32>
    %41 = arith.divf %39, %40 : vector<8x96xf32>
    %42 = vector.extract_strided_slice %27 {offsets = [0, 96], sizes = [8, 32], strides = [1, 1]} : vector<8x128xf32> to vector<8x32xf32>
    %43 = math.tanh %42 : vector<8x32xf32>
    %c0_20 = arith.constant 0 : index
    %c0_21 = arith.constant 0 : index
    %c0_22 = arith.constant 0 : index
    %44 = vector.load %arg2[%c0_20, %c0_21, %c0_22] : memref<8x8x1xf32, #tpu.memory_space<vmem>>, vector<1x8x1xf32>
    %45 = vector.shape_cast %44 : vector<1x8x1xf32> to vector<8x1xf32>
    %c7_23 = arith.constant 7 : index
    %c0_24 = arith.constant 0 : index
    %c0_25 = arith.constant 0 : index
    %46 = vector.load %arg2[%c7_23, %c0_24, %c0_25] : memref<8x8x1xf32, #tpu.memory_space<vmem>>, vector<1x8x1xf32>
    %47 = vector.shape_cast %46 : vector<1x8x1xf32> to vector<8x1xf32>
    %48 = vector.extract_strided_slice %33 {offsets = [0, 32], sizes = [8, 32], strides = [1, 1]} : vector<8x96xf32> to vector<8x32xf32>
    %49 = arith.mulf %48, %12 : vector<8x32xf32>
    %50 = vector.extract_strided_slice %33 {offsets = [0, 0], sizes = [8, 32], strides = [1, 1]} : vector<8x96xf32> to vector<8x32xf32>
    %51 = arith.mulf %50, %35 : vector<8x32xf32>
    %52 = arith.addf %49, %51 : vector<8x32xf32>
    %53 = vector.broadcast %45 : vector<8x1xf32> to vector<8x32xf32>
    %54 = arith.mulf %52, %53 : vector<8x32xf32>
    %55 = vector.extract_strided_slice %41 {offsets = [0, 32], sizes = [8, 32], strides = [1, 1]} : vector<8x96xf32> to vector<8x32xf32>
    %56 = arith.mulf %55, %12 : vector<8x32xf32>
    %57 = vector.extract_strided_slice %41 {offsets = [0, 0], sizes = [8, 32], strides = [1, 1]} : vector<8x96xf32> to vector<8x32xf32>
    %58 = arith.mulf %57, %43 : vector<8x32xf32>
    %59 = arith.addf %56, %58 : vector<8x32xf32>
    %60 = vector.broadcast %47 : vector<8x1xf32> to vector<8x32xf32>
    %61 = arith.mulf %59, %60 : vector<8x32xf32>
    %62 = vector.extract_strided_slice %33 {offsets = [0, 64], sizes = [8, 32], strides = [1, 1]} : vector<8x96xf32> to vector<8x32xf32>
    %63 = math.tanh %54 : vector<8x32xf32>
    %64 = arith.mulf %62, %63 : vector<8x32xf32>
    %65 = vector.broadcast %45 : vector<8x1xf32> to vector<8x32xf32>
    %66 = arith.mulf %64, %65 : vector<8x32xf32>
    %67 = vector.extract_strided_slice %41 {offsets = [0, 64], sizes = [8, 32], strides = [1, 1]} : vector<8x96xf32> to vector<8x32xf32>
    %68 = math.tanh %61 : vector<8x32xf32>
    %69 = arith.mulf %67, %68 : vector<8x32xf32>
    %70 = vector.broadcast %47 : vector<8x1xf32> to vector<8x32xf32>
    %71 = arith.mulf %69, %70 : vector<8x32xf32>
    %c0_26 = arith.constant 0 : index
    %c0_27 = arith.constant 0 : index
    %c0_28 = arith.constant 0 : index
    %72 = vector.load %arg6[%c0_26, %c0_27, %c0_28] : memref<8x8x64xf32, #tpu.memory_space<vmem>>, vector<1x8x32xf32>
    %73 = vector.shape_cast %72 : vector<1x8x32xf32> to vector<8x32xf32>
    %74 = vector.shape_cast %66 : vector<8x32xf32> to vector<1x8x32xf32>
    tpu.vector_store %arg6[%c0_26, %c0_27, %c0_28], %74 {strides = array<i32>} : memref<8x8x64xf32, #tpu.memory_space<vmem>>, vector<1x8x32xf32>,
    %c7_29 = arith.constant 7 : index
    %c0_30 = arith.constant 0 : index
    %c32 = arith.constant 32 : index
    %75 = vector.load %arg6[%c7_29, %c0_30, %c32] : memref<8x8x64xf32, #tpu.memory_space<vmem>>, vector<1x8x32xf32>
    %76 = vector.shape_cast %75 : vector<1x8x32xf32> to vector<8x32xf32>
    %77 = vector.shape_cast %71 : vector<8x32xf32> to vector<1x8x32xf32>
    tpu.vector_store %arg6[%c7_29, %c0_30, %c32], %77 {strides = array<i32>} : memref<8x8x64xf32, #tpu.memory_space<vmem>>, vector<1x8x32xf32>,
    %78 = tpu.concatenate %66, %71 in 1 : vector<8x32xf32>, vector<8x32xf32> -> vector<8x64xf32>
    %79 = arith.truncf %78 : vector<8x64xf32> to vector<8x64xbf16>
    %cst_31 = arith.constant dense<0.000000e+00> : vector<8x256xf32>
    %80 = tpu.matmul %79, %11, %cst_31 {dimension_numbers = #tpu.dot_dimension_numbers<[1], [0], [0], [1], [0, 0, 1, 1], [], []>} : vector<8x64xbf16>, vector<64x256xbf16>, vector<8x256xf32> -> vector<8x256xf32>
    %c1 = arith.constant 1 : index
    %c0_32 = arith.constant 0 : index
    %c0_33 = arith.constant 0 : index
    %81 = vector.load %arg7[%c1, %c0_32, %c0_33] : memref<8x8x256xbf16, #tpu.memory_space<vmem>>, vector<1x8x256xbf16>
    %82 = vector.shape_cast %81 : vector<1x8x256xbf16> to vector<8x256xbf16>
    %83 = vector.extract_strided_slice %82 {offsets = [0, 0], sizes = [8, 128], strides = [1, 1]} : vector<8x256xbf16> to vector<8x128xbf16>
    %84 = arith.extf %83 : vector<8x128xbf16> to vector<8x128xf32>
    %85 = vector.extract_strided_slice %80 {offsets = [0, 0], sizes = [8, 128], strides = [1, 1]} : vector<8x256xf32> to vector<8x128xf32>
    %86 = arith.addf %84, %85 : vector<8x128xf32>
    %c6 = arith.constant 6 : index
    %c0_34 = arith.constant 0 : index
    %c0_35 = arith.constant 0 : index
    %87 = vector.load %arg7[%c6, %c0_34, %c0_35] : memref<8x8x256xbf16, #tpu.memory_space<vmem>>, vector<1x8x256xbf16>
    %88 = vector.shape_cast %87 : vector<1x8x256xbf16> to vector<8x256xbf16>
    %89 = vector.extract_strided_slice %88 {offsets = [0, 128], sizes = [8, 128], strides = [1, 1]} : vector<8x256xbf16> to vector<8x128xbf16>
    %90 = arith.extf %89 : vector<8x128xbf16> to vector<8x128xf32>
    %91 = vector.extract_strided_slice %80 {offsets = [0, 128], sizes = [8, 128], strides = [1, 1]} : vector<8x256xf32> to vector<8x128xf32>
    %92 = arith.addf %90, %91 : vector<8x128xf32>
    %93 = vector.extract_strided_slice %86 {offsets = [0, 0], sizes = [8, 96], strides = [1, 1]} : vector<8x128xf32> to vector<8x96xf32>
    %94 = arith.negf %93 : vector<8x96xf32>
    %95 = math.exp %94 : vector<8x96xf32>
    %cst_36 = arith.constant 1.000000e+00 : f32
    %96 = vector.broadcast %cst_36 : f32 to vector<8x96xf32>
    %97 = arith.addf %96, %95 : vector<8x96xf32>
    %98 = arith.divf %96, %97 : vector<8x96xf32>
    %99 = vector.extract_strided_slice %86 {offsets = [0, 96], sizes = [8, 32], strides = [1, 1]} : vector<8x128xf32> to vector<8x32xf32>
    %100 = math.tanh %99 : vector<8x32xf32>
    %101 = vector.extract_strided_slice %92 {offsets = [0, 0], sizes = [8, 96], strides = [1, 1]} : vector<8x128xf32> to vector<8x96xf32>
    %102 = arith.negf %101 : vector<8x96xf32>
    %103 = math.exp %102 : vector<8x96xf32>
    %cst_37 = arith.constant 1.000000e+00 : f32
    %104 = vector.broadcast %cst_37 : f32 to vector<8x96xf32>
    %105 = arith.addf %104, %103 : vector<8x96xf32>
    %106 = arith.divf %104, %105 : vector<8x96xf32>
    %107 = vector.extract_strided_slice %92 {offsets = [0, 96], sizes = [8, 32], strides = [1, 1]} : vector<8x128xf32> to vector<8x32xf32>
    %108 = math.tanh %107 : vector<8x32xf32>
    %c1_38 = arith.constant 1 : index
    %c0_39 = arith.constant 0 : index
    %c0_40 = arith.constant 0 : index
    %109 = vector.load %arg2[%c1_38, %c0_39, %c0_40] : memref<8x8x1xf32, #tpu.memory_space<vmem>>, vector<1x8x1xf32>
    %110 = vector.shape_cast %109 : vector<1x8x1xf32> to vector<8x1xf32>
    %c6_41 = arith.constant 6 : index
    %c0_42 = arith.constant 0 : index
    %c0_43 = arith.constant 0 : index
    %111 = vector.load %arg2[%c6_41, %c0_42, %c0_43] : memref<8x8x1xf32, #tpu.memory_space<vmem>>, vector<1x8x1xf32>
    %112 = vector.shape_cast %111 : vector<1x8x1xf32> to vector<8x1xf32>
    %113 = vector.extract_strided_slice %98 {offsets = [0, 32], sizes = [8, 32], strides = [1, 1]} : vector<8x96xf32> to vector<8x32xf32>
    %114 = arith.mulf %113, %54 : vector<8x32xf32>
    %115 = vector.extract_strided_slice %98 {offsets = [0, 0], sizes = [8, 32], strides = [1, 1]} : vector<8x96xf32> to vector<8x32xf32>
    %116 = arith.mulf %115, %100 : vector<8x32xf32>
    %117 = arith.addf %114, %116 : vector<8x32xf32>
    %118 = vector.broadcast %110 : vector<8x1xf32> to vector<8x32xf32>
    %119 = arith.mulf %117, %118 : vector<8x32xf32>
    %120 = vector.extract_strided_slice %106 {offsets = [0, 32], sizes = [8, 32], strides = [1, 1]} : vector<8x96xf32> to vector<8x32xf32>
    %121 = arith.mulf %120, %61 : vector<8x32xf32>
    %122 = vector.extract_strided_slice %106 {offsets = [0, 0], sizes = [8, 32], strides = [1, 1]} : vector<8x96xf32> to vector<8x32xf32>
    %123 = arith.mulf %122, %108 : vector<8x32xf32>
    %124 = arith.addf %121, %123 : vector<8x32xf32>
    %125 = vector.broadcast %112 : vector<8x1xf32> to vector<8x32xf32>
    %126 = arith.mulf %124, %125 : vector<8x32xf32>
    %127 = vector.extract_strided_slice %98 {offsets = [0, 64], sizes = [8, 32], strides = [1, 1]} : vector<8x96xf32> to vector<8x32xf32>
    %128 = math.tanh %119 : vector<8x32xf32>
    %129 = arith.mulf %127, %128 : vector<8x32xf32>
    %130 = vector.broadcast %110 : vector<8x1xf32> to vector<8x32xf32>
    %131 = arith.mulf %129, %130 : vector<8x32xf32>
    %132 = vector.extract_strided_slice %106 {offsets = [0, 64], sizes = [8, 32], strides = [1, 1]} : vector<8x96xf32> to vector<8x32xf32>
    %133 = math.tanh %126 : vector<8x32xf32>
    %134 = arith.mulf %132, %133 : vector<8x32xf32>
    %135 = vector.broadcast %112 : vector<8x1xf32> to vector<8x32xf32>
    %136 = arith.mulf %134, %135 : vector<8x32xf32>
    %c1_44 = arith.constant 1 : index
    %c0_45 = arith.constant 0 : index
    %c0_46 = arith.constant 0 : index
    %137 = vector.load %arg6[%c1_44, %c0_45, %c0_46] : memref<8x8x64xf32, #tpu.memory_space<vmem>>, vector<1x8x32xf32>
    %138 = vector.shape_cast %137 : vector<1x8x32xf32> to vector<8x32xf32>
    %139 = vector.shape_cast %131 : vector<8x32xf32> to vector<1x8x32xf32>
    tpu.vector_store %arg6[%c1_44, %c0_45, %c0_46], %139 {strides = array<i32>} : memref<8x8x64xf32, #tpu.memory_space<vmem>>, vector<1x8x32xf32>,
    %c6_47 = arith.constant 6 : index
    %c0_48 = arith.constant 0 : index
    %c32_49 = arith.constant 32 : index
    %140 = vector.load %arg6[%c6_47, %c0_48, %c32_49] : memref<8x8x64xf32, #tpu.memory_space<vmem>>, vector<1x8x32xf32>
    %141 = vector.shape_cast %140 : vector<1x8x32xf32> to vector<8x32xf32>
    %142 = vector.shape_cast %136 : vector<8x32xf32> to vector<1x8x32xf32>
    tpu.vector_store %arg6[%c6_47, %c0_48, %c32_49], %142 {strides = array<i32>} : memref<8x8x64xf32, #tpu.memory_space<vmem>>, vector<1x8x32xf32>,
    %143 = tpu.concatenate %131, %136 in 1 : vector<8x32xf32>, vector<8x32xf32> -> vector<8x64xf32>
    %144 = arith.truncf %143 : vector<8x64xf32> to vector<8x64xbf16>
    %cst_50 = arith.constant dense<0.000000e+00> : vector<8x256xf32>
    %145 = tpu.matmul %144, %11, %cst_50 {dimension_numbers = #tpu.dot_dimension_numbers<[1], [0], [0], [1], [0, 0, 1, 1], [], []>} : vector<8x64xbf16>, vector<64x256xbf16>, vector<8x256xf32> -> vector<8x256xf32>
    %c2 = arith.constant 2 : index
    %c0_51 = arith.constant 0 : index
    %c0_52 = arith.constant 0 : index
    %146 = vector.load %arg7[%c2, %c0_51, %c0_52] : memref<8x8x256xbf16, #tpu.memory_space<vmem>>, vector<1x8x256xbf16>
    %147 = vector.shape_cast %146 : vector<1x8x256xbf16> to vector<8x256xbf16>
    %148 = vector.extract_strided_slice %147 {offsets = [0, 0], sizes = [8, 128], strides = [1, 1]} : vector<8x256xbf16> to vector<8x128xbf16>
    %149 = arith.extf %148 : vector<8x128xbf16> to vector<8x128xf32>
    %150 = vector.extract_strided_slice %145 {offsets = [0, 0], sizes = [8, 128], strides = [1, 1]} : vector<8x256xf32> to vector<8x128xf32>
    %151 = arith.addf %149, %150 : vector<8x128xf32>
    %c5 = arith.constant 5 : index
    %c0_53 = arith.constant 0 : index
    %c0_54 = arith.constant 0 : index
    %152 = vector.load %arg7[%c5, %c0_53, %c0_54] : memref<8x8x256xbf16, #tpu.memory_space<vmem>>, vector<1x8x256xbf16>
    %153 = vector.shape_cast %152 : vector<1x8x256xbf16> to vector<8x256xbf16>
    %154 = vector.extract_strided_slice %153 {offsets = [0, 128], sizes = [8, 128], strides = [1, 1]} : vector<8x256xbf16> to vector<8x128xbf16>
    %155 = arith.extf %154 : vector<8x128xbf16> to vector<8x128xf32>
    %156 = vector.extract_strided_slice %145 {offsets = [0, 128], sizes = [8, 128], strides = [1, 1]} : vector<8x256xf32> to vector<8x128xf32>
    %157 = arith.addf %155, %156 : vector<8x128xf32>
    %158 = vector.extract_strided_slice %151 {offsets = [0, 0], sizes = [8, 96], strides = [1, 1]} : vector<8x128xf32> to vector<8x96xf32>
    %159 = arith.negf %158 : vector<8x96xf32>
    %160 = math.exp %159 : vector<8x96xf32>
    %cst_55 = arith.constant 1.000000e+00 : f32
    %161 = vector.broadcast %cst_55 : f32 to vector<8x96xf32>
    %162 = arith.addf %161, %160 : vector<8x96xf32>
    %163 = arith.divf %161, %162 : vector<8x96xf32>
    %164 = vector.extract_strided_slice %151 {offsets = [0, 96], sizes = [8, 32], strides = [1, 1]} : vector<8x128xf32> to vector<8x32xf32>
    %165 = math.tanh %164 : vector<8x32xf32>
    %166 = vector.extract_strided_slice %157 {offsets = [0, 0], sizes = [8, 96], strides = [1, 1]} : vector<8x128xf32> to vector<8x96xf32>
    %167 = arith.negf %166 : vector<8x96xf32>
    %168 = math.exp %167 : vector<8x96xf32>
    %cst_56 = arith.constant 1.000000e+00 : f32
    %169 = vector.broadcast %cst_56 : f32 to vector<8x96xf32>
    %170 = arith.addf %169, %168 : vector<8x96xf32>
    %171 = arith.divf %169, %170 : vector<8x96xf32>
    %172 = vector.extract_strided_slice %157 {offsets = [0, 96], sizes = [8, 32], strides = [1, 1]} : vector<8x128xf32> to vector<8x32xf32>
    %173 = math.tanh %172 : vector<8x32xf32>
    %c2_57 = arith.constant 2 : index
    %c0_58 = arith.constant 0 : index
    %c0_59 = arith.constant 0 : index
    %174 = vector.load %arg2[%c2_57, %c0_58, %c0_59] : memref<8x8x1xf32, #tpu.memory_space<vmem>>, vector<1x8x1xf32>
    %175 = vector.shape_cast %174 : vector<1x8x1xf32> to vector<8x1xf32>
    %c5_60 = arith.constant 5 : index
    %c0_61 = arith.constant 0 : index
    %c0_62 = arith.constant 0 : index
    %176 = vector.load %arg2[%c5_60, %c0_61, %c0_62] : memref<8x8x1xf32, #tpu.memory_space<vmem>>, vector<1x8x1xf32>
    %177 = vector.shape_cast %176 : vector<1x8x1xf32> to vector<8x1xf32>
    %178 = vector.extract_strided_slice %163 {offsets = [0, 32], sizes = [8, 32], strides = [1, 1]} : vector<8x96xf32> to vector<8x32xf32>
    %179 = arith.mulf %178, %119 : vector<8x32xf32>
    %180 = vector.extract_strided_slice %163 {offsets = [0, 0], sizes = [8, 32], strides = [1, 1]} : vector<8x96xf32> to vector<8x32xf32>
    %181 = arith.mulf %180, %165 : vector<8x32xf32>
    %182 = arith.addf %179, %181 : vector<8x32xf32>
    %183 = vector.broadcast %175 : vector<8x1xf32> to vector<8x32xf32>
    %184 = arith.mulf %182, %183 : vector<8x32xf32>
    %185 = vector.extract_strided_slice %171 {offsets = [0, 32], sizes = [8, 32], strides = [1, 1]} : vector<8x96xf32> to vector<8x32xf32>
    %186 = arith.mulf %185, %126 : vector<8x32xf32>
    %187 = vector.extract_strided_slice %171 {offsets = [0, 0], sizes = [8, 32], strides = [1, 1]} : vector<8x96xf32> to vector<8x32xf32>
    %188 = arith.mulf %187, %173 : vector<8x32xf32>
    %189 = arith.addf %186, %188 : vector<8x32xf32>
    %190 = vector.broadcast %177 : vector<8x1xf32> to vector<8x32xf32>
    %191 = arith.mulf %189, %190 : vector<8x32xf32>
    %192 = vector.extract_strided_slice %163 {offsets = [0, 64], sizes = [8, 32], strides = [1, 1]} : vector<8x96xf32> to vector<8x32xf32>
    %193 = math.tanh %184 : vector<8x32xf32>
    %194 = arith.mulf %192, %193 : vector<8x32xf32>
    %195 = vector.broadcast %175 : vector<8x1xf32> to vector<8x32xf32>
    %196 = arith.mulf %194, %195 : vector<8x32xf32>
    %197 = vector.extract_strided_slice %171 {offsets = [0, 64], sizes = [8, 32], strides = [1, 1]} : vector<8x96xf32> to vector<8x32xf32>
    %198 = math.tanh %191 : vector<8x32xf32>
    %199 = arith.mulf %197, %198 : vector<8x32xf32>
    %200 = vector.broadcast %177 : vector<8x1xf32> to vector<8x32xf32>
    %201 = arith.mulf %199, %200 : vector<8x32xf32>
    %c2_63 = arith.constant 2 : index
    %c0_64 = arith.constant 0 : index
    %c0_65 = arith.constant 0 : index
    %202 = vector.load %arg6[%c2_63, %c0_64, %c0_65] : memref<8x8x64xf32, #tpu.memory_space<vmem>>, vector<1x8x32xf32>
    %203 = vector.shape_cast %202 : vector<1x8x32xf32> to vector<8x32xf32>
    %204 = vector.shape_cast %196 : vector<8x32xf32> to vector<1x8x32xf32>
    tpu.vector_store %arg6[%c2_63, %c0_64, %c0_65], %204 {strides = array<i32>} : memref<8x8x64xf32, #tpu.memory_space<vmem>>, vector<1x8x32xf32>,
    %c5_66 = arith.constant 5 : index
    %c0_67 = arith.constant 0 : index
    %c32_68 = arith.constant 32 : index
    %205 = vector.load %arg6[%c5_66, %c0_67, %c32_68] : memref<8x8x64xf32, #tpu.memory_space<vmem>>, vector<1x8x32xf32>
    %206 = vector.shape_cast %205 : vector<1x8x32xf32> to vector<8x32xf32>
    %207 = vector.shape_cast %201 : vector<8x32xf32> to vector<1x8x32xf32>
    tpu.vector_store %arg6[%c5_66, %c0_67, %c32_68], %207 {strides = array<i32>} : memref<8x8x64xf32, #tpu.memory_space<vmem>>, vector<1x8x32xf32>,
    %208 = tpu.concatenate %196, %201 in 1 : vector<8x32xf32>, vector<8x32xf32> -> vector<8x64xf32>
    %209 = arith.truncf %208 : vector<8x64xf32> to vector<8x64xbf16>
    %cst_69 = arith.constant dense<0.000000e+00> : vector<8x256xf32>
    %210 = tpu.matmul %209, %11, %cst_69 {dimension_numbers = #tpu.dot_dimension_numbers<[1], [0], [0], [1], [0, 0, 1, 1], [], []>} : vector<8x64xbf16>, vector<64x256xbf16>, vector<8x256xf32> -> vector<8x256xf32>
    %c3 = arith.constant 3 : index
    %c0_70 = arith.constant 0 : index
    %c0_71 = arith.constant 0 : index
    %211 = vector.load %arg7[%c3, %c0_70, %c0_71] : memref<8x8x256xbf16, #tpu.memory_space<vmem>>, vector<1x8x256xbf16>
    %212 = vector.shape_cast %211 : vector<1x8x256xbf16> to vector<8x256xbf16>
    %213 = vector.extract_strided_slice %212 {offsets = [0, 0], sizes = [8, 128], strides = [1, 1]} : vector<8x256xbf16> to vector<8x128xbf16>
    %214 = arith.extf %213 : vector<8x128xbf16> to vector<8x128xf32>
    %215 = vector.extract_strided_slice %210 {offsets = [0, 0], sizes = [8, 128], strides = [1, 1]} : vector<8x256xf32> to vector<8x128xf32>
    %216 = arith.addf %214, %215 : vector<8x128xf32>
    %c4 = arith.constant 4 : index
    %c0_72 = arith.constant 0 : index
    %c0_73 = arith.constant 0 : index
    %217 = vector.load %arg7[%c4, %c0_72, %c0_73] : memref<8x8x256xbf16, #tpu.memory_space<vmem>>, vector<1x8x256xbf16>
    %218 = vector.shape_cast %217 : vector<1x8x256xbf16> to vector<8x256xbf16>
    %219 = vector.extract_strided_slice %218 {offsets = [0, 128], sizes = [8, 128], strides = [1, 1]} : vector<8x256xbf16> to vector<8x128xbf16>
    %220 = arith.extf %219 : vector<8x128xbf16> to vector<8x128xf32>
    %221 = vector.extract_strided_slice %210 {offsets = [0, 128], sizes = [8, 128], strides = [1, 1]} : vector<8x256xf32> to vector<8x128xf32>
    %222 = arith.addf %220, %221 : vector<8x128xf32>
    %223 = vector.extract_strided_slice %216 {offsets = [0, 0], sizes = [8, 96], strides = [1, 1]} : vector<8x128xf32> to vector<8x96xf32>
    %224 = arith.negf %223 : vector<8x96xf32>
    %225 = math.exp %224 : vector<8x96xf32>
    %cst_74 = arith.constant 1.000000e+00 : f32
    %226 = vector.broadcast %cst_74 : f32 to vector<8x96xf32>
    %227 = arith.addf %226, %225 : vector<8x96xf32>
    %228 = arith.divf %226, %227 : vector<8x96xf32>
    %229 = vector.extract_strided_slice %216 {offsets = [0, 96], sizes = [8, 32], strides = [1, 1]} : vector<8x128xf32> to vector<8x32xf32>
    %230 = math.tanh %229 : vector<8x32xf32>
    %231 = vector.extract_strided_slice %222 {offsets = [0, 0], sizes = [8, 96], strides = [1, 1]} : vector<8x128xf32> to vector<8x96xf32>
    %232 = arith.negf %231 : vector<8x96xf32>
    %233 = math.exp %232 : vector<8x96xf32>
    %cst_75 = arith.constant 1.000000e+00 : f32
    %234 = vector.broadcast %cst_75 : f32 to vector<8x96xf32>
    %235 = arith.addf %234, %233 : vector<8x96xf32>
    %236 = arith.divf %234, %235 : vector<8x96xf32>
    %237 = vector.extract_strided_slice %222 {offsets = [0, 96], sizes = [8, 32], strides = [1, 1]} : vector<8x128xf32> to vector<8x32xf32>
    %238 = math.tanh %237 : vector<8x32xf32>
    %c3_76 = arith.constant 3 : index
    %c0_77 = arith.constant 0 : index
    %c0_78 = arith.constant 0 : index
    %239 = vector.load %arg2[%c3_76, %c0_77, %c0_78] : memref<8x8x1xf32, #tpu.memory_space<vmem>>, vector<1x8x1xf32>
    %240 = vector.shape_cast %239 : vector<1x8x1xf32> to vector<8x1xf32>
    %c4_79 = arith.constant 4 : index
    %c0_80 = arith.constant 0 : index
    %c0_81 = arith.constant 0 : index
    %241 = vector.load %arg2[%c4_79, %c0_80, %c0_81] : memref<8x8x1xf32, #tpu.memory_space<vmem>>, vector<1x8x1xf32>
    %242 = vector.shape_cast %241 : vector<1x8x1xf32> to vector<8x1xf32>
    %243 = vector.extract_strided_slice %228 {offsets = [0, 32], sizes = [8, 32], strides = [1, 1]} : vector<8x96xf32> to vector<8x32xf32>
    %244 = arith.mulf %243, %184 : vector<8x32xf32>
    %245 = vector.extract_strided_slice %228 {offsets = [0, 0], sizes = [8, 32], strides = [1, 1]} : vector<8x96xf32> to vector<8x32xf32>
    %246 = arith.mulf %245, %230 : vector<8x32xf32>
    %247 = arith.addf %244, %246 : vector<8x32xf32>
    %248 = vector.broadcast %240 : vector<8x1xf32> to vector<8x32xf32>
    %249 = arith.mulf %247, %248 : vector<8x32xf32>
    %250 = vector.extract_strided_slice %236 {offsets = [0, 32], sizes = [8, 32], strides = [1, 1]} : vector<8x96xf32> to vector<8x32xf32>
    %251 = arith.mulf %250, %191 : vector<8x32xf32>
    %252 = vector.extract_strided_slice %236 {offsets = [0, 0], sizes = [8, 32], strides = [1, 1]} : vector<8x96xf32> to vector<8x32xf32>
    %253 = arith.mulf %252, %238 : vector<8x32xf32>
    %254 = arith.addf %251, %253 : vector<8x32xf32>
    %255 = vector.broadcast %242 : vector<8x1xf32> to vector<8x32xf32>
    %256 = arith.mulf %254, %255 : vector<8x32xf32>
    %257 = vector.extract_strided_slice %228 {offsets = [0, 64], sizes = [8, 32], strides = [1, 1]} : vector<8x96xf32> to vector<8x32xf32>
    %258 = math.tanh %249 : vector<8x32xf32>
    %259 = arith.mulf %257, %258 : vector<8x32xf32>
    %260 = vector.broadcast %240 : vector<8x1xf32> to vector<8x32xf32>
    %261 = arith.mulf %259, %260 : vector<8x32xf32>
    %262 = vector.extract_strided_slice %236 {offsets = [0, 64], sizes = [8, 32], strides = [1, 1]} : vector<8x96xf32> to vector<8x32xf32>
    %263 = math.tanh %256 : vector<8x32xf32>
    %264 = arith.mulf %262, %263 : vector<8x32xf32>
    %265 = vector.broadcast %242 : vector<8x1xf32> to vector<8x32xf32>
    %266 = arith.mulf %264, %265 : vector<8x32xf32>
    %c3_82 = arith.constant 3 : index
    %c0_83 = arith.constant 0 : index
    %c0_84 = arith.constant 0 : index
    %267 = vector.load %arg6[%c3_82, %c0_83, %c0_84] : memref<8x8x64xf32, #tpu.memory_space<vmem>>, vector<1x8x32xf32>
    %268 = vector.shape_cast %267 : vector<1x8x32xf32> to vector<8x32xf32>
    %269 = vector.shape_cast %261 : vector<8x32xf32> to vector<1x8x32xf32>
    tpu.vector_store %arg6[%c3_82, %c0_83, %c0_84], %269 {strides = array<i32>} : memref<8x8x64xf32, #tpu.memory_space<vmem>>, vector<1x8x32xf32>,
    %c4_85 = arith.constant 4 : index
    %c0_86 = arith.constant 0 : index
    %c32_87 = arith.constant 32 : index
    %270 = vector.load %arg6[%c4_85, %c0_86, %c32_87] : memref<8x8x64xf32, #tpu.memory_space<vmem>>, vector<1x8x32xf32>
    %271 = vector.shape_cast %270 : vector<1x8x32xf32> to vector<8x32xf32>
    %272 = vector.shape_cast %266 : vector<8x32xf32> to vector<1x8x32xf32>
    tpu.vector_store %arg6[%c4_85, %c0_86, %c32_87], %272 {strides = array<i32>} : memref<8x8x64xf32, #tpu.memory_space<vmem>>, vector<1x8x32xf32>,
    %273 = tpu.concatenate %261, %266 in 1 : vector<8x32xf32>, vector<8x32xf32> -> vector<8x64xf32>
    %274 = arith.truncf %273 : vector<8x64xf32> to vector<8x64xbf16>
    %cst_88 = arith.constant dense<0.000000e+00> : vector<8x256xf32>
    %275 = tpu.matmul %274, %11, %cst_88 {dimension_numbers = #tpu.dot_dimension_numbers<[1], [0], [0], [1], [0, 0, 1, 1], [], []>} : vector<8x64xbf16>, vector<64x256xbf16>, vector<8x256xf32> -> vector<8x256xf32>
    %c4_89 = arith.constant 4 : index
    %c0_90 = arith.constant 0 : index
    %c0_91 = arith.constant 0 : index
    %276 = vector.load %arg7[%c4_89, %c0_90, %c0_91] : memref<8x8x256xbf16, #tpu.memory_space<vmem>>, vector<1x8x256xbf16>
    %277 = vector.shape_cast %276 : vector<1x8x256xbf16> to vector<8x256xbf16>
    %278 = vector.extract_strided_slice %277 {offsets = [0, 0], sizes = [8, 128], strides = [1, 1]} : vector<8x256xbf16> to vector<8x128xbf16>
    %279 = arith.extf %278 : vector<8x128xbf16> to vector<8x128xf32>
    %280 = vector.extract_strided_slice %275 {offsets = [0, 0], sizes = [8, 128], strides = [1, 1]} : vector<8x256xf32> to vector<8x128xf32>
    %281 = arith.addf %279, %280 : vector<8x128xf32>
    %c3_92 = arith.constant 3 : index
    %c0_93 = arith.constant 0 : index
    %c0_94 = arith.constant 0 : index
    %282 = vector.load %arg7[%c3_92, %c0_93, %c0_94] : memref<8x8x256xbf16, #tpu.memory_space<vmem>>, vector<1x8x256xbf16>
    %283 = vector.shape_cast %282 : vector<1x8x256xbf16> to vector<8x256xbf16>
    %284 = vector.extract_strided_slice %283 {offsets = [0, 128], sizes = [8, 128], strides = [1, 1]} : vector<8x256xbf16> to vector<8x128xbf16>
    %285 = arith.extf %284 : vector<8x128xbf16> to vector<8x128xf32>
    %286 = vector.extract_strided_slice %275 {offsets = [0, 128], sizes = [8, 128], strides = [1, 1]} : vector<8x256xf32> to vector<8x128xf32>
    %287 = arith.addf %285, %286 : vector<8x128xf32>
    %288 = vector.extract_strided_slice %281 {offsets = [0, 0], sizes = [8, 96], strides = [1, 1]} : vector<8x128xf32> to vector<8x96xf32>
    %289 = arith.negf %288 : vector<8x96xf32>
    %290 = math.exp %289 : vector<8x96xf32>
    %cst_95 = arith.constant 1.000000e+00 : f32
    %291 = vector.broadcast %cst_95 : f32 to vector<8x96xf32>
    %292 = arith.addf %291, %290 : vector<8x96xf32>
    %293 = arith.divf %291, %292 : vector<8x96xf32>
    %294 = vector.extract_strided_slice %281 {offsets = [0, 96], sizes = [8, 32], strides = [1, 1]} : vector<8x128xf32> to vector<8x32xf32>
    %295 = math.tanh %294 : vector<8x32xf32>
    %296 = vector.extract_strided_slice %287 {offsets = [0, 0], sizes = [8, 96], strides = [1, 1]} : vector<8x128xf32> to vector<8x96xf32>
    %297 = arith.negf %296 : vector<8x96xf32>
    %298 = math.exp %297 : vector<8x96xf32>
    %cst_96 = arith.constant 1.000000e+00 : f32
    %299 = vector.broadcast %cst_96 : f32 to vector<8x96xf32>
    %300 = arith.addf %299, %298 : vector<8x96xf32>
    %301 = arith.divf %299, %300 : vector<8x96xf32>
    %302 = vector.extract_strided_slice %287 {offsets = [0, 96], sizes = [8, 32], strides = [1, 1]} : vector<8x128xf32> to vector<8x32xf32>
    %303 = math.tanh %302 : vector<8x32xf32>
    %c4_97 = arith.constant 4 : index
    %c0_98 = arith.constant 0 : index
    %c0_99 = arith.constant 0 : index
    %304 = vector.load %arg2[%c4_97, %c0_98, %c0_99] : memref<8x8x1xf32, #tpu.memory_space<vmem>>, vector<1x8x1xf32>
    %305 = vector.shape_cast %304 : vector<1x8x1xf32> to vector<8x1xf32>
    %c3_100 = arith.constant 3 : index
    %c0_101 = arith.constant 0 : index
    %c0_102 = arith.constant 0 : index
    %306 = vector.load %arg2[%c3_100, %c0_101, %c0_102] : memref<8x8x1xf32, #tpu.memory_space<vmem>>, vector<1x8x1xf32>
    %307 = vector.shape_cast %306 : vector<1x8x1xf32> to vector<8x1xf32>
    %308 = vector.extract_strided_slice %293 {offsets = [0, 32], sizes = [8, 32], strides = [1, 1]} : vector<8x96xf32> to vector<8x32xf32>
    %309 = arith.mulf %308, %249 : vector<8x32xf32>
    %310 = vector.extract_strided_slice %293 {offsets = [0, 0], sizes = [8, 32], strides = [1, 1]} : vector<8x96xf32> to vector<8x32xf32>
    %311 = arith.mulf %310, %295 : vector<8x32xf32>
    %312 = arith.addf %309, %311 : vector<8x32xf32>
    %313 = vector.broadcast %305 : vector<8x1xf32> to vector<8x32xf32>
    %314 = arith.mulf %312, %313 : vector<8x32xf32>
    %315 = vector.extract_strided_slice %301 {offsets = [0, 32], sizes = [8, 32], strides = [1, 1]} : vector<8x96xf32> to vector<8x32xf32>
    %316 = arith.mulf %315, %256 : vector<8x32xf32>
    %317 = vector.extract_strided_slice %301 {offsets = [0, 0], sizes = [8, 32], strides = [1, 1]} : vector<8x96xf32> to vector<8x32xf32>
    %318 = arith.mulf %317, %303 : vector<8x32xf32>
    %319 = arith.addf %316, %318 : vector<8x32xf32>
    %320 = vector.broadcast %307 : vector<8x1xf32> to vector<8x32xf32>
    %321 = arith.mulf %319, %320 : vector<8x32xf32>
    %322 = vector.extract_strided_slice %293 {offsets = [0, 64], sizes = [8, 32], strides = [1, 1]} : vector<8x96xf32> to vector<8x32xf32>
    %323 = math.tanh %314 : vector<8x32xf32>
    %324 = arith.mulf %322, %323 : vector<8x32xf32>
    %325 = vector.broadcast %305 : vector<8x1xf32> to vector<8x32xf32>
    %326 = arith.mulf %324, %325 : vector<8x32xf32>
    %327 = vector.extract_strided_slice %301 {offsets = [0, 64], sizes = [8, 32], strides = [1, 1]} : vector<8x96xf32> to vector<8x32xf32>
    %328 = math.tanh %321 : vector<8x32xf32>
    %329 = arith.mulf %327, %328 : vector<8x32xf32>
    %330 = vector.broadcast %307 : vector<8x1xf32> to vector<8x32xf32>
    %331 = arith.mulf %329, %330 : vector<8x32xf32>
    %c4_103 = arith.constant 4 : index
    %c0_104 = arith.constant 0 : index
    %c0_105 = arith.constant 0 : index
    %332 = vector.load %arg6[%c4_103, %c0_104, %c0_105] : memref<8x8x64xf32, #tpu.memory_space<vmem>>, vector<1x8x32xf32>
    %333 = vector.shape_cast %332 : vector<1x8x32xf32> to vector<8x32xf32>
    %334 = vector.shape_cast %326 : vector<8x32xf32> to vector<1x8x32xf32>
    tpu.vector_store %arg6[%c4_103, %c0_104, %c0_105], %334 {strides = array<i32>} : memref<8x8x64xf32, #tpu.memory_space<vmem>>, vector<1x8x32xf32>,
    %c3_106 = arith.constant 3 : index
    %c0_107 = arith.constant 0 : index
    %c32_108 = arith.constant 32 : index
    %335 = vector.load %arg6[%c3_106, %c0_107, %c32_108] : memref<8x8x64xf32, #tpu.memory_space<vmem>>, vector<1x8x32xf32>
    %336 = vector.shape_cast %335 : vector<1x8x32xf32> to vector<8x32xf32>
    %337 = vector.shape_cast %331 : vector<8x32xf32> to vector<1x8x32xf32>
    tpu.vector_store %arg6[%c3_106, %c0_107, %c32_108], %337 {strides = array<i32>} : memref<8x8x64xf32, #tpu.memory_space<vmem>>, vector<1x8x32xf32>,
    %338 = tpu.concatenate %326, %331 in 1 : vector<8x32xf32>, vector<8x32xf32> -> vector<8x64xf32>
    %339 = arith.truncf %338 : vector<8x64xf32> to vector<8x64xbf16>
    %cst_109 = arith.constant dense<0.000000e+00> : vector<8x256xf32>
    %340 = tpu.matmul %339, %11, %cst_109 {dimension_numbers = #tpu.dot_dimension_numbers<[1], [0], [0], [1], [0, 0, 1, 1], [], []>} : vector<8x64xbf16>, vector<64x256xbf16>, vector<8x256xf32> -> vector<8x256xf32>
    %c5_110 = arith.constant 5 : index
    %c0_111 = arith.constant 0 : index
    %c0_112 = arith.constant 0 : index
    %341 = vector.load %arg7[%c5_110, %c0_111, %c0_112] : memref<8x8x256xbf16, #tpu.memory_space<vmem>>, vector<1x8x256xbf16>
    %342 = vector.shape_cast %341 : vector<1x8x256xbf16> to vector<8x256xbf16>
    %343 = vector.extract_strided_slice %342 {offsets = [0, 0], sizes = [8, 128], strides = [1, 1]} : vector<8x256xbf16> to vector<8x128xbf16>
    %344 = arith.extf %343 : vector<8x128xbf16> to vector<8x128xf32>
    %345 = vector.extract_strided_slice %340 {offsets = [0, 0], sizes = [8, 128], strides = [1, 1]} : vector<8x256xf32> to vector<8x128xf32>
    %346 = arith.addf %344, %345 : vector<8x128xf32>
    %c2_113 = arith.constant 2 : index
    %c0_114 = arith.constant 0 : index
    %c0_115 = arith.constant 0 : index
    %347 = vector.load %arg7[%c2_113, %c0_114, %c0_115] : memref<8x8x256xbf16, #tpu.memory_space<vmem>>, vector<1x8x256xbf16>
    %348 = vector.shape_cast %347 : vector<1x8x256xbf16> to vector<8x256xbf16>
    %349 = vector.extract_strided_slice %348 {offsets = [0, 128], sizes = [8, 128], strides = [1, 1]} : vector<8x256xbf16> to vector<8x128xbf16>
    %350 = arith.extf %349 : vector<8x128xbf16> to vector<8x128xf32>
    %351 = vector.extract_strided_slice %340 {offsets = [0, 128], sizes = [8, 128], strides = [1, 1]} : vector<8x256xf32> to vector<8x128xf32>
    %352 = arith.addf %350, %351 : vector<8x128xf32>
    %353 = vector.extract_strided_slice %346 {offsets = [0, 0], sizes = [8, 96], strides = [1, 1]} : vector<8x128xf32> to vector<8x96xf32>
    %354 = arith.negf %353 : vector<8x96xf32>
    %355 = math.exp %354 : vector<8x96xf32>
    %cst_116 = arith.constant 1.000000e+00 : f32
    %356 = vector.broadcast %cst_116 : f32 to vector<8x96xf32>
    %357 = arith.addf %356, %355 : vector<8x96xf32>
    %358 = arith.divf %356, %357 : vector<8x96xf32>
    %359 = vector.extract_strided_slice %346 {offsets = [0, 96], sizes = [8, 32], strides = [1, 1]} : vector<8x128xf32> to vector<8x32xf32>
    %360 = math.tanh %359 : vector<8x32xf32>
    %361 = vector.extract_strided_slice %352 {offsets = [0, 0], sizes = [8, 96], strides = [1, 1]} : vector<8x128xf32> to vector<8x96xf32>
    %362 = arith.negf %361 : vector<8x96xf32>
    %363 = math.exp %362 : vector<8x96xf32>
    %cst_117 = arith.constant 1.000000e+00 : f32
    %364 = vector.broadcast %cst_117 : f32 to vector<8x96xf32>
    %365 = arith.addf %364, %363 : vector<8x96xf32>
    %366 = arith.divf %364, %365 : vector<8x96xf32>
    %367 = vector.extract_strided_slice %352 {offsets = [0, 96], sizes = [8, 32], strides = [1, 1]} : vector<8x128xf32> to vector<8x32xf32>
    %368 = math.tanh %367 : vector<8x32xf32>
    %c5_118 = arith.constant 5 : index
    %c0_119 = arith.constant 0 : index
    %c0_120 = arith.constant 0 : index
    %369 = vector.load %arg2[%c5_118, %c0_119, %c0_120] : memref<8x8x1xf32, #tpu.memory_space<vmem>>, vector<1x8x1xf32>
    %370 = vector.shape_cast %369 : vector<1x8x1xf32> to vector<8x1xf32>
    %c2_121 = arith.constant 2 : index
    %c0_122 = arith.constant 0 : index
    %c0_123 = arith.constant 0 : index
    %371 = vector.load %arg2[%c2_121, %c0_122, %c0_123] : memref<8x8x1xf32, #tpu.memory_space<vmem>>, vector<1x8x1xf32>
    %372 = vector.shape_cast %371 : vector<1x8x1xf32> to vector<8x1xf32>
    %373 = vector.extract_strided_slice %358 {offsets = [0, 32], sizes = [8, 32], strides = [1, 1]} : vector<8x96xf32> to vector<8x32xf32>
    %374 = arith.mulf %373, %314 : vector<8x32xf32>
    %375 = vector.extract_strided_slice %358 {offsets = [0, 0], sizes = [8, 32], strides = [1, 1]} : vector<8x96xf32> to vector<8x32xf32>
    %376 = arith.mulf %375, %360 : vector<8x32xf32>
    %377 = arith.addf %374, %376 : vector<8x32xf32>
    %378 = vector.broadcast %370 : vector<8x1xf32> to vector<8x32xf32>
    %379 = arith.mulf %377, %378 : vector<8x32xf32>
    %380 = vector.extract_strided_slice %366 {offsets = [0, 32], sizes = [8, 32], strides = [1, 1]} : vector<8x96xf32> to vector<8x32xf32>
    %381 = arith.mulf %380, %321 : vector<8x32xf32>
    %382 = vector.extract_strided_slice %366 {offsets = [0, 0], sizes = [8, 32], strides = [1, 1]} : vector<8x96xf32> to vector<8x32xf32>
    %383 = arith.mulf %382, %368 : vector<8x32xf32>
    %384 = arith.addf %381, %383 : vector<8x32xf32>
    %385 = vector.broadcast %372 : vector<8x1xf32> to vector<8x32xf32>
    %386 = arith.mulf %384, %385 : vector<8x32xf32>
    %387 = vector.extract_strided_slice %358 {offsets = [0, 64], sizes = [8, 32], strides = [1, 1]} : vector<8x96xf32> to vector<8x32xf32>
    %388 = math.tanh %379 : vector<8x32xf32>
    %389 = arith.mulf %387, %388 : vector<8x32xf32>
    %390 = vector.broadcast %370 : vector<8x1xf32> to vector<8x32xf32>
    %391 = arith.mulf %389, %390 : vector<8x32xf32>
    %392 = vector.extract_strided_slice %366 {offsets = [0, 64], sizes = [8, 32], strides = [1, 1]} : vector<8x96xf32> to vector<8x32xf32>
    %393 = math.tanh %386 : vector<8x32xf32>
    %394 = arith.mulf %392, %393 : vector<8x32xf32>
    %395 = vector.broadcast %372 : vector<8x1xf32> to vector<8x32xf32>
    %396 = arith.mulf %394, %395 : vector<8x32xf32>
    %c5_124 = arith.constant 5 : index
    %c0_125 = arith.constant 0 : index
    %c0_126 = arith.constant 0 : index
    %397 = vector.load %arg6[%c5_124, %c0_125, %c0_126] : memref<8x8x64xf32, #tpu.memory_space<vmem>>, vector<1x8x32xf32>
    %398 = vector.shape_cast %397 : vector<1x8x32xf32> to vector<8x32xf32>
    %399 = vector.shape_cast %391 : vector<8x32xf32> to vector<1x8x32xf32>
    tpu.vector_store %arg6[%c5_124, %c0_125, %c0_126], %399 {strides = array<i32>} : memref<8x8x64xf32, #tpu.memory_space<vmem>>, vector<1x8x32xf32>,
    %c2_127 = arith.constant 2 : index
    %c0_128 = arith.constant 0 : index
    %c32_129 = arith.constant 32 : index
    %400 = vector.load %arg6[%c2_127, %c0_128, %c32_129] : memref<8x8x64xf32, #tpu.memory_space<vmem>>, vector<1x8x32xf32>
    %401 = vector.shape_cast %400 : vector<1x8x32xf32> to vector<8x32xf32>
    %402 = vector.shape_cast %396 : vector<8x32xf32> to vector<1x8x32xf32>
    tpu.vector_store %arg6[%c2_127, %c0_128, %c32_129], %402 {strides = array<i32>} : memref<8x8x64xf32, #tpu.memory_space<vmem>>, vector<1x8x32xf32>,
    %403 = tpu.concatenate %391, %396 in 1 : vector<8x32xf32>, vector<8x32xf32> -> vector<8x64xf32>
    %404 = arith.truncf %403 : vector<8x64xf32> to vector<8x64xbf16>
    %cst_130 = arith.constant dense<0.000000e+00> : vector<8x256xf32>
    %405 = tpu.matmul %404, %11, %cst_130 {dimension_numbers = #tpu.dot_dimension_numbers<[1], [0], [0], [1], [0, 0, 1, 1], [], []>} : vector<8x64xbf16>, vector<64x256xbf16>, vector<8x256xf32> -> vector<8x256xf32>
    %c6_131 = arith.constant 6 : index
    %c0_132 = arith.constant 0 : index
    %c0_133 = arith.constant 0 : index
    %406 = vector.load %arg7[%c6_131, %c0_132, %c0_133] : memref<8x8x256xbf16, #tpu.memory_space<vmem>>, vector<1x8x256xbf16>
    %407 = vector.shape_cast %406 : vector<1x8x256xbf16> to vector<8x256xbf16>
    %408 = vector.extract_strided_slice %407 {offsets = [0, 0], sizes = [8, 128], strides = [1, 1]} : vector<8x256xbf16> to vector<8x128xbf16>
    %409 = arith.extf %408 : vector<8x128xbf16> to vector<8x128xf32>
    %410 = vector.extract_strided_slice %405 {offsets = [0, 0], sizes = [8, 128], strides = [1, 1]} : vector<8x256xf32> to vector<8x128xf32>
    %411 = arith.addf %409, %410 : vector<8x128xf32>
    %c1_134 = arith.constant 1 : index
    %c0_135 = arith.constant 0 : index
    %c0_136 = arith.constant 0 : index
    %412 = vector.load %arg7[%c1_134, %c0_135, %c0_136] : memref<8x8x256xbf16, #tpu.memory_space<vmem>>, vector<1x8x256xbf16>
    %413 = vector.shape_cast %412 : vector<1x8x256xbf16> to vector<8x256xbf16>
    %414 = vector.extract_strided_slice %413 {offsets = [0, 128], sizes = [8, 128], strides = [1, 1]} : vector<8x256xbf16> to vector<8x128xbf16>
    %415 = arith.extf %414 : vector<8x128xbf16> to vector<8x128xf32>
    %416 = vector.extract_strided_slice %405 {offsets = [0, 128], sizes = [8, 128], strides = [1, 1]} : vector<8x256xf32> to vector<8x128xf32>
    %417 = arith.addf %415, %416 : vector<8x128xf32>
    %418 = vector.extract_strided_slice %411 {offsets = [0, 0], sizes = [8, 96], strides = [1, 1]} : vector<8x128xf32> to vector<8x96xf32>
    %419 = arith.negf %418 : vector<8x96xf32>
    %420 = math.exp %419 : vector<8x96xf32>
    %cst_137 = arith.constant 1.000000e+00 : f32
    %421 = vector.broadcast %cst_137 : f32 to vector<8x96xf32>
    %422 = arith.addf %421, %420 : vector<8x96xf32>
    %423 = arith.divf %421, %422 : vector<8x96xf32>
    %424 = vector.extract_strided_slice %411 {offsets = [0, 96], sizes = [8, 32], strides = [1, 1]} : vector<8x128xf32> to vector<8x32xf32>
    %425 = math.tanh %424 : vector<8x32xf32>
    %426 = vector.extract_strided_slice %417 {offsets = [0, 0], sizes = [8, 96], strides = [1, 1]} : vector<8x128xf32> to vector<8x96xf32>
    %427 = arith.negf %426 : vector<8x96xf32>
    %428 = math.exp %427 : vector<8x96xf32>
    %cst_138 = arith.constant 1.000000e+00 : f32
    %429 = vector.broadcast %cst_138 : f32 to vector<8x96xf32>
    %430 = arith.addf %429, %428 : vector<8x96xf32>
    %431 = arith.divf %429, %430 : vector<8x96xf32>
    %432 = vector.extract_strided_slice %417 {offsets = [0, 96], sizes = [8, 32], strides = [1, 1]} : vector<8x128xf32> to vector<8x32xf32>
    %433 = math.tanh %432 : vector<8x32xf32>
    %c6_139 = arith.constant 6 : index
    %c0_140 = arith.constant 0 : index
    %c0_141 = arith.constant 0 : index
    %434 = vector.load %arg2[%c6_139, %c0_140, %c0_141] : memref<8x8x1xf32, #tpu.memory_space<vmem>>, vector<1x8x1xf32>
    %435 = vector.shape_cast %434 : vector<1x8x1xf32> to vector<8x1xf32>
    %c1_142 = arith.constant 1 : index
    %c0_143 = arith.constant 0 : index
    %c0_144 = arith.constant 0 : index
    %436 = vector.load %arg2[%c1_142, %c0_143, %c0_144] : memref<8x8x1xf32, #tpu.memory_space<vmem>>, vector<1x8x1xf32>
    %437 = vector.shape_cast %436 : vector<1x8x1xf32> to vector<8x1xf32>
    %438 = vector.extract_strided_slice %423 {offsets = [0, 32], sizes = [8, 32], strides = [1, 1]} : vector<8x96xf32> to vector<8x32xf32>
    %439 = arith.mulf %438, %379 : vector<8x32xf32>
    %440 = vector.extract_strided_slice %423 {offsets = [0, 0], sizes = [8, 32], strides = [1, 1]} : vector<8x96xf32> to vector<8x32xf32>
    %441 = arith.mulf %440, %425 : vector<8x32xf32>
    %442 = arith.addf %439, %441 : vector<8x32xf32>
    %443 = vector.broadcast %435 : vector<8x1xf32> to vector<8x32xf32>
    %444 = arith.mulf %442, %443 : vector<8x32xf32>
    %445 = vector.extract_strided_slice %431 {offsets = [0, 32], sizes = [8, 32], strides = [1, 1]} : vector<8x96xf32> to vector<8x32xf32>
    %446 = arith.mulf %445, %386 : vector<8x32xf32>
    %447 = vector.extract_strided_slice %431 {offsets = [0, 0], sizes = [8, 32], strides = [1, 1]} : vector<8x96xf32> to vector<8x32xf32>
    %448 = arith.mulf %447, %433 : vector<8x32xf32>
    %449 = arith.addf %446, %448 : vector<8x32xf32>
    %450 = vector.broadcast %437 : vector<8x1xf32> to vector<8x32xf32>
    %451 = arith.mulf %449, %450 : vector<8x32xf32>
    %452 = vector.extract_strided_slice %423 {offsets = [0, 64], sizes = [8, 32], strides = [1, 1]} : vector<8x96xf32> to vector<8x32xf32>
    %453 = math.tanh %444 : vector<8x32xf32>
    %454 = arith.mulf %452, %453 : vector<8x32xf32>
    %455 = vector.broadcast %435 : vector<8x1xf32> to vector<8x32xf32>
    %456 = arith.mulf %454, %455 : vector<8x32xf32>
    %457 = vector.extract_strided_slice %431 {offsets = [0, 64], sizes = [8, 32], strides = [1, 1]} : vector<8x96xf32> to vector<8x32xf32>
    %458 = math.tanh %451 : vector<8x32xf32>
    %459 = arith.mulf %457, %458 : vector<8x32xf32>
    %460 = vector.broadcast %437 : vector<8x1xf32> to vector<8x32xf32>
    %461 = arith.mulf %459, %460 : vector<8x32xf32>
    %c6_145 = arith.constant 6 : index
    %c0_146 = arith.constant 0 : index
    %c0_147 = arith.constant 0 : index
    %462 = vector.load %arg6[%c6_145, %c0_146, %c0_147] : memref<8x8x64xf32, #tpu.memory_space<vmem>>, vector<1x8x32xf32>
    %463 = vector.shape_cast %462 : vector<1x8x32xf32> to vector<8x32xf32>
    %464 = vector.shape_cast %456 : vector<8x32xf32> to vector<1x8x32xf32>
    tpu.vector_store %arg6[%c6_145, %c0_146, %c0_147], %464 {strides = array<i32>} : memref<8x8x64xf32, #tpu.memory_space<vmem>>, vector<1x8x32xf32>,
    %c1_148 = arith.constant 1 : index
    %c0_149 = arith.constant 0 : index
    %c32_150 = arith.constant 32 : index
    %465 = vector.load %arg6[%c1_148, %c0_149, %c32_150] : memref<8x8x64xf32, #tpu.memory_space<vmem>>, vector<1x8x32xf32>
    %466 = vector.shape_cast %465 : vector<1x8x32xf32> to vector<8x32xf32>
    %467 = vector.shape_cast %461 : vector<8x32xf32> to vector<1x8x32xf32>
    tpu.vector_store %arg6[%c1_148, %c0_149, %c32_150], %467 {strides = array<i32>} : memref<8x8x64xf32, #tpu.memory_space<vmem>>, vector<1x8x32xf32>,
    %468 = tpu.concatenate %456, %461 in 1 : vector<8x32xf32>, vector<8x32xf32> -> vector<8x64xf32>
    %469 = arith.truncf %468 : vector<8x64xf32> to vector<8x64xbf16>
    %cst_151 = arith.constant dense<0.000000e+00> : vector<8x256xf32>
    %470 = tpu.matmul %469, %11, %cst_151 {dimension_numbers = #tpu.dot_dimension_numbers<[1], [0], [0], [1], [0, 0, 1, 1], [], []>} : vector<8x64xbf16>, vector<64x256xbf16>, vector<8x256xf32> -> vector<8x256xf32>
    %c7_152 = arith.constant 7 : index
    %c0_153 = arith.constant 0 : index
    %c0_154 = arith.constant 0 : index
    %471 = vector.load %arg7[%c7_152, %c0_153, %c0_154] : memref<8x8x256xbf16, #tpu.memory_space<vmem>>, vector<1x8x256xbf16>
    %472 = vector.shape_cast %471 : vector<1x8x256xbf16> to vector<8x256xbf16>
    %473 = vector.extract_strided_slice %472 {offsets = [0, 0], sizes = [8, 128], strides = [1, 1]} : vector<8x256xbf16> to vector<8x128xbf16>
    %474 = arith.extf %473 : vector<8x128xbf16> to vector<8x128xf32>
    %475 = vector.extract_strided_slice %470 {offsets = [0, 0], sizes = [8, 128], strides = [1, 1]} : vector<8x256xf32> to vector<8x128xf32>
    %476 = arith.addf %474, %475 : vector<8x128xf32>
    %c0_155 = arith.constant 0 : index
    %c0_156 = arith.constant 0 : index
    %c0_157 = arith.constant 0 : index
    %477 = vector.load %arg7[%c0_155, %c0_156, %c0_157] : memref<8x8x256xbf16, #tpu.memory_space<vmem>>, vector<1x8x256xbf16>
    %478 = vector.shape_cast %477 : vector<1x8x256xbf16> to vector<8x256xbf16>
    %479 = vector.extract_strided_slice %478 {offsets = [0, 128], sizes = [8, 128], strides = [1, 1]} : vector<8x256xbf16> to vector<8x128xbf16>
    %480 = arith.extf %479 : vector<8x128xbf16> to vector<8x128xf32>
    %481 = vector.extract_strided_slice %470 {offsets = [0, 128], sizes = [8, 128], strides = [1, 1]} : vector<8x256xf32> to vector<8x128xf32>
    %482 = arith.addf %480, %481 : vector<8x128xf32>
    %483 = vector.extract_strided_slice %476 {offsets = [0, 0], sizes = [8, 96], strides = [1, 1]} : vector<8x128xf32> to vector<8x96xf32>
    %484 = arith.negf %483 : vector<8x96xf32>
    %485 = math.exp %484 : vector<8x96xf32>
    %cst_158 = arith.constant 1.000000e+00 : f32
    %486 = vector.broadcast %cst_158 : f32 to vector<8x96xf32>
    %487 = arith.addf %486, %485 : vector<8x96xf32>
    %488 = arith.divf %486, %487 : vector<8x96xf32>
    %489 = vector.extract_strided_slice %476 {offsets = [0, 96], sizes = [8, 32], strides = [1, 1]} : vector<8x128xf32> to vector<8x32xf32>
    %490 = math.tanh %489 : vector<8x32xf32>
    %491 = vector.extract_strided_slice %482 {offsets = [0, 0], sizes = [8, 96], strides = [1, 1]} : vector<8x128xf32> to vector<8x96xf32>
    %492 = arith.negf %491 : vector<8x96xf32>
    %493 = math.exp %492 : vector<8x96xf32>
    %cst_159 = arith.constant 1.000000e+00 : f32
    %494 = vector.broadcast %cst_159 : f32 to vector<8x96xf32>
    %495 = arith.addf %494, %493 : vector<8x96xf32>
    %496 = arith.divf %494, %495 : vector<8x96xf32>
    %497 = vector.extract_strided_slice %482 {offsets = [0, 96], sizes = [8, 32], strides = [1, 1]} : vector<8x128xf32> to vector<8x32xf32>
    %498 = math.tanh %497 : vector<8x32xf32>
    %c7_160 = arith.constant 7 : index
    %c0_161 = arith.constant 0 : index
    %c0_162 = arith.constant 0 : index
    %499 = vector.load %arg2[%c7_160, %c0_161, %c0_162] : memref<8x8x1xf32, #tpu.memory_space<vmem>>, vector<1x8x1xf32>
    %500 = vector.shape_cast %499 : vector<1x8x1xf32> to vector<8x1xf32>
    %c0_163 = arith.constant 0 : index
    %c0_164 = arith.constant 0 : index
    %c0_165 = arith.constant 0 : index
    %501 = vector.load %arg2[%c0_163, %c0_164, %c0_165] : memref<8x8x1xf32, #tpu.memory_space<vmem>>, vector<1x8x1xf32>
    %502 = vector.shape_cast %501 : vector<1x8x1xf32> to vector<8x1xf32>
    %503 = vector.extract_strided_slice %488 {offsets = [0, 32], sizes = [8, 32], strides = [1, 1]} : vector<8x96xf32> to vector<8x32xf32>
    %504 = arith.mulf %503, %444 : vector<8x32xf32>
    %505 = vector.extract_strided_slice %488 {offsets = [0, 0], sizes = [8, 32], strides = [1, 1]} : vector<8x96xf32> to vector<8x32xf32>
    %506 = arith.mulf %505, %490 : vector<8x32xf32>
    %507 = arith.addf %504, %506 : vector<8x32xf32>
    %508 = vector.broadcast %500 : vector<8x1xf32> to vector<8x32xf32>
    %509 = arith.mulf %507, %508 : vector<8x32xf32>
    %510 = vector.extract_strided_slice %496 {offsets = [0, 32], sizes = [8, 32], strides = [1, 1]} : vector<8x96xf32> to vector<8x32xf32>
    %511 = arith.mulf %510, %451 : vector<8x32xf32>
    %512 = vector.extract_strided_slice %496 {offsets = [0, 0], sizes = [8, 32], strides = [1, 1]} : vector<8x96xf32> to vector<8x32xf32>
    %513 = arith.mulf %512, %498 : vector<8x32xf32>
    %514 = arith.addf %511, %513 : vector<8x32xf32>
    %515 = vector.broadcast %502 : vector<8x1xf32> to vector<8x32xf32>
    %516 = arith.mulf %514, %515 : vector<8x32xf32>
    %517 = vector.extract_strided_slice %488 {offsets = [0, 64], sizes = [8, 32], strides = [1, 1]} : vector<8x96xf32> to vector<8x32xf32>
    %518 = math.tanh %509 : vector<8x32xf32>
    %519 = arith.mulf %517, %518 : vector<8x32xf32>
    %520 = vector.broadcast %500 : vector<8x1xf32> to vector<8x32xf32>
    %521 = arith.mulf %519, %520 : vector<8x32xf32>
    %522 = vector.extract_strided_slice %496 {offsets = [0, 64], sizes = [8, 32], strides = [1, 1]} : vector<8x96xf32> to vector<8x32xf32>
    %523 = math.tanh %516 : vector<8x32xf32>
    %524 = arith.mulf %522, %523 : vector<8x32xf32>
    %525 = vector.broadcast %502 : vector<8x1xf32> to vector<8x32xf32>
    %526 = arith.mulf %524, %525 : vector<8x32xf32>
    %c7_166 = arith.constant 7 : index
    %c0_167 = arith.constant 0 : index
    %c0_168 = arith.constant 0 : index
    %527 = vector.load %arg6[%c7_166, %c0_167, %c0_168] : memref<8x8x64xf32, #tpu.memory_space<vmem>>, vector<1x8x32xf32>
    %528 = vector.shape_cast %527 : vector<1x8x32xf32> to vector<8x32xf32>
    %529 = vector.shape_cast %521 : vector<8x32xf32> to vector<1x8x32xf32>
    tpu.vector_store %arg6[%c7_166, %c0_167, %c0_168], %529 {strides = array<i32>} : memref<8x8x64xf32, #tpu.memory_space<vmem>>, vector<1x8x32xf32>,
    %c0_169 = arith.constant 0 : index
    %c0_170 = arith.constant 0 : index
    %c32_171 = arith.constant 32 : index
    %530 = vector.load %arg6[%c0_169, %c0_170, %c32_171] : memref<8x8x64xf32, #tpu.memory_space<vmem>>, vector<1x8x32xf32>
    %531 = vector.shape_cast %530 : vector<1x8x32xf32> to vector<8x32xf32>
    %532 = vector.shape_cast %526 : vector<8x32xf32> to vector<1x8x32xf32>
    tpu.vector_store %arg6[%c0_169, %c0_170, %c32_171], %532 {strides = array<i32>} : memref<8x8x64xf32, #tpu.memory_space<vmem>>, vector<1x8x32xf32>,
    return
  }
  func.func @transform_0(%arg0: i32) -> (i32, i32, i32) {
    %c0_i32 = arith.constant 0 : i32
    %c0_i32_0 = arith.constant 0 : i32
    %c0_i32_1 = arith.constant 0 : i32
    return %c0_i32, %arg0, %c0_i32_0 : i32, i32, i32
  }
  func.func @transform_1(%arg0: i32) -> (i32, i32, i32) {
    %c0_i32 = arith.constant 0 : i32
    %c0_i32_0 = arith.constant 0 : i32
    %c0_i32_1 = arith.constant 0 : i32
    return %c0_i32, %arg0, %c0_i32_0 : i32, i32, i32
  }
  func.func @transform_2(%arg0: i32) -> (i32, i32) {
    %c0_i32 = arith.constant 0 : i32
    %c0_i32_0 = arith.constant 0 : i32
    %c0_i32_1 = arith.constant 0 : i32
    return %c0_i32, %c0_i32_0 : i32, i32
  }
  func.func @transform_3(%arg0: i32) -> (i32, i32) {
    %c0_i32 = arith.constant 0 : i32
    %c0_i32_0 = arith.constant 0 : i32
    %c0_i32_1 = arith.constant 0 : i32
    return %c0_i32, %c0_i32_0 : i32, i32
  }
  func.func @transform_4(%arg0: i32) -> (i32, i32) {
    %c0_i32 = arith.constant 0 : i32
    %c0_i32_0 = arith.constant 0 : i32
    %c0_i32_1 = arith.constant 0 : i32
    return %c0_i32, %c0_i32_0 : i32, i32
  }
  func.func @transform_5(%arg0: i32) -> (i32, i32, i32) {
    %c0_i32 = arith.constant 0 : i32
    %c0_i32_0 = arith.constant 0 : i32
    %c0_i32_1 = arith.constant 0 : i32
    return %c0_i32, %arg0, %c0_i32_0 : i32, i32, i32
  }
}

module attributes {stable_mosaic.version = 11 : i64} {
  func.func @_bilstm_kernel(%arg0: i32, %arg1: memref<8x8x64xf32, #tpu.memory_space<vmem>>, %arg2: memref<8x8x1xf32, #tpu.memory_space<vmem>>, %arg3: memref<64x256xbf16, #tpu.memory_space<vmem>>, %arg4: memref<64x256xbf16, #tpu.memory_space<vmem>>, %arg5: memref<1x256xf32, #tpu.memory_space<vmem>>, %arg6: memref<8x8x64xf32, #tpu.memory_space<vmem>>, %arg7: memref<8x8x256xbf16, #tpu.memory_space<vmem>>) attributes {dimension_semantics = [#tpu.dimension_semantics<parallel>], iteration_bounds = array<i64: 1>, scalar_prefetch = 0 : i64, scratch_operands = 1 : i64, tpu.core_type = #tpu.core_type<tc>, window_params = [{transform_indices = @transform_0, window_bounds = array<i64: 8, 8, 64>}, {transform_indices = @transform_1, window_bounds = array<i64: 8, 8, 1>}, {pipeline_mode = #tpu.pipeline_mode<synchronous>, transform_indices = @transform_2, window_bounds = array<i64: 64, 256>}, {pipeline_mode = #tpu.pipeline_mode<synchronous>, transform_indices = @transform_3, window_bounds = array<i64: 64, 256>}, {pipeline_mode = #tpu.pipeline_mode<synchronous>, transform_indices = @transform_4, window_bounds = array<i64: 1, 256>}, {transform_indices = @transform_5, window_bounds = array<i64: 8, 8, 64>}]} {
    %c0 = arith.constant 0 : index
    %c0_0 = arith.constant 0 : index
    %c0_1 = arith.constant 0 : index
    %0 = vector.load %arg1[%c0, %c0_0, %c0_1] : memref<8x8x64xf32, #tpu.memory_space<vmem>>, vector<8x8x64xf32>
    %1 = arith.truncf %0 : vector<8x8x64xf32> to vector<8x8x64xbf16>
    %2 = vector.shape_cast %1 : vector<8x8x64xbf16> to vector<64x64xbf16>
    %c0_2 = arith.constant 0 : index
    %c0_3 = arith.constant 0 : index
    %3 = vector.load %arg3[%c0_2, %c0_3] : memref<64x256xbf16, #tpu.memory_space<vmem>>, vector<64x256xbf16>
    %cst = arith.constant dense<0.000000e+00> : vector<64x256xf32>
    %4 = tpu.matmul %2, %3, %cst {dimension_numbers = #tpu.dot_dimension_numbers<[1], [0], [0], [1], [0, 0, 1, 1], [], []>} : vector<64x64xbf16>, vector<64x256xbf16>, vector<64x256xf32> -> vector<64x256xf32>
    %c0_4 = arith.constant 0 : index
    %c0_5 = arith.constant 0 : index
    %5 = vector.load %arg5[%c0_4, %c0_5] : memref<1x256xf32, #tpu.memory_space<vmem>>, vector<1x256xf32>
    %6 = vector.broadcast %5 : vector<1x256xf32> to vector<64x256xf32>
    %7 = arith.addf %4, %6 : vector<64x256xf32>
    %8 = arith.truncf %7 : vector<64x256xf32> to vector<64x256xbf16>
    %9 = vector.shape_cast %8 : vector<64x256xbf16> to vector<8x8x256xbf16>
    %c0_6 = arith.constant 0 : index
    %c0_7 = arith.constant 0 : index
    %c0_8 = arith.constant 0 : index
    %10 = vector.load %arg7[%c0_6, %c0_7, %c0_8] : memref<8x8x256xbf16, #tpu.memory_space<vmem>>, vector<8x8x256xbf16>
    tpu.vector_store %arg7[%c0_6, %c0_7, %c0_8], %9 {strides = array<i32>} : memref<8x8x256xbf16, #tpu.memory_space<vmem>>, vector<8x8x256xbf16>,
    %c0_9 = arith.constant 0 : index
    %c0_10 = arith.constant 0 : index
    %11 = vector.load %arg4[%c0_9, %c0_10] : memref<64x256xbf16, #tpu.memory_space<vmem>>, vector<64x256xbf16>
    %cst_11 = arith.constant 0.000000e+00 : f32
    %12 = vector.broadcast %cst_11 : f32 to vector<8x32xf32>
    %13 = tpu.concatenate %12, %12 in 1 : vector<8x32xf32>, vector<8x32xf32> -> vector<8x64xf32>
    %14 = arith.truncf %13 : vector<8x64xf32> to vector<8x64xbf16>
    %cst_12 = arith.constant dense<0.000000e+00> : vector<8x256xf32>
    %15 = tpu.matmul %14, %11, %cst_12 {dimension_numbers = #tpu.dot_dimension_numbers<[1], [0], [0], [1], [0, 0, 1, 1], [], []>} : vector<8x64xbf16>, vector<64x256xbf16>, vector<8x256xf32> -> vector<8x256xf32>
    %c0_13 = arith.constant 0 : index
    %c0_14 = arith.constant 0 : index
    %c0_15 = arith.constant 0 : index
    %16 = vector.load %arg7[%c0_13, %c0_14, %c0_15] : memref<8x8x256xbf16, #tpu.memory_space<vmem>>, vector<1x8x256xbf16>
    %17 = vector.shape_cast %16 : vector<1x8x256xbf16> to vector<8x256xbf16>
    %18 = vector.extract_strided_slice %17 {offsets = [0, 0], sizes = [8, 128], strides = [1, 1]} : vector<8x256xbf16> to vector<8x128xbf16>
    %19 = arith.extf %18 : vector<8x128xbf16> to vector<8x128xf32>
    %20 = vector.extract_strided_slice %15 {offsets = [0, 0], sizes = [8, 128], strides = [1, 1]} : vector<8x256xf32> to vector<8x128xf32>
    %21 = arith.addf %19, %20 : vector<8x128xf32>
    %c7 = arith.constant 7 : index
    %c0_16 = arith.constant 0 : index
    %c0_17 = arith.constant 0 : index
    %22 = vector.load %arg7[%c7, %c0_16, %c0_17] : memref<8x8x256xbf16, #tpu.memory_space<vmem>>, vector<1x8x256xbf16>
    %23 = vector.shape_cast %22 : vector<1x8x256xbf16> to vector<8x256xbf16>
    %24 = vector.extract_strided_slice %23 {offsets = [0, 128], sizes = [8, 128], strides = [1, 1]} : vector<8x256xbf16> to vector<8x128xbf16>
    %25 = arith.extf %24 : vector<8x128xbf16> to vector<8x128xf32>
    %26 = vector.extract_strided_slice %15 {offsets = [0, 128], sizes = [8, 128], strides = [1, 1]} : vector<8x256xf32> to vector<8x128xf32>
    %27 = arith.addf %25, %26 : vector<8x128xf32>
    %28 = vector.extract_strided_slice %21 {offsets = [0, 0], sizes = [8, 96], strides = [1, 1]} : vector<8x128xf32> to vector<8x96xf32>
    %29 = arith.negf %28 : vector<8x96xf32>
    %30 = math.exp %29 : vector<8x96xf32>
    %cst_18 = arith.constant 1.000000e+00 : f32
    %31 = vector.broadcast %cst_18 : f32 to vector<8x96xf32>
    %32 = arith.addf %31, %30 : vector<8x96xf32>
    %33 = arith.divf %31, %32 : vector<8x96xf32>
    %34 = vector.extract_strided_slice %21 {offsets = [0, 96], sizes = [8, 32], strides = [1, 1]} : vector<8x128xf32> to vector<8x32xf32>
    %35 = math.tanh %34 : vector<8x32xf32>
    %36 = vector.extract_strided_slice %27 {offsets = [0, 0], sizes = [8, 96], strides = [1, 1]} : vector<8x128xf32> to vector<8x96xf32>
    %37 = arith.negf %36 : vector<8x96xf32>
    %38 = math.exp %37 : vector<8x96xf32>
    %cst_19 = arith.constant 1.000000e+00 : f32
    %39 = vector.broadcast %cst_19 : f32 to vector<8x96xf32>
    %40 = arith.addf %39, %38 : vector<8x96xf32>
    %41 = arith.divf %39, %40 : vector<8x96xf32>
    %42 = vector.extract_strided_slice %27 {offsets = [0, 96], sizes = [8, 32], strides = [1, 1]} : vector<8x128xf32> to vector<8x32xf32>
    %43 = math.tanh %42 : vector<8x32xf32>
    %c0_20 = arith.constant 0 : index
    %c0_21 = arith.constant 0 : index
    %c0_22 = arith.constant 0 : index
    %44 = vector.load %arg2[%c0_20, %c0_21, %c0_22] : memref<8x8x1xf32, #tpu.memory_space<vmem>>, vector<1x8x1xf32>
    %45 = vector.shape_cast %44 : vector<1x8x1xf32> to vector<8x1xf32>
    %c7_23 = arith.constant 7 : index
    %c0_24 = arith.constant 0 : index
    %c0_25 = arith.constant 0 : index
    %46 = vector.load %arg2[%c7_23, %c0_24, %c0_25] : memref<8x8x1xf32, #tpu.memory_space<vmem>>, vector<1x8x1xf32>
    %47 = vector.shape_cast %46 : vector<1x8x1xf32> to vector<8x1xf32>
    %48 = vector.extract_strided_slice %33 {offsets = [0, 32], sizes = [8, 32], strides = [1, 1]} : vector<8x96xf32> to vector<8x32xf32>
    %49 = arith.mulf %48, %12 : vector<8x32xf32>
    %50 = vector.extract_strided_slice %33 {offsets = [0, 0], sizes = [8, 32], strides = [1, 1]} : vector<8x96xf32> to vector<8x32xf32>
    %51 = arith.mulf %50, %35 : vector<8x32xf32>
    %52 = arith.addf %49, %51 : vector<8x32xf32>
    %53 = vector.broadcast %45 : vector<8x1xf32> to vector<8x32xf32>
    %54 = arith.mulf %52, %53 : vector<8x32xf32>
    %55 = vector.extract_strided_slice %41 {offsets = [0, 32], sizes = [8, 32], strides = [1, 1]} : vector<8x96xf32> to vector<8x32xf32>
    %56 = arith.mulf %55, %12 : vector<8x32xf32>
    %57 = vector.extract_strided_slice %41 {offsets = [0, 0], sizes = [8, 32], strides = [1, 1]} : vector<8x96xf32> to vector<8x32xf32>
    %58 = arith.mulf %57, %43 : vector<8x32xf32>
    %59 = arith.addf %56, %58 : vector<8x32xf32>
    %60 = vector.broadcast %47 : vector<8x1xf32> to vector<8x32xf32>
    %61 = arith.mulf %59, %60 : vector<8x32xf32>
    %62 = vector.extract_strided_slice %33 {offsets = [0, 64], sizes = [8, 32], strides = [1, 1]} : vector<8x96xf32> to vector<8x32xf32>
    %63 = math.tanh %54 : vector<8x32xf32>
    %64 = arith.mulf %62, %63 : vector<8x32xf32>
    %65 = vector.broadcast %45 : vector<8x1xf32> to vector<8x32xf32>
    %66 = arith.mulf %64, %65 : vector<8x32xf32>
    %67 = vector.extract_strided_slice %41 {offsets = [0, 64], sizes = [8, 32], strides = [1, 1]} : vector<8x96xf32> to vector<8x32xf32>
    %68 = math.tanh %61 : vector<8x32xf32>
    %69 = arith.mulf %67, %68 : vector<8x32xf32>
    %70 = vector.broadcast %47 : vector<8x1xf32> to vector<8x32xf32>
    %71 = arith.mulf %69, %70 : vector<8x32xf32>
    %c0_26 = arith.constant 0 : index
    %c0_27 = arith.constant 0 : index
    %c0_28 = arith.constant 0 : index
    %72 = vector.load %arg6[%c0_26, %c0_27, %c0_28] : memref<8x8x64xf32, #tpu.memory_space<vmem>>, vector<1x8x32xf32>
    %73 = vector.shape_cast %72 : vector<1x8x32xf32> to vector<8x32xf32>
    %74 = vector.shape_cast %66 : vector<8x32xf32> to vector<1x8x32xf32>
    tpu.vector_store %arg6[%c0_26, %c0_27, %c0_28], %74 {strides = array<i32>} : memref<8x8x64xf32, #tpu.memory_space<vmem>>, vector<1x8x32xf32>,
    %c7_29 = arith.constant 7 : index
    %c0_30 = arith.constant 0 : index
    %c32 = arith.constant 32 : index
    %75 = vector.load %arg6[%c7_29, %c0_30, %c32] : memref<8x8x64xf32, #tpu.memory_space<vmem>>, vector<1x8x32xf32>
    %76 = vector.shape_cast %75 : vector<1x8x32xf32> to vector<8x32xf32>
    %77 = vector.shape_cast %71 : vector<8x32xf32> to vector<1x8x32xf32>
    tpu.vector_store %arg6[%c7_29, %c0_30, %c32], %77 {strides = array<i32>} : memref<8x8x64xf32, #tpu.memory_space<vmem>>, vector<1x8x32xf32>,
    %78 = tpu.concatenate %66, %71 in 1 : vector<8x32xf32>, vector<8x32xf32> -> vector<8x64xf32>
    %79 = arith.truncf %78 : vector<8x64xf32> to vector<8x64xbf16>
    %cst_31 = arith.constant dense<0.000000e+00> : vector<8x256xf32>
    %80 = tpu.matmul %79, %11, %cst_31 {dimension_numbers = #tpu.dot_dimension_numbers<[1], [0], [0], [1], [0, 0, 1, 1], [], []>} : vector<8x64xbf16>, vector<64x256xbf16>, vector<8x256xf32> -> vector<8x256xf32>
    %c1 = arith.constant 1 : index
    %c0_32 = arith.constant 0 : index
    %c0_33 = arith.constant 0 : index
    %81 = vector.load %arg7[%c1, %c0_32, %c0_33] : memref<8x8x256xbf16, #tpu.memory_space<vmem>>, vector<1x8x256xbf16>
    %82 = vector.shape_cast %81 : vector<1x8x256xbf16> to vector<8x256xbf16>
    %83 = vector.extract_strided_slice %82 {offsets = [0, 0], sizes = [8, 128], strides = [1, 1]} : vector<8x256xbf16> to vector<8x128xbf16>
    %84 = arith.extf %83 : vector<8x128xbf16> to vector<8x128xf32>
    %85 = vector.extract_strided_slice %80 {offsets = [0, 0], sizes = [8, 128], strides = [1, 1]} : vector<8x256xf32> to vector<8x128xf32>
    %86 = arith.addf %84, %85 : vector<8x128xf32>
    %c6 = arith.constant 6 : index
    %c0_34 = arith.constant 0 : index
    %c0_35 = arith.constant 0 : index
    %87 = vector.load %arg7[%c6, %c0_34, %c0_35] : memref<8x8x256xbf16, #tpu.memory_space<vmem>>, vector<1x8x256xbf16>
    %88 = vector.shape_cast %87 : vector<1x8x256xbf16> to vector<8x256xbf16>
    %89 = vector.extract_strided_slice %88 {offsets = [0, 128], sizes = [8, 128], strides = [1, 1]} : vector<8x256xbf16> to vector<8x128xbf16>
    %90 = arith.extf %89 : vector<8x128xbf16> to vector<8x128xf32>
    %91 = vector.extract_strided_slice %80 {offsets = [0, 128], sizes = [8, 128], strides = [1, 1]} : vector<8x256xf32> to vector<8x128xf32>
    %92 = arith.addf %90, %91 : vector<8x128xf32>
    %93 = vector.extract_strided_slice %86 {offsets = [0, 0], sizes = [8, 96], strides = [1, 1]} : vector<8x128xf32> to vector<8x96xf32>
    %94 = arith.negf %93 : vector<8x96xf32>
    %95 = math.exp %94 : vector<8x96xf32>
    %cst_36 = arith.constant 1.000000e+00 : f32
    %96 = vector.broadcast %cst_36 : f32 to vector<8x96xf32>
    %97 = arith.addf %96, %95 : vector<8x96xf32>
    %98 = arith.divf %96, %97 : vector<8x96xf32>
    %99 = vector.extract_strided_slice %86 {offsets = [0, 96], sizes = [8, 32], strides = [1, 1]} : vector<8x128xf32> to vector<8x32xf32>
    %100 = math.tanh %99 : vector<8x32xf32>
    %101 = vector.extract_strided_slice %92 {offsets = [0, 0], sizes = [8, 96], strides = [1, 1]} : vector<8x128xf32> to vector<8x96xf32>
    %102 = arith.negf %101 : vector<8x96xf32>
    %103 = math.exp %102 : vector<8x96xf32>
    %cst_37 = arith.constant 1.000000e+00 : f32
    %104 = vector.broadcast %cst_37 : f32 to vector<8x96xf32>
    %105 = arith.addf %104, %103 : vector<8x96xf32>
    %106 = arith.divf %104, %105 : vector<8x96xf32>
    %107 = vector.extract_strided_slice %92 {offsets = [0, 96], sizes = [8, 32], strides = [1, 1]} : vector<8x128xf32> to vector<8x32xf32>
    %108 = math.tanh %107 : vector<8x32xf32>
    %c1_38 = arith.constant 1 : index
    %c0_39 = arith.constant 0 : index
    %c0_40 = arith.constant 0 : index
    %109 = vector.load %arg2[%c1_38, %c0_39, %c0_40] : memref<8x8x1xf32, #tpu.memory_space<vmem>>, vector<1x8x1xf32>
    %110 = vector.shape_cast %109 : vector<1x8x1xf32> to vector<8x1xf32>
    %c6_41 = arith.constant 6 : index
    %c0_42 = arith.constant 0 : index
    %c0_43 = arith.constant 0 : index
    %111 = vector.load %arg2[%c6_41, %c0_42, %c0_43] : memref<8x8x1xf32, #tpu.memory_space<vmem>>, vector<1x8x1xf32>
    %112 = vector.shape_cast %111 : vector<1x8x1xf32> to vector<8x1xf32>
    %113 = vector.extract_strided_slice %98 {offsets = [0, 32], sizes = [8, 32], strides = [1, 1]} : vector<8x96xf32> to vector<8x32xf32>
    %114 = arith.mulf %113, %54 : vector<8x32xf32>
    %115 = vector.extract_strided_slice %98 {offsets = [0, 0], sizes = [8, 32], strides = [1, 1]} : vector<8x96xf32> to vector<8x32xf32>
    %116 = arith.mulf %115, %100 : vector<8x32xf32>
    %117 = arith.addf %114, %116 : vector<8x32xf32>
    %118 = vector.broadcast %110 : vector<8x1xf32> to vector<8x32xf32>
    %119 = arith.mulf %117, %118 : vector<8x32xf32>
    %120 = vector.extract_strided_slice %106 {offsets = [0, 32], sizes = [8, 32], strides = [1, 1]} : vector<8x96xf32> to vector<8x32xf32>
    %121 = arith.mulf %120, %61 : vector<8x32xf32>
    %122 = vector.extract_strided_slice %106 {offsets = [0, 0], sizes = [8, 32], strides = [1, 1]} : vector<8x96xf32> to vector<8x32xf32>
    %123 = arith.mulf %122, %108 : vector<8x32xf32>
    %124 = arith.addf %121, %123 : vector<8x32xf32>
    %125 = vector.broadcast %112 : vector<8x1xf32> to vector<8x32xf32>
    %126 = arith.mulf %124, %125 : vector<8x32xf32>
    %127 = vector.extract_strided_slice %98 {offsets = [0, 64], sizes = [8, 32], strides = [1, 1]} : vector<8x96xf32> to vector<8x32xf32>
    %128 = math.tanh %119 : vector<8x32xf32>
    %129 = arith.mulf %127, %128 : vector<8x32xf32>
    %130 = vector.broadcast %110 : vector<8x1xf32> to vector<8x32xf32>
    %131 = arith.mulf %129, %130 : vector<8x32xf32>
    %132 = vector.extract_strided_slice %106 {offsets = [0, 64], sizes = [8, 32], strides = [1, 1]} : vector<8x96xf32> to vector<8x32xf32>
    %133 = math.tanh %126 : vector<8x32xf32>
    %134 = arith.mulf %132, %133 : vector<8x32xf32>
    %135 = vector.broadcast %112 : vector<8x1xf32> to vector<8x32xf32>
    %136 = arith.mulf %134, %135 : vector<8x32xf32>
    %c1_44 = arith.constant 1 : index
    %c0_45 = arith.constant 0 : index
    %c0_46 = arith.constant 0 : index
    %137 = vector.load %arg6[%c1_44, %c0_45, %c0_46] : memref<8x8x64xf32, #tpu.memory_space<vmem>>, vector<1x8x32xf32>
    %138 = vector.shape_cast %137 : vector<1x8x32xf32> to vector<8x32xf32>
    %139 = vector.shape_cast %131 : vector<8x32xf32> to vector<1x8x32xf32>
    tpu.vector_store %arg6[%c1_44, %c0_45, %c0_46], %139 {strides = array<i32>} : memref<8x8x64xf32, #tpu.memory_space<vmem>>, vector<1x8x32xf32>,
    %c6_47 = arith.constant 6 : index
    %c0_48 = arith.constant 0 : index
    %c32_49 = arith.constant 32 : index
    %140 = vector.load %arg6[%c6_47, %c0_48, %c32_49] : memref<8x8x64xf32, #tpu.memory_space<vmem>>, vector<1x8x32xf32>
    %141 = vector.shape_cast %140 : vector<1x8x32xf32> to vector<8x32xf32>
    %142 = vector.shape_cast %136 : vector<8x32xf32> to vector<1x8x32xf32>
    tpu.vector_store %arg6[%c6_47, %c0_48, %c32_49], %142 {strides = array<i32>} : memref<8x8x64xf32, #tpu.memory_space<vmem>>, vector<1x8x32xf32>,
    %143 = tpu.concatenate %131, %136 in 1 : vector<8x32xf32>, vector<8x32xf32> -> vector<8x64xf32>
    %144 = arith.truncf %143 : vector<8x64xf32> to vector<8x64xbf16>
    %cst_50 = arith.constant dense<0.000000e+00> : vector<8x256xf32>
    %145 = tpu.matmul %144, %11, %cst_50 {dimension_numbers = #tpu.dot_dimension_numbers<[1], [0], [0], [1], [0, 0, 1, 1], [], []>} : vector<8x64xbf16>, vector<64x256xbf16>, vector<8x256xf32> -> vector<8x256xf32>
    %c2 = arith.constant 2 : index
    %c0_51 = arith.constant 0 : index
    %c0_52 = arith.constant 0 : index
    %146 = vector.load %arg7[%c2, %c0_51, %c0_52] : memref<8x8x256xbf16, #tpu.memory_space<vmem>>, vector<1x8x256xbf16>
    %147 = vector.shape_cast %146 : vector<1x8x256xbf16> to vector<8x256xbf16>
    %148 = vector.extract_strided_slice %147 {offsets = [0, 0], sizes = [8, 128], strides = [1, 1]} : vector<8x256xbf16> to vector<8x128xbf16>
    %149 = arith.extf %148 : vector<8x128xbf16> to vector<8x128xf32>
    %150 = vector.extract_strided_slice %145 {offsets = [0, 0], sizes = [8, 128], strides = [1, 1]} : vector<8x256xf32> to vector<8x128xf32>
    %151 = arith.addf %149, %150 : vector<8x128xf32>
    %c5 = arith.constant 5 : index
    %c0_53 = arith.constant 0 : index
    %c0_54 = arith.constant 0 : index
    %152 = vector.load %arg7[%c5, %c0_53, %c0_54] : memref<8x8x256xbf16, #tpu.memory_space<vmem>>, vector<1x8x256xbf16>
    %153 = vector.shape_cast %152 : vector<1x8x256xbf16> to vector<8x256xbf16>
    %154 = vector.extract_strided_slice %153 {offsets = [0, 128], sizes = [8, 128], strides = [1, 1]} : vector<8x256xbf16> to vector<8x128xbf16>
    %155 = arith.extf %154 : vector<8x128xbf16> to vector<8x128xf32>
    %156 = vector.extract_strided_slice %145 {offsets = [0, 128], sizes = [8, 128], strides = [1, 1]} : vector<8x256xf32> to vector<8x128xf32>
    %157 = arith.addf %155, %156 : vector<8x128xf32>
    %158 = vector.extract_strided_slice %151 {offsets = [0, 0], sizes = [8, 96], strides = [1, 1]} : vector<8x128xf32> to vector<8x96xf32>
    %159 = arith.negf %158 : vector<8x96xf32>
    %160 = math.exp %159 : vector<8x96xf32>
    %cst_55 = arith.constant 1.000000e+00 : f32
    %161 = vector.broadcast %cst_55 : f32 to vector<8x96xf32>
    %162 = arith.addf %161, %160 : vector<8x96xf32>
    %163 = arith.divf %161, %162 : vector<8x96xf32>
    %164 = vector.extract_strided_slice %151 {offsets = [0, 96], sizes = [8, 32], strides = [1, 1]} : vector<8x128xf32> to vector<8x32xf32>
    %165 = math.tanh %164 : vector<8x32xf32>
    %166 = vector.extract_strided_slice %157 {offsets = [0, 0], sizes = [8, 96], strides = [1, 1]} : vector<8x128xf32> to vector<8x96xf32>
    %167 = arith.negf %166 : vector<8x96xf32>
    %168 = math.exp %167 : vector<8x96xf32>
    %cst_56 = arith.constant 1.000000e+00 : f32
    %169 = vector.broadcast %cst_56 : f32 to vector<8x96xf32>
    %170 = arith.addf %169, %168 : vector<8x96xf32>
    %171 = arith.divf %169, %170 : vector<8x96xf32>
    %172 = vector.extract_strided_slice %157 {offsets = [0, 96], sizes = [8, 32], strides = [1, 1]} : vector<8x128xf32> to vector<8x32xf32>
    %173 = math.tanh %172 : vector<8x32xf32>
    %c2_57 = arith.constant 2 : index
    %c0_58 = arith.constant 0 : index
    %c0_59 = arith.constant 0 : index
    %174 = vector.load %arg2[%c2_57, %c0_58, %c0_59] : memref<8x8x1xf32, #tpu.memory_space<vmem>>, vector<1x8x1xf32>
    %175 = vector.shape_cast %174 : vector<1x8x1xf32> to vector<8x1xf32>
    %c5_60 = arith.constant 5 : index
    %c0_61 = arith.constant 0 : index
    %c0_62 = arith.constant 0 : index
    %176 = vector.load %arg2[%c5_60, %c0_61, %c0_62] : memref<8x8x1xf32, #tpu.memory_space<vmem>>, vector<1x8x1xf32>
    %177 = vector.shape_cast %176 : vector<1x8x1xf32> to vector<8x1xf32>
    %178 = vector.extract_strided_slice %163 {offsets = [0, 32], sizes = [8, 32], strides = [1, 1]} : vector<8x96xf32> to vector<8x32xf32>
    %179 = arith.mulf %178, %119 : vector<8x32xf32>
    %180 = vector.extract_strided_slice %163 {offsets = [0, 0], sizes = [8, 32], strides = [1, 1]} : vector<8x96xf32> to vector<8x32xf32>
    %181 = arith.mulf %180, %165 : vector<8x32xf32>
    %182 = arith.addf %179, %181 : vector<8x32xf32>
    %183 = vector.broadcast %175 : vector<8x1xf32> to vector<8x32xf32>
    %184 = arith.mulf %182, %183 : vector<8x32xf32>
    %185 = vector.extract_strided_slice %171 {offsets = [0, 32], sizes = [8, 32], strides = [1, 1]} : vector<8x96xf32> to vector<8x32xf32>
    %186 = arith.mulf %185, %126 : vector<8x32xf32>
    %187 = vector.extract_strided_slice %171 {offsets = [0, 0], sizes = [8, 32], strides = [1, 1]} : vector<8x96xf32> to vector<8x32xf32>
    %188 = arith.mulf %187, %173 : vector<8x32xf32>
    %189 = arith.addf %186, %188 : vector<8x32xf32>
    %190 = vector.broadcast %177 : vector<8x1xf32> to vector<8x32xf32>
    %191 = arith.mulf %189, %190 : vector<8x32xf32>
    %192 = vector.extract_strided_slice %163 {offsets = [0, 64], sizes = [8, 32], strides = [1, 1]} : vector<8x96xf32> to vector<8x32xf32>
    %193 = math.tanh %184 : vector<8x32xf32>
    %194 = arith.mulf %192, %193 : vector<8x32xf32>
    %195 = vector.broadcast %175 : vector<8x1xf32> to vector<8x32xf32>
    %196 = arith.mulf %194, %195 : vector<8x32xf32>
    %197 = vector.extract_strided_slice %171 {offsets = [0, 64], sizes = [8, 32], strides = [1, 1]} : vector<8x96xf32> to vector<8x32xf32>
    %198 = math.tanh %191 : vector<8x32xf32>
    %199 = arith.mulf %197, %198 : vector<8x32xf32>
    %200 = vector.broadcast %177 : vector<8x1xf32> to vector<8x32xf32>
    %201 = arith.mulf %199, %200 : vector<8x32xf32>
    %c2_63 = arith.constant 2 : index
    %c0_64 = arith.constant 0 : index
    %c0_65 = arith.constant 0 : index
    %202 = vector.load %arg6[%c2_63, %c0_64, %c0_65] : memref<8x8x64xf32, #tpu.memory_space<vmem>>, vector<1x8x32xf32>
    %203 = vector.shape_cast %202 : vector<1x8x32xf32> to vector<8x32xf32>
    %204 = vector.shape_cast %196 : vector<8x32xf32> to vector<1x8x32xf32>
    tpu.vector_store %arg6[%c2_63, %c0_64, %c0_65], %204 {strides = array<i32>} : memref<8x8x64xf32, #tpu.memory_space<vmem>>, vector<1x8x32xf32>,
    %c5_66 = arith.constant 5 : index
    %c0_67 = arith.constant 0 : index
    %c32_68 = arith.constant 32 : index
    %205 = vector.load %arg6[%c5_66, %c0_67, %c32_68] : memref<8x8x64xf32, #tpu.memory_space<vmem>>, vector<1x8x32xf32>
    %206 = vector.shape_cast %205 : vector<1x8x32xf32> to vector<8x32xf32>
    %207 = vector.shape_cast %201 : vector<8x32xf32> to vector<1x8x32xf32>
    tpu.vector_store %arg6[%c5_66, %c0_67, %c32_68], %207 {strides = array<i32>} : memref<8x8x64xf32, #tpu.memory_space<vmem>>, vector<1x8x32xf32>,
    %208 = tpu.concatenate %196, %201 in 1 : vector<8x32xf32>, vector<8x32xf32> -> vector<8x64xf32>
    %209 = arith.truncf %208 : vector<8x64xf32> to vector<8x64xbf16>
    %cst_69 = arith.constant dense<0.000000e+00> : vector<8x256xf32>
    %210 = tpu.matmul %209, %11, %cst_69 {dimension_numbers = #tpu.dot_dimension_numbers<[1], [0], [0], [1], [0, 0, 1, 1], [], []>} : vector<8x64xbf16>, vector<64x256xbf16>, vector<8x256xf32> -> vector<8x256xf32>
    %c3 = arith.constant 3 : index
    %c0_70 = arith.constant 0 : index
    %c0_71 = arith.constant 0 : index
    %211 = vector.load %arg7[%c3, %c0_70, %c0_71] : memref<8x8x256xbf16, #tpu.memory_space<vmem>>, vector<1x8x256xbf16>
    %212 = vector.shape_cast %211 : vector<1x8x256xbf16> to vector<8x256xbf16>
    %213 = vector.extract_strided_slice %212 {offsets = [0, 0], sizes = [8, 128], strides = [1, 1]} : vector<8x256xbf16> to vector<8x128xbf16>
    %214 = arith.extf %213 : vector<8x128xbf16> to vector<8x128xf32>
    %215 = vector.extract_strided_slice %210 {offsets = [0, 0], sizes = [8, 128], strides = [1, 1]} : vector<8x256xf32> to vector<8x128xf32>
    %216 = arith.addf %214, %215 : vector<8x128xf32>
    %c4 = arith.constant 4 : index
    %c0_72 = arith.constant 0 : index
    %c0_73 = arith.constant 0 : index
    %217 = vector.load %arg7[%c4, %c0_72, %c0_73] : memref<8x8x256xbf16, #tpu.memory_space<vmem>>, vector<1x8x256xbf16>
    %218 = vector.shape_cast %217 : vector<1x8x256xbf16> to vector<8x256xbf16>
    %219 = vector.extract_strided_slice %218 {offsets = [0, 128], sizes = [8, 128], strides = [1, 1]} : vector<8x256xbf16> to vector<8x128xbf16>
    %220 = arith.extf %219 : vector<8x128xbf16> to vector<8x128xf32>
    %221 = vector.extract_strided_slice %210 {offsets = [0, 128], sizes = [8, 128], strides = [1, 1]} : vector<8x256xf32> to vector<8x128xf32>
    %222 = arith.addf %220, %221 : vector<8x128xf32>
    %223 = vector.extract_strided_slice %216 {offsets = [0, 0], sizes = [8, 96], strides = [1, 1]} : vector<8x128xf32> to vector<8x96xf32>
    %224 = arith.negf %223 : vector<8x96xf32>
    %225 = math.exp %224 : vector<8x96xf32>
    %cst_74 = arith.constant 1.000000e+00 : f32
    %226 = vector.broadcast %cst_74 : f32 to vector<8x96xf32>
    %227 = arith.addf %226, %225 : vector<8x96xf32>
    %228 = arith.divf %226, %227 : vector<8x96xf32>
    %229 = vector.extract_strided_slice %216 {offsets = [0, 96], sizes = [8, 32], strides = [1, 1]} : vector<8x128xf32> to vector<8x32xf32>
    %230 = math.tanh %229 : vector<8x32xf32>
    %231 = vector.extract_strided_slice %222 {offsets = [0, 0], sizes = [8, 96], strides = [1, 1]} : vector<8x128xf32> to vector<8x96xf32>
    %232 = arith.negf %231 : vector<8x96xf32>
    %233 = math.exp %232 : vector<8x96xf32>
    %cst_75 = arith.constant 1.000000e+00 : f32
    %234 = vector.broadcast %cst_75 : f32 to vector<8x96xf32>
    %235 = arith.addf %234, %233 : vector<8x96xf32>
    %236 = arith.divf %234, %235 : vector<8x96xf32>
    %237 = vector.extract_strided_slice %222 {offsets = [0, 96], sizes = [8, 32], strides = [1, 1]} : vector<8x128xf32> to vector<8x32xf32>
    %238 = math.tanh %237 : vector<8x32xf32>
    %c3_76 = arith.constant 3 : index
    %c0_77 = arith.constant 0 : index
    %c0_78 = arith.constant 0 : index
    %239 = vector.load %arg2[%c3_76, %c0_77, %c0_78] : memref<8x8x1xf32, #tpu.memory_space<vmem>>, vector<1x8x1xf32>
    %240 = vector.shape_cast %239 : vector<1x8x1xf32> to vector<8x1xf32>
    %c4_79 = arith.constant 4 : index
    %c0_80 = arith.constant 0 : index
    %c0_81 = arith.constant 0 : index
    %241 = vector.load %arg2[%c4_79, %c0_80, %c0_81] : memref<8x8x1xf32, #tpu.memory_space<vmem>>, vector<1x8x1xf32>
    %242 = vector.shape_cast %241 : vector<1x8x1xf32> to vector<8x1xf32>
    %243 = vector.extract_strided_slice %228 {offsets = [0, 32], sizes = [8, 32], strides = [1, 1]} : vector<8x96xf32> to vector<8x32xf32>
    %244 = arith.mulf %243, %184 : vector<8x32xf32>
    %245 = vector.extract_strided_slice %228 {offsets = [0, 0], sizes = [8, 32], strides = [1, 1]} : vector<8x96xf32> to vector<8x32xf32>
    %246 = arith.mulf %245, %230 : vector<8x32xf32>
    %247 = arith.addf %244, %246 : vector<8x32xf32>
    %248 = vector.broadcast %240 : vector<8x1xf32> to vector<8x32xf32>
    %249 = arith.mulf %247, %248 : vector<8x32xf32>
    %250 = vector.extract_strided_slice %236 {offsets = [0, 32], sizes = [8, 32], strides = [1, 1]} : vector<8x96xf32> to vector<8x32xf32>
    %251 = arith.mulf %250, %191 : vector<8x32xf32>
    %252 = vector.extract_strided_slice %236 {offsets = [0, 0], sizes = [8, 32], strides = [1, 1]} : vector<8x96xf32> to vector<8x32xf32>
    %253 = arith.mulf %252, %238 : vector<8x32xf32>
    %254 = arith.addf %251, %253 : vector<8x32xf32>
    %255 = vector.broadcast %242 : vector<8x1xf32> to vector<8x32xf32>
    %256 = arith.mulf %254, %255 : vector<8x32xf32>
    %257 = vector.extract_strided_slice %228 {offsets = [0, 64], sizes = [8, 32], strides = [1, 1]} : vector<8x96xf32> to vector<8x32xf32>
    %258 = math.tanh %249 : vector<8x32xf32>
    %259 = arith.mulf %257, %258 : vector<8x32xf32>
    %260 = vector.broadcast %240 : vector<8x1xf32> to vector<8x32xf32>
    %261 = arith.mulf %259, %260 : vector<8x32xf32>
    %262 = vector.extract_strided_slice %236 {offsets = [0, 64], sizes = [8, 32], strides = [1, 1]} : vector<8x96xf32> to vector<8x32xf32>
    %263 = math.tanh %256 : vector<8x32xf32>
    %264 = arith.mulf %262, %263 : vector<8x32xf32>
    %265 = vector.broadcast %242 : vector<8x1xf32> to vector<8x32xf32>
    %266 = arith.mulf %264, %265 : vector<8x32xf32>
    %c3_82 = arith.constant 3 : index
    %c0_83 = arith.constant 0 : index
    %c0_84 = arith.constant 0 : index
    %267 = vector.load %arg6[%c3_82, %c0_83, %c0_84] : memref<8x8x64xf32, #tpu.memory_space<vmem>>, vector<1x8x32xf32>
    %268 = vector.shape_cast %267 : vector<1x8x32xf32> to vector<8x32xf32>
    %269 = vector.shape_cast %261 : vector<8x32xf32> to vector<1x8x32xf32>
    tpu.vector_store %arg6[%c3_82, %c0_83, %c0_84], %269 {strides = array<i32>} : memref<8x8x64xf32, #tpu.memory_space<vmem>>, vector<1x8x32xf32>,
    %c4_85 = arith.constant 4 : index
    %c0_86 = arith.constant 0 : index
    %c32_87 = arith.constant 32 : index
    %270 = vector.load %arg6[%c4_85, %c0_86, %c32_87] : memref<8x8x64xf32, #tpu.memory_space<vmem>>, vector<1x8x32xf32>
    %271 = vector.shape_cast %270 : vector<1x8x32xf32> to vector<8x32xf32>
    %272 = vector.shape_cast %266 : vector<8x32xf32> to vector<1x8x32xf32>
    tpu.vector_store %arg6[%c4_85, %c0_86, %c32_87], %272 {strides = array<i32>} : memref<8x8x64xf32, #tpu.memory_space<vmem>>, vector<1x8x32xf32>,
    %273 = tpu.concatenate %261, %266 in 1 : vector<8x32xf32>, vector<8x32xf32> -> vector<8x64xf32>
    %274 = arith.truncf %273 : vector<8x64xf32> to vector<8x64xbf16>
    %cst_88 = arith.constant dense<0.000000e+00> : vector<8x256xf32>
    %275 = tpu.matmul %274, %11, %cst_88 {dimension_numbers = #tpu.dot_dimension_numbers<[1], [0], [0], [1], [0, 0, 1, 1], [], []>} : vector<8x64xbf16>, vector<64x256xbf16>, vector<8x256xf32> -> vector<8x256xf32>
    %c4_89 = arith.constant 4 : index
    %c0_90 = arith.constant 0 : index
    %c0_91 = arith.constant 0 : index
    %276 = vector.load %arg7[%c4_89, %c0_90, %c0_91] : memref<8x8x256xbf16, #tpu.memory_space<vmem>>, vector<1x8x256xbf16>
    %277 = vector.shape_cast %276 : vector<1x8x256xbf16> to vector<8x256xbf16>
    %278 = vector.extract_strided_slice %277 {offsets = [0, 0], sizes = [8, 128], strides = [1, 1]} : vector<8x256xbf16> to vector<8x128xbf16>
    %279 = arith.extf %278 : vector<8x128xbf16> to vector<8x128xf32>
    %280 = vector.extract_strided_slice %275 {offsets = [0, 0], sizes = [8, 128], strides = [1, 1]} : vector<8x256xf32> to vector<8x128xf32>
    %281 = arith.addf %279, %280 : vector<8x128xf32>
    %c3_92 = arith.constant 3 : index
    %c0_93 = arith.constant 0 : index
    %c0_94 = arith.constant 0 : index
    %282 = vector.load %arg7[%c3_92, %c0_93, %c0_94] : memref<8x8x256xbf16, #tpu.memory_space<vmem>>, vector<1x8x256xbf16>
    %283 = vector.shape_cast %282 : vector<1x8x256xbf16> to vector<8x256xbf16>
    %284 = vector.extract_strided_slice %283 {offsets = [0, 128], sizes = [8, 128], strides = [1, 1]} : vector<8x256xbf16> to vector<8x128xbf16>
    %285 = arith.extf %284 : vector<8x128xbf16> to vector<8x128xf32>
    %286 = vector.extract_strided_slice %275 {offsets = [0, 128], sizes = [8, 128], strides = [1, 1]} : vector<8x256xf32> to vector<8x128xf32>
    %287 = arith.addf %285, %286 : vector<8x128xf32>
    %288 = vector.extract_strided_slice %281 {offsets = [0, 0], sizes = [8, 96], strides = [1, 1]} : vector<8x128xf32> to vector<8x96xf32>
    %289 = arith.negf %288 : vector<8x96xf32>
    %290 = math.exp %289 : vector<8x96xf32>
    %cst_95 = arith.constant 1.000000e+00 : f32
    %291 = vector.broadcast %cst_95 : f32 to vector<8x96xf32>
    %292 = arith.addf %291, %290 : vector<8x96xf32>
    %293 = arith.divf %291, %292 : vector<8x96xf32>
    %294 = vector.extract_strided_slice %281 {offsets = [0, 96], sizes = [8, 32], strides = [1, 1]} : vector<8x128xf32> to vector<8x32xf32>
    %295 = math.tanh %294 : vector<8x32xf32>
    %296 = vector.extract_strided_slice %287 {offsets = [0, 0], sizes = [8, 96], strides = [1, 1]} : vector<8x128xf32> to vector<8x96xf32>
    %297 = arith.negf %296 : vector<8x96xf32>
    %298 = math.exp %297 : vector<8x96xf32>
    %cst_96 = arith.constant 1.000000e+00 : f32
    %299 = vector.broadcast %cst_96 : f32 to vector<8x96xf32>
    %300 = arith.addf %299, %298 : vector<8x96xf32>
    %301 = arith.divf %299, %300 : vector<8x96xf32>
    %302 = vector.extract_strided_slice %287 {offsets = [0, 96], sizes = [8, 32], strides = [1, 1]} : vector<8x128xf32> to vector<8x32xf32>
    %303 = math.tanh %302 : vector<8x32xf32>
    %c4_97 = arith.constant 4 : index
    %c0_98 = arith.constant 0 : index
    %c0_99 = arith.constant 0 : index
    %304 = vector.load %arg2[%c4_97, %c0_98, %c0_99] : memref<8x8x1xf32, #tpu.memory_space<vmem>>, vector<1x8x1xf32>
    %305 = vector.shape_cast %304 : vector<1x8x1xf32> to vector<8x1xf32>
    %c3_100 = arith.constant 3 : index
    %c0_101 = arith.constant 0 : index
    %c0_102 = arith.constant 0 : index
    %306 = vector.load %arg2[%c3_100, %c0_101, %c0_102] : memref<8x8x1xf32, #tpu.memory_space<vmem>>, vector<1x8x1xf32>
    %307 = vector.shape_cast %306 : vector<1x8x1xf32> to vector<8x1xf32>
    %308 = vector.extract_strided_slice %293 {offsets = [0, 32], sizes = [8, 32], strides = [1, 1]} : vector<8x96xf32> to vector<8x32xf32>
    %309 = arith.mulf %308, %249 : vector<8x32xf32>
    %310 = vector.extract_strided_slice %293 {offsets = [0, 0], sizes = [8, 32], strides = [1, 1]} : vector<8x96xf32> to vector<8x32xf32>
    %311 = arith.mulf %310, %295 : vector<8x32xf32>
    %312 = arith.addf %309, %311 : vector<8x32xf32>
    %313 = vector.broadcast %305 : vector<8x1xf32> to vector<8x32xf32>
    %314 = arith.mulf %312, %313 : vector<8x32xf32>
    %315 = vector.extract_strided_slice %301 {offsets = [0, 32], sizes = [8, 32], strides = [1, 1]} : vector<8x96xf32> to vector<8x32xf32>
    %316 = arith.mulf %315, %256 : vector<8x32xf32>
    %317 = vector.extract_strided_slice %301 {offsets = [0, 0], sizes = [8, 32], strides = [1, 1]} : vector<8x96xf32> to vector<8x32xf32>
    %318 = arith.mulf %317, %303 : vector<8x32xf32>
    %319 = arith.addf %316, %318 : vector<8x32xf32>
    %320 = vector.broadcast %307 : vector<8x1xf32> to vector<8x32xf32>
    %321 = arith.mulf %319, %320 : vector<8x32xf32>
    %322 = vector.extract_strided_slice %293 {offsets = [0, 64], sizes = [8, 32], strides = [1, 1]} : vector<8x96xf32> to vector<8x32xf32>
    %323 = math.tanh %314 : vector<8x32xf32>
    %324 = arith.mulf %322, %323 : vector<8x32xf32>
    %325 = vector.broadcast %305 : vector<8x1xf32> to vector<8x32xf32>
    %326 = arith.mulf %324, %325 : vector<8x32xf32>
    %327 = vector.extract_strided_slice %301 {offsets = [0, 64], sizes = [8, 32], strides = [1, 1]} : vector<8x96xf32> to vector<8x32xf32>
    %328 = math.tanh %321 : vector<8x32xf32>
    %329 = arith.mulf %327, %328 : vector<8x32xf32>
    %330 = vector.broadcast %307 : vector<8x1xf32> to vector<8x32xf32>
    %331 = arith.mulf %329, %330 : vector<8x32xf32>
    %c4_103 = arith.constant 4 : index
    %c0_104 = arith.constant 0 : index
    %c0_105 = arith.constant 0 : index
    %332 = vector.load %arg6[%c4_103, %c0_104, %c0_105] : memref<8x8x64xf32, #tpu.memory_space<vmem>>, vector<1x8x32xf32>
    %333 = vector.shape_cast %332 : vector<1x8x32xf32> to vector<8x32xf32>
    %334 = vector.shape_cast %326 : vector<8x32xf32> to vector<1x8x32xf32>
    tpu.vector_store %arg6[%c4_103, %c0_104, %c0_105], %334 {strides = array<i32>} : memref<8x8x64xf32, #tpu.memory_space<vmem>>, vector<1x8x32xf32>,
    %c3_106 = arith.constant 3 : index
    %c0_107 = arith.constant 0 : index
    %c32_108 = arith.constant 32 : index
    %335 = vector.load %arg6[%c3_106, %c0_107, %c32_108] : memref<8x8x64xf32, #tpu.memory_space<vmem>>, vector<1x8x32xf32>
    %336 = vector.shape_cast %335 : vector<1x8x32xf32> to vector<8x32xf32>
    %337 = vector.shape_cast %331 : vector<8x32xf32> to vector<1x8x32xf32>
    tpu.vector_store %arg6[%c3_106, %c0_107, %c32_108], %337 {strides = array<i32>} : memref<8x8x64xf32, #tpu.memory_space<vmem>>, vector<1x8x32xf32>,
    %338 = tpu.concatenate %326, %331 in 1 : vector<8x32xf32>, vector<8x32xf32> -> vector<8x64xf32>
    %339 = arith.truncf %338 : vector<8x64xf32> to vector<8x64xbf16>
    %cst_109 = arith.constant dense<0.000000e+00> : vector<8x256xf32>
    %340 = tpu.matmul %339, %11, %cst_109 {dimension_numbers = #tpu.dot_dimension_numbers<[1], [0], [0], [1], [0, 0, 1, 1], [], []>} : vector<8x64xbf16>, vector<64x256xbf16>, vector<8x256xf32> -> vector<8x256xf32>
    %c5_110 = arith.constant 5 : index
    %c0_111 = arith.constant 0 : index
    %c0_112 = arith.constant 0 : index
    %341 = vector.load %arg7[%c5_110, %c0_111, %c0_112] : memref<8x8x256xbf16, #tpu.memory_space<vmem>>, vector<1x8x256xbf16>
    %342 = vector.shape_cast %341 : vector<1x8x256xbf16> to vector<8x256xbf16>
    %343 = vector.extract_strided_slice %342 {offsets = [0, 0], sizes = [8, 128], strides = [1, 1]} : vector<8x256xbf16> to vector<8x128xbf16>
    %344 = arith.extf %343 : vector<8x128xbf16> to vector<8x128xf32>
    %345 = vector.extract_strided_slice %340 {offsets = [0, 0], sizes = [8, 128], strides = [1, 1]} : vector<8x256xf32> to vector<8x128xf32>
    %346 = arith.addf %344, %345 : vector<8x128xf32>
    %c2_113 = arith.constant 2 : index
    %c0_114 = arith.constant 0 : index
    %c0_115 = arith.constant 0 : index
    %347 = vector.load %arg7[%c2_113, %c0_114, %c0_115] : memref<8x8x256xbf16, #tpu.memory_space<vmem>>, vector<1x8x256xbf16>
    %348 = vector.shape_cast %347 : vector<1x8x256xbf16> to vector<8x256xbf16>
    %349 = vector.extract_strided_slice %348 {offsets = [0, 128], sizes = [8, 128], strides = [1, 1]} : vector<8x256xbf16> to vector<8x128xbf16>
    %350 = arith.extf %349 : vector<8x128xbf16> to vector<8x128xf32>
    %351 = vector.extract_strided_slice %340 {offsets = [0, 128], sizes = [8, 128], strides = [1, 1]} : vector<8x256xf32> to vector<8x128xf32>
    %352 = arith.addf %350, %351 : vector<8x128xf32>
    %353 = vector.extract_strided_slice %346 {offsets = [0, 0], sizes = [8, 96], strides = [1, 1]} : vector<8x128xf32> to vector<8x96xf32>
    %354 = arith.negf %353 : vector<8x96xf32>
    %355 = math.exp %354 : vector<8x96xf32>
    %cst_116 = arith.constant 1.000000e+00 : f32
    %356 = vector.broadcast %cst_116 : f32 to vector<8x96xf32>
    %357 = arith.addf %356, %355 : vector<8x96xf32>
    %358 = arith.divf %356, %357 : vector<8x96xf32>
    %359 = vector.extract_strided_slice %346 {offsets = [0, 96], sizes = [8, 32], strides = [1, 1]} : vector<8x128xf32> to vector<8x32xf32>
    %360 = math.tanh %359 : vector<8x32xf32>
    %361 = vector.extract_strided_slice %352 {offsets = [0, 0], sizes = [8, 96], strides = [1, 1]} : vector<8x128xf32> to vector<8x96xf32>
    %362 = arith.negf %361 : vector<8x96xf32>
    %363 = math.exp %362 : vector<8x96xf32>
    %cst_117 = arith.constant 1.000000e+00 : f32
    %364 = vector.broadcast %cst_117 : f32 to vector<8x96xf32>
    %365 = arith.addf %364, %363 : vector<8x96xf32>
    %366 = arith.divf %364, %365 : vector<8x96xf32>
    %367 = vector.extract_strided_slice %352 {offsets = [0, 96], sizes = [8, 32], strides = [1, 1]} : vector<8x128xf32> to vector<8x32xf32>
    %368 = math.tanh %367 : vector<8x32xf32>
    %c5_118 = arith.constant 5 : index
    %c0_119 = arith.constant 0 : index
    %c0_120 = arith.constant 0 : index
    %369 = vector.load %arg2[%c5_118, %c0_119, %c0_120] : memref<8x8x1xf32, #tpu.memory_space<vmem>>, vector<1x8x1xf32>
    %370 = vector.shape_cast %369 : vector<1x8x1xf32> to vector<8x1xf32>
    %c2_121 = arith.constant 2 : index
    %c0_122 = arith.constant 0 : index
    %c0_123 = arith.constant 0 : index
    %371 = vector.load %arg2[%c2_121, %c0_122, %c0_123] : memref<8x8x1xf32, #tpu.memory_space<vmem>>, vector<1x8x1xf32>
    %372 = vector.shape_cast %371 : vector<1x8x1xf32> to vector<8x1xf32>
    %373 = vector.extract_strided_slice %358 {offsets = [0, 32], sizes = [8, 32], strides = [1, 1]} : vector<8x96xf32> to vector<8x32xf32>
    %374 = arith.mulf %373, %314 : vector<8x32xf32>
    %375 = vector.extract_strided_slice %358 {offsets = [0, 0], sizes = [8, 32], strides = [1, 1]} : vector<8x96xf32> to vector<8x32xf32>
    %376 = arith.mulf %375, %360 : vector<8x32xf32>
    %377 = arith.addf %374, %376 : vector<8x32xf32>
    %378 = vector.broadcast %370 : vector<8x1xf32> to vector<8x32xf32>
    %379 = arith.mulf %377, %378 : vector<8x32xf32>
    %380 = vector.extract_strided_slice %366 {offsets = [0, 32], sizes = [8, 32], strides = [1, 1]} : vector<8x96xf32> to vector<8x32xf32>
    %381 = arith.mulf %380, %321 : vector<8x32xf32>
    %382 = vector.extract_strided_slice %366 {offsets = [0, 0], sizes = [8, 32], strides = [1, 1]} : vector<8x96xf32> to vector<8x32xf32>
    %383 = arith.mulf %382, %368 : vector<8x32xf32>
    %384 = arith.addf %381, %383 : vector<8x32xf32>
    %385 = vector.broadcast %372 : vector<8x1xf32> to vector<8x32xf32>
    %386 = arith.mulf %384, %385 : vector<8x32xf32>
    %387 = vector.extract_strided_slice %358 {offsets = [0, 64], sizes = [8, 32], strides = [1, 1]} : vector<8x96xf32> to vector<8x32xf32>
    %388 = math.tanh %379 : vector<8x32xf32>
    %389 = arith.mulf %387, %388 : vector<8x32xf32>
    %390 = vector.broadcast %370 : vector<8x1xf32> to vector<8x32xf32>
    %391 = arith.mulf %389, %390 : vector<8x32xf32>
    %392 = vector.extract_strided_slice %366 {offsets = [0, 64], sizes = [8, 32], strides = [1, 1]} : vector<8x96xf32> to vector<8x32xf32>
    %393 = math.tanh %386 : vector<8x32xf32>
    %394 = arith.mulf %392, %393 : vector<8x32xf32>
    %395 = vector.broadcast %372 : vector<8x1xf32> to vector<8x32xf32>
    %396 = arith.mulf %394, %395 : vector<8x32xf32>
    %c5_124 = arith.constant 5 : index
    %c0_125 = arith.constant 0 : index
    %c0_126 = arith.constant 0 : index
    %397 = vector.load %arg6[%c5_124, %c0_125, %c0_126] : memref<8x8x64xf32, #tpu.memory_space<vmem>>, vector<1x8x32xf32>
    %398 = vector.shape_cast %397 : vector<1x8x32xf32> to vector<8x32xf32>
    %399 = vector.shape_cast %391 : vector<8x32xf32> to vector<1x8x32xf32>
    tpu.vector_store %arg6[%c5_124, %c0_125, %c0_126], %399 {strides = array<i32>} : memref<8x8x64xf32, #tpu.memory_space<vmem>>, vector<1x8x32xf32>,
    %c2_127 = arith.constant 2 : index
    %c0_128 = arith.constant 0 : index
    %c32_129 = arith.constant 32 : index
    %400 = vector.load %arg6[%c2_127, %c0_128, %c32_129] : memref<8x8x64xf32, #tpu.memory_space<vmem>>, vector<1x8x32xf32>
    %401 = vector.shape_cast %400 : vector<1x8x32xf32> to vector<8x32xf32>
    %402 = vector.shape_cast %396 : vector<8x32xf32> to vector<1x8x32xf32>
    tpu.vector_store %arg6[%c2_127, %c0_128, %c32_129], %402 {strides = array<i32>} : memref<8x8x64xf32, #tpu.memory_space<vmem>>, vector<1x8x32xf32>,
    %403 = tpu.concatenate %391, %396 in 1 : vector<8x32xf32>, vector<8x32xf32> -> vector<8x64xf32>
    %404 = arith.truncf %403 : vector<8x64xf32> to vector<8x64xbf16>
    %cst_130 = arith.constant dense<0.000000e+00> : vector<8x256xf32>
    %405 = tpu.matmul %404, %11, %cst_130 {dimension_numbers = #tpu.dot_dimension_numbers<[1], [0], [0], [1], [0, 0, 1, 1], [], []>} : vector<8x64xbf16>, vector<64x256xbf16>, vector<8x256xf32> -> vector<8x256xf32>
    %c6_131 = arith.constant 6 : index
    %c0_132 = arith.constant 0 : index
    %c0_133 = arith.constant 0 : index
    %406 = vector.load %arg7[%c6_131, %c0_132, %c0_133] : memref<8x8x256xbf16, #tpu.memory_space<vmem>>, vector<1x8x256xbf16>
    %407 = vector.shape_cast %406 : vector<1x8x256xbf16> to vector<8x256xbf16>
    %408 = vector.extract_strided_slice %407 {offsets = [0, 0], sizes = [8, 128], strides = [1, 1]} : vector<8x256xbf16> to vector<8x128xbf16>
    %409 = arith.extf %408 : vector<8x128xbf16> to vector<8x128xf32>
    %410 = vector.extract_strided_slice %405 {offsets = [0, 0], sizes = [8, 128], strides = [1, 1]} : vector<8x256xf32> to vector<8x128xf32>
    %411 = arith.addf %409, %410 : vector<8x128xf32>
    %c1_134 = arith.constant 1 : index
    %c0_135 = arith.constant 0 : index
    %c0_136 = arith.constant 0 : index
    %412 = vector.load %arg7[%c1_134, %c0_135, %c0_136] : memref<8x8x256xbf16, #tpu.memory_space<vmem>>, vector<1x8x256xbf16>
    %413 = vector.shape_cast %412 : vector<1x8x256xbf16> to vector<8x256xbf16>
    %414 = vector.extract_strided_slice %413 {offsets = [0, 128], sizes = [8, 128], strides = [1, 1]} : vector<8x256xbf16> to vector<8x128xbf16>
    %415 = arith.extf %414 : vector<8x128xbf16> to vector<8x128xf32>
    %416 = vector.extract_strided_slice %405 {offsets = [0, 128], sizes = [8, 128], strides = [1, 1]} : vector<8x256xf32> to vector<8x128xf32>
    %417 = arith.addf %415, %416 : vector<8x128xf32>
    %418 = vector.extract_strided_slice %411 {offsets = [0, 0], sizes = [8, 96], strides = [1, 1]} : vector<8x128xf32> to vector<8x96xf32>
    %419 = arith.negf %418 : vector<8x96xf32>
    %420 = math.exp %419 : vector<8x96xf32>
    %cst_137 = arith.constant 1.000000e+00 : f32
    %421 = vector.broadcast %cst_137 : f32 to vector<8x96xf32>
    %422 = arith.addf %421, %420 : vector<8x96xf32>
    %423 = arith.divf %421, %422 : vector<8x96xf32>
    %424 = vector.extract_strided_slice %411 {offsets = [0, 96], sizes = [8, 32], strides = [1, 1]} : vector<8x128xf32> to vector<8x32xf32>
    %425 = math.tanh %424 : vector<8x32xf32>
    %426 = vector.extract_strided_slice %417 {offsets = [0, 0], sizes = [8, 96], strides = [1, 1]} : vector<8x128xf32> to vector<8x96xf32>
    %427 = arith.negf %426 : vector<8x96xf32>
    %428 = math.exp %427 : vector<8x96xf32>
    %cst_138 = arith.constant 1.000000e+00 : f32
    %429 = vector.broadcast %cst_138 : f32 to vector<8x96xf32>
    %430 = arith.addf %429, %428 : vector<8x96xf32>
    %431 = arith.divf %429, %430 : vector<8x96xf32>
    %432 = vector.extract_strided_slice %417 {offsets = [0, 96], sizes = [8, 32], strides = [1, 1]} : vector<8x128xf32> to vector<8x32xf32>
    %433 = math.tanh %432 : vector<8x32xf32>
    %c6_139 = arith.constant 6 : index
    %c0_140 = arith.constant 0 : index
    %c0_141 = arith.constant 0 : index
    %434 = vector.load %arg2[%c6_139, %c0_140, %c0_141] : memref<8x8x1xf32, #tpu.memory_space<vmem>>, vector<1x8x1xf32>
    %435 = vector.shape_cast %434 : vector<1x8x1xf32> to vector<8x1xf32>
    %c1_142 = arith.constant 1 : index
    %c0_143 = arith.constant 0 : index
    %c0_144 = arith.constant 0 : index
    %436 = vector.load %arg2[%c1_142, %c0_143, %c0_144] : memref<8x8x1xf32, #tpu.memory_space<vmem>>, vector<1x8x1xf32>
    %437 = vector.shape_cast %436 : vector<1x8x1xf32> to vector<8x1xf32>
    %438 = vector.extract_strided_slice %423 {offsets = [0, 32], sizes = [8, 32], strides = [1, 1]} : vector<8x96xf32> to vector<8x32xf32>
    %439 = arith.mulf %438, %379 : vector<8x32xf32>
    %440 = vector.extract_strided_slice %423 {offsets = [0, 0], sizes = [8, 32], strides = [1, 1]} : vector<8x96xf32> to vector<8x32xf32>
    %441 = arith.mulf %440, %425 : vector<8x32xf32>
    %442 = arith.addf %439, %441 : vector<8x32xf32>
    %443 = vector.broadcast %435 : vector<8x1xf32> to vector<8x32xf32>
    %444 = arith.mulf %442, %443 : vector<8x32xf32>
    %445 = vector.extract_strided_slice %431 {offsets = [0, 32], sizes = [8, 32], strides = [1, 1]} : vector<8x96xf32> to vector<8x32xf32>
    %446 = arith.mulf %445, %386 : vector<8x32xf32>
    %447 = vector.extract_strided_slice %431 {offsets = [0, 0], sizes = [8, 32], strides = [1, 1]} : vector<8x96xf32> to vector<8x32xf32>
    %448 = arith.mulf %447, %433 : vector<8x32xf32>
    %449 = arith.addf %446, %448 : vector<8x32xf32>
    %450 = vector.broadcast %437 : vector<8x1xf32> to vector<8x32xf32>
    %451 = arith.mulf %449, %450 : vector<8x32xf32>
    %452 = vector.extract_strided_slice %423 {offsets = [0, 64], sizes = [8, 32], strides = [1, 1]} : vector<8x96xf32> to vector<8x32xf32>
    %453 = math.tanh %444 : vector<8x32xf32>
    %454 = arith.mulf %452, %453 : vector<8x32xf32>
    %455 = vector.broadcast %435 : vector<8x1xf32> to vector<8x32xf32>
    %456 = arith.mulf %454, %455 : vector<8x32xf32>
    %457 = vector.extract_strided_slice %431 {offsets = [0, 64], sizes = [8, 32], strides = [1, 1]} : vector<8x96xf32> to vector<8x32xf32>
    %458 = math.tanh %451 : vector<8x32xf32>
    %459 = arith.mulf %457, %458 : vector<8x32xf32>
    %460 = vector.broadcast %437 : vector<8x1xf32> to vector<8x32xf32>
    %461 = arith.mulf %459, %460 : vector<8x32xf32>
    %c6_145 = arith.constant 6 : index
    %c0_146 = arith.constant 0 : index
    %c0_147 = arith.constant 0 : index
    %462 = vector.load %arg6[%c6_145, %c0_146, %c0_147] : memref<8x8x64xf32, #tpu.memory_space<vmem>>, vector<1x8x32xf32>
    %463 = vector.shape_cast %462 : vector<1x8x32xf32> to vector<8x32xf32>
    %464 = vector.shape_cast %456 : vector<8x32xf32> to vector<1x8x32xf32>
    tpu.vector_store %arg6[%c6_145, %c0_146, %c0_147], %464 {strides = array<i32>} : memref<8x8x64xf32, #tpu.memory_space<vmem>>, vector<1x8x32xf32>,
    %c1_148 = arith.constant 1 : index
    %c0_149 = arith.constant 0 : index
    %c32_150 = arith.constant 32 : index
    %465 = vector.load %arg6[%c1_148, %c0_149, %c32_150] : memref<8x8x64xf32, #tpu.memory_space<vmem>>, vector<1x8x32xf32>
    %466 = vector.shape_cast %465 : vector<1x8x32xf32> to vector<8x32xf32>
    %467 = vector.shape_cast %461 : vector<8x32xf32> to vector<1x8x32xf32>
    tpu.vector_store %arg6[%c1_148, %c0_149, %c32_150], %467 {strides = array<i32>} : memref<8x8x64xf32, #tpu.memory_space<vmem>>, vector<1x8x32xf32>,
    %468 = tpu.concatenate %456, %461 in 1 : vector<8x32xf32>, vector<8x32xf32> -> vector<8x64xf32>
    %469 = arith.truncf %468 : vector<8x64xf32> to vector<8x64xbf16>
    %cst_151 = arith.constant dense<0.000000e+00> : vector<8x256xf32>
    %470 = tpu.matmul %469, %11, %cst_151 {dimension_numbers = #tpu.dot_dimension_numbers<[1], [0], [0], [1], [0, 0, 1, 1], [], []>} : vector<8x64xbf16>, vector<64x256xbf16>, vector<8x256xf32> -> vector<8x256xf32>
    %c7_152 = arith.constant 7 : index
    %c0_153 = arith.constant 0 : index
    %c0_154 = arith.constant 0 : index
    %471 = vector.load %arg7[%c7_152, %c0_153, %c0_154] : memref<8x8x256xbf16, #tpu.memory_space<vmem>>, vector<1x8x256xbf16>
    %472 = vector.shape_cast %471 : vector<1x8x256xbf16> to vector<8x256xbf16>
    %473 = vector.extract_strided_slice %472 {offsets = [0, 0], sizes = [8, 128], strides = [1, 1]} : vector<8x256xbf16> to vector<8x128xbf16>
    %474 = arith.extf %473 : vector<8x128xbf16> to vector<8x128xf32>
    %475 = vector.extract_strided_slice %470 {offsets = [0, 0], sizes = [8, 128], strides = [1, 1]} : vector<8x256xf32> to vector<8x128xf32>
    %476 = arith.addf %474, %475 : vector<8x128xf32>
    %c0_155 = arith.constant 0 : index
    %c0_156 = arith.constant 0 : index
    %c0_157 = arith.constant 0 : index
    %477 = vector.load %arg7[%c0_155, %c0_156, %c0_157] : memref<8x8x256xbf16, #tpu.memory_space<vmem>>, vector<1x8x256xbf16>
    %478 = vector.shape_cast %477 : vector<1x8x256xbf16> to vector<8x256xbf16>
    %479 = vector.extract_strided_slice %478 {offsets = [0, 128], sizes = [8, 128], strides = [1, 1]} : vector<8x256xbf16> to vector<8x128xbf16>
    %480 = arith.extf %479 : vector<8x128xbf16> to vector<8x128xf32>
    %481 = vector.extract_strided_slice %470 {offsets = [0, 128], sizes = [8, 128], strides = [1, 1]} : vector<8x256xf32> to vector<8x128xf32>
    %482 = arith.addf %480, %481 : vector<8x128xf32>
    %483 = vector.extract_strided_slice %476 {offsets = [0, 0], sizes = [8, 96], strides = [1, 1]} : vector<8x128xf32> to vector<8x96xf32>
    %484 = arith.negf %483 : vector<8x96xf32>
    %485 = math.exp %484 : vector<8x96xf32>
    %cst_158 = arith.constant 1.000000e+00 : f32
    %486 = vector.broadcast %cst_158 : f32 to vector<8x96xf32>
    %487 = arith.addf %486, %485 : vector<8x96xf32>
    %488 = arith.divf %486, %487 : vector<8x96xf32>
    %489 = vector.extract_strided_slice %476 {offsets = [0, 96], sizes = [8, 32], strides = [1, 1]} : vector<8x128xf32> to vector<8x32xf32>
    %490 = math.tanh %489 : vector<8x32xf32>
    %491 = vector.extract_strided_slice %482 {offsets = [0, 0], sizes = [8, 96], strides = [1, 1]} : vector<8x128xf32> to vector<8x96xf32>
    %492 = arith.negf %491 : vector<8x96xf32>
    %493 = math.exp %492 : vector<8x96xf32>
    %cst_159 = arith.constant 1.000000e+00 : f32
    %494 = vector.broadcast %cst_159 : f32 to vector<8x96xf32>
    %495 = arith.addf %494, %493 : vector<8x96xf32>
    %496 = arith.divf %494, %495 : vector<8x96xf32>
    %497 = vector.extract_strided_slice %482 {offsets = [0, 96], sizes = [8, 32], strides = [1, 1]} : vector<8x128xf32> to vector<8x32xf32>
    %498 = math.tanh %497 : vector<8x32xf32>
    %c7_160 = arith.constant 7 : index
    %c0_161 = arith.constant 0 : index
    %c0_162 = arith.constant 0 : index
    %499 = vector.load %arg2[%c7_160, %c0_161, %c0_162] : memref<8x8x1xf32, #tpu.memory_space<vmem>>, vector<1x8x1xf32>
    %500 = vector.shape_cast %499 : vector<1x8x1xf32> to vector<8x1xf32>
    %c0_163 = arith.constant 0 : index
    %c0_164 = arith.constant 0 : index
    %c0_165 = arith.constant 0 : index
    %501 = vector.load %arg2[%c0_163, %c0_164, %c0_165] : memref<8x8x1xf32, #tpu.memory_space<vmem>>, vector<1x8x1xf32>
    %502 = vector.shape_cast %501 : vector<1x8x1xf32> to vector<8x1xf32>
    %503 = vector.extract_strided_slice %488 {offsets = [0, 32], sizes = [8, 32], strides = [1, 1]} : vector<8x96xf32> to vector<8x32xf32>
    %504 = arith.mulf %503, %444 : vector<8x32xf32>
    %505 = vector.extract_strided_slice %488 {offsets = [0, 0], sizes = [8, 32], strides = [1, 1]} : vector<8x96xf32> to vector<8x32xf32>
    %506 = arith.mulf %505, %490 : vector<8x32xf32>
    %507 = arith.addf %504, %506 : vector<8x32xf32>
    %508 = vector.broadcast %500 : vector<8x1xf32> to vector<8x32xf32>
    %509 = arith.mulf %507, %508 : vector<8x32xf32>
    %510 = vector.extract_strided_slice %496 {offsets = [0, 32], sizes = [8, 32], strides = [1, 1]} : vector<8x96xf32> to vector<8x32xf32>
    %511 = arith.mulf %510, %451 : vector<8x32xf32>
    %512 = vector.extract_strided_slice %496 {offsets = [0, 0], sizes = [8, 32], strides = [1, 1]} : vector<8x96xf32> to vector<8x32xf32>
    %513 = arith.mulf %512, %498 : vector<8x32xf32>
    %514 = arith.addf %511, %513 : vector<8x32xf32>
    %515 = vector.broadcast %502 : vector<8x1xf32> to vector<8x32xf32>
    %516 = arith.mulf %514, %515 : vector<8x32xf32>
    %517 = vector.extract_strided_slice %488 {offsets = [0, 64], sizes = [8, 32], strides = [1, 1]} : vector<8x96xf32> to vector<8x32xf32>
    %518 = math.tanh %509 : vector<8x32xf32>
    %519 = arith.mulf %517, %518 : vector<8x32xf32>
    %520 = vector.broadcast %500 : vector<8x1xf32> to vector<8x32xf32>
    %521 = arith.mulf %519, %520 : vector<8x32xf32>
    %522 = vector.extract_strided_slice %496 {offsets = [0, 64], sizes = [8, 32], strides = [1, 1]} : vector<8x96xf32> to vector<8x32xf32>
    %523 = math.tanh %516 : vector<8x32xf32>
    %524 = arith.mulf %522, %523 : vector<8x32xf32>
    %525 = vector.broadcast %502 : vector<8x1xf32> to vector<8x32xf32>
    %526 = arith.mulf %524, %525 : vector<8x32xf32>
    %c7_166 = arith.constant 7 : index
    %c0_167 = arith.constant 0 : index
    %c0_168 = arith.constant 0 : index
    %527 = vector.load %arg6[%c7_166, %c0_167, %c0_168] : memref<8x8x64xf32, #tpu.memory_space<vmem>>, vector<1x8x32xf32>
    %528 = vector.shape_cast %527 : vector<1x8x32xf32> to vector<8x32xf32>
    %529 = vector.shape_cast %521 : vector<8x32xf32> to vector<1x8x32xf32>
    tpu.vector_store %arg6[%c7_166, %c0_167, %c0_168], %529 {strides = array<i32>} : memref<8x8x64xf32, #tpu.memory_space<vmem>>, vector<1x8x32xf32>,
    %c0_169 = arith.constant 0 : index
    %c0_170 = arith.constant 0 : index
    %c32_171 = arith.constant 32 : index
    %530 = vector.load %arg6[%c0_169, %c0_170, %c32_171] : memref<8x8x64xf32, #tpu.memory_space<vmem>>, vector<1x8x32xf32>
    %531 = vector.shape_cast %530 : vector<1x8x32xf32> to vector<8x32xf32>
    %532 = vector.shape_cast %526 : vector<8x32xf32> to vector<1x8x32xf32>
    tpu.vector_store %arg6[%c0_169, %c0_170, %c32_171], %532 {strides = array<i32>} : memref<8x8x64xf32, #tpu.memory_space<vmem>>, vector<1x8x32xf32>,
    return
  }
  func.func @transform_0(%arg0: i32) -> (i32, i32, i32) {
    %c0_i32 = arith.constant 0 : i32
    %c0_i32_0 = arith.constant 0 : i32
    %c0_i32_1 = arith.constant 0 : i32
    return %c0_i32, %arg0, %c0_i32_0 : i32, i32, i32
  }
  func.func @transform_1(%arg0: i32) -> (i32, i32, i32) {
    %c0_i32 = arith.constant 0 : i32
    %c0_i32_0 = arith.constant 0 : i32
    %c0_i32_1 = arith.constant 0 : i32
    return %c0_i32, %arg0, %c0_i32_0 : i32, i32, i32
  }
  func.func @transform_2(%arg0: i32) -> (i32, i32) {
    %c0_i32 = arith.constant 0 : i32
    %c0_i32_0 = arith.constant 0 : i32
    %c0_i32_1 = arith.constant 0 : i32
    return %c0_i32, %c0_i32_0 : i32, i32
  }
  func.func @transform_3(%arg0: i32) -> (i32, i32) {
    %c0_i32 = arith.constant 0 : i32
    %c0_i32_0 = arith.constant 0 : i32
    %c0_i32_1 = arith.constant 0 : i32
    return %c0_i32, %c0_i32_0 : i32, i32
  }
  func.func @transform_4(%arg0: i32) -> (i32, i32) {
    %c0_i32 = arith.constant 0 : i32
    %c0_i32_0 = arith.constant 0 : i32
    %c0_i32_1 = arith.constant 0 : i32
    return %c0_i32, %c0_i32_0 : i32, i32
  }
  func.func @transform_5(%arg0: i32) -> (i32, i32, i32) {
    %c0_i32 = arith.constant 0 : i32
    %c0_i32_0 = arith.constant 0 : i32
    %c0_i32_1 = arith.constant 0 : i32
    return %c0_i32, %arg0, %c0_i32_0 : i32, i32, i32
  }
}

module attributes {stable_mosaic.version = 11 : i64} {
  func.func @_mha_mlp_kernel(%arg0: i32, %arg1: memref<1x8x64xf32, #tpu.memory_space<vmem>>, %arg2: memref<64x192xbf16, #tpu.memory_space<vmem>>, %arg3: memref<1x192xf32, #tpu.memory_space<vmem>>, %arg4: memref<64x64xbf16, #tpu.memory_space<vmem>>, %arg5: memref<1x64xf32, #tpu.memory_space<vmem>>, %arg6: memref<64x600xbf16, #tpu.memory_space<vmem>>, %arg7: memref<1x600xf32, #tpu.memory_space<vmem>>, %arg8: memref<1x1x8xf32, #tpu.memory_space<vmem>>, %arg9: memref<1x8x600xf32, #tpu.memory_space<vmem>>) attributes {dimension_semantics = [#tpu.dimension_semantics<parallel>], iteration_bounds = array<i64: 2>, scalar_prefetch = 0 : i64, scratch_operands = 0 : i64, tpu.core_type = #tpu.core_type<tc>, window_params = [{transform_indices = @transform_0, window_bounds = array<i64: 1, 8, 64>}, {pipeline_mode = #tpu.pipeline_mode<synchronous>, transform_indices = @transform_1, window_bounds = array<i64: 64, 192>}, {pipeline_mode = #tpu.pipeline_mode<synchronous>, transform_indices = @transform_2, window_bounds = array<i64: 1, 192>}, {pipeline_mode = #tpu.pipeline_mode<synchronous>, transform_indices = @transform_3, window_bounds = array<i64: 64, 64>}, {pipeline_mode = #tpu.pipeline_mode<synchronous>, transform_indices = @transform_4, window_bounds = array<i64: 1, 64>}, {pipeline_mode = #tpu.pipeline_mode<synchronous>, transform_indices = @transform_5, window_bounds = array<i64: 64, 600>}, {pipeline_mode = #tpu.pipeline_mode<synchronous>, transform_indices = @transform_6, window_bounds = array<i64: 1, 600>}, {transform_indices = @transform_7, window_bounds = array<i64: 1, 1, 8>}, {transform_indices = @transform_8, window_bounds = array<i64: 1, 8, 600>}]} {
    %c0 = arith.constant 0 : index
    %c0_0 = arith.constant 0 : index
    %c0_1 = arith.constant 0 : index
    %0 = vector.load %arg1[%c0, %c0_0, %c0_1] : memref<1x8x64xf32, #tpu.memory_space<vmem>>, vector<1x8x64xf32>
    %1 = vector.shape_cast %0 : vector<1x8x64xf32> to vector<8x64xf32>
    %2 = arith.truncf %1 : vector<8x64xf32> to vector<8x64xbf16>
    %c0_2 = arith.constant 0 : index
    %c0_3 = arith.constant 0 : index
    %3 = vector.load %arg2[%c0_2, %c0_3] : memref<64x192xbf16, #tpu.memory_space<vmem>>, vector<64x192xbf16>
    %cst = arith.constant dense<0.000000e+00> : vector<8x192xf32>
    %4 = tpu.matmul %2, %3, %cst {dimension_numbers = #tpu.dot_dimension_numbers<[1], [0], [0], [1], [0, 0, 1, 1], [], []>} : vector<8x64xbf16>, vector<64x192xbf16>, vector<8x192xf32> -> vector<8x192xf32>
    %c0_4 = arith.constant 0 : index
    %c0_5 = arith.constant 0 : index
    %5 = vector.load %arg3[%c0_4, %c0_5] : memref<1x192xf32, #tpu.memory_space<vmem>>, vector<1x192xf32>
    %6 = vector.broadcast %5 : vector<1x192xf32> to vector<8x192xf32>
    %7 = arith.addf %4, %6 : vector<8x192xf32>
    %c0_6 = arith.constant 0 : index
    %c0_7 = arith.constant 0 : index
    %c0_8 = arith.constant 0 : index
    %8 = vector.load %arg8[%c0_6, %c0_7, %c0_8] : memref<1x1x8xf32, #tpu.memory_space<vmem>>, vector<1x1x8xf32>
    %9 = vector.shape_cast %8 : vector<1x1x8xf32> to vector<1x8xf32>
    %10 = vector.extract_strided_slice %7 {offsets = [0, 0], sizes = [8, 16], strides = [1, 1]} : vector<8x192xf32> to vector<8x16xf32>
    %11 = arith.truncf %10 : vector<8x16xf32> to vector<8x16xbf16>
    %12 = vector.extract_strided_slice %7 {offsets = [0, 64], sizes = [8, 16], strides = [1, 1]} : vector<8x192xf32> to vector<8x16xf32>
    %13 = arith.truncf %12 : vector<8x16xf32> to vector<8x16xbf16>
    %14 = vector.extract_strided_slice %7 {offsets = [0, 128], sizes = [8, 16], strides = [1, 1]} : vector<8x192xf32> to vector<8x16xf32>
    %15 = arith.truncf %14 : vector<8x16xf32> to vector<8x16xbf16>
    %cst_9 = arith.constant dense<0.000000e+00> : vector<8x8xf32>
    %16 = tpu.matmul %11, %13, %cst_9 {dimension_numbers = #tpu.dot_dimension_numbers<[1], [1], [0], [0], [0, 0, 1, 0], [], []>} : vector<8x16xbf16>, vector<8x16xbf16>, vector<8x8xf32> -> vector<8x8xf32>
    %cst_10 = arith.constant 2.500000e-01 : f32
    %17 = vector.broadcast %cst_10 : f32 to vector<8x8xf32>
    %18 = arith.mulf %16, %17 : vector<8x8xf32>
    %cst_11 = arith.constant 5.000000e-01 : f32
    %19 = vector.broadcast %cst_11 : f32 to vector<1x8xf32>
    %20 = arith.cmpf ogt, %9, %19 : vector<1x8xf32>
    %cst_12 = arith.constant -1.000000e+30 : f32
    %21 = vector.shape_cast %20 : vector<1x8xi1> to vector<1x8xi1>
    %22 = vector.broadcast %21 : vector<1x8xi1> to vector<8x8xi1>
    %23 = vector.broadcast %cst_12 : f32 to vector<8x8xf32>
    %24 = arith.select %22, %18, %23 : vector<8x8xi1>, vector<8x8xf32>
    %cst_13 = arith.constant dense<0xFF800000> : vector<8xf32>
    %25 = vector.multi_reduction <maximumf>, %24, %cst_13 [1] : vector<8x8xf32> to vector<8xf32>
    %26 = vector.shape_cast %25 : vector<8xf32> to vector<8x1xf32>
    %27 = vector.broadcast %26 : vector<8x1xf32> to vector<8x8xf32>
    %28 = arith.subf %24, %27 : vector<8x8xf32>
    %29 = math.exp %28 : vector<8x8xf32>
    %cst_14 = arith.constant dense<0.000000e+00> : vector<8xf32>
    %30 = vector.multi_reduction <add>, %29, %cst_14 [1] : vector<8x8xf32> to vector<8xf32>
    %31 = vector.shape_cast %30 : vector<8xf32> to vector<8x1xf32>
    %32 = tpu.reciprocal %31 {approx = true} : vector<8x1xf32> -> vector<8x1xf32>
    %33 = vector.broadcast %32 : vector<8x1xf32> to vector<8x8xf32>
    %34 = arith.mulf %29, %33 : vector<8x8xf32>
    %35 = arith.truncf %34 : vector<8x8xf32> to vector<8x8xbf16>
    %cst_15 = arith.constant dense<0.000000e+00> : vector<8x16xf32>
    %36 = tpu.matmul %35, %15, %cst_15 {dimension_numbers = #tpu.dot_dimension_numbers<[1], [0], [0], [1], [0, 0, 1, 1], [], []>} : vector<8x8xbf16>, vector<8x16xbf16>, vector<8x16xf32> -> vector<8x16xf32>
    %37 = vector.extract_strided_slice %7 {offsets = [0, 16], sizes = [8, 16], strides = [1, 1]} : vector<8x192xf32> to vector<8x16xf32>
    %38 = arith.truncf %37 : vector<8x16xf32> to vector<8x16xbf16>
    %39 = vector.extract_strided_slice %7 {offsets = [0, 80], sizes = [8, 16], strides = [1, 1]} : vector<8x192xf32> to vector<8x16xf32>
    %40 = arith.truncf %39 : vector<8x16xf32> to vector<8x16xbf16>
    %41 = vector.extract_strided_slice %7 {offsets = [0, 144], sizes = [8, 16], strides = [1, 1]} : vector<8x192xf32> to vector<8x16xf32>
    %42 = arith.truncf %41 : vector<8x16xf32> to vector<8x16xbf16>
    %cst_16 = arith.constant dense<0.000000e+00> : vector<8x8xf32>
    %43 = tpu.matmul %38, %40, %cst_16 {dimension_numbers = #tpu.dot_dimension_numbers<[1], [1], [0], [0], [0, 0, 1, 0], [], []>} : vector<8x16xbf16>, vector<8x16xbf16>, vector<8x8xf32> -> vector<8x8xf32>
    %cst_17 = arith.constant 2.500000e-01 : f32
    %44 = vector.broadcast %cst_17 : f32 to vector<8x8xf32>
    %45 = arith.mulf %43, %44 : vector<8x8xf32>
    %cst_18 = arith.constant 5.000000e-01 : f32
    %46 = vector.broadcast %cst_18 : f32 to vector<1x8xf32>
    %47 = arith.cmpf ogt, %9, %46 : vector<1x8xf32>
    %cst_19 = arith.constant -1.000000e+30 : f32
    %48 = vector.shape_cast %47 : vector<1x8xi1> to vector<1x8xi1>
    %49 = vector.broadcast %48 : vector<1x8xi1> to vector<8x8xi1>
    %50 = vector.broadcast %cst_19 : f32 to vector<8x8xf32>
    %51 = arith.select %49, %45, %50 : vector<8x8xi1>, vector<8x8xf32>
    %cst_20 = arith.constant dense<0xFF800000> : vector<8xf32>
    %52 = vector.multi_reduction <maximumf>, %51, %cst_20 [1] : vector<8x8xf32> to vector<8xf32>
    %53 = vector.shape_cast %52 : vector<8xf32> to vector<8x1xf32>
    %54 = vector.broadcast %53 : vector<8x1xf32> to vector<8x8xf32>
    %55 = arith.subf %51, %54 : vector<8x8xf32>
    %56 = math.exp %55 : vector<8x8xf32>
    %cst_21 = arith.constant dense<0.000000e+00> : vector<8xf32>
    %57 = vector.multi_reduction <add>, %56, %cst_21 [1] : vector<8x8xf32> to vector<8xf32>
    %58 = vector.shape_cast %57 : vector<8xf32> to vector<8x1xf32>
    %59 = tpu.reciprocal %58 {approx = true} : vector<8x1xf32> -> vector<8x1xf32>
    %60 = vector.broadcast %59 : vector<8x1xf32> to vector<8x8xf32>
    %61 = arith.mulf %56, %60 : vector<8x8xf32>
    %62 = arith.truncf %61 : vector<8x8xf32> to vector<8x8xbf16>
    %cst_22 = arith.constant dense<0.000000e+00> : vector<8x16xf32>
    %63 = tpu.matmul %62, %42, %cst_22 {dimension_numbers = #tpu.dot_dimension_numbers<[1], [0], [0], [1], [0, 0, 1, 1], [], []>} : vector<8x8xbf16>, vector<8x16xbf16>, vector<8x16xf32> -> vector<8x16xf32>
    %64 = vector.extract_strided_slice %7 {offsets = [0, 32], sizes = [8, 16], strides = [1, 1]} : vector<8x192xf32> to vector<8x16xf32>
    %65 = arith.truncf %64 : vector<8x16xf32> to vector<8x16xbf16>
    %66 = vector.extract_strided_slice %7 {offsets = [0, 96], sizes = [8, 16], strides = [1, 1]} : vector<8x192xf32> to vector<8x16xf32>
    %67 = arith.truncf %66 : vector<8x16xf32> to vector<8x16xbf16>
    %68 = vector.extract_strided_slice %7 {offsets = [0, 160], sizes = [8, 16], strides = [1, 1]} : vector<8x192xf32> to vector<8x16xf32>
    %69 = arith.truncf %68 : vector<8x16xf32> to vector<8x16xbf16>
    %cst_23 = arith.constant dense<0.000000e+00> : vector<8x8xf32>
    %70 = tpu.matmul %65, %67, %cst_23 {dimension_numbers = #tpu.dot_dimension_numbers<[1], [1], [0], [0], [0, 0, 1, 0], [], []>} : vector<8x16xbf16>, vector<8x16xbf16>, vector<8x8xf32> -> vector<8x8xf32>
    %cst_24 = arith.constant 2.500000e-01 : f32
    %71 = vector.broadcast %cst_24 : f32 to vector<8x8xf32>
    %72 = arith.mulf %70, %71 : vector<8x8xf32>
    %cst_25 = arith.constant 5.000000e-01 : f32
    %73 = vector.broadcast %cst_25 : f32 to vector<1x8xf32>
    %74 = arith.cmpf ogt, %9, %73 : vector<1x8xf32>
    %cst_26 = arith.constant -1.000000e+30 : f32
    %75 = vector.shape_cast %74 : vector<1x8xi1> to vector<1x8xi1>
    %76 = vector.broadcast %75 : vector<1x8xi1> to vector<8x8xi1>
    %77 = vector.broadcast %cst_26 : f32 to vector<8x8xf32>
    %78 = arith.select %76, %72, %77 : vector<8x8xi1>, vector<8x8xf32>
    %cst_27 = arith.constant dense<0xFF800000> : vector<8xf32>
    %79 = vector.multi_reduction <maximumf>, %78, %cst_27 [1] : vector<8x8xf32> to vector<8xf32>
    %80 = vector.shape_cast %79 : vector<8xf32> to vector<8x1xf32>
    %81 = vector.broadcast %80 : vector<8x1xf32> to vector<8x8xf32>
    %82 = arith.subf %78, %81 : vector<8x8xf32>
    %83 = math.exp %82 : vector<8x8xf32>
    %cst_28 = arith.constant dense<0.000000e+00> : vector<8xf32>
    %84 = vector.multi_reduction <add>, %83, %cst_28 [1] : vector<8x8xf32> to vector<8xf32>
    %85 = vector.shape_cast %84 : vector<8xf32> to vector<8x1xf32>
    %86 = tpu.reciprocal %85 {approx = true} : vector<8x1xf32> -> vector<8x1xf32>
    %87 = vector.broadcast %86 : vector<8x1xf32> to vector<8x8xf32>
    %88 = arith.mulf %83, %87 : vector<8x8xf32>
    %89 = arith.truncf %88 : vector<8x8xf32> to vector<8x8xbf16>
    %cst_29 = arith.constant dense<0.000000e+00> : vector<8x16xf32>
    %90 = tpu.matmul %89, %69, %cst_29 {dimension_numbers = #tpu.dot_dimension_numbers<[1], [0], [0], [1], [0, 0, 1, 1], [], []>} : vector<8x8xbf16>, vector<8x16xbf16>, vector<8x16xf32> -> vector<8x16xf32>
    %91 = vector.extract_strided_slice %7 {offsets = [0, 48], sizes = [8, 16], strides = [1, 1]} : vector<8x192xf32> to vector<8x16xf32>
    %92 = arith.truncf %91 : vector<8x16xf32> to vector<8x16xbf16>
    %93 = vector.extract_strided_slice %7 {offsets = [0, 112], sizes = [8, 16], strides = [1, 1]} : vector<8x192xf32> to vector<8x16xf32>
    %94 = arith.truncf %93 : vector<8x16xf32> to vector<8x16xbf16>
    %95 = vector.extract_strided_slice %7 {offsets = [0, 176], sizes = [8, 16], strides = [1, 1]} : vector<8x192xf32> to vector<8x16xf32>
    %96 = arith.truncf %95 : vector<8x16xf32> to vector<8x16xbf16>
    %cst_30 = arith.constant dense<0.000000e+00> : vector<8x8xf32>
    %97 = tpu.matmul %92, %94, %cst_30 {dimension_numbers = #tpu.dot_dimension_numbers<[1], [1], [0], [0], [0, 0, 1, 0], [], []>} : vector<8x16xbf16>, vector<8x16xbf16>, vector<8x8xf32> -> vector<8x8xf32>
    %cst_31 = arith.constant 2.500000e-01 : f32
    %98 = vector.broadcast %cst_31 : f32 to vector<8x8xf32>
    %99 = arith.mulf %97, %98 : vector<8x8xf32>
    %cst_32 = arith.constant 5.000000e-01 : f32
    %100 = vector.broadcast %cst_32 : f32 to vector<1x8xf32>
    %101 = arith.cmpf ogt, %9, %100 : vector<1x8xf32>
    %cst_33 = arith.constant -1.000000e+30 : f32
    %102 = vector.shape_cast %101 : vector<1x8xi1> to vector<1x8xi1>
    %103 = vector.broadcast %102 : vector<1x8xi1> to vector<8x8xi1>
    %104 = vector.broadcast %cst_33 : f32 to vector<8x8xf32>
    %105 = arith.select %103, %99, %104 : vector<8x8xi1>, vector<8x8xf32>
    %cst_34 = arith.constant dense<0xFF800000> : vector<8xf32>
    %106 = vector.multi_reduction <maximumf>, %105, %cst_34 [1] : vector<8x8xf32> to vector<8xf32>
    %107 = vector.shape_cast %106 : vector<8xf32> to vector<8x1xf32>
    %108 = vector.broadcast %107 : vector<8x1xf32> to vector<8x8xf32>
    %109 = arith.subf %105, %108 : vector<8x8xf32>
    %110 = math.exp %109 : vector<8x8xf32>
    %cst_35 = arith.constant dense<0.000000e+00> : vector<8xf32>
    %111 = vector.multi_reduction <add>, %110, %cst_35 [1] : vector<8x8xf32> to vector<8xf32>
    %112 = vector.shape_cast %111 : vector<8xf32> to vector<8x1xf32>
    %113 = tpu.reciprocal %112 {approx = true} : vector<8x1xf32> -> vector<8x1xf32>
    %114 = vector.broadcast %113 : vector<8x1xf32> to vector<8x8xf32>
    %115 = arith.mulf %110, %114 : vector<8x8xf32>
    %116 = arith.truncf %115 : vector<8x8xf32> to vector<8x8xbf16>
    %cst_36 = arith.constant dense<0.000000e+00> : vector<8x16xf32>
    %117 = tpu.matmul %116, %96, %cst_36 {dimension_numbers = #tpu.dot_dimension_numbers<[1], [0], [0], [1], [0, 0, 1, 1], [], []>} : vector<8x8xbf16>, vector<8x16xbf16>, vector<8x16xf32> -> vector<8x16xf32>
    %118 = tpu.concatenate %36, %63, %90, %117 in 1 : vector<8x16xf32>, vector<8x16xf32>, vector<8x16xf32>, vector<8x16xf32> -> vector<8x64xf32>
    %119 = arith.truncf %118 : vector<8x64xf32> to vector<8x64xbf16>
    %c0_37 = arith.constant 0 : index
    %c0_38 = arith.constant 0 : index
    %120 = vector.load %arg4[%c0_37, %c0_38] : memref<64x64xbf16, #tpu.memory_space<vmem>>, vector<64x64xbf16>
    %cst_39 = arith.constant dense<0.000000e+00> : vector<8x64xf32>
    %121 = tpu.matmul %119, %120, %cst_39 {dimension_numbers = #tpu.dot_dimension_numbers<[1], [0], [0], [1], [0, 0, 1, 1], [], []>} : vector<8x64xbf16>, vector<64x64xbf16>, vector<8x64xf32> -> vector<8x64xf32>
    %c0_40 = arith.constant 0 : index
    %c0_41 = arith.constant 0 : index
    %122 = vector.load %arg5[%c0_40, %c0_41] : memref<1x64xf32, #tpu.memory_space<vmem>>, vector<1x64xf32>
    %123 = vector.broadcast %122 : vector<1x64xf32> to vector<8x64xf32>
    %124 = arith.addf %121, %123 : vector<8x64xf32>
    %125 = arith.truncf %124 : vector<8x64xf32> to vector<8x64xbf16>
    %c0_42 = arith.constant 0 : index
    %c0_43 = arith.constant 0 : index
    %126 = vector.load %arg6[%c0_42, %c0_43] : memref<64x600xbf16, #tpu.memory_space<vmem>>, vector<64x600xbf16>
    %cst_44 = arith.constant dense<0.000000e+00> : vector<8x600xf32>
    %127 = tpu.matmul %125, %126, %cst_44 {dimension_numbers = #tpu.dot_dimension_numbers<[1], [0], [0], [1], [0, 0, 1, 1], [], []>} : vector<8x64xbf16>, vector<64x600xbf16>, vector<8x600xf32> -> vector<8x600xf32>
    %c0_45 = arith.constant 0 : index
    %c0_46 = arith.constant 0 : index
    %128 = vector.load %arg7[%c0_45, %c0_46] : memref<1x600xf32, #tpu.memory_space<vmem>>, vector<1x600xf32>
    %129 = vector.broadcast %128 : vector<1x600xf32> to vector<8x600xf32>
    %130 = arith.addf %127, %129 : vector<8x600xf32>
    %cst_47 = arith.constant 0.000000e+00 : f32
    %131 = vector.broadcast %cst_47 : f32 to vector<8x600xf32>
    %132 = arith.cmpf oge, %130, %131 : vector<8x600xf32>
    %cst_48 = arith.constant 1.000000e-01 : f32
    %133 = vector.broadcast %cst_48 : f32 to vector<8x600xf32>
    %134 = arith.mulf %133, %130 : vector<8x600xf32>
    %135 = arith.select %132, %130, %134 : vector<8x600xi1>, vector<8x600xf32>
    %c0_49 = arith.constant 0 : index
    %c0_50 = arith.constant 0 : index
    %c0_51 = arith.constant 0 : index
    %136 = vector.load %arg9[%c0_49, %c0_50, %c0_51] : memref<1x8x600xf32, #tpu.memory_space<vmem>>, vector<1x8x600xf32>
    %137 = vector.shape_cast %136 : vector<1x8x600xf32> to vector<8x600xf32>
    %138 = vector.shape_cast %135 : vector<8x600xf32> to vector<1x8x600xf32>
    tpu.vector_store %arg9[%c0_49, %c0_50, %c0_51], %138 {strides = array<i32>} : memref<1x8x600xf32, #tpu.memory_space<vmem>>, vector<1x8x600xf32>,
    return
  }
  func.func @transform_0(%arg0: i32) -> (i32, i32, i32) {
    %c0_i32 = arith.constant 0 : i32
    %c0_i32_0 = arith.constant 0 : i32
    %c0_i32_1 = arith.constant 0 : i32
    return %arg0, %c0_i32, %c0_i32_0 : i32, i32, i32
  }
  func.func @transform_1(%arg0: i32) -> (i32, i32) {
    %c0_i32 = arith.constant 0 : i32
    %c0_i32_0 = arith.constant 0 : i32
    %c0_i32_1 = arith.constant 0 : i32
    return %c0_i32, %c0_i32_0 : i32, i32
  }
  func.func @transform_2(%arg0: i32) -> (i32, i32) {
    %c0_i32 = arith.constant 0 : i32
    %c0_i32_0 = arith.constant 0 : i32
    %c0_i32_1 = arith.constant 0 : i32
    return %c0_i32, %c0_i32_0 : i32, i32
  }
  func.func @transform_3(%arg0: i32) -> (i32, i32) {
    %c0_i32 = arith.constant 0 : i32
    %c0_i32_0 = arith.constant 0 : i32
    %c0_i32_1 = arith.constant 0 : i32
    return %c0_i32, %c0_i32_0 : i32, i32
  }
  func.func @transform_4(%arg0: i32) -> (i32, i32) {
    %c0_i32 = arith.constant 0 : i32
    %c0_i32_0 = arith.constant 0 : i32
    %c0_i32_1 = arith.constant 0 : i32
    return %c0_i32, %c0_i32_0 : i32, i32
  }
  func.func @transform_5(%arg0: i32) -> (i32, i32) {
    %c0_i32 = arith.constant 0 : i32
    %c0_i32_0 = arith.constant 0 : i32
    %c0_i32_1 = arith.constant 0 : i32
    return %c0_i32, %c0_i32_0 : i32, i32
  }
  func.func @transform_6(%arg0: i32) -> (i32, i32) {
    %c0_i32 = arith.constant 0 : i32
    %c0_i32_0 = arith.constant 0 : i32
    %c0_i32_1 = arith.constant 0 : i32
    return %c0_i32, %c0_i32_0 : i32, i32
  }
  func.func @transform_7(%arg0: i32) -> (i32, i32, i32) {
    %c0_i32 = arith.constant 0 : i32
    %c0_i32_0 = arith.constant 0 : i32
    %c0_i32_1 = arith.constant 0 : i32
    return %arg0, %c0_i32, %c0_i32_0 : i32, i32, i32
  }
  func.func @transform_8(%arg0: i32) -> (i32, i32, i32) {
    %c0_i32 = arith.constant 0 : i32
    %c0_i32_0 = arith.constant 0 : i32
    %c0_i32_1 = arith.constant 0 : i32
    return %arg0, %c0_i32, %c0_i32_0 : i32, i32, i32
  }
}

module attributes {stable_mosaic.version = 11 : i64} {
  func.func @_biaffine_kernel(%arg0: i32, %arg1: i32, %arg2: memref<1x8x256xf32, #tpu.memory_space<vmem>>, %arg3: memref<1x8x256xf32, #tpu.memory_space<vmem>>, %arg4: memref<1x256x256xbf16, #tpu.memory_space<vmem>>, %arg5: memref<1x1x8x8xf32, #tpu.memory_space<vmem>>) attributes {dimension_semantics = [#tpu.dimension_semantics<parallel>, #tpu.dimension_semantics<parallel>], iteration_bounds = array<i64: 2, 1>, scalar_prefetch = 0 : i64, scratch_operands = 0 : i64, tpu.core_type = #tpu.core_type<tc>, window_params = [{transform_indices = @transform_0, window_bounds = array<i64: 1, 8, 256>}, {transform_indices = @transform_1, window_bounds = array<i64: 1, 8, 256>}, {transform_indices = @transform_2, window_bounds = array<i64: 1, 256, 256>}, {transform_indices = @transform_3, window_bounds = array<i64: 1, 1, 8, 8>}]} {
    %c0 = arith.constant 0 : index
    %c0_0 = arith.constant 0 : index
    %c0_1 = arith.constant 0 : index
    %0 = vector.load %arg2[%c0, %c0_0, %c0_1] : memref<1x8x256xf32, #tpu.memory_space<vmem>>, vector<1x8x256xf32>
    %1 = vector.shape_cast %0 : vector<1x8x256xf32> to vector<8x256xf32>
    %2 = arith.truncf %1 : vector<8x256xf32> to vector<8x256xbf16>
    %c0_2 = arith.constant 0 : index
    %c0_3 = arith.constant 0 : index
    %c0_4 = arith.constant 0 : index
    %3 = vector.load %arg3[%c0_2, %c0_3, %c0_4] : memref<1x8x256xf32, #tpu.memory_space<vmem>>, vector<1x8x256xf32>
    %4 = vector.shape_cast %3 : vector<1x8x256xf32> to vector<8x256xf32>
    %5 = arith.truncf %4 : vector<8x256xf32> to vector<8x256xbf16>
    %c0_5 = arith.constant 0 : index
    %c0_6 = arith.constant 0 : index
    %c0_7 = arith.constant 0 : index
    %6 = vector.load %arg4[%c0_5, %c0_6, %c0_7] : memref<1x256x256xbf16, #tpu.memory_space<vmem>>, vector<1x256x256xbf16>
    %7 = vector.shape_cast %6 : vector<1x256x256xbf16> to vector<256x256xbf16>
    %cst = arith.constant dense<0.000000e+00> : vector<8x256xf32>
    %8 = tpu.matmul %2, %7, %cst {dimension_numbers = #tpu.dot_dimension_numbers<[1], [0], [0], [1], [0, 0, 1, 1], [], []>} : vector<8x256xbf16>, vector<256x256xbf16>, vector<8x256xf32> -> vector<8x256xf32>
    %9 = arith.truncf %8 : vector<8x256xf32> to vector<8x256xbf16>
    %cst_8 = arith.constant dense<0.000000e+00> : vector<8x8xf32>
    %10 = tpu.matmul %5, %9, %cst_8 {dimension_numbers = #tpu.dot_dimension_numbers<[1], [1], [0], [0], [0, 0, 1, 0], [], []>} : vector<8x256xbf16>, vector<8x256xbf16>, vector<8x8xf32> -> vector<8x8xf32>
    %c0_9 = arith.constant 0 : index
    %c0_10 = arith.constant 0 : index
    %c0_11 = arith.constant 0 : index
    %c0_12 = arith.constant 0 : index
    %11 = vector.load %arg5[%c0_9, %c0_10, %c0_11, %c0_12] : memref<1x1x8x8xf32, #tpu.memory_space<vmem>>, vector<1x1x8x8xf32>
    %12 = vector.shape_cast %11 : vector<1x1x8x8xf32> to vector<8x8xf32>
    %13 = vector.shape_cast %10 : vector<8x8xf32> to vector<1x1x8x8xf32>
    tpu.vector_store %arg5[%c0_9, %c0_10, %c0_11, %c0_12], %13 {strides = array<i32>} : memref<1x1x8x8xf32, #tpu.memory_space<vmem>>, vector<1x1x8x8xf32>,
    return
  }
  func.func @transform_0(%arg0: i32, %arg1: i32) -> (i32, i32, i32) {
    %c0_i32 = arith.constant 0 : i32
    %c0_i32_0 = arith.constant 0 : i32
    %c0_i32_1 = arith.constant 0 : i32
    return %arg0, %c0_i32, %c0_i32_0 : i32, i32, i32
  }
  func.func @transform_1(%arg0: i32, %arg1: i32) -> (i32, i32, i32) {
    %c0_i32 = arith.constant 0 : i32
    %c0_i32_0 = arith.constant 0 : i32
    %c0_i32_1 = arith.constant 0 : i32
    return %arg0, %c0_i32, %c0_i32_0 : i32, i32, i32
  }
  func.func @transform_2(%arg0: i32, %arg1: i32) -> (i32, i32, i32) {
    %c0_i32 = arith.constant 0 : i32
    %c0_i32_0 = arith.constant 0 : i32
    %c0_i32_1 = arith.constant 0 : i32
    return %arg1, %c0_i32, %c0_i32_0 : i32, i32, i32
  }
  func.func @transform_3(%arg0: i32, %arg1: i32) -> (i32, i32, i32, i32) {
    %c0_i32 = arith.constant 0 : i32
    %c0_i32_0 = arith.constant 0 : i32
    %c0_i32_1 = arith.constant 0 : i32
    return %arg0, %arg1, %c0_i32, %c0_i32_0 : i32, i32, i32, i32
  }
}

module attributes {stable_mosaic.version = 11 : i64} {
  func.func @_biaffine_kernel(%arg0: i32, %arg1: i32, %arg2: memref<1x8x128xf32, #tpu.memory_space<vmem>>, %arg3: memref<1x8x128xf32, #tpu.memory_space<vmem>>, %arg4: memref<1x128x128xbf16, #tpu.memory_space<vmem>>, %arg5: memref<1x1x8x8xf32, #tpu.memory_space<vmem>>) attributes {dimension_semantics = [#tpu.dimension_semantics<parallel>, #tpu.dimension_semantics<parallel>], iteration_bounds = array<i64: 2, 5>, scalar_prefetch = 0 : i64, scratch_operands = 0 : i64, tpu.core_type = #tpu.core_type<tc>, window_params = [{transform_indices = @transform_0, window_bounds = array<i64: 1, 8, 128>}, {transform_indices = @transform_1, window_bounds = array<i64: 1, 8, 128>}, {transform_indices = @transform_2, window_bounds = array<i64: 1, 128, 128>}, {transform_indices = @transform_3, window_bounds = array<i64: 1, 1, 8, 8>}]} {
    %c0 = arith.constant 0 : index
    %c0_0 = arith.constant 0 : index
    %c0_1 = arith.constant 0 : index
    %0 = vector.load %arg2[%c0, %c0_0, %c0_1] : memref<1x8x128xf32, #tpu.memory_space<vmem>>, vector<1x8x128xf32>
    %1 = vector.shape_cast %0 : vector<1x8x128xf32> to vector<8x128xf32>
    %2 = arith.truncf %1 : vector<8x128xf32> to vector<8x128xbf16>
    %c0_2 = arith.constant 0 : index
    %c0_3 = arith.constant 0 : index
    %c0_4 = arith.constant 0 : index
    %3 = vector.load %arg3[%c0_2, %c0_3, %c0_4] : memref<1x8x128xf32, #tpu.memory_space<vmem>>, vector<1x8x128xf32>
    %4 = vector.shape_cast %3 : vector<1x8x128xf32> to vector<8x128xf32>
    %5 = arith.truncf %4 : vector<8x128xf32> to vector<8x128xbf16>
    %c0_5 = arith.constant 0 : index
    %c0_6 = arith.constant 0 : index
    %c0_7 = arith.constant 0 : index
    %6 = vector.load %arg4[%c0_5, %c0_6, %c0_7] : memref<1x128x128xbf16, #tpu.memory_space<vmem>>, vector<1x128x128xbf16>
    %7 = vector.shape_cast %6 : vector<1x128x128xbf16> to vector<128x128xbf16>
    %cst = arith.constant dense<0.000000e+00> : vector<8x128xf32>
    %8 = tpu.matmul %2, %7, %cst {dimension_numbers = #tpu.dot_dimension_numbers<[1], [0], [0], [1], [0, 0, 1, 1], [], []>} : vector<8x128xbf16>, vector<128x128xbf16>, vector<8x128xf32> -> vector<8x128xf32>
    %9 = arith.truncf %8 : vector<8x128xf32> to vector<8x128xbf16>
    %cst_8 = arith.constant dense<0.000000e+00> : vector<8x8xf32>
    %10 = tpu.matmul %5, %9, %cst_8 {dimension_numbers = #tpu.dot_dimension_numbers<[1], [1], [0], [0], [0, 0, 1, 0], [], []>} : vector<8x128xbf16>, vector<8x128xbf16>, vector<8x8xf32> -> vector<8x8xf32>
    %c0_9 = arith.constant 0 : index
    %c0_10 = arith.constant 0 : index
    %c0_11 = arith.constant 0 : index
    %c0_12 = arith.constant 0 : index
    %11 = vector.load %arg5[%c0_9, %c0_10, %c0_11, %c0_12] : memref<1x1x8x8xf32, #tpu.memory_space<vmem>>, vector<1x1x8x8xf32>
    %12 = vector.shape_cast %11 : vector<1x1x8x8xf32> to vector<8x8xf32>
    %13 = vector.shape_cast %10 : vector<8x8xf32> to vector<1x1x8x8xf32>
    tpu.vector_store %arg5[%c0_9, %c0_10, %c0_11, %c0_12], %13 {strides = array<i32>} : memref<1x1x8x8xf32, #tpu.memory_space<vmem>>, vector<1x1x8x8xf32>,
    return
  }
  func.func @transform_0(%arg0: i32, %arg1: i32) -> (i32, i32, i32) {
    %c0_i32 = arith.constant 0 : i32
    %c0_i32_0 = arith.constant 0 : i32
    %c0_i32_1 = arith.constant 0 : i32
    return %arg0, %c0_i32, %c0_i32_0 : i32, i32, i32
  }
  func.func @transform_1(%arg0: i32, %arg1: i32) -> (i32, i32, i32) {
    %c0_i32 = arith.constant 0 : i32
    %c0_i32_0 = arith.constant 0 : i32
    %c0_i32_1 = arith.constant 0 : i32
    return %arg0, %c0_i32, %c0_i32_0 : i32, i32, i32
  }
  func.func @transform_2(%arg0: i32, %arg1: i32) -> (i32, i32, i32) {
    %c0_i32 = arith.constant 0 : i32
    %c0_i32_0 = arith.constant 0 : i32
    %c0_i32_1 = arith.constant 0 : i32
    return %arg1, %c0_i32, %c0_i32_0 : i32, i32, i32
  }
  func.func @transform_3(%arg0: i32, %arg1: i32) -> (i32, i32, i32, i32) {
    %c0_i32 = arith.constant 0 : i32
    %c0_i32_0 = arith.constant 0 : i32
    %c0_i32_1 = arith.constant 0 : i32
    return %arg0, %arg1, %c0_i32, %c0_i32_0 : i32, i32, i32, i32
  }
}

</mosaic_0001>

<llo_original>
// kernel: run.7
$region0: #{run.7}
  #allocation0 [shape = 'u32[]', space=smem, size = 0x4, offset = 0x4, fixed_abs, tag = 'smem constant byte address 0x4 - core index']
  #allocation1 [shape = 'u32[144,128]{1,0:T(1,128)}', space=vmem, size = 0x12000, scoped, tag = 'internal scratch']
  %s0 = inlined_call_operand.vmem [shape: f32[2,8,64], index: 0, kind: input, shape index: {}]
  %s1 = inlined_call_operand.vmem [shape: bf16[64,192], index: 1, kind: input, shape index: {}]
  %s2 = inlined_call_operand.vmem [shape: f32[1,192], index: 2, kind: input, shape index: {}]
  %s3 = inlined_call_operand.vmem [shape: bf16[64,64], index: 3, kind: input, shape index: {}]
  %s4 = inlined_call_operand.vmem [shape: f32[1,64], index: 4, kind: input, shape index: {}]
  %s5 = inlined_call_operand.vmem [shape: bf16[64,600], index: 5, kind: input, shape index: {}]
  %s6 = inlined_call_operand.vmem [shape: f32[1,600], index: 6, kind: input, shape index: {}]
  %s7 = inlined_call_operand.vmem [shape: f32[2,1,8], index: 7, kind: input, shape index: {}]
  %s8 = inlined_call_operand.vmem [shape: f32[2,8,600], index: 8, kind: output, shape index: {}]
  %s9 = sld [smem:[#allocation0]]
  $region65: #{run.7} parent=0
    _
  %s11 = ssub.s32 1, %s9
  %s12 = scalar_select 0, %s11, %s9
  loop: start=0, step=1, limit=4
  $region2: #{run.7} parent=0 // loop_pre_header
    _
  $region3: #{run.7} parent=0 // loop_header
    %s14 = sphi 0, %s18
    %p15 = scmp.ge.s32.totalorder %s14, 4
    %s24 = sphi 0, %s26
    %s27 = sphi 0, %s24
    %s28 = sphi 0, %s27
    %s44 = sphi 0, %s28
    %s48 = sphi 0, %s48
    %s50 = sphi 0, %s48
    %s51 = sphi 0, %s50
    %s65 = sphi 0, %s51
    %s69 = sphi 0, %s69
    %s71 = sphi 0, %s69
    %s72 = sphi 0, %s71
    %s86 = sphi 0, %s72
    %s90 = sphi 0, %s90
    %s92 = sphi 0, %s90
    %s93 = sphi 0, %s92
    %s107 = sphi 0, %s93
    %s111 = sphi 0, %s111
    %s113 = sphi 0, %s111
    %s114 = sphi 0, %s113
    %s128 = sphi 0, %s114
    %s132 = sphi 0, %s132
    %s134 = sphi 0, %s132
    %s135 = sphi 0, %s134
    %s149 = sphi 0, %s135
    %s153 = sphi 0, %s153
    %s155 = sphi 0, %s153
    %s156 = sphi 0, %s155
    %s170 = sphi 0, %s156
    %s176 = sphi 0, %s178
    %s179 = sphi 0, %s176
    %s180 = sphi 0, %s179
    %s196 = sphi 0, %s180
    %s202 = sphi 0, %s204
    %s205 = sphi 0, %s202
    %s206 = sphi 0, %s205
    %s222 = sphi 0, %s206
  $region4: #{run.7} parent=0 // loop_header_branch
    %17 = sbr.rel (%p15) target = $region8
  $region5: #{run.7} parent=0 // loop_body
    %s19 = ssub.s32 %s14, 1
    %s20 = ssub.s32 %s14, 2
    %s21 = sadd.s32 %s14, 1
    %s22 = ssub.s32 %s14, %s21
    %p23 = scmp.eq.s32.totalorder %s22, 0
    %s25 = sadd.s32 %s24, 1
    %s26 = scalar_select %p23, %s24, %s25
    %p29 = pneg %p23
    %p30 = scmp.eq.s32.totalorder %s14, 1
    %p31 = por %p29, %p30
    %p32 = scmp.ne.s32.totalorder %s24, %s27
    %p33 = scmp.eq.s32.totalorder %s14, 0
    %p34 = por %p32, %p33
    %p35 = scmp.ne.s32.totalorder %s24, %s27
    %p36 = scmp.eq.s32.totalorder %s19, 1
    %p37 = por %p35, %p36
    %p38 = scmp.ne.s32.totalorder %s27, %s28
    %p39 = scmp.eq.s32.totalorder %s19, 0
    %p40 = por %p38, %p39
    %p41 = scmp.ne.s32.totalorder %s27, %s28
    %p42 = scmp.eq.s32.totalorder %s20, 1
    %p43 = por %p41, %p42
    %p45 = scmp.ne.s32.totalorder %s28, %s44
    %p46 = scmp.eq.s32.totalorder %s20, 0
    %p47 = por %p45, %p46
    %s49 = sadd.s32 %s48, 1
    %p52 = scmp.eq.s32.totalorder %s14, 1
    %p53 = scmp.ne.s32.totalorder %s48, %s50
    %p54 = scmp.eq.s32.totalorder %s14, 0
    %p55 = por %p53, %p54
    %p56 = scmp.ne.s32.totalorder %s48, %s50
    %p57 = scmp.eq.s32.totalorder %s19, 1
    %p58 = por %p56, %p57
    %p59 = scmp.ne.s32.totalorder %s50, %s51
    %p60 = scmp.eq.s32.totalorder %s19, 0
    %p61 = por %p59, %p60
    %p62 = scmp.ne.s32.totalorder %s50, %s51
    %p63 = scmp.eq.s32.totalorder %s20, 1
    %p64 = por %p62, %p63
    %p66 = scmp.ne.s32.totalorder %s51, %s65
    %p67 = scmp.eq.s32.totalorder %s20, 0
    %p68 = por %p66, %p67
    %s70 = sadd.s32 %s69, 1
    %p73 = scmp.eq.s32.totalorder %s14, 1
    %p74 = scmp.ne.s32.totalorder %s69, %s71
    %p75 = scmp.eq.s32.totalorder %s14, 0
    %p76 = por %p74, %p75
    %p77 = scmp.ne.s32.totalorder %s69, %s71
    %p78 = scmp.eq.s32.totalorder %s19, 1
    %p79 = por %p77, %p78
    %p80 = scmp.ne.s32.totalorder %s71, %s72
    %p81 = scmp.eq.s32.totalorder %s19, 0
    %p82 = por %p80, %p81
    %p83 = scmp.ne.s32.totalorder %s71, %s72
    %p84 = scmp.eq.s32.totalorder %s20, 1
    %p85 = por %p83, %p84
    %p87 = scmp.ne.s32.totalorder %s72, %s86
    %p88 = scmp.eq.s32.totalorder %s20, 0
    %p89 = por %p87, %p88
    %s91 = sadd.s32 %s90, 1
    %p94 = scmp.eq.s32.totalorder %s14, 1
    %p95 = scmp.ne.s32.totalorder %s90, %s92
    %p96 = scmp.eq.s32.totalorder %s14, 0
    %p97 = por %p95, %p96
    %p98 = scmp.ne.s32.totalorder %s90, %s92
    %p99 = scmp.eq.s32.totalorder %s19, 1
    %p100 = por %p98, %p99
    %p101 = scmp.ne.s32.totalorder %s92, %s93
    %p102 = scmp.eq.s32.totalorder %s19, 0
    %p103 = por %p101, %p102
    %p104 = scmp.ne.s32.totalorder %s92, %s93
    %p105 = scmp.eq.s32.totalorder %s20, 1
    %p106 = por %p104, %p105
    %p108 = scmp.ne.s32.totalorder %s93, %s107
    %p109 = scmp.eq.s32.totalorder %s20, 0
    %p110 = por %p108, %p109
    %s112 = sadd.s32 %s111, 1
    %p115 = scmp.eq.s32.totalorder %s14, 1
    %p116 = scmp.ne.s32.totalorder %s111, %s113
    %p117 = scmp.eq.s32.totalorder %s14, 0
    %p118 = por %p116, %p117
    %p119 = scmp.ne.s32.totalorder %s111, %s113
    %p120 = scmp.eq.s32.totalorder %s19, 1
    %p121 = por %p119, %p120
    %p122 = scmp.ne.s32.totalorder %s113, %s114
    %p123 = scmp.eq.s32.totalorder %s19, 0
    %p124 = por %p122, %p123
    %p125 = scmp.ne.s32.totalorder %s113, %s114
    %p126 = scmp.eq.s32.totalorder %s20, 1
    %p127 = por %p125, %p126
    %p129 = scmp.ne.s32.totalorder %s114, %s128
    %p130 = scmp.eq.s32.totalorder %s20, 0
    %p131 = por %p129, %p130
    %s133 = sadd.s32 %s132, 1
    %p136 = scmp.eq.s32.totalorder %s14, 1
    %p137 = scmp.ne.s32.totalorder %s132, %s134
    %p138 = scmp.eq.s32.totalorder %s14, 0
    %p139 = por %p137, %p138
    %p140 = scmp.ne.s32.totalorder %s132, %s134
    %p141 = scmp.eq.s32.totalorder %s19, 1
    %p142 = por %p140, %p141
    %p143 = scmp.ne.s32.totalorder %s134, %s135
    %p144 = scmp.eq.s32.totalorder %s19, 0
    %p145 = por %p143, %p144
    %p146 = scmp.ne.s32.totalorder %s134, %s135
    %p147 = scmp.eq.s32.totalorder %s20, 1
    %p148 = por %p146, %p147
    %p150 = scmp.ne.s32.totalorder %s135, %s149
    %p151 = scmp.eq.s32.totalorder %s20, 0
    %p152 = por %p150, %p151
    %s154 = sadd.s32 %s153, 1
    %p157 = scmp.eq.s32.totalorder %s14, 1
    %p158 = scmp.ne.s32.totalorder %s153, %s155
    %p159 = scmp.eq.s32.totalorder %s14, 0
    %p160 = por %p158, %p159
    %p161 = scmp.ne.s32.totalorder %s153, %s155
    %p162 = scmp.eq.s32.totalorder %s19, 1
    %p163 = por %p161, %p162
    %p164 = scmp.ne.s32.totalorder %s155, %s156
    %p165 = scmp.eq.s32.totalorder %s19, 0
    %p166 = por %p164, %p165
    %p167 = scmp.ne.s32.totalorder %s155, %s156
    %p168 = scmp.eq.s32.totalorder %s20, 1
    %p169 = por %p167, %p168
    %p171 = scmp.ne.s32.totalorder %s156, %s170
    %p172 = scmp.eq.s32.totalorder %s20, 0
    %p173 = por %p171, %p172
    %s174 = ssub.s32 %s14, %s21
    %p175 = scmp.eq.s32.totalorder %s174, 0
    %s177 = sadd.s32 %s176, 1
    %s178 = scalar_select %p175, %s176, %s177
    %p181 = pneg %p175
    %p182 = scmp.eq.s32.totalorder %s14, 1
    %p183 = por %p181, %p182
    %p184 = scmp.ne.s32.totalorder %s176, %s179
    %p185 = scmp.eq.s32.totalorder %s14, 0
    %p186 = por %p184, %p185
    %p187 = scmp.ne.s32.totalorder %s176, %s179
    %p188 = scmp.eq.s32.totalorder %s19, 1
    %p189 = por %p187, %p188
    %p190 = scmp.ne.s32.totalorder %s179, %s180
    %p191 = scmp.eq.s32.totalorder %s19, 0
    %p192 = por %p190, %p191
    %p193 = scmp.ne.s32.totalorder %s179, %s180
    %p194 = scmp.eq.s32.totalorder %s20, 1
    %p195 = por %p193, %p194
    %p197 = scmp.ne.s32.totalorder %s180, %s196
    %p198 = scmp.eq.s32.totalorder %s20, 0
    %p199 = por %p197, %p198
    %s200 = ssub.s32 %s14, %s21
    %p201 = scmp.eq.s32.totalorder %s200, 0
    %s203 = sadd.s32 %s202, 1
    %s204 = scalar_select %p201, %s202, %s203
    %p207 = pneg %p201
    %p208 = scmp.eq.s32.totalorder %s14, 1
    %p209 = por %p207, %p208
    %p210 = scmp.ne.s32.totalorder %s202, %s205
    %p211 = scmp.eq.s32.totalorder %s14, 0
    %p212 = por %p210, %p211
    %p213 = scmp.ne.s32.totalorder %s202, %s205
    %p214 = scmp.eq.s32.totalorder %s19, 1
    %p215 = por %p213, %p214
    %p216 = scmp.ne.s32.totalorder %s205, %s206
    %p217 = scmp.eq.s32.totalorder %s19, 0
    %p218 = por %p216, %p217
    %p219 = scmp.ne.s32.totalorder %s205, %s206
    %p220 = scmp.eq.s32.totalorder %s20, 1
    %p221 = por %p219, %p220
    %p223 = scmp.ne.s32.totalorder %s206, %s222
    %p224 = scmp.eq.s32.totalorder %s20, 0
    %p225 = por %p223, %p224
    %p226 = scmp.le.s32.totalorder 1, %s14
    %p227 = scmp.lt.s32.totalorder %s14, 3
    %p228 = pnand %p226, %p227
    %p229 = pneg %p228
    // Predicated region
    $region9: #{run.7} parent=5 // pred_check
      _
    $region10: #{run.7} parent=5 // pred_check_branch
      %231 = sbr.rel (%p228) target = $region12
    $region11: #{run.7} parent=5 // pred_region
      %s232 = ssub.s32 %s14, 1
      // Predicated region
      $region13: #{run.7} parent=11 // pred_check
        %p233 = pneg %p61
      $region14: #{run.7} parent=11 // pred_check_branch
        %235 = sbr.rel (%p233) target = $region16
      $region15: #{run.7} parent=11 // pred_region
        _
      $region16: #{run.7} parent=11 // pred_fallthru
        _
      // Predicated region
      $region17: #{run.7} parent=11 // pred_check
        %p236 = pneg %p82
      $region18: #{run.7} parent=11 // pred_check_branch
        %238 = sbr.rel (%p236) target = $region20
      $region19: #{run.7} parent=11 // pred_region
        _
      $region20: #{run.7} parent=11 // pred_fallthru
        _
      // Predicated region
      $region21: #{run.7} parent=11 // pred_check
        %p239 = pneg %p103
      $region22: #{run.7} parent=11 // pred_check_branch
        %241 = sbr.rel (%p239) target = $region24
      $region23: #{run.7} parent=11 // pred_region
        _
      $region24: #{run.7} parent=11 // pred_fallthru
        _
      // Predicated region
      $region25: #{run.7} parent=11 // pred_check
        %p242 = pneg %p124
      $region26: #{run.7} parent=11 // pred_check_branch
        %244 = sbr.rel (%p242) target = $region28
      $region27: #{run.7} parent=11 // pred_region
        _
      $region28: #{run.7} parent=11 // pred_fallthru
        _
      // Predicated region
      $region29: #{run.7} parent=11 // pred_check
        %p245 = pneg %p145
      $region30: #{run.7} parent=11 // pred_check_branch
        %247 = sbr.rel (%p245) target = $region32
      $region31: #{run.7} parent=11 // pred_region
        _
      $region32: #{run.7} parent=11 // pred_fallthru
        _
      // Predicated region
      $region33: #{run.7} parent=11 // pred_check
        %p248 = pneg %p166
      $region34: #{run.7} parent=11 // pred_check_branch
        %250 = sbr.rel (%p248) target = $region36
      $region35: #{run.7} parent=11 // pred_region
        _
      $region36: #{run.7} parent=11 // pred_fallthru
        _
    $region12: #{run.7} parent=5 // pred_fallthru
      _
    %p251 = scmp.lt.s32.totalorder %s14, 2
    // Predicated region
    $region37: #{run.7} parent=5 // pred_check
      %p252 = pneg %p251
    $region38: #{run.7} parent=5 // pred_check_branch
      %254 = sbr.rel (%p252) target = $region40
    $region39: #{run.7} parent=5 // pred_region
      // Predicated region
      $region41: #{run.7} parent=39 // pred_check
        %p255 = pneg %p34
      $region42: #{run.7} parent=39 // pred_check_branch
        %257 = sbr.rel (%p255) target = $region44
      $region43: #{run.7} parent=39 // pred_region
        %p258 = scmp.lt.s32.totalorder %s14, 1
        %s259 = scalar_select %p258, %s14, 1
        %s260 = smul.addr %s259, 8
        %s261 = scalar_lea.vmem %s0, %s260
      $region44: #{run.7} parent=39 // pred_fallthru
        _
      // Predicated region
      $region45: #{run.7} parent=39 // pred_check
        %p262 = pneg %p186
      $region46: #{run.7} parent=39 // pred_check_branch
        %264 = sbr.rel (%p262) target = $region48
      $region47: #{run.7} parent=39 // pred_region
        %p265 = scmp.lt.s32.totalorder %s14, 1
        %s266 = scalar_select %p265, %s14, 1
        %s267 = scalar_lea.vmem %s7, %s266
      $region48: #{run.7} parent=39 // pred_fallthru
        _
    $region40: #{run.7} parent=5 // pred_fallthru
      _
    %p268 = scmp.le.s32.totalorder 1, %s14
    %p269 = scmp.lt.s32.totalorder %s14, 3
    %p270 = pnand %p268, %p269
    %p271 = pneg %p270
    // Predicated region
    $region49: #{run.7} parent=5 // pred_check
      _
    $region50: #{run.7} parent=5 // pred_check_branch
      %273 = sbr.rel (%p270) target = $region52
    $region51: #{run.7} parent=5 // pred_region
      %s274 = ssub.s32 %s14, 1
      %p275 = scmp.lt.s32.totalorder %s19, 1
      %s276 = scalar_select %p275, %s19, 1
      %s277 = smul.addr %s276, 8
      %s278 = scalar_lea.vmem %s0, %s277
      %p279 = pneg %p40
      %p280 = pneg %p37
      %p281 = pneg %p61
      %p282 = pneg %p58
      %p283 = pneg %p82
      %p284 = pneg %p79
      %p285 = pneg %p103
      %p286 = pneg %p100
      %p287 = pneg %p124
      %p288 = pneg %p121
      %p289 = pneg %p145
      %p290 = pneg %p142
      %p291 = pneg %p166
      %p292 = pneg %p163
      %p293 = scmp.lt.s32.totalorder %s19, 1
      %s294 = scalar_select %p293, %s19, 1
      %s295 = scalar_lea.vmem %s7, %s294
      %p296 = pneg %p192
      %p297 = pneg %p189
      %p298 = pneg %p218
      %p299 = pneg %p215
      %p300 = scmp.lt.s32.totalorder %s19, 1
      %s301 = scalar_select %p300, %s19, 1
      %s302 = smul.addr %s301, 5
      %s303 = smul.addr %s302, 8
      %s304 = scalar_lea.vmem %s8, %s303
      %p305 = scmp.lt.s32.totalorder %s19, 1
      %s306 = scalar_select %p305, %s19, 1
      %s307 = smul.addr %s306, 8
      %s308 = scalar_lea.vmem %s0, %s307
      %p309 = scmp.lt.s32.totalorder %s19, 1
      %s310 = scalar_select %p309, %s19, 1
      %s311 = scalar_lea.vmem %s7, %s310
      %p312 = scmp.lt.s32.totalorder %s19, 1
      %s313 = scalar_select %p312, %s19, 1
      %s314 = smul.addr %s313, 5
      %s315 = smul.addr %s314, 8
      %s316 = scalar_lea.vmem %s8, %s315
      %v318 = vld [vmem:[%s308] sm:$0xff]
      %v319 = vpack.c.bf16 %v318, %v318
      %v320 = vld [vmem:[%s1] sm:$0xff]
      %v321 = vld [vmem:[%s1 + $0x8] sm:$0xff]
      %v322 = vld [vmem:[%s1 + $0x10] sm:$0xff]
      %v323 = vld [vmem:[%s1 + $0x18] sm:$0xff]
      %v324 = vld [vmem:[%s1 + $0x20] sm:$0xff]
      %v325 = vld [vmem:[%s1 + $0x28] sm:$0xff]
      %v326 = vld [vmem:[%s1 + $0x30] sm:$0xff]
      %v327 = vld [vmem:[%s1 + $0x38] sm:$0xff]
      %v328 = vld [vmem:[%s2] sm:$0x3]
      %v330 = vlaneseq
      %v331 = vshrl.u32 %v330, 7
      %v332 = vsub.s32 0, %v331
      %v333 = vrot.slane %v328, %v332
      %v334 = vlaneseq
      %v335 = vshrl.u32 %v334, 7
      %v336 = vsub.s32 1, %v335
      %v337 = vrot.slane %v328, %v336
      %v348 = vunpack.c.l.b16 %v320
      %v349 = vunpack.c.h.b16 %v320
      %v350 = vunpack.c.l.b16 %v321
      %v351 = vunpack.c.h.b16 %v321
      %v352 = vunpack.c.l.b16 %v322
      %v353 = vunpack.c.h.b16 %v322
      %v354 = vunpack.c.l.b16 %v323
      %v355 = vunpack.c.h.b16 %v323
      %v356 = vunpack.c.l.b16 %v324
      %v357 = vunpack.c.h.b16 %v324
      %v358 = vunpack.c.l.b16 %v325
      %v359 = vunpack.c.h.b16 %v325
      %v360 = vunpack.c.l.b16 %v326
      %v361 = vunpack.c.h.b16 %v326
      %v362 = vunpack.c.l.b16 %v327
      %v363 = vunpack.c.h.b16 %v327
      %v364 = vpack.c.b16 %v350, %v348
      %v365 = vpack.c.b16 %v351, %v349
      %v366 = vpack.c.b16 %v354, %v352
      %v367 = vpack.c.b16 %v355, %v353
      %v368 = vpack.c.b16 %v358, %v356
      %v369 = vpack.c.b16 %v359, %v357
      %v370 = vpack.c.b16 %v362, %v360
      %v371 = vpack.c.b16 %v363, %v361
      %vm380 = vcmask 523264
      %v382 = vsel %vm380, %v319, 0
      %384 = vmatprep.subr.bf16.mxu0 %v365
      %385 = vmatpush1.bf16.msra.mxu0 %v364
      %386 = vmatprep.subr.bf16.mxu0 %v367
      %387 = vmatpush1.bf16.msra.mxu0 %v366
      %388 = vmatprep.subr.bf16.mxu0 %v369
      %389 = vmatpush1.bf16.msra.mxu0 %v368
      %390 = vmatprep.subr.bf16.mxu0 %v371
      %391 = vmatpush1.bf16.msra.mxu0 %v370
      %392 = vmatprep.subr.bf16.mxu0 0
      %393 = vmatpush1.bf16.msra.mxu0 0
      %394 = vmatprep.subr.bf16.mxu0 0
      %395 = vmatpush1.bf16.msra.mxu0 0
      %396 = vmatprep.subr.bf16.mxu0 0
      %397 = vmatpush1.bf16.msra.mxu0 0
      %398 = vmatprep.subr.bf16.mxu0 0
      %399 = vmatpush1.bf16.msra.mxu0 0
      %400 = vmatprep.subr.bf16.mxu0 0
      %401 = vmatpush1.bf16.msra.mxu0 0
      %402 = vmatprep.subr.bf16.mxu0 0
      %403 = vmatpush1.bf16.msra.mxu0 0
      %404 = vmatprep.subr.bf16.mxu0 0
      %405 = vmatpush1.bf16.msra.mxu0 0
      %406 = vmatprep.subr.bf16.mxu0 0
      %407 = vmatpush1.bf16.msra.mxu0 0
      %408 = vmatprep.subr.bf16.mxu0 0
      %409 = vmatpush1.bf16.msra.mxu0 0
      %410 = vmatprep.subr.bf16.mxu0 0
      %411 = vmatpush1.bf16.msra.mxu0 0
      %412 = vmatprep.subr.bf16.mxu0 0
      %413 = vmatpush1.bf16.msra.mxu0 0
      %414 = vmatprep.subr.bf16.mxu0 0
      %415 = vmatpush1.bf16.msra.mxu0 0
      %416 = vmatprep.mubr.bf16.mxu0 0
      %417 = vmatmul.mubr.bf16.gmra.mrb[0].mxu0 %v382
      %v418 = vpop.f32.mrb[0].mxu0
      %v419 = vadd.f32 %v333, %v418
      %v420 = vpop.f32.mrb[0].mxu0
      %v421 = vadd.f32 %v337, %v420
      %v422 = vpop.f32.mrb[0].mxu0
      %v423 = vpop.f32.mrb[0].mxu0
      %424 = vdwg.mxu0
      %v425 = vld [vmem:[%s311] sm:$0x1]
      %v426 = vpack.c.bf16 %v419, %v419
      %v427 = vpack.c.bf16 %v421, %v421
      %429 = vrot.lane.b32.xlu0 %v426, 64
      %v430 = vpop.permute.xlu0 %429
      %vm431 = vcmask 130048
      %v433 = vsel %vm431, %v426, 0
      %v436 = vsel %vm431, %v430, 0
      %438 = vmatprep.subr.bf16.mxu0 0
      %439 = vmatpush1.bf16.xpose.msra.mxu0 %v436
      %440 = vmatprep.subr.bf16.mxu0 0
      %441 = vmatpush1.bf16.xpose.msra.mxu0 0
      %442 = vmatprep.subr.bf16.mxu0 0
      %443 = vmatpush1.bf16.xpose.msra.mxu0 0
      %444 = vmatprep.subr.bf16.mxu0 0
      %445 = vmatpush1.bf16.xpose.msra.mxu0 0
      %446 = vmatprep.subr.bf16.mxu0 0
      %447 = vmatpush1.bf16.xpose.msra.mxu0 0
      %448 = vmatprep.subr.bf16.mxu0 0
      %449 = vmatpush1.bf16.xpose.msra.mxu0 0
      %450 = vmatprep.subr.bf16.mxu0 0
      %451 = vmatpush1.bf16.xpose.msra.mxu0 0
      %452 = vmatprep.subr.bf16.mxu0 0
      %453 = vmatpush1.bf16.xpose.msra.mxu0 0
      %454 = vmatprep.subr.bf16.mxu0 0
      %455 = vmatpush1.bf16.xpose.msra.mxu0 0
      %456 = vmatprep.subr.bf16.mxu0 0
      %457 = vmatpush1.bf16.xpose.msra.mxu0 0
      %458 = vmatprep.subr.bf16.mxu0 0
      %459 = vmatpush1.bf16.xpose.msra.mxu0 0
      %460 = vmatprep.subr.bf16.mxu0 0
      %461 = vmatpush1.bf16.xpose.msra.mxu0 0
      %462 = vmatprep.subr.bf16.mxu0 0
      %463 = vmatpush1.bf16.xpose.msra.mxu0 0
      %464 = vmatprep.subr.bf16.mxu0 0
      %465 = vmatpush1.bf16.xpose.msra.mxu0 0
      %466 = vmatprep.subr.bf16.mxu0 0
      %467 = vmatpush1.bf16.xpose.msra.mxu0 0
      %468 = vmatprep.subr.bf16.mxu0 0
      %469 = vmatpush1.bf16.xpose.msra.mxu0 0
      %470 = vmatprep.mubr.bf16.mxu0 0
      %471 = vmatmul.mubr.bf16.gmra.mrb[0].mxu0 %v433
      %v472 = vpop.f32.mrb[0].mxu0
      %v473 = vadd.f32 0.0, %v472
      %v474 = vpop.f32.mrb[0].mxu0
      %v475 = vpop.f32.mrb[0].mxu0
      %v476 = vpop.f32.mrb[0].mxu0
      %477 = vdwg.mxu0
      %v478 = vmul.f32 %v473, 0.25
      %vm479 = vcmp.gt.f32.partialorder %v425, 0.5
      %v480 = vsel %vm479, 1, 0
      %v481 = vlaneseq
      %v482 = vshrl.u32 %v481, 7
      %v483 = vsub.s32 0, %v482
      %v484 = vrot.slane %v480, %v483
      %vm485 = vcmp.eq.s32.totalorder %v484, 1
      %v486 = vsel %vm485, %v478, -1e+30
      %vm487 = vcmask 64512
      %v488 = vsel %vm487, %v486, -inf
      %489 = vmax.xlane.f32.xlu0 %v488
      %v490 = vpop.xlane.xlu0 %489
      %v491 = vsub.f32 %v486, %v490
      %v492 = vmul.f32 %v491, 1.442695
      %v493 = vpow.pop %v492
      %v494 = vsel %vm487, %v493, 0.0
      %495 = vadd.xlane.f32.xlu0 %v494
      %v496 = vpop.xlane.xlu0 %495
      %v497 = vrcp.pop %v496
      %v498 = vmul.f32 %v493, %v497
      %v499 = vpack.c.bf16 %v498, %v498
      %v501 = vsel %vm487, %v499, 0
      %vm503 = vcmask 1043456
      %v505 = vsel %vm503, %v427, 0
      %507 = vmatprep.subr.bf16.mxu0 0
      %508 = vmatpush1.bf16.msra.mxu0 %v505
      %509 = vmatprep.subr.bf16.mxu0 0
      %510 = vmatpush1.bf16.msra.mxu0 0
      %511 = vmatprep.subr.bf16.mxu0 0
      %512 = vmatpush1.bf16.msra.mxu0 0
      %513 = vmatprep.subr.bf16.mxu0 0
      %514 = vmatpush1.bf16.msra.mxu0 0
      %515 = vmatprep.subr.bf16.mxu0 0
      %516 = vmatpush1.bf16.msra.mxu0 0
      %517 = vmatprep.subr.bf16.mxu0 0
      %518 = vmatpush1.bf16.msra.mxu0 0
      %519 = vmatprep.subr.bf16.mxu0 0
      %520 = vmatpush1.bf16.msra.mxu0 0
      %521 = vmatprep.subr.bf16.mxu0 0
      %522 = vmatpush1.bf16.msra.mxu0 0
      %523 = vmatprep.subr.bf16.mxu0 0
      %524 = vmatpush1.bf16.msra.mxu0 0
      %525 = vmatprep.subr.bf16.mxu0 0
      %526 = vmatpush1.bf16.msra.mxu0 0
      %527 = vmatprep.subr.bf16.mxu0 0
      %528 = vmatpush1.bf16.msra.mxu0 0
      %529 = vmatprep.subr.bf16.mxu0 0
      %530 = vmatpush1.bf16.msra.mxu0 0
      %531 = vmatprep.subr.bf16.mxu0 0
      %532 = vmatpush1.bf16.msra.mxu0 0
      %533 = vmatprep.subr.bf16.mxu0 0
      %534 = vmatpush1.bf16.msra.mxu0 0
      %535 = vmatprep.subr.bf16.mxu0 0
      %536 = vmatpush1.bf16.msra.mxu0 0
      %537 = vmatprep.subr.bf16.mxu0 0
      %538 = vmatpush1.bf16.msra.mxu0 0
      %539 = vmatprep.mubr.bf16.mxu0 0
      %540 = vmatmul.mubr.bf16.gmra.mrb[0].mxu0 %v501
      %v541 = vpop.f32.mrb[0].mxu0
      %v542 = vadd.f32 0.0, %v541
      %v543 = vpop.f32.mrb[0].mxu0
      %v544 = vpop.f32.mrb[0].mxu0
      %v545 = vpop.f32.mrb[0].mxu0
      %546 = vdwg.mxu0
      %547 = vrot.lane.b32.xlu0 %v426, 112
      %v548 = vpop.permute.xlu0 %547
      %549 = vrot.lane.b32.xlu0 %v426, 48
      %v550 = vpop.permute.xlu0 %549
      %v552 = vsel %vm431, %v548, 0
      %v555 = vsel %vm431, %v550, 0
      %557 = vmatprep.subr.bf16.mxu0 0
      %558 = vmatpush1.bf16.xpose.msra.mxu0 %v555
      %559 = vmatprep.subr.bf16.mxu0 0
      %560 = vmatpush1.bf16.xpose.msra.mxu0 0
      %561 = vmatprep.subr.bf16.mxu0 0
      %562 = vmatpush1.bf16.xpose.msra.mxu0 0
      %563 = vmatprep.subr.bf16.mxu0 0
      %564 = vmatpush1.bf16.xpose.msra.mxu0 0
      %565 = vmatprep.subr.bf16.mxu0 0
      %566 = vmatpush1.bf16.xpose.msra.mxu0 0
      %567 = vmatprep.subr.bf16.mxu0 0
      %568 = vmatpush1.bf16.xpose.msra.mxu0 0
      %569 = vmatprep.subr.bf16.mxu0 0
      %570 = vmatpush1.bf16.xpose.msra.mxu0 0
      %571 = vmatprep.subr.bf16.mxu0 0
      %572 = vmatpush1.bf16.xpose.msra.mxu0 0
      %573 = vmatprep.subr.bf16.mxu0 0
      %574 = vmatpush1.bf16.xpose.msra.mxu0 0
      %575 = vmatprep.subr.bf16.mxu0 0
      %576 = vmatpush1.bf16.xpose.msra.mxu0 0
      %577 = vmatprep.subr.bf16.mxu0 0
      %578 = vmatpush1.bf16.xpose.msra.mxu0 0
      %579 = vmatprep.subr.bf16.mxu0 0
      %580 = vmatpush1.bf16.xpose.msra.mxu0 0
      %581 = vmatprep.subr.bf16.mxu0 0
      %582 = vmatpush1.bf16.xpose.msra.mxu0 0
      %583 = vmatprep.subr.bf16.mxu0 0
      %584 = vmatpush1.bf16.xpose.msra.mxu0 0
      %585 = vmatprep.subr.bf16.mxu0 0
      %586 = vmatpush1.bf16.xpose.msra.mxu0 0
      %587 = vmatprep.subr.bf16.mxu0 0
      %588 = vmatpush1.bf16.xpose.msra.mxu0 0
      %589 = vmatprep.mubr.bf16.mxu0 0
      %590 = vmatmul.mubr.bf16.gmra.mrb[0].mxu0 %v552
      %v591 = vpop.f32.mrb[0].mxu0
      %v592 = vadd.f32 0.0, %v591
      %v593 = vpop.f32.mrb[0].mxu0
      %v594 = vpop.f32.mrb[0].mxu0
      %v595 = vpop.f32.mrb[0].mxu0
      %596 = vdwg.mxu0
      %v597 = vmul.f32 %v592, 0.25
      %v598 = vsel %vm485, %v597, -1e+30
      %v599 = vsel %vm487, %v598, -inf
      %600 = vmax.xlane.f32.xlu0 %v599
      %v601 = vpop.xlane.xlu0 %600
      %v602 = vsub.f32 %v598, %v601
      %v603 = vmul.f32 %v602, 1.442695
      %v604 = vpow.pop %v603
      %v605 = vsel %vm487, %v604, 0.0
      %606 = vadd.xlane.f32.xlu0 %v605
      %v607 = vpop.xlane.xlu0 %606
      %v608 = vrcp.pop %v607
      %v609 = vmul.f32 %v604, %v608
      %v610 = vpack.c.bf16 %v609, %v609
      %612 = vrot.lane.b32.xlu0 %v427, 112
      %v613 = vpop.permute.xlu0 %612
      %v615 = vsel %vm487, %v610, 0
      %v618 = vsel %vm503, %v613, 0
      %620 = vmatprep.subr.bf16.mxu0 0
      %621 = vmatpush1.bf16.msra.mxu0 %v618
      %622 = vmatprep.subr.bf16.mxu0 0
      %623 = vmatpush1.bf16.msra.mxu0 0
      %624 = vmatprep.subr.bf16.mxu0 0
      %625 = vmatpush1.bf16.msra.mxu0 0
      %626 = vmatprep.subr.bf16.mxu0 0
      %627 = vmatpush1.bf16.msra.mxu0 0
      %628 = vmatprep.subr.bf16.mxu0 0
      %629 = vmatpush1.bf16.msra.mxu0 0
      %630 = vmatprep.subr.bf16.mxu0 0
      %631 = vmatpush1.bf16.msra.mxu0 0
      %632 = vmatprep.subr.bf16.mxu0 0
      %633 = vmatpush1.bf16.msra.mxu0 0
      %634 = vmatprep.subr.bf16.mxu0 0
      %635 = vmatpush1.bf16.msra.mxu0 0
      %636 = vmatprep.subr.bf16.mxu0 0
      %637 = vmatpush1.bf16.msra.mxu0 0
      %638 = vmatprep.subr.bf16.mxu0 0
      %639 = vmatpush1.bf16.msra.mxu0 0
      %640 = vmatprep.subr.bf16.mxu0 0
      %641 = vmatpush1.bf16.msra.mxu0 0
      %642 = vmatprep.subr.bf16.mxu0 0
      %643 = vmatpush1.bf16.msra.mxu0 0
      %644 = vmatprep.subr.bf16.mxu0 0
      %645 = vmatpush1.bf16.msra.mxu0 0
      %646 = vmatprep.subr.bf16.mxu0 0
      %647 = vmatpush1.bf16.msra.mxu0 0
      %648 = vmatprep.subr.bf16.mxu0 0
      %649 = vmatpush1.bf16.msra.mxu0 0
      %650 = vmatprep.subr.bf16.mxu0 0
      %651 = vmatpush1.bf16.msra.mxu0 0
      %652 = vmatprep.mubr.bf16.mxu0 0
      %653 = vmatmul.mubr.bf16.gmra.mrb[0].mxu0 %v615
      %v654 = vpop.f32.mrb[0].mxu0
      %v655 = vadd.f32 0.0, %v654
      %v656 = vpop.f32.mrb[0].mxu0
      %v657 = vpop.f32.mrb[0].mxu0
      %v658 = vpop.f32.mrb[0].mxu0
      %659 = vdwg.mxu0
      %660 = vrot.lane.b32.xlu0 %v426, 96
      %v661 = vpop.permute.xlu0 %660
      %662 = vrot.lane.b32.xlu0 %v426, 32
      %v663 = vpop.permute.xlu0 %662
      %v665 = vsel %vm431, %v661, 0
      %v668 = vsel %vm431, %v663, 0
      %670 = vmatprep.subr.bf16.mxu0 0
      %671 = vmatpush1.bf16.xpose.msra.mxu0 %v668
      %672 = vmatprep.subr.bf16.mxu0 0
      %673 = vmatpush1.bf16.xpose.msra.mxu0 0
      %674 = vmatprep.subr.bf16.mxu0 0
      %675 = vmatpush1.bf16.xpose.msra.mxu0 0
      %676 = vmatprep.subr.bf16.mxu0 0
      %677 = vmatpush1.bf16.xpose.msra.mxu0 0
      %678 = vmatprep.subr.bf16.mxu0 0
      %679 = vmatpush1.bf16.xpose.msra.mxu0 0
      %680 = vmatprep.subr.bf16.mxu0 0
      %681 = vmatpush1.bf16.xpose.msra.mxu0 0
      %682 = vmatprep.subr.bf16.mxu0 0
      %683 = vmatpush1.bf16.xpose.msra.mxu0 0
      %684 = vmatprep.subr.bf16.mxu0 0
      %685 = vmatpush1.bf16.xpose.msra.mxu0 0
      %686 = vmatprep.subr.bf16.mxu0 0
      %687 = vmatpush1.bf16.xpose.msra.mxu0 0
      %688 = vmatprep.subr.bf16.mxu0 0
      %689 = vmatpush1.bf16.xpose.msra.mxu0 0
      %690 = vmatprep.subr.bf16.mxu0 0
      %691 = vmatpush1.bf16.xpose.msra.mxu0 0
      %692 = vmatprep.subr.bf16.mxu0 0
      %693 = vmatpush1.bf16.xpose.msra.mxu0 0
      %694 = vmatprep.subr.bf16.mxu0 0
      %695 = vmatpush1.bf16.xpose.msra.mxu0 0
      %696 = vmatprep.subr.bf16.mxu0 0
      %697 = vmatpush1.bf16.xpose.msra.mxu0 0
      %698 = vmatprep.subr.bf16.mxu0 0
      %699 = vmatpush1.bf16.xpose.msra.mxu0 0
      %700 = vmatprep.subr.bf16.mxu0 0
      %701 = vmatpush1.bf16.xpose.msra.mxu0 0
      %702 = vmatprep.mubr.bf16.mxu0 0
      %703 = vmatmul.mubr.bf16.gmra.mrb[0].mxu0 %v665
      %v704 = vpop.f32.mrb[0].mxu0
      %v705 = vadd.f32 0.0, %v704
      %v706 = vpop.f32.mrb[0].mxu0
      %v707 = vpop.f32.mrb[0].mxu0
      %v708 = vpop.f32.mrb[0].mxu0
      %709 = vdwg.mxu0
      %v710 = vmul.f32 %v705, 0.25
      %v711 = vsel %vm485, %v710, -1e+30
      %v712 = vsel %vm487, %v711, -inf
      %713 = vmax.xlane.f32.xlu0 %v712
      %v714 = vpop.xlane.xlu0 %713
      %v715 = vsub.f32 %v711, %v714
      %v716 = vmul.f32 %v715, 1.442695
      %v717 = vpow.pop %v716
      %v718 = vsel %vm487, %v717, 0.0
      %719 = vadd.xlane.f32.xlu0 %v718
      %v720 = vpop.xlane.xlu0 %719
      %v721 = vrcp.pop %v720
      %v722 = vmul.f32 %v717, %v721
      %v723 = vpack.c.bf16 %v722, %v722
      %724 = vrot.lane.b32.xlu0 %v427, 96
      %v725 = vpop.permute.xlu0 %724
      %v727 = vsel %vm487, %v723, 0
      %v730 = vsel %vm503, %v725, 0
      %732 = vmatprep.subr.bf16.mxu0 0
      %733 = vmatpush1.bf16.msra.mxu0 %v730
      %734 = vmatprep.subr.bf16.mxu0 0
      %735 = vmatpush1.bf16.msra.mxu0 0
      %736 = vmatprep.subr.bf16.mxu0 0
      %737 = vmatpush1.bf16.msra.mxu0 0
      %738 = vmatprep.subr.bf16.mxu0 0
      %739 = vmatpush1.bf16.msra.mxu0 0
      %740 = vmatprep.subr.bf16.mxu0 0
      %741 = vmatpush1.bf16.msra.mxu0 0
      %742 = vmatprep.subr.bf16.mxu0 0
      %743 = vmatpush1.bf16.msra.mxu0 0
      %744 = vmatprep.subr.bf16.mxu0 0
      %745 = vmatpush1.bf16.msra.mxu0 0
      %746 = vmatprep.subr.bf16.mxu0 0
      %747 = vmatpush1.bf16.msra.mxu0 0
      %748 = vmatprep.subr.bf16.mxu0 0
      %749 = vmatpush1.bf16.msra.mxu0 0
      %750 = vmatprep.subr.bf16.mxu0 0
      %751 = vmatpush1.bf16.msra.mxu0 0
      %752 = vmatprep.subr.bf16.mxu0 0
      %753 = vmatpush1.bf16.msra.mxu0 0
      %754 = vmatprep.subr.bf16.mxu0 0
      %755 = vmatpush1.bf16.msra.mxu0 0
      %756 = vmatprep.subr.bf16.mxu0 0
      %757 = vmatpush1.bf16.msra.mxu0 0
      %758 = vmatprep.subr.bf16.mxu0 0
      %759 = vmatpush1.bf16.msra.mxu0 0
      %760 = vmatprep.subr.bf16.mxu0 0
      %761 = vmatpush1.bf16.msra.mxu0 0
      %762 = vmatprep.subr.bf16.mxu0 0
      %763 = vmatpush1.bf16.msra.mxu0 0
      %764 = vmatprep.mubr.bf16.mxu0 0
      %765 = vmatmul.mubr.bf16.gmra.mrb[0].mxu0 %v727
      %v766 = vpop.f32.mrb[0].mxu0
      %v767 = vadd.f32 0.0, %v766
      %v768 = vpop.f32.mrb[0].mxu0
      %v769 = vpop.f32.mrb[0].mxu0
      %v770 = vpop.f32.mrb[0].mxu0
      %771 = vdwg.mxu0
      %772 = vrot.lane.b32.xlu0 %v426, 80
      %v773 = vpop.permute.xlu0 %772
      %774 = vrot.lane.b32.xlu0 %v426, 16
      %v775 = vpop.permute.xlu0 %774
      %v777 = vsel %vm431, %v773, 0
      %v780 = vsel %vm431, %v775, 0
      %782 = vmatprep.subr.bf16.mxu0 0
      %783 = vmatpush1.bf16.xpose.msra.mxu0 %v780
      %784 = vmatprep.subr.bf16.mxu0 0
      %785 = vmatpush1.bf16.xpose.msra.mxu0 0
      %786 = vmatprep.subr.bf16.mxu0 0
      %787 = vmatpush1.bf16.xpose.msra.mxu0 0
      %788 = vmatprep.subr.bf16.mxu0 0
      %789 = vmatpush1.bf16.xpose.msra.mxu0 0
      %790 = vmatprep.subr.bf16.mxu0 0
      %791 = vmatpush1.bf16.xpose.msra.mxu0 0
      %792 = vmatprep.subr.bf16.mxu0 0
      %793 = vmatpush1.bf16.xpose.msra.mxu0 0
      %794 = vmatprep.subr.bf16.mxu0 0
      %795 = vmatpush1.bf16.xpose.msra.mxu0 0
      %796 = vmatprep.subr.bf16.mxu0 0
      %797 = vmatpush1.bf16.xpose.msra.mxu0 0
      %798 = vmatprep.subr.bf16.mxu0 0
      %799 = vmatpush1.bf16.xpose.msra.mxu0 0
      %800 = vmatprep.subr.bf16.mxu0 0
      %801 = vmatpush1.bf16.xpose.msra.mxu0 0
      %802 = vmatprep.subr.bf16.mxu0 0
      %803 = vmatpush1.bf16.xpose.msra.mxu0 0
      %804 = vmatprep.subr.bf16.mxu0 0
      %805 = vmatpush1.bf16.xpose.msra.mxu0 0
      %806 = vmatprep.subr.bf16.mxu0 0
      %807 = vmatpush1.bf16.xpose.msra.mxu0 0
      %808 = vmatprep.subr.bf16.mxu0 0
      %809 = vmatpush1.bf16.xpose.msra.mxu0 0
      %810 = vmatprep.subr.bf16.mxu0 0
      %811 = vmatpush1.bf16.xpose.msra.mxu0 0
      %812 = vmatprep.subr.bf16.mxu0 0
      %813 = vmatpush1.bf16.xpose.msra.mxu0 0
      %814 = vmatprep.mubr.bf16.mxu0 0
      %815 = vmatmul.mubr.bf16.gmra.mrb[0].mxu0 %v777
      %v816 = vpop.f32.mrb[0].mxu0
      %v817 = vadd.f32 0.0, %v816
      %v818 = vpop.f32.mrb[0].mxu0
      %v819 = vpop.f32.mrb[0].mxu0
      %v820 = vpop.f32.mrb[0].mxu0
      %821 = vdwg.mxu0
      %v822 = vmul.f32 %v817, 0.25
      %v823 = vsel %vm485, %v822, -1e+30
      %v824 = vsel %vm487, %v823, -inf
      %825 = vmax.xlane.f32.xlu0 %v824
      %v826 = vpop.xlane.xlu0 %825
      %v827 = vsub.f32 %v823, %v826
      %v828 = vmul.f32 %v827, 1.442695
      %v829 = vpow.pop %v828
      %v830 = vsel %vm487, %v829, 0.0
      %831 = vadd.xlane.f32.xlu0 %v830
      %v832 = vpop.xlane.xlu0 %831
      %v833 = vrcp.pop %v832
      %v834 = vmul.f32 %v829, %v833
      %v835 = vpack.c.bf16 %v834, %v834
      %836 = vrot.lane.b32.xlu0 %v427, 80
      %v837 = vpop.permute.xlu0 %836
      %v839 = vsel %vm487, %v835, 0
      %v842 = vsel %vm503, %v837, 0
      %844 = vmatprep.subr.bf16.mxu0 0
      %845 = vmatpush1.bf16.msra.mxu0 %v842
      %846 = vmatprep.subr.bf16.mxu0 0
      %847 = vmatpush1.bf16.msra.mxu0 0
      %848 = vmatprep.subr.bf16.mxu0 0
      %849 = vmatpush1.bf16.msra.mxu0 0
      %850 = vmatprep.subr.bf16.mxu0 0
      %851 = vmatpush1.bf16.msra.mxu0 0
      %852 = vmatprep.subr.bf16.mxu0 0
      %853 = vmatpush1.bf16.msra.mxu0 0
      %854 = vmatprep.subr.bf16.mxu0 0
      %855 = vmatpush1.bf16.msra.mxu0 0
      %856 = vmatprep.subr.bf16.mxu0 0
      %857 = vmatpush1.bf16.msra.mxu0 0
      %858 = vmatprep.subr.bf16.mxu0 0
      %859 = vmatpush1.bf16.msra.mxu0 0
      %860 = vmatprep.subr.bf16.mxu0 0
      %861 = vmatpush1.bf16.msra.mxu0 0
      %862 = vmatprep.subr.bf16.mxu0 0
      %863 = vmatpush1.bf16.msra.mxu0 0
      %864 = vmatprep.subr.bf16.mxu0 0
      %865 = vmatpush1.bf16.msra.mxu0 0
      %866 = vmatprep.subr.bf16.mxu0 0
      %867 = vmatpush1.bf16.msra.mxu0 0
      %868 = vmatprep.subr.bf16.mxu0 0
      %869 = vmatpush1.bf16.msra.mxu0 0
      %870 = vmatprep.subr.bf16.mxu0 0
      %871 = vmatpush1.bf16.msra.mxu0 0
      %872 = vmatprep.subr.bf16.mxu0 0
      %873 = vmatpush1.bf16.msra.mxu0 0
      %874 = vmatprep.subr.bf16.mxu0 0
      %875 = vmatpush1.bf16.msra.mxu0 0
      %876 = vmatprep.mubr.bf16.mxu0 0
      %877 = vmatmul.mubr.bf16.gmra.mrb[0].mxu0 %v839
      %v878 = vpop.f32.mrb[0].mxu0
      %v879 = vadd.f32 0.0, %v878
      %v880 = vpop.f32.mrb[0].mxu0
      %v881 = vpop.f32.mrb[0].mxu0
      %v882 = vpop.f32.mrb[0].mxu0
      %883 = vdwg.mxu0
      %885 = vrot.lane.b32.xlu0 %v655, 16
      %v886 = vpop.permute.xlu0 %885
      %889 = vrot.lane.b32.xlu0 %v767, 32
      %v890 = vpop.permute.xlu0 %889
      %893 = vrot.lane.b32.xlu0 %v879, 48
      %v894 = vpop.permute.xlu0 %893
      %v896 = vsel %vm431, %v542, %v886
      %vm897 = vcmask 261120
      %v898 = vsel %vm897, %v896, %v890
      %vm899 = vcmask 392192
      %v900 = vsel %vm899, %v898, %v894
      %v901 = vpack.c.bf16 %v900, %v900
      %v902 = vld [vmem:[%s3] sm:$0xf]
      %v903 = vld [vmem:[%s3 + $0x4] sm:$0xf]
      %v904 = vld [vmem:[%s3 + $0x8] sm:$0xf]
      %v905 = vld [vmem:[%s3 + $0xc] sm:$0xf]
      %v906 = vld [vmem:[%s3 + $0x10] sm:$0xf]
      %v907 = vld [vmem:[%s3 + $0x14] sm:$0xf]
      %v908 = vld [vmem:[%s3 + $0x18] sm:$0xf]
      %v909 = vld [vmem:[%s3 + $0x1c] sm:$0xf]
      %v910 = vld [vmem:[%s4] sm:$0x1]
      %v912 = vlaneseq
      %v913 = vshrl.u32 %v912, 7
      %v914 = vsub.s32 0, %v913
      %v915 = vrot.slane %v910, %v914
      %v925 = vunpack.c.l.b16 %v902
      %v926 = vunpack.c.l.b16 %v903
      %v927 = vunpack.c.l.b16 %v904
      %v928 = vunpack.c.l.b16 %v905
      %v929 = vunpack.c.l.b16 %v906
      %v930 = vunpack.c.l.b16 %v907
      %v931 = vunpack.c.l.b16 %v908
      %v932 = vunpack.c.l.b16 %v909
      %v933 = vpack.c.b16 %v926, %v925
      %v934 = vpack.c.b16 %v928, %v927
      %v935 = vpack.c.b16 %v930, %v929
      %v936 = vpack.c.b16 %v932, %v931
      %v942 = vsel %vm380, %v901, 0
      %944 = vmatprep.subr.bf16.mxu0 0
      %945 = vmatpush1.bf16.msra.mxu0 %v933
      %946 = vmatprep.subr.bf16.mxu0 0
      %947 = vmatpush1.bf16.msra.mxu0 %v934
      %948 = vmatprep.subr.bf16.mxu0 0
      %949 = vmatpush1.bf16.msra.mxu0 %v935
      %950 = vmatprep.subr.bf16.mxu0 0
      %951 = vmatpush1.bf16.msra.mxu0 %v936
      %952 = vmatprep.subr.bf16.mxu0 0
      %953 = vmatpush1.bf16.msra.mxu0 0
      %954 = vmatprep.subr.bf16.mxu0 0
      %955 = vmatpush1.bf16.msra.mxu0 0
      %956 = vmatprep.subr.bf16.mxu0 0
      %957 = vmatpush1.bf16.msra.mxu0 0
      %958 = vmatprep.subr.bf16.mxu0 0
      %959 = vmatpush1.bf16.msra.mxu0 0
      %960 = vmatprep.subr.bf16.mxu0 0
      %961 = vmatpush1.bf16.msra.mxu0 0
      %962 = vmatprep.subr.bf16.mxu0 0
      %963 = vmatpush1.bf16.msra.mxu0 0
      %964 = vmatprep.subr.bf16.mxu0 0
      %965 = vmatpush1.bf16.msra.mxu0 0
      %966 = vmatprep.subr.bf16.mxu0 0
      %967 = vmatpush1.bf16.msra.mxu0 0
      %968 = vmatprep.subr.bf16.mxu0 0
      %969 = vmatpush1.bf16.msra.mxu0 0
      %970 = vmatprep.subr.bf16.mxu0 0
      %971 = vmatpush1.bf16.msra.mxu0 0
      %972 = vmatprep.subr.bf16.mxu0 0
      %973 = vmatpush1.bf16.msra.mxu0 0
      %974 = vmatprep.subr.bf16.mxu0 0
      %975 = vmatpush1.bf16.msra.mxu0 0
      %976 = vmatprep.mubr.bf16.mxu0 0
      %977 = vmatmul.mubr.bf16.gmra.mrb[0].mxu0 %v942
      %v978 = vpop.f32.mrb[0].mxu0
      %v979 = vadd.f32 %v915, %v978
      %v980 = vpop.f32.mrb[0].mxu0
      %v981 = vpop.f32.mrb[0].mxu0
      %v982 = vpop.f32.mrb[0].mxu0
      %983 = vdwg.mxu0
      %v984 = vpack.c.bf16 %v979, %v979
      %v985 = vld [vmem:[%s5] sm:$0xff]
      %v986 = vld [vmem:[%s5 + $0x8] sm:$0xff]
      %v987 = vld [vmem:[%s5 + $0x10] sm:$0xf]
      %v988 = vld [vmem:[%s5 + $0x14] sm:$0xff]
      %v989 = vld [vmem:[%s5 + $0x1c] sm:$0xff]
      %v990 = vld [vmem:[%s5 + $0x24] sm:$0xf]
      %v991 = vld [vmem:[%s5 + $0x28] sm:$0xff]
      %v992 = vld [vmem:[%s5 + $0x30] sm:$0xff]
      %v993 = vld [vmem:[%s5 + $0x38] sm:$0xf]
      %v994 = vld [vmem:[%s5 + $0x3c] sm:$0xff]
      %v995 = vld [vmem:[%s5 + $0x44] sm:$0xff]
      %v996 = vld [vmem:[%s5 + $0x4c] sm:$0xf]
      %v997 = vld [vmem:[%s5 + $0x50] sm:$0xff]
      %v998 = vld [vmem:[%s5 + $0x58] sm:$0xff]
      %v999 = vld [vmem:[%s5 + $0x60] sm:$0xf]
      %v1000 = vld [vmem:[%s5 + $0x64] sm:$0xff]
      %v1001 = vld [vmem:[%s5 + $0x6c] sm:$0xff]
      %v1002 = vld [vmem:[%s5 + $0x74] sm:$0xf]
      %v1003 = vld [vmem:[%s5 + $0x78] sm:$0xff]
      %v1004 = vld [vmem:[%s5 + $0x80] sm:$0xff]
      %v1005 = vld [vmem:[%s5 + $0x88] sm:$0xf]
      %v1006 = vld [vmem:[%s5 + $0x8c] sm:$0xff]
      %v1007 = vld [vmem:[%s5 + $0x94] sm:$0xff]
      %v1008 = vld [vmem:[%s5 + $0x9c] sm:$0xf]
      %v1009 = vld [vmem:[%s6] sm:$0x1f]
      %v1011 = vlaneseq
      %v1012 = vshrl.u32 %v1011, 7
      %v1013 = vsub.s32 0, %v1012
      %v1014 = vrot.slane %v1009, %v1013
      %v1015 = vlaneseq
      %v1016 = vshrl.u32 %v1015, 7
      %v1017 = vsub.s32 1, %v1016
      %v1018 = vrot.slane %v1009, %v1017
      %v1019 = vlaneseq
      %v1020 = vshrl.u32 %v1019, 7
      %v1021 = vsub.s32 2, %v1020
      %v1022 = vrot.slane %v1009, %v1021
      %v1023 = vlaneseq
      %v1024 = vshrl.u32 %v1023, 7
      %v1025 = vsub.s32 3, %v1024
      %v1026 = vrot.slane %v1009, %v1025
      %v1027 = vlaneseq
      %v1028 = vshrl.u32 %v1027, 7
      %v1029 = vsub.s32 4, %v1028
      %v1030 = vrot.slane %v1009, %v1029
      %v1060 = vunpack.c.l.b16 %v985
      %v1061 = vunpack.c.h.b16 %v985
      %v1062 = vunpack.c.l.b16 %v986
      %v1063 = vunpack.c.h.b16 %v986
      %v1064 = vunpack.c.l.b16 %v987
      %v1065 = vunpack.c.l.b16 %v988
      %v1066 = vunpack.c.h.b16 %v988
      %v1067 = vunpack.c.l.b16 %v989
      %v1068 = vunpack.c.h.b16 %v989
      %v1069 = vunpack.c.l.b16 %v990
      %v1070 = vunpack.c.l.b16 %v991
      %v1071 = vunpack.c.h.b16 %v991
      %v1072 = vunpack.c.l.b16 %v992
      %v1073 = vunpack.c.h.b16 %v992
      %v1074 = vunpack.c.l.b16 %v993
      %v1075 = vunpack.c.l.b16 %v994
      %v1076 = vunpack.c.h.b16 %v994
      %v1077 = vunpack.c.l.b16 %v995
      %v1078 = vunpack.c.h.b16 %v995
      %v1079 = vunpack.c.l.b16 %v996
      %v1080 = vunpack.c.l.b16 %v997
      %v1081 = vunpack.c.h.b16 %v997
      %v1082 = vunpack.c.l.b16 %v998
      %v1083 = vunpack.c.h.b16 %v998
      %v1084 = vunpack.c.l.b16 %v999
      %v1085 = vunpack.c.l.b16 %v1000
      %v1086 = vunpack.c.h.b16 %v1000
      %v1087 = vunpack.c.l.b16 %v1001
      %v1088 = vunpack.c.h.b16 %v1001
      %v1089 = vunpack.c.l.b16 %v1002
      %v1090 = vunpack.c.l.b16 %v1003
      %v1091 = vunpack.c.h.b16 %v1003
      %v1092 = vunpack.c.l.b16 %v1004
      %v1093 = vunpack.c.h.b16 %v1004
      %v1094 = vunpack.c.l.b16 %v1005
      %v1095 = vunpack.c.l.b16 %v1006
      %v1096 = vunpack.c.h.b16 %v1006
      %v1097 = vunpack.c.l.b16 %v1007
      %v1098 = vunpack.c.h.b16 %v1007
      %v1099 = vunpack.c.l.b16 %v1008
      %v1100 = vpack.c.b16 %v1065, %v1060
      %v1101 = vpack.c.b16 %v1066, %v1061
      %v1102 = vpack.c.b16 %v1067, %v1062
      %v1103 = vpack.c.b16 %v1068, %v1063
      %v1104 = vpack.c.b16 %v1069, %v1064
      %v1105 = vpack.c.b16 %v1075, %v1070
      %v1106 = vpack.c.b16 %v1076, %v1071
      %v1107 = vpack.c.b16 %v1077, %v1072
      %v1108 = vpack.c.b16 %v1078, %v1073
      %v1109 = vpack.c.b16 %v1079, %v1074
      %v1110 = vpack.c.b16 %v1085, %v1080
      %v1111 = vpack.c.b16 %v1086, %v1081
      %v1112 = vpack.c.b16 %v1087, %v1082
      %v1113 = vpack.c.b16 %v1088, %v1083
      %v1114 = vpack.c.b16 %v1089, %v1084
      %v1115 = vpack.c.b16 %v1095, %v1090
      %v1116 = vpack.c.b16 %v1096, %v1091
      %v1117 = vpack.c.b16 %v1097, %v1092
      %v1118 = vpack.c.b16 %v1098, %v1093
      %v1119 = vpack.c.b16 %v1099, %v1094
      %v1141 = vsel %vm380, %v984, 0
      %1143 = vmatprep.subr.bf16.mxu0 %v1101
      %1144 = vmatpush1.bf16.msra.mxu0 %v1100
      %1145 = vmatprep.subr.bf16.mxu0 %v1106
      %1146 = vmatpush1.bf16.msra.mxu0 %v1105
      %1147 = vmatprep.subr.bf16.mxu0 %v1111
      %1148 = vmatpush1.bf16.msra.mxu0 %v1110
      %1149 = vmatprep.subr.bf16.mxu0 %v1116
      %1150 = vmatpush1.bf16.msra.mxu0 %v1115
      %1151 = vmatprep.subr.bf16.mxu0 0
      %1152 = vmatpush1.bf16.msra.mxu0 0
      %1153 = vmatprep.subr.bf16.mxu0 0
      %1154 = vmatpush1.bf16.msra.mxu0 0
      %1155 = vmatprep.subr.bf16.mxu0 0
      %1156 = vmatpush1.bf16.msra.mxu0 0
      %1157 = vmatprep.subr.bf16.mxu0 0
      %1158 = vmatpush1.bf16.msra.mxu0 0
      %1159 = vmatprep.subr.bf16.mxu0 0
      %1160 = vmatpush1.bf16.msra.mxu0 0
      %1161 = vmatprep.subr.bf16.mxu0 0
      %1162 = vmatpush1.bf16.msra.mxu0 0
      %1163 = vmatprep.subr.bf16.mxu0 0
      %1164 = vmatpush1.bf16.msra.mxu0 0
      %1165 = vmatprep.subr.bf16.mxu0 0
      %1166 = vmatpush1.bf16.msra.mxu0 0
      %1167 = vmatprep.subr.bf16.mxu0 0
      %1168 = vmatpush1.bf16.msra.mxu0 0
      %1169 = vmatprep.subr.bf16.mxu0 0
      %1170 = vmatpush1.bf16.msra.mxu0 0
      %1171 = vmatprep.subr.bf16.mxu0 0
      %1172 = vmatpush1.bf16.msra.mxu0 0
      %1173 = vmatprep.subr.bf16.mxu0 0
      %1174 = vmatpush1.bf16.msra.mxu0 0
      %1175 = vmatprep.mubr.bf16.mxu0 0
      %1176 = vmatmul.mubr.bf16.gmra.mrb[0].mxu0 %v1141
      %v1177 = vpop.f32.mrb[0].mxu0
      %v1178 = vadd.f32 %v1014, %v1177
      %v1179 = vpop.f32.mrb[0].mxu0
      %v1180 = vadd.f32 %v1018, %v1179
      %v1181 = vpop.f32.mrb[0].mxu0
      %v1182 = vpop.f32.mrb[0].mxu0
      %1183 = vdwg.mxu0
      %1184 = vmatprep.subr.bf16.mxu0 %v1103
      %1185 = vmatpush1.bf16.msra.mxu0 %v1102
      %1186 = vmatprep.subr.bf16.mxu0 %v1108
      %1187 = vmatpush1.bf16.msra.mxu0 %v1107
      %1188 = vmatprep.subr.bf16.mxu0 %v1113
      %1189 = vmatpush1.bf16.msra.mxu0 %v1112
      %1190 = vmatprep.subr.bf16.mxu0 %v1118
      %1191 = vmatpush1.bf16.msra.mxu0 %v1117
      %1192 = vmatprep.subr.bf16.mxu0 0
      %1193 = vmatpush1.bf16.msra.mxu0 0
      %1194 = vmatprep.subr.bf16.mxu0 0
      %1195 = vmatpush1.bf16.msra.mxu0 0
      %1196 = vmatprep.subr.bf16.mxu0 0
      %1197 = vmatpush1.bf16.msra.mxu0 0
      %1198 = vmatprep.subr.bf16.mxu0 0
      %1199 = vmatpush1.bf16.msra.mxu0 0
      %1200 = vmatprep.subr.bf16.mxu0 0
      %1201 = vmatpush1.bf16.msra.mxu0 0
      %1202 = vmatprep.subr.bf16.mxu0 0
      %1203 = vmatpush1.bf16.msra.mxu0 0
      %1204 = vmatprep.subr.bf16.mxu0 0
      %1205 = vmatpush1.bf16.msra.mxu0 0
      %1206 = vmatprep.subr.bf16.mxu0 0
      %1207 = vmatpush1.bf16.msra.mxu0 0
      %1208 = vmatprep.subr.bf16.mxu0 0
      %1209 = vmatpush1.bf16.msra.mxu0 0
      %1210 = vmatprep.subr.bf16.mxu0 0
      %1211 = vmatpush1.bf16.msra.mxu0 0
      %1212 = vmatprep.subr.bf16.mxu0 0
      %1213 = vmatpush1.bf16.msra.mxu0 0
      %1214 = vmatprep.subr.bf16.mxu0 0
      %1215 = vmatpush1.bf16.msra.mxu0 0
      %1216 = vmatprep.mubr.bf16.mxu0 0
      %1217 = vmatmul.mubr.bf16.gmra.mrb[0].mxu0 %v1141
      %v1218 = vpop.f32.mrb[0].mxu0
      %v1219 = vadd.f32 %v1022, %v1218
      %v1220 = vpop.f32.mrb[0].mxu0
      %v1221 = vadd.f32 %v1026, %v1220
      %v1222 = vpop.f32.mrb[0].mxu0
      %v1223 = vpop.f32.mrb[0].mxu0
      %1224 = vdwg.mxu0
      %1225 = vmatprep.subr.bf16.mxu0 0
      %1226 = vmatpush1.bf16.msra.mxu0 %v1104
      %1227 = vmatprep.subr.bf16.mxu0 0
      %1228 = vmatpush1.bf16.msra.mxu0 %v1109
      %1229 = vmatprep.subr.bf16.mxu0 0
      %1230 = vmatpush1.bf16.msra.mxu0 %v1114
      %1231 = vmatprep.subr.bf16.mxu0 0
      %1232 = vmatpush1.bf16.msra.mxu0 %v1119
      %1233 = vmatprep.subr.bf16.mxu0 0
      %1234 = vmatpush1.bf16.msra.mxu0 0
      %1235 = vmatprep.subr.bf16.mxu0 0
      %1236 = vmatpush1.bf16.msra.mxu0 0
      %1237 = vmatprep.subr.bf16.mxu0 0
      %1238 = vmatpush1.bf16.msra.mxu0 0
      %1239 = vmatprep.subr.bf16.mxu0 0
      %1240 = vmatpush1.bf16.msra.mxu0 0
      %1241 = vmatprep.subr.bf16.mxu0 0
      %1242 = vmatpush1.bf16.msra.mxu0 0
      %1243 = vmatprep.subr.bf16.mxu0 0
      %1244 = vmatpush1.bf16.msra.mxu0 0
      %1245 = vmatprep.subr.bf16.mxu0 0
      %1246 = vmatpush1.bf16.msra.mxu0 0
      %1247 = vmatprep.subr.bf16.mxu0 0
      %1248 = vmatpush1.bf16.msra.mxu0 0
      %1249 = vmatprep.subr.bf16.mxu0 0
      %1250 = vmatpush1.bf16.msra.mxu0 0
      %1251 = vmatprep.subr.bf16.mxu0 0
      %1252 = vmatpush1.bf16.msra.mxu0 0
      %1253 = vmatprep.subr.bf16.mxu0 0
      %1254 = vmatpush1.bf16.msra.mxu0 0
      %1255 = vmatprep.subr.bf16.mxu0 0
      %1256 = vmatpush1.bf16.msra.mxu0 0
      %1257 = vmatprep.mubr.bf16.mxu0 0
      %1258 = vmatmul.mubr.bf16.gmra.mrb[0].mxu0 %v1141
      %v1259 = vpop.f32.mrb[0].mxu0
      %v1260 = vadd.f32 %v1030, %v1259
      %v1261 = vpop.f32.mrb[0].mxu0
      %v1262 = vpop.f32.mrb[0].mxu0
      %v1263 = vpop.f32.mrb[0].mxu0
      %1264 = vdwg.mxu0
      %vm1265 = vcmp.ge.f32.partialorder %v1178, 0.0
      %vm1266 = vcmp.ge.f32.partialorder %v1180, 0.0
      %vm1267 = vcmp.ge.f32.partialorder %v1219, 0.0
      %vm1268 = vcmp.ge.f32.partialorder %v1221, 0.0
      %vm1269 = vcmp.ge.f32.partialorder %v1260, 0.0
      %v1270 = vmul.f32 %v1178, 0.1
      %v1271 = vmul.f32 %v1180, 0.1
      %v1272 = vmul.f32 %v1219, 0.1
      %v1273 = vmul.f32 %v1221, 0.1
      %v1274 = vmul.f32 %v1260, 0.1
      %v1275 = vsel %vm1265, %v1178, %v1270
      %v1276 = vsel %vm1266, %v1180, %v1271
      %v1277 = vsel %vm1267, %v1219, %v1272
      %v1278 = vsel %vm1268, %v1221, %v1273
      %v1279 = vsel %vm1269, %v1260, %v1274
      %1280 = vst [vmem:[%s316] sm:$0xff] %v1275
      %1281 = vst [vmem:[%s316 + $0x8] sm:$0xff] %v1276
      %1282 = vst [vmem:[%s316 + $0x10] sm:$0xff] %v1277
      %1283 = vst [vmem:[%s316 + $0x18] sm:$0xff] %v1278
      %vm1284 = vcmask 719872
      %1285 = vst.msk [vmem:[%s316 + $0x20] sm:$0xff] %vm1284, %v1279
      %p1286 = scmp.lt.s32.totalorder %s19, 1
      %s1287 = scalar_select %p1286, %s19, 1
      %s1288 = smul.addr %s1287, 5
      %s1289 = smul.addr %s1288, 8
      %s1290 = scalar_lea.vmem %s8, %s1289
      // Predicated region
      $region53: #{run.7} parent=51 // pred_check
        %p1291 = pneg %p215
      $region54: #{run.7} parent=51 // pred_check_branch
        %1293 = sbr.rel (%p1291) target = $region56
      $region55: #{run.7} parent=51 // pred_region
        _
      $region56: #{run.7} parent=51 // pred_fallthru
        _
    $region52: #{run.7} parent=5 // pred_fallthru
      _
    %p1294 = scmp.le.s32.totalorder 2, %s14
    // Predicated region
    $region57: #{run.7} parent=5 // pred_check
      %p1295 = pneg %p1294
    $region58: #{run.7} parent=5 // pred_check_branch
      %1297 = sbr.rel (%p1295) target = $region60
    $region59: #{run.7} parent=5 // pred_region
      %s1298 = ssub.s32 %s14, 2
      // Predicated region
      $region61: #{run.7} parent=59 // pred_check
        %p1299 = pneg %p221
      $region62: #{run.7} parent=59 // pred_check_branch
        %1301 = sbr.rel (%p1299) target = $region64
      $region63: #{run.7} parent=59 // pred_region
        %p1302 = scmp.lt.s32.totalorder %s20, 1
        %s1303 = scalar_select %p1302, %s20, 1
        %s1304 = smul.addr %s1303, 5
        %s1305 = smul.addr %s1304, 8
        %s1306 = scalar_lea.vmem %s8, %s1305
      $region64: #{run.7} parent=59 // pred_fallthru
        _
    $region60: #{run.7} parent=5 // pred_fallthru
      _
  $region6: #{run.7} parent=0 // loop_footer
    %s18 = sadd.s32 1, %s14
  $region7: #{run.7} parent=0 // loop_footer_branch
    %13 = sbr.rel target = $region3
  $region8: #{run.7} parent=0 // loop_exit
    _

// kernel: run.6
$region0: #{run.6}
  #allocation0 [shape = 'u32[]', space=smem, size = 0x4, offset = 0x4, fixed_abs, tag = 'smem constant byte address 0x4 - core index']
  #allocation1 [shape = 'u32[144,128]{1,0:T(1,128)}', space=vmem, size = 0x12000, scoped, tag = 'internal scratch']
  #allocation2 [shape = 'bf16[8,8,256]{2,1,0:T(8,128)(2,1)}', space=vmem, size = 0x8000, scoped, tag = 'scratch operand']
  %s0 = inlined_call_operand.vmem [shape: f32[8,8,64], index: 0, kind: input, shape index: {}]
  %s1 = inlined_call_operand.vmem [shape: f32[8,8,1], index: 1, kind: input, shape index: {}]
  %s2 = inlined_call_operand.vmem [shape: bf16[64,256], index: 2, kind: input, shape index: {}]
  %s3 = inlined_call_operand.vmem [shape: bf16[64,256], index: 3, kind: input, shape index: {}]
  %s4 = inlined_call_operand.vmem [shape: f32[1,256], index: 4, kind: input, shape index: {}]
  %s5 = inlined_call_operand.vmem [shape: f32[8,8,64], index: 5, kind: output, shape index: {}]
  %s6 = sld [smem:[#allocation0]]
  $region30: #{run.6} parent=0
    _
  %s8 = ssub.s32 1, %s6
  %s9 = scalar_select 0, %s8, %s6
  // Predicated region
  $region2: #{run.6} parent=0 // pred_check
    _
  $region3: #{run.6} parent=0 // pred_check_branch
    %11 = sbr.rel (0) target = $region5
  $region4: #{run.6} parent=0 // pred_region
    _
  $region5: #{run.6} parent=0 // pred_fallthru
    _
  // Predicated region
  $region6: #{run.6} parent=0 // pred_check
    _
  $region7: #{run.6} parent=0 // pred_check_branch
    %13 = sbr.rel (0) target = $region9
  $region8: #{run.6} parent=0 // pred_region
    _
  $region9: #{run.6} parent=0 // pred_fallthru
    _
  // Predicated region
  $region10: #{run.6} parent=0 // pred_check
    _
  $region11: #{run.6} parent=0 // pred_check_branch
    %15 = sbr.rel (0) target = $region13
  $region12: #{run.6} parent=0 // pred_region
    _
  $region13: #{run.6} parent=0 // pred_fallthru
    _
  // Predicated region
  $region14: #{run.6} parent=0 // pred_check
    _
  $region15: #{run.6} parent=0 // pred_check_branch
    %17 = sbr.rel (0) target = $region17
  $region16: #{run.6} parent=0 // pred_region
    _
  $region17: #{run.6} parent=0 // pred_fallthru
    _
  // Predicated region
  $region18: #{run.6} parent=0 // pred_check
    _
  $region19: #{run.6} parent=0 // pred_check_branch
    %19 = sbr.rel (0) target = $region21
  $region20: #{run.6} parent=0 // pred_region
    _
  $region21: #{run.6} parent=0 // pred_fallthru
    _
  %v21 = vld [vmem:[%s0] sm:$0xff]
  %v22 = vld [vmem:[%s0 + $0x8] sm:$0xff]
  %v23 = vld [vmem:[%s0 + $0x10] sm:$0xff]
  %v24 = vld [vmem:[%s0 + $0x18] sm:$0xff]
  %v25 = vld [vmem:[%s0 + $0x20] sm:$0xff]
  %v26 = vld [vmem:[%s0 + $0x28] sm:$0xff]
  %v27 = vld [vmem:[%s0 + $0x30] sm:$0xff]
  %v28 = vld [vmem:[%s0 + $0x38] sm:$0xff]
  %v29 = vpack.c.bf16 %v21, %v21
  %v30 = vpack.c.bf16 %v22, %v22
  %v31 = vpack.c.bf16 %v23, %v23
  %v32 = vpack.c.bf16 %v24, %v24
  %v33 = vpack.c.bf16 %v25, %v25
  %v34 = vpack.c.bf16 %v26, %v26
  %v35 = vpack.c.bf16 %v27, %v27
  %v36 = vpack.c.bf16 %v28, %v28
  %v37 = vld [vmem:[%s2] sm:$0xff]
  %v38 = vld [vmem:[%s2 + $0x8] sm:$0xff]
  %v39 = vld [vmem:[%s2 + $0x10] sm:$0xff]
  %v40 = vld [vmem:[%s2 + $0x18] sm:$0xff]
  %v41 = vld [vmem:[%s2 + $0x20] sm:$0xff]
  %v42 = vld [vmem:[%s2 + $0x28] sm:$0xff]
  %v43 = vld [vmem:[%s2 + $0x30] sm:$0xff]
  %v44 = vld [vmem:[%s2 + $0x38] sm:$0xff]
  %v45 = vld [vmem:[%s4] sm:$0x3]
  %v47 = vlaneseq
  %v48 = vshrl.u32 %v47, 7
  %v49 = vsub.s32 0, %v48
  %v50 = vrot.slane %v45, %v49
  %v51 = vlaneseq
  %v52 = vshrl.u32 %v51, 7
  %v53 = vsub.s32 1, %v52
  %v54 = vrot.slane %v45, %v53
  %v65 = vunpack.c.l.b16 %v29
  %v66 = vunpack.c.l.b16 %v30
  %v67 = vunpack.c.l.b16 %v31
  %v68 = vunpack.c.l.b16 %v32
  %v69 = vunpack.c.l.b16 %v33
  %v70 = vunpack.c.l.b16 %v34
  %v71 = vunpack.c.l.b16 %v35
  %v72 = vunpack.c.l.b16 %v36
  %v73 = vpack.c.b16 %v66, %v65
  %v74 = vpack.c.b16 %v68, %v67
  %v75 = vpack.c.b16 %v70, %v69
  %v76 = vpack.c.b16 %v72, %v71
  %v85 = vunpack.c.l.b16 %v37
  %v86 = vunpack.c.h.b16 %v37
  %v87 = vunpack.c.l.b16 %v38
  %v88 = vunpack.c.h.b16 %v38
  %v89 = vunpack.c.l.b16 %v39
  %v90 = vunpack.c.h.b16 %v39
  %v91 = vunpack.c.l.b16 %v40
  %v92 = vunpack.c.h.b16 %v40
  %v93 = vunpack.c.l.b16 %v41
  %v94 = vunpack.c.h.b16 %v41
  %v95 = vunpack.c.l.b16 %v42
  %v96 = vunpack.c.h.b16 %v42
  %v97 = vunpack.c.l.b16 %v43
  %v98 = vunpack.c.h.b16 %v43
  %v99 = vunpack.c.l.b16 %v44
  %v100 = vunpack.c.h.b16 %v44
  %v101 = vpack.c.b16 %v87, %v85
  %v102 = vpack.c.b16 %v88, %v86
  %v103 = vpack.c.b16 %v91, %v89
  %v104 = vpack.c.b16 %v92, %v90
  %v105 = vpack.c.b16 %v95, %v93
  %v106 = vpack.c.b16 %v96, %v94
  %v107 = vpack.c.b16 %v99, %v97
  %v108 = vpack.c.b16 %v100, %v98
  %vm117 = vcmask 523264
  %v119 = vsel %vm117, %v73, 0
  %v122 = vsel %vm117, %v74, 0
  %v125 = vsel %vm117, %v75, 0
  %v128 = vsel %vm117, %v76, 0
  %130 = vmatprep.subr.bf16.mxu0 %v102
  %131 = vmatpush1.bf16.msra.mxu0 %v101
  %132 = vmatprep.subr.bf16.mxu0 %v104
  %133 = vmatpush1.bf16.msra.mxu0 %v103
  %134 = vmatprep.subr.bf16.mxu0 %v106
  %135 = vmatpush1.bf16.msra.mxu0 %v105
  %136 = vmatprep.subr.bf16.mxu0 %v108
  %137 = vmatpush1.bf16.msra.mxu0 %v107
  %138 = vmatprep.subr.bf16.mxu0 0
  %139 = vmatpush1.bf16.msra.mxu0 0
  %140 = vmatprep.subr.bf16.mxu0 0
  %141 = vmatpush1.bf16.msra.mxu0 0
  %142 = vmatprep.subr.bf16.mxu0 0
  %143 = vmatpush1.bf16.msra.mxu0 0
  %144 = vmatprep.subr.bf16.mxu0 0
  %145 = vmatpush1.bf16.msra.mxu0 0
  %146 = vmatprep.subr.bf16.mxu0 0
  %147 = vmatpush1.bf16.msra.mxu0 0
  %148 = vmatprep.subr.bf16.mxu0 0
  %149 = vmatpush1.bf16.msra.mxu0 0
  %150 = vmatprep.subr.bf16.mxu0 0
  %151 = vmatpush1.bf16.msra.mxu0 0
  %152 = vmatprep.subr.bf16.mxu0 0
  %153 = vmatpush1.bf16.msra.mxu0 0
  %154 = vmatprep.subr.bf16.mxu0 0
  %155 = vmatpush1.bf16.msra.mxu0 0
  %156 = vmatprep.subr.bf16.mxu0 0
  %157 = vmatpush1.bf16.msra.mxu0 0
  %158 = vmatprep.subr.bf16.mxu0 0
  %159 = vmatpush1.bf16.msra.mxu0 0
  %160 = vmatprep.subr.bf16.mxu0 0
  %161 = vmatpush1.bf16.msra.mxu0 0
  %162 = vmatprep.mubr.bf16.mxu0 0
  %163 = vmatmul.mubr.bf16.gmra.mrb[0].mxu0 %v119
  %v164 = vpop.f32.mrb[0].mxu0
  %v165 = vadd.f32 %v50, %v164
  %v166 = vpop.f32.mrb[0].mxu0
  %v167 = vadd.f32 %v54, %v166
  %v168 = vpop.f32.mrb[0].mxu0
  %v169 = vadd.f32 %v50, %v168
  %v170 = vpop.f32.mrb[0].mxu0
  %v171 = vadd.f32 %v54, %v170
  %172 = vmatprep.mubr.bf16.mxu0 0
  %173 = vmatmul.mubr.bf16.gmra.mrb[0].mxu0 %v122
  %v174 = vpop.f32.mrb[0].mxu0
  %v175 = vadd.f32 %v50, %v174
  %v176 = vpop.f32.mrb[0].mxu0
  %v177 = vadd.f32 %v54, %v176
  %v178 = vpop.f32.mrb[0].mxu0
  %v179 = vadd.f32 %v50, %v178
  %v180 = vpop.f32.mrb[0].mxu0
  %v181 = vadd.f32 %v54, %v180
  %182 = vmatprep.mubr.bf16.mxu0 0
  %183 = vmatmul.mubr.bf16.gmra.mrb[0].mxu0 %v125
  %v184 = vpop.f32.mrb[0].mxu0
  %v185 = vadd.f32 %v50, %v184
  %v186 = vpop.f32.mrb[0].mxu0
  %v187 = vadd.f32 %v54, %v186
  %v188 = vpop.f32.mrb[0].mxu0
  %v189 = vadd.f32 %v50, %v188
  %v190 = vpop.f32.mrb[0].mxu0
  %v191 = vadd.f32 %v54, %v190
  %192 = vmatprep.mubr.bf16.mxu0 0
  %193 = vmatmul.mubr.bf16.gmra.mrb[0].mxu0 %v128
  %v194 = vpop.f32.mrb[0].mxu0
  %v195 = vadd.f32 %v50, %v194
  %v196 = vpop.f32.mrb[0].mxu0
  %v197 = vadd.f32 %v54, %v196
  %v198 = vpop.f32.mrb[0].mxu0
  %v199 = vadd.f32 %v50, %v198
  %v200 = vpop.f32.mrb[0].mxu0
  %v201 = vadd.f32 %v54, %v200
  %202 = vdwg.mxu0
  %v203 = vpack.c.bf16 %v169, %v165
  %v204 = vpack.c.bf16 %v171, %v167
  %v205 = vpack.c.bf16 %v179, %v175
  %v206 = vpack.c.bf16 %v181, %v177
  %v207 = vpack.c.bf16 %v189, %v185
  %v208 = vpack.c.bf16 %v191, %v187
  %v209 = vpack.c.bf16 %v199, %v195
  %v210 = vpack.c.bf16 %v201, %v197
  %v219 = vunpack.c.l.b16 %v203
  %v220 = vunpack.c.l.b16 %v204
  %v221 = vunpack.c.h.b16 %v203
  %v222 = vunpack.c.h.b16 %v204
  %v223 = vunpack.c.l.b16 %v205
  %v224 = vunpack.c.l.b16 %v206
  %v225 = vunpack.c.h.b16 %v205
  %v226 = vunpack.c.h.b16 %v206
  %v227 = vunpack.c.l.b16 %v207
  %v228 = vunpack.c.l.b16 %v208
  %v229 = vunpack.c.h.b16 %v207
  %v230 = vunpack.c.h.b16 %v208
  %v231 = vunpack.c.l.b16 %v209
  %v232 = vunpack.c.l.b16 %v210
  %v233 = vunpack.c.h.b16 %v209
  %v234 = vunpack.c.h.b16 %v210
  %v235 = vpack.c.b16 %v220, %v219
  %v236 = vpack.c.b16 %v222, %v221
  %v237 = vpack.c.b16 %v224, %v223
  %v238 = vpack.c.b16 %v226, %v225
  %v239 = vpack.c.b16 %v228, %v227
  %v240 = vpack.c.b16 %v230, %v229
  %v241 = vpack.c.b16 %v232, %v231
  %v242 = vpack.c.b16 %v234, %v233
  %251 = vst [vmem:[#allocation2] sm:$0xff] %v235
  %252 = vst [vmem:[#allocation2 + $0x8] sm:$0xff] %v236
  %253 = vst [vmem:[#allocation2 + $0x10] sm:$0xff] %v237
  %254 = vst [vmem:[#allocation2 + $0x18] sm:$0xff] %v238
  %255 = vst [vmem:[#allocation2 + $0x20] sm:$0xff] %v239
  %256 = vst [vmem:[#allocation2 + $0x28] sm:$0xff] %v240
  %257 = vst [vmem:[#allocation2 + $0x30] sm:$0xff] %v241
  %258 = vst [vmem:[#allocation2 + $0x38] sm:$0xff] %v242
  %v259 = vld [vmem:[%s3] sm:$0xff]
  %v260 = vld [vmem:[%s3 + $0x8] sm:$0xff]
  %v261 = vld [vmem:[%s3 + $0x10] sm:$0xff]
  %v262 = vld [vmem:[%s3 + $0x18] sm:$0xff]
  %v263 = vld [vmem:[%s3 + $0x20] sm:$0xff]
  %v264 = vld [vmem:[%s3 + $0x28] sm:$0xff]
  %v265 = vld [vmem:[%s3 + $0x30] sm:$0xff]
  %v266 = vld [vmem:[%s3 + $0x38] sm:$0xff]
  %v267 = vpack.c.bf16 0.0, 0.0
  %v276 = vunpack.c.l.b16 %v259
  %v277 = vunpack.c.h.b16 %v259
  %v278 = vunpack.c.l.b16 %v260
  %v279 = vunpack.c.h.b16 %v260
  %v280 = vunpack.c.l.b16 %v261
  %v281 = vunpack.c.h.b16 %v261
  %v282 = vunpack.c.l.b16 %v262
  %v283 = vunpack.c.h.b16 %v262
  %v284 = vunpack.c.l.b16 %v263
  %v285 = vunpack.c.h.b16 %v263
  %v286 = vunpack.c.l.b16 %v264
  %v287 = vunpack.c.h.b16 %v264
  %v288 = vunpack.c.l.b16 %v265
  %v289 = vunpack.c.h.b16 %v265
  %v290 = vunpack.c.l.b16 %v266
  %v291 = vunpack.c.h.b16 %v266
  %v292 = vpack.c.b16 %v278, %v276
  %v293 = vpack.c.b16 %v279, %v277
  %v294 = vpack.c.b16 %v282, %v280
  %v295 = vpack.c.b16 %v283, %v281
  %v296 = vpack.c.b16 %v286, %v284
  %v297 = vpack.c.b16 %v287, %v285
  %v298 = vpack.c.b16 %v290, %v288
  %v299 = vpack.c.b16 %v291, %v289
  %v309 = vsel %vm117, %v267, 0
  %311 = vmatprep.subr.bf16.mxu0 %v293
  %312 = vmatpush1.bf16.msra.mxu0 %v292
  %313 = vmatprep.subr.bf16.mxu0 %v295
  %314 = vmatpush1.bf16.msra.mxu0 %v294
  %315 = vmatprep.subr.bf16.mxu0 %v297
  %316 = vmatpush1.bf16.msra.mxu0 %v296
  %317 = vmatprep.subr.bf16.mxu0 %v299
  %318 = vmatpush1.bf16.msra.mxu0 %v298
  %319 = vmatprep.subr.bf16.mxu0 0
  %320 = vmatpush1.bf16.msra.mxu0 0
  %321 = vmatprep.subr.bf16.mxu0 0
  %322 = vmatpush1.bf16.msra.mxu0 0
  %323 = vmatprep.subr.bf16.mxu0 0
  %324 = vmatpush1.bf16.msra.mxu0 0
  %325 = vmatprep.subr.bf16.mxu0 0
  %326 = vmatpush1.bf16.msra.mxu0 0
  %327 = vmatprep.subr.bf16.mxu0 0
  %328 = vmatpush1.bf16.msra.mxu0 0
  %329 = vmatprep.subr.bf16.mxu0 0
  %330 = vmatpush1.bf16.msra.mxu0 0
  %331 = vmatprep.subr.bf16.mxu0 0
  %332 = vmatpush1.bf16.msra.mxu0 0
  %333 = vmatprep.subr.bf16.mxu0 0
  %334 = vmatpush1.bf16.msra.mxu0 0
  %335 = vmatprep.subr.bf16.mxu0 0
  %336 = vmatpush1.bf16.msra.mxu0 0
  %337 = vmatprep.subr.bf16.mxu0 0
  %338 = vmatpush1.bf16.msra.mxu0 0
  %339 = vmatprep.subr.bf16.mxu0 0
  %340 = vmatpush1.bf16.msra.mxu0 0
  %341 = vmatprep.subr.bf16.mxu0 0
  %342 = vmatpush1.bf16.msra.mxu0 0
  %343 = vmatprep.mubr.bf16.mxu0 0
  %344 = vmatmul.mubr.bf16.gmra.mrb[0].mxu0 %v309
  %v345 = vpop.f32.mrb[0].mxu0
  %v346 = vadd.f32 0.0, %v345
  %v347 = vpop.f32.mrb[0].mxu0
  %v348 = vadd.f32 0.0, %v347
  %v349 = vpop.f32.mrb[0].mxu0
  %v350 = vpop.f32.mrb[0].mxu0
  %351 = vdwg.mxu0
  %v352 = vld [vmem:[#allocation2] sm:$0xff]
  %v353 = vunpack.c.l.bf16 %v352
  %v354 = vadd.f32 %v353, %v346
  %s355 = scalar_lea.vmem [#allocation2], 56
  %v356 = vld [vmem:[%s355] sm:$0xff]
  %v358 = vrot.slane %v356, 4
  %v360 = vunpack.c.l.bf16 %v358
  %v361 = vadd.f32 %v360, %v348
  %v362 = vxor.u32 %v354, 2147483648
  %v363 = vmul.f32 %v362, 1.442695
  %v364 = vpow.pop %v363
  %v365 = vadd.f32 %v364, 1.0
  %v366 = vrcp.pop %v365
  %v367 = vmul.f32 1.0, %v366
  %v368 = vtanh.pop %v354
  %v369 = vxor.u32 %v361, 2147483648
  %v370 = vmul.f32 %v369, 1.442695
  %v371 = vpow.pop %v370
  %v372 = vadd.f32 %v371, 1.0
  %v373 = vrcp.pop %v372
  %v374 = vmul.f32 1.0, %v373
  %v375 = vtanh.pop %v361
  %v376 = vld [vmem:[%s1] sm:$0xff]
  %s377 = scalar_lea.vmem %s1, 56
  %v378 = vld [vmem:[%s377] sm:$0xff]
  %v379 = vmul.f32 %v367, 0.0
  %381 = vrot.lane.b32.xlu0 %v368, 32
  %v382 = vpop.permute.xlu0 %381
  %v384 = vmul.f32 %v367, %v382
  %386 = vrot.lane.b32.xlu0 %v384, 32
  %v387 = vpop.permute.xlu0 %386
  %v389 = vadd.f32 %v379, %v387
  %391 = vset.pattern.permute.xlu0 0
  %392 = vperm.xlu0 %391, %v376
  %v393 = vpop.permute.xlu0 %392
  %v395 = vmul.f32 %v389, %v393
  %v396 = vmul.f32 %v374, 0.0
  %398 = vrot.lane.b32.xlu0 %v375, 32
  %v399 = vpop.permute.xlu0 %398
  %v401 = vmul.f32 %v374, %v399
  %403 = vrot.lane.b32.xlu0 %v401, 32
  %v404 = vpop.permute.xlu0 %403
  %v406 = vadd.f32 %v396, %v404
  %408 = vset.pattern.permute.xlu0 0
  %409 = vperm.xlu0 %408, %v378
  %v410 = vpop.permute.xlu0 %409
  %v412 = vmul.f32 %v406, %v410
  %v413 = vtanh.pop %v395
  %415 = vrot.lane.b32.xlu0 %v413, 32
  %v416 = vpop.permute.xlu0 %415
  %v418 = vmul.f32 %v367, %v416
  %v419 = vmul.f32 %v418, %v393
  %v420 = vtanh.pop %v412
  %422 = vrot.lane.b32.xlu0 %v420, 32
  %v423 = vpop.permute.xlu0 %422
  %v425 = vmul.f32 %v374, %v423
  %v426 = vmul.f32 %v425, %v410
  %428 = vrot.lane.b32.xlu0 %v419, 64
  %v429 = vpop.permute.xlu0 %428
  %vm431 = vcmask 261120
  %432 = vst.msk [vmem:[%s5] sm:$0xff] %vm431, %v429
  %434 = vrot.lane.b32.xlu0 %v426, 96
  %v435 = vpop.permute.xlu0 %434
  %s437 = scalar_lea.vmem %s5, 56
  %vm438 = vcmask 523520
  %439 = vst.msk [vmem:[%s437] sm:$0xff] %vm438, %v435
  %v440 = vsel %vm431, %v429, %v435
  %v441 = vpack.c.bf16 %v440, %v440
  %v443 = vsel %vm117, %v441, 0
  %445 = vmatprep.subr.bf16.mxu0 %v293
  %446 = vmatpush1.bf16.msra.mxu0 %v292
  %447 = vmatprep.subr.bf16.mxu0 %v295
  %448 = vmatpush1.bf16.msra.mxu0 %v294
  %449 = vmatprep.subr.bf16.mxu0 %v297
  %450 = vmatpush1.bf16.msra.mxu0 %v296
  %451 = vmatprep.subr.bf16.mxu0 %v299
  %452 = vmatpush1.bf16.msra.mxu0 %v298
  %453 = vmatprep.subr.bf16.mxu0 0
  %454 = vmatpush1.bf16.msra.mxu0 0
  %455 = vmatprep.subr.bf16.mxu0 0
  %456 = vmatpush1.bf16.msra.mxu0 0
  %457 = vmatprep.subr.bf16.mxu0 0
  %458 = vmatpush1.bf16.msra.mxu0 0
  %459 = vmatprep.subr.bf16.mxu0 0
  %460 = vmatpush1.bf16.msra.mxu0 0
  %461 = vmatprep.subr.bf16.mxu0 0
  %462 = vmatpush1.bf16.msra.mxu0 0
  %463 = vmatprep.subr.bf16.mxu0 0
  %464 = vmatpush1.bf16.msra.mxu0 0
  %465 = vmatprep.subr.bf16.mxu0 0
  %466 = vmatpush1.bf16.msra.mxu0 0
  %467 = vmatprep.subr.bf16.mxu0 0
  %468 = vmatpush1.bf16.msra.mxu0 0
  %469 = vmatprep.subr.bf16.mxu0 0
  %470 = vmatpush1.bf16.msra.mxu0 0
  %471 = vmatprep.subr.bf16.mxu0 0
  %472 = vmatpush1.bf16.msra.mxu0 0
  %473 = vmatprep.subr.bf16.mxu0 0
  %474 = vmatpush1.bf16.msra.mxu0 0
  %475 = vmatprep.subr.bf16.mxu0 0
  %476 = vmatpush1.bf16.msra.mxu0 0
  %477 = vmatprep.mubr.bf16.mxu0 0
  %478 = vmatmul.mubr.bf16.gmra.mrb[0].mxu0 %v443
  %v479 = vpop.f32.mrb[0].mxu0
  %v480 = vadd.f32 0.0, %v479
  %v481 = vpop.f32.mrb[0].mxu0
  %v482 = vadd.f32 0.0, %v481
  %v483 = vpop.f32.mrb[0].mxu0
  %v484 = vpop.f32.mrb[0].mxu0
  %485 = vdwg.mxu0
  %s486 = scalar_lea.vmem [#allocation2], 8
  %v487 = vld [vmem:[%s486] sm:$0xff]
  %v488 = vunpack.c.l.bf16 %v487
  %v489 = vadd.f32 %v488, %v480
  %s490 = scalar_lea.vmem [#allocation2], 48
  %v491 = vld [vmem:[%s490] sm:$0xff]
  %v493 = vrot.slane %v491, 4
  %v495 = vunpack.c.l.bf16 %v493
  %v496 = vadd.f32 %v495, %v482
  %v497 = vxor.u32 %v489, 2147483648
  %v498 = vmul.f32 %v497, 1.442695
  %v499 = vpow.pop %v498
  %v500 = vadd.f32 %v499, 1.0
  %v501 = vrcp.pop %v500
  %v502 = vmul.f32 1.0, %v501
  %v503 = vtanh.pop %v489
  %v504 = vxor.u32 %v496, 2147483648
  %v505 = vmul.f32 %v504, 1.442695
  %v506 = vpow.pop %v505
  %v507 = vadd.f32 %v506, 1.0
  %v508 = vrcp.pop %v507
  %v509 = vmul.f32 1.0, %v508
  %v510 = vtanh.pop %v496
  %s511 = scalar_lea.vmem %s1, 8
  %v512 = vld [vmem:[%s511] sm:$0xff]
  %s513 = scalar_lea.vmem %s1, 48
  %v514 = vld [vmem:[%s513] sm:$0xff]
  %v515 = vmul.f32 %v502, %v395
  %517 = vrot.lane.b32.xlu0 %v503, 32
  %v518 = vpop.permute.xlu0 %517
  %v520 = vmul.f32 %v502, %v518
  %522 = vrot.lane.b32.xlu0 %v520, 32
  %v523 = vpop.permute.xlu0 %522
  %v525 = vadd.f32 %v515, %v523
  %527 = vset.pattern.permute.xlu0 0
  %528 = vperm.xlu0 %527, %v512
  %v529 = vpop.permute.xlu0 %528
  %v531 = vmul.f32 %v525, %v529
  %v532 = vmul.f32 %v509, %v412
  %534 = vrot.lane.b32.xlu0 %v510, 32
  %v535 = vpop.permute.xlu0 %534
  %v537 = vmul.f32 %v509, %v535
  %539 = vrot.lane.b32.xlu0 %v537, 32
  %v540 = vpop.permute.xlu0 %539
  %v542 = vadd.f32 %v532, %v540
  %544 = vset.pattern.permute.xlu0 0
  %545 = vperm.xlu0 %544, %v514
  %v546 = vpop.permute.xlu0 %545
  %v548 = vmul.f32 %v542, %v546
  %v549 = vtanh.pop %v531
  %551 = vrot.lane.b32.xlu0 %v549, 32
  %v552 = vpop.permute.xlu0 %551
  %v554 = vmul.f32 %v502, %v552
  %v555 = vmul.f32 %v554, %v529
  %v556 = vtanh.pop %v548
  %558 = vrot.lane.b32.xlu0 %v556, 32
  %v559 = vpop.permute.xlu0 %558
  %v561 = vmul.f32 %v509, %v559
  %v562 = vmul.f32 %v561, %v546
  %564 = vrot.lane.b32.xlu0 %v555, 64
  %v565 = vpop.permute.xlu0 %564
  %s567 = scalar_lea.vmem %s5, 8
  %568 = vst.msk [vmem:[%s567] sm:$0xff] %vm431, %v565
  %570 = vrot.lane.b32.xlu0 %v562, 96
  %v571 = vpop.permute.xlu0 %570
  %s573 = scalar_lea.vmem %s5, 48
  %574 = vst.msk [vmem:[%s573] sm:$0xff] %vm438, %v571
  %v575 = vsel %vm431, %v565, %v571
  %v576 = vpack.c.bf16 %v575, %v575
  %v578 = vsel %vm117, %v576, 0
  %580 = vmatprep.subr.bf16.mxu0 %v293
  %581 = vmatpush1.bf16.msra.mxu0 %v292
  %582 = vmatprep.subr.bf16.mxu0 %v295
  %583 = vmatpush1.bf16.msra.mxu0 %v294
  %584 = vmatprep.subr.bf16.mxu0 %v297
  %585 = vmatpush1.bf16.msra.mxu0 %v296
  %586 = vmatprep.subr.bf16.mxu0 %v299
  %587 = vmatpush1.bf16.msra.mxu0 %v298
  %588 = vmatprep.subr.bf16.mxu0 0
  %589 = vmatpush1.bf16.msra.mxu0 0
  %590 = vmatprep.subr.bf16.mxu0 0
  %591 = vmatpush1.bf16.msra.mxu0 0
  %592 = vmatprep.subr.bf16.mxu0 0
  %593 = vmatpush1.bf16.msra.mxu0 0
  %594 = vmatprep.subr.bf16.mxu0 0
  %595 = vmatpush1.bf16.msra.mxu0 0
  %596 = vmatprep.subr.bf16.mxu0 0
  %597 = vmatpush1.bf16.msra.mxu0 0
  %598 = vmatprep.subr.bf16.mxu0 0
  %599 = vmatpush1.bf16.msra.mxu0 0
  %600 = vmatprep.subr.bf16.mxu0 0
  %601 = vmatpush1.bf16.msra.mxu0 0
  %602 = vmatprep.subr.bf16.mxu0 0
  %603 = vmatpush1.bf16.msra.mxu0 0
  %604 = vmatprep.subr.bf16.mxu0 0
  %605 = vmatpush1.bf16.msra.mxu0 0
  %606 = vmatprep.subr.bf16.mxu0 0
  %607 = vmatpush1.bf16.msra.mxu0 0
  %608 = vmatprep.subr.bf16.mxu0 0
  %609 = vmatpush1.bf16.msra.mxu0 0
  %610 = vmatprep.subr.bf16.mxu0 0
  %611 = vmatpush1.bf16.msra.mxu0 0
  %612 = vmatprep.mubr.bf16.mxu0 0
  %613 = vmatmul.mubr.bf16.gmra.mrb[0].mxu0 %v578
  %v614 = vpop.f32.mrb[0].mxu0
  %v615 = vadd.f32 0.0, %v614
  %v616 = vpop.f32.mrb[0].mxu0
  %v617 = vadd.f32 0.0, %v616
  %v618 = vpop.f32.mrb[0].mxu0
  %v619 = vpop.f32.mrb[0].mxu0
  %620 = vdwg.mxu0
  %s621 = scalar_lea.vmem [#allocation2], 16
  %v622 = vld [vmem:[%s621] sm:$0xff]
  %v623 = vunpack.c.l.bf16 %v622
  %v624 = vadd.f32 %v623, %v615
  %s625 = scalar_lea.vmem [#allocation2], 40
  %v626 = vld [vmem:[%s625] sm:$0xff]
  %v628 = vrot.slane %v626, 4
  %v630 = vunpack.c.l.bf16 %v628
  %v631 = vadd.f32 %v630, %v617
  %v632 = vxor.u32 %v624, 2147483648
  %v633 = vmul.f32 %v632, 1.442695
  %v634 = vpow.pop %v633
  %v635 = vadd.f32 %v634, 1.0
  %v636 = vrcp.pop %v635
  %v637 = vmul.f32 1.0, %v636
  %v638 = vtanh.pop %v624
  %v639 = vxor.u32 %v631, 2147483648
  %v640 = vmul.f32 %v639, 1.442695
  %v641 = vpow.pop %v640
  %v642 = vadd.f32 %v641, 1.0
  %v643 = vrcp.pop %v642
  %v644 = vmul.f32 1.0, %v643
  %v645 = vtanh.pop %v631
  %s646 = scalar_lea.vmem %s1, 16
  %v647 = vld [vmem:[%s646] sm:$0xff]
  %s648 = scalar_lea.vmem %s1, 40
  %v649 = vld [vmem:[%s648] sm:$0xff]
  %v650 = vmul.f32 %v637, %v531
  %652 = vrot.lane.b32.xlu0 %v638, 32
  %v653 = vpop.permute.xlu0 %652
  %v655 = vmul.f32 %v637, %v653
  %657 = vrot.lane.b32.xlu0 %v655, 32
  %v658 = vpop.permute.xlu0 %657
  %v660 = vadd.f32 %v650, %v658
  %662 = vset.pattern.permute.xlu0 0
  %663 = vperm.xlu0 %662, %v647
  %v664 = vpop.permute.xlu0 %663
  %v666 = vmul.f32 %v660, %v664
  %v667 = vmul.f32 %v644, %v548
  %669 = vrot.lane.b32.xlu0 %v645, 32
  %v670 = vpop.permute.xlu0 %669
  %v672 = vmul.f32 %v644, %v670
  %674 = vrot.lane.b32.xlu0 %v672, 32
  %v675 = vpop.permute.xlu0 %674
  %v677 = vadd.f32 %v667, %v675
  %679 = vset.pattern.permute.xlu0 0
  %680 = vperm.xlu0 %679, %v649
  %v681 = vpop.permute.xlu0 %680
  %v683 = vmul.f32 %v677, %v681
  %v684 = vtanh.pop %v666
  %686 = vrot.lane.b32.xlu0 %v684, 32
  %v687 = vpop.permute.xlu0 %686
  %v689 = vmul.f32 %v637, %v687
  %v690 = vmul.f32 %v689, %v664
  %v691 = vtanh.pop %v683
  %693 = vrot.lane.b32.xlu0 %v691, 32
  %v694 = vpop.permute.xlu0 %693
  %v696 = vmul.f32 %v644, %v694
  %v697 = vmul.f32 %v696, %v681
  %699 = vrot.lane.b32.xlu0 %v690, 64
  %v700 = vpop.permute.xlu0 %699
  %s702 = scalar_lea.vmem %s5, 16
  %703 = vst.msk [vmem:[%s702] sm:$0xff] %vm431, %v700
  %705 = vrot.lane.b32.xlu0 %v697, 96
  %v706 = vpop.permute.xlu0 %705
  %s708 = scalar_lea.vmem %s5, 40
  %709 = vst.msk [vmem:[%s708] sm:$0xff] %vm438, %v706
  %v710 = vsel %vm431, %v700, %v706
  %v711 = vpack.c.bf16 %v710, %v710
  %v713 = vsel %vm117, %v711, 0
  %715 = vmatprep.subr.bf16.mxu0 %v293
  %716 = vmatpush1.bf16.msra.mxu0 %v292
  %717 = vmatprep.subr.bf16.mxu0 %v295
  %718 = vmatpush1.bf16.msra.mxu0 %v294
  %719 = vmatprep.subr.bf16.mxu0 %v297
  %720 = vmatpush1.bf16.msra.mxu0 %v296
  %721 = vmatprep.subr.bf16.mxu0 %v299
  %722 = vmatpush1.bf16.msra.mxu0 %v298
  %723 = vmatprep.subr.bf16.mxu0 0
  %724 = vmatpush1.bf16.msra.mxu0 0
  %725 = vmatprep.subr.bf16.mxu0 0
  %726 = vmatpush1.bf16.msra.mxu0 0
  %727 = vmatprep.subr.bf16.mxu0 0
  %728 = vmatpush1.bf16.msra.mxu0 0
  %729 = vmatprep.subr.bf16.mxu0 0
  %730 = vmatpush1.bf16.msra.mxu0 0
  %731 = vmatprep.subr.bf16.mxu0 0
  %732 = vmatpush1.bf16.msra.mxu0 0
  %733 = vmatprep.subr.bf16.mxu0 0
  %734 = vmatpush1.bf16.msra.mxu0 0
  %735 = vmatprep.subr.bf16.mxu0 0
  %736 = vmatpush1.bf16.msra.mxu0 0
  %737 = vmatprep.subr.bf16.mxu0 0
  %738 = vmatpush1.bf16.msra.mxu0 0
  %739 = vmatprep.subr.bf16.mxu0 0
  %740 = vmatpush1.bf16.msra.mxu0 0
  %741 = vmatprep.subr.bf16.mxu0 0
  %742 = vmatpush1.bf16.msra.mxu0 0
  %743 = vmatprep.subr.bf16.mxu0 0
  %744 = vmatpush1.bf16.msra.mxu0 0
  %745 = vmatprep.subr.bf16.mxu0 0
  %746 = vmatpush1.bf16.msra.mxu0 0
  %747 = vmatprep.mubr.bf16.mxu0 0
  %748 = vmatmul.mubr.bf16.gmra.mrb[0].mxu0 %v713
  %v749 = vpop.f32.mrb[0].mxu0
  %v750 = vadd.f32 0.0, %v749
  %v751 = vpop.f32.mrb[0].mxu0
  %v752 = vadd.f32 0.0, %v751
  %v753 = vpop.f32.mrb[0].mxu0
  %v754 = vpop.f32.mrb[0].mxu0
  %755 = vdwg.mxu0
  %s756 = scalar_lea.vmem [#allocation2], 24
  %v757 = vld [vmem:[%s756] sm:$0xff]
  %v758 = vunpack.c.l.bf16 %v757
  %v759 = vadd.f32 %v758, %v750
  %s760 = scalar_lea.vmem [#allocation2], 32
  %v761 = vld [vmem:[%s760] sm:$0xff]
  %v763 = vrot.slane %v761, 4
  %v765 = vunpack.c.l.bf16 %v763
  %v766 = vadd.f32 %v765, %v752
  %v767 = vxor.u32 %v759, 2147483648
  %v768 = vmul.f32 %v767, 1.442695
  %v769 = vpow.pop %v768
  %v770 = vadd.f32 %v769, 1.0
  %v771 = vrcp.pop %v770
  %v772 = vmul.f32 1.0, %v771
  %v773 = vtanh.pop %v759
  %v774 = vxor.u32 %v766, 2147483648
  %v775 = vmul.f32 %v774, 1.442695
  %v776 = vpow.pop %v775
  %v777 = vadd.f32 %v776, 1.0
  %v778 = vrcp.pop %v777
  %v779 = vmul.f32 1.0, %v778
  %v780 = vtanh.pop %v766
  %s781 = scalar_lea.vmem %s1, 24
  %v782 = vld [vmem:[%s781] sm:$0xff]
  %s783 = scalar_lea.vmem %s1, 32
  %v784 = vld [vmem:[%s783] sm:$0xff]
  %v785 = vmul.f32 %v772, %v666
  %787 = vrot.lane.b32.xlu0 %v773, 32
  %v788 = vpop.permute.xlu0 %787
  %v790 = vmul.f32 %v772, %v788
  %792 = vrot.lane.b32.xlu0 %v790, 32
  %v793 = vpop.permute.xlu0 %792
  %v795 = vadd.f32 %v785, %v793
  %797 = vset.pattern.permute.xlu0 0
  %798 = vperm.xlu0 %797, %v782
  %v799 = vpop.permute.xlu0 %798
  %v801 = vmul.f32 %v795, %v799
  %v802 = vmul.f32 %v779, %v683
  %804 = vrot.lane.b32.xlu0 %v780, 32
  %v805 = vpop.permute.xlu0 %804
  %v807 = vmul.f32 %v779, %v805
  %809 = vrot.lane.b32.xlu0 %v807, 32
  %v810 = vpop.permute.xlu0 %809
  %v812 = vadd.f32 %v802, %v810
  %814 = vset.pattern.permute.xlu0 0
  %815 = vperm.xlu0 %814, %v784
  %v816 = vpop.permute.xlu0 %815
  %v818 = vmul.f32 %v812, %v816
  %v819 = vtanh.pop %v801
  %821 = vrot.lane.b32.xlu0 %v819, 32
  %v822 = vpop.permute.xlu0 %821
  %v824 = vmul.f32 %v772, %v822
  %v825 = vmul.f32 %v824, %v799
  %v826 = vtanh.pop %v818
  %828 = vrot.lane.b32.xlu0 %v826, 32
  %v829 = vpop.permute.xlu0 %828
  %v831 = vmul.f32 %v779, %v829
  %v832 = vmul.f32 %v831, %v816
  %834 = vrot.lane.b32.xlu0 %v825, 64
  %v835 = vpop.permute.xlu0 %834
  %s837 = scalar_lea.vmem %s5, 24
  %838 = vst.msk [vmem:[%s837] sm:$0xff] %vm431, %v835
  %840 = vrot.lane.b32.xlu0 %v832, 96
  %v841 = vpop.permute.xlu0 %840
  %s843 = scalar_lea.vmem %s5, 32
  %844 = vst.msk [vmem:[%s843] sm:$0xff] %vm438, %v841
  %v845 = vsel %vm431, %v835, %v841
  %v846 = vpack.c.bf16 %v845, %v845
  %v848 = vsel %vm117, %v846, 0
  %850 = vmatprep.subr.bf16.mxu0 %v293
  %851 = vmatpush1.bf16.msra.mxu0 %v292
  %852 = vmatprep.subr.bf16.mxu0 %v295
  %853 = vmatpush1.bf16.msra.mxu0 %v294
  %854 = vmatprep.subr.bf16.mxu0 %v297
  %855 = vmatpush1.bf16.msra.mxu0 %v296
  %856 = vmatprep.subr.bf16.mxu0 %v299
  %857 = vmatpush1.bf16.msra.mxu0 %v298
  %858 = vmatprep.subr.bf16.mxu0 0
  %859 = vmatpush1.bf16.msra.mxu0 0
  %860 = vmatprep.subr.bf16.mxu0 0
  %861 = vmatpush1.bf16.msra.mxu0 0
  %862 = vmatprep.subr.bf16.mxu0 0
  %863 = vmatpush1.bf16.msra.mxu0 0
  %864 = vmatprep.subr.bf16.mxu0 0
  %865 = vmatpush1.bf16.msra.mxu0 0
  %866 = vmatprep.subr.bf16.mxu0 0
  %867 = vmatpush1.bf16.msra.mxu0 0
  %868 = vmatprep.subr.bf16.mxu0 0
  %869 = vmatpush1.bf16.msra.mxu0 0
  %870 = vmatprep.subr.bf16.mxu0 0
  %871 = vmatpush1.bf16.msra.mxu0 0
  %872 = vmatprep.subr.bf16.mxu0 0
  %873 = vmatpush1.bf16.msra.mxu0 0
  %874 = vmatprep.subr.bf16.mxu0 0
  %875 = vmatpush1.bf16.msra.mxu0 0
  %876 = vmatprep.subr.bf16.mxu0 0
  %877 = vmatpush1.bf16.msra.mxu0 0
  %878 = vmatprep.subr.bf16.mxu0 0
  %879 = vmatpush1.bf16.msra.mxu0 0
  %880 = vmatprep.subr.bf16.mxu0 0
  %881 = vmatpush1.bf16.msra.mxu0 0
  %882 = vmatprep.mubr.bf16.mxu0 0
  %883 = vmatmul.mubr.bf16.gmra.mrb[0].mxu0 %v848
  %v884 = vpop.f32.mrb[0].mxu0
  %v885 = vadd.f32 0.0, %v884
  %v886 = vpop.f32.mrb[0].mxu0
  %v887 = vadd.f32 0.0, %v886
  %v888 = vpop.f32.mrb[0].mxu0
  %v889 = vpop.f32.mrb[0].mxu0
  %890 = vdwg.mxu0
  %v891 = vld [vmem:[%s760] sm:$0xff]
  %v892 = vunpack.c.l.bf16 %v891
  %v893 = vadd.f32 %v892, %v885
  %v894 = vld [vmem:[%s756] sm:$0xff]
  %v896 = vrot.slane %v894, 4
  %v898 = vunpack.c.l.bf16 %v896
  %v899 = vadd.f32 %v898, %v887
  %v900 = vxor.u32 %v893, 2147483648
  %v901 = vmul.f32 %v900, 1.442695
  %v902 = vpow.pop %v901
  %v903 = vadd.f32 %v902, 1.0
  %v904 = vrcp.pop %v903
  %v905 = vmul.f32 1.0, %v904
  %v906 = vtanh.pop %v893
  %v907 = vxor.u32 %v899, 2147483648
  %v908 = vmul.f32 %v907, 1.442695
  %v909 = vpow.pop %v908
  %v910 = vadd.f32 %v909, 1.0
  %v911 = vrcp.pop %v910
  %v912 = vmul.f32 1.0, %v911
  %v913 = vtanh.pop %v899
  %v914 = vld [vmem:[%s783] sm:$0xff]
  %v915 = vld [vmem:[%s781] sm:$0xff]
  %v916 = vmul.f32 %v905, %v801
  %918 = vrot.lane.b32.xlu0 %v906, 32
  %v919 = vpop.permute.xlu0 %918
  %v921 = vmul.f32 %v905, %v919
  %923 = vrot.lane.b32.xlu0 %v921, 32
  %v924 = vpop.permute.xlu0 %923
  %v926 = vadd.f32 %v916, %v924
  %928 = vset.pattern.permute.xlu0 0
  %929 = vperm.xlu0 %928, %v914
  %v930 = vpop.permute.xlu0 %929
  %v932 = vmul.f32 %v926, %v930
  %v933 = vmul.f32 %v912, %v818
  %935 = vrot.lane.b32.xlu0 %v913, 32
  %v936 = vpop.permute.xlu0 %935
  %v938 = vmul.f32 %v912, %v936
  %940 = vrot.lane.b32.xlu0 %v938, 32
  %v941 = vpop.permute.xlu0 %940
  %v943 = vadd.f32 %v933, %v941
  %945 = vset.pattern.permute.xlu0 0
  %946 = vperm.xlu0 %945, %v915
  %v947 = vpop.permute.xlu0 %946
  %v949 = vmul.f32 %v943, %v947
  %v950 = vtanh.pop %v932
  %952 = vrot.lane.b32.xlu0 %v950, 32
  %v953 = vpop.permute.xlu0 %952
  %v955 = vmul.f32 %v905, %v953
  %v956 = vmul.f32 %v955, %v930
  %v957 = vtanh.pop %v949
  %959 = vrot.lane.b32.xlu0 %v957, 32
  %v960 = vpop.permute.xlu0 %959
  %v962 = vmul.f32 %v912, %v960
  %v963 = vmul.f32 %v962, %v947
  %965 = vrot.lane.b32.xlu0 %v956, 64
  %v966 = vpop.permute.xlu0 %965
  %968 = vst.msk [vmem:[%s843] sm:$0xff] %vm431, %v966
  %970 = vrot.lane.b32.xlu0 %v963, 96
  %v971 = vpop.permute.xlu0 %970
  %973 = vst.msk [vmem:[%s837] sm:$0xff] %vm438, %v971
  %v974 = vsel %vm431, %v966, %v971
  %v975 = vpack.c.bf16 %v974, %v974
  %v977 = vsel %vm117, %v975, 0
  %979 = vmatprep.subr.bf16.mxu0 %v293
  %980 = vmatpush1.bf16.msra.mxu0 %v292
  %981 = vmatprep.subr.bf16.mxu0 %v295
  %982 = vmatpush1.bf16.msra.mxu0 %v294
  %983 = vmatprep.subr.bf16.mxu0 %v297
  %984 = vmatpush1.bf16.msra.mxu0 %v296
  %985 = vmatprep.subr.bf16.mxu0 %v299
  %986 = vmatpush1.bf16.msra.mxu0 %v298
  %987 = vmatprep.subr.bf16.mxu0 0
  %988 = vmatpush1.bf16.msra.mxu0 0
  %989 = vmatprep.subr.bf16.mxu0 0
  %990 = vmatpush1.bf16.msra.mxu0 0
  %991 = vmatprep.subr.bf16.mxu0 0
  %992 = vmatpush1.bf16.msra.mxu0 0
  %993 = vmatprep.subr.bf16.mxu0 0
  %994 = vmatpush1.bf16.msra.mxu0 0
  %995 = vmatprep.subr.bf16.mxu0 0
  %996 = vmatpush1.bf16.msra.mxu0 0
  %997 = vmatprep.subr.bf16.mxu0 0
  %998 = vmatpush1.bf16.msra.mxu0 0
  %999 = vmatprep.subr.bf16.mxu0 0
  %1000 = vmatpush1.bf16.msra.mxu0 0
  %1001 = vmatprep.subr.bf16.mxu0 0
  %1002 = vmatpush1.bf16.msra.mxu0 0
  %1003 = vmatprep.subr.bf16.mxu0 0
  %1004 = vmatpush1.bf16.msra.mxu0 0
  %1005 = vmatprep.subr.bf16.mxu0 0
  %1006 = vmatpush1.bf16.msra.mxu0 0
  %1007 = vmatprep.subr.bf16.mxu0 0
  %1008 = vmatpush1.bf16.msra.mxu0 0
  %1009 = vmatprep.subr.bf16.mxu0 0
  %1010 = vmatpush1.bf16.msra.mxu0 0
  %1011 = vmatprep.mubr.bf16.mxu0 0
  %1012 = vmatmul.mubr.bf16.gmra.mrb[0].mxu0 %v977
  %v1013 = vpop.f32.mrb[0].mxu0
  %v1014 = vadd.f32 0.0, %v1013
  %v1015 = vpop.f32.mrb[0].mxu0
  %v1016 = vadd.f32 0.0, %v1015
  %v1017 = vpop.f32.mrb[0].mxu0
  %v1018 = vpop.f32.mrb[0].mxu0
  %1019 = vdwg.mxu0
  %v1020 = vld [vmem:[%s625] sm:$0xff]
  %v1021 = vunpack.c.l.bf16 %v1020
  %v1022 = vadd.f32 %v1021, %v1014
  %v1023 = vld [vmem:[%s621] sm:$0xff]
  %v1025 = vrot.slane %v1023, 4
  %v1027 = vunpack.c.l.bf16 %v1025
  %v1028 = vadd.f32 %v1027, %v1016
  %v1029 = vxor.u32 %v1022, 2147483648
  %v1030 = vmul.f32 %v1029, 1.442695
  %v1031 = vpow.pop %v1030
  %v1032 = vadd.f32 %v1031, 1.0
  %v1033 = vrcp.pop %v1032
  %v1034 = vmul.f32 1.0, %v1033
  %v1035 = vtanh.pop %v1022
  %v1036 = vxor.u32 %v1028, 2147483648
  %v1037 = vmul.f32 %v1036, 1.442695
  %v1038 = vpow.pop %v1037
  %v1039 = vadd.f32 %v1038, 1.0
  %v1040 = vrcp.pop %v1039
  %v1041 = vmul.f32 1.0, %v1040
  %v1042 = vtanh.pop %v1028
  %v1043 = vld [vmem:[%s648] sm:$0xff]
  %v1044 = vld [vmem:[%s646] sm:$0xff]
  %v1045 = vmul.f32 %v1034, %v932
  %1047 = vrot.lane.b32.xlu0 %v1035, 32
  %v1048 = vpop.permute.xlu0 %1047
  %v1050 = vmul.f32 %v1034, %v1048
  %1052 = vrot.lane.b32.xlu0 %v1050, 32
  %v1053 = vpop.permute.xlu0 %1052
  %v1055 = vadd.f32 %v1045, %v1053
  %1057 = vset.pattern.permute.xlu0 0
  %1058 = vperm.xlu0 %1057, %v1043
  %v1059 = vpop.permute.xlu0 %1058
  %v1061 = vmul.f32 %v1055, %v1059
  %v1062 = vmul.f32 %v1041, %v949
  %1064 = vrot.lane.b32.xlu0 %v1042, 32
  %v1065 = vpop.permute.xlu0 %1064
  %v1067 = vmul.f32 %v1041, %v1065
  %1069 = vrot.lane.b32.xlu0 %v1067, 32
  %v1070 = vpop.permute.xlu0 %1069
  %v1072 = vadd.f32 %v1062, %v1070
  %1074 = vset.pattern.permute.xlu0 0
  %1075 = vperm.xlu0 %1074, %v1044
  %v1076 = vpop.permute.xlu0 %1075
  %v1078 = vmul.f32 %v1072, %v1076
  %v1079 = vtanh.pop %v1061
  %1081 = vrot.lane.b32.xlu0 %v1079, 32
  %v1082 = vpop.permute.xlu0 %1081
  %v1084 = vmul.f32 %v1034, %v1082
  %v1085 = vmul.f32 %v1084, %v1059
  %v1086 = vtanh.pop %v1078
  %1088 = vrot.lane.b32.xlu0 %v1086, 32
  %v1089 = vpop.permute.xlu0 %1088
  %v1091 = vmul.f32 %v1041, %v1089
  %v1092 = vmul.f32 %v1091, %v1076
  %1094 = vrot.lane.b32.xlu0 %v1085, 64
  %v1095 = vpop.permute.xlu0 %1094
  %1097 = vst.msk [vmem:[%s708] sm:$0xff] %vm431, %v1095
  %1099 = vrot.lane.b32.xlu0 %v1092, 96
  %v1100 = vpop.permute.xlu0 %1099
  %1102 = vst.msk [vmem:[%s702] sm:$0xff] %vm438, %v1100
  %v1103 = vsel %vm431, %v1095, %v1100
  %v1104 = vpack.c.bf16 %v1103, %v1103
  %v1106 = vsel %vm117, %v1104, 0
  %1108 = vmatprep.subr.bf16.mxu0 %v293
  %1109 = vmatpush1.bf16.msra.mxu0 %v292
  %1110 = vmatprep.subr.bf16.mxu0 %v295
  %1111 = vmatpush1.bf16.msra.mxu0 %v294
  %1112 = vmatprep.subr.bf16.mxu0 %v297
  %1113 = vmatpush1.bf16.msra.mxu0 %v296
  %1114 = vmatprep.subr.bf16.mxu0 %v299
  %1115 = vmatpush1.bf16.msra.mxu0 %v298
  %1116 = vmatprep.subr.bf16.mxu0 0
  %1117 = vmatpush1.bf16.msra.mxu0 0
  %1118 = vmatprep.subr.bf16.mxu0 0
  %1119 = vmatpush1.bf16.msra.mxu0 0
  %1120 = vmatprep.subr.bf16.mxu0 0
  %1121 = vmatpush1.bf16.msra.mxu0 0
  %1122 = vmatprep.subr.bf16.mxu0 0
  %1123 = vmatpush1.bf16.msra.mxu0 0
  %1124 = vmatprep.subr.bf16.mxu0 0
  %1125 = vmatpush1.bf16.msra.mxu0 0
  %1126 = vmatprep.subr.bf16.mxu0 0
  %1127 = vmatpush1.bf16.msra.mxu0 0
  %1128 = vmatprep.subr.bf16.mxu0 0
  %1129 = vmatpush1.bf16.msra.mxu0 0
  %1130 = vmatprep.subr.bf16.mxu0 0
  %1131 = vmatpush1.bf16.msra.mxu0 0
  %1132 = vmatprep.subr.bf16.mxu0 0
  %1133 = vmatpush1.bf16.msra.mxu0 0
  %1134 = vmatprep.subr.bf16.mxu0 0
  %1135 = vmatpush1.bf16.msra.mxu0 0
  %1136 = vmatprep.subr.bf16.mxu0 0
  %1137 = vmatpush1.bf16.msra.mxu0 0
  %1138 = vmatprep.subr.bf16.mxu0 0
  %1139 = vmatpush1.bf16.msra.mxu0 0
  %1140 = vmatprep.mubr.bf16.mxu0 0
  %1141 = vmatmul.mubr.bf16.gmra.mrb[0].mxu0 %v1106
  %v1142 = vpop.f32.mrb[0].mxu0
  %v1143 = vadd.f32 0.0, %v1142
  %v1144 = vpop.f32.mrb[0].mxu0
  %v1145 = vadd.f32 0.0, %v1144
  %v1146 = vpop.f32.mrb[0].mxu0
  %v1147 = vpop.f32.mrb[0].mxu0
  %1148 = vdwg.mxu0
  %v1149 = vld [vmem:[%s490] sm:$0xff]
  %v1150 = vunpack.c.l.bf16 %v1149
  %v1151 = vadd.f32 %v1150, %v1143
  %v1152 = vld [vmem:[%s486] sm:$0xff]
  %v1154 = vrot.slane %v1152, 4
  %v1156 = vunpack.c.l.bf16 %v1154
  %v1157 = vadd.f32 %v1156, %v1145
  %v1158 = vxor.u32 %v1151, 2147483648
  %v1159 = vmul.f32 %v1158, 1.442695
  %v1160 = vpow.pop %v1159
  %v1161 = vadd.f32 %v1160, 1.0
  %v1162 = vrcp.pop %v1161
  %v1163 = vmul.f32 1.0, %v1162
  %v1164 = vtanh.pop %v1151
  %v1165 = vxor.u32 %v1157, 2147483648
  %v1166 = vmul.f32 %v1165, 1.442695
  %v1167 = vpow.pop %v1166
  %v1168 = vadd.f32 %v1167, 1.0
  %v1169 = vrcp.pop %v1168
  %v1170 = vmul.f32 1.0, %v1169
  %v1171 = vtanh.pop %v1157
  %v1172 = vld [vmem:[%s513] sm:$0xff]
  %v1173 = vld [vmem:[%s511] sm:$0xff]
  %v1174 = vmul.f32 %v1163, %v1061
  %1176 = vrot.lane.b32.xlu0 %v1164, 32
  %v1177 = vpop.permute.xlu0 %1176
  %v1179 = vmul.f32 %v1163, %v1177
  %1181 = vrot.lane.b32.xlu0 %v1179, 32
  %v1182 = vpop.permute.xlu0 %1181
  %v1184 = vadd.f32 %v1174, %v1182
  %1186 = vset.pattern.permute.xlu0 0
  %1187 = vperm.xlu0 %1186, %v1172
  %v1188 = vpop.permute.xlu0 %1187
  %v1190 = vmul.f32 %v1184, %v1188
  %v1191 = vmul.f32 %v1170, %v1078
  %1193 = vrot.lane.b32.xlu0 %v1171, 32
  %v1194 = vpop.permute.xlu0 %1193
  %v1196 = vmul.f32 %v1170, %v1194
  %1198 = vrot.lane.b32.xlu0 %v1196, 32
  %v1199 = vpop.permute.xlu0 %1198
  %v1201 = vadd.f32 %v1191, %v1199
  %1203 = vset.pattern.permute.xlu0 0
  %1204 = vperm.xlu0 %1203, %v1173
  %v1205 = vpop.permute.xlu0 %1204
  %v1207 = vmul.f32 %v1201, %v1205
  %v1208 = vtanh.pop %v1190
  %1210 = vrot.lane.b32.xlu0 %v1208, 32
  %v1211 = vpop.permute.xlu0 %1210
  %v1213 = vmul.f32 %v1163, %v1211
  %v1214 = vmul.f32 %v1213, %v1188
  %v1215 = vtanh.pop %v1207
  %1217 = vrot.lane.b32.xlu0 %v1215, 32
  %v1218 = vpop.permute.xlu0 %1217
  %v1220 = vmul.f32 %v1170, %v1218
  %v1221 = vmul.f32 %v1220, %v1205
  %1223 = vrot.lane.b32.xlu0 %v1214, 64
  %v1224 = vpop.permute.xlu0 %1223
  %1226 = vst.msk [vmem:[%s573] sm:$0xff] %vm431, %v1224
  %1228 = vrot.lane.b32.xlu0 %v1221, 96
  %v1229 = vpop.permute.xlu0 %1228
  %1231 = vst.msk [vmem:[%s567] sm:$0xff] %vm438, %v1229
  %v1232 = vsel %vm431, %v1224, %v1229
  %v1233 = vpack.c.bf16 %v1232, %v1232
  %v1235 = vsel %vm117, %v1233, 0
  %1237 = vmatprep.subr.bf16.mxu0 %v293
  %1238 = vmatpush1.bf16.msra.mxu0 %v292
  %1239 = vmatprep.subr.bf16.mxu0 %v295
  %1240 = vmatpush1.bf16.msra.mxu0 %v294
  %1241 = vmatprep.subr.bf16.mxu0 %v297
  %1242 = vmatpush1.bf16.msra.mxu0 %v296
  %1243 = vmatprep.subr.bf16.mxu0 %v299
  %1244 = vmatpush1.bf16.msra.mxu0 %v298
  %1245 = vmatprep.subr.bf16.mxu0 0
  %1246 = vmatpush1.bf16.msra.mxu0 0
  %1247 = vmatprep.subr.bf16.mxu0 0
  %1248 = vmatpush1.bf16.msra.mxu0 0
  %1249 = vmatprep.subr.bf16.mxu0 0
  %1250 = vmatpush1.bf16.msra.mxu0 0
  %1251 = vmatprep.subr.bf16.mxu0 0
  %1252 = vmatpush1.bf16.msra.mxu0 0
  %1253 = vmatprep.subr.bf16.mxu0 0
  %1254 = vmatpush1.bf16.msra.mxu0 0
  %1255 = vmatprep.subr.bf16.mxu0 0
  %1256 = vmatpush1.bf16.msra.mxu0 0
  %1257 = vmatprep.subr.bf16.mxu0 0
  %1258 = vmatpush1.bf16.msra.mxu0 0
  %1259 = vmatprep.subr.bf16.mxu0 0
  %1260 = vmatpush1.bf16.msra.mxu0 0
  %1261 = vmatprep.subr.bf16.mxu0 0
  %1262 = vmatpush1.bf16.msra.mxu0 0
  %1263 = vmatprep.subr.bf16.mxu0 0
  %1264 = vmatpush1.bf16.msra.mxu0 0
  %1265 = vmatprep.subr.bf16.mxu0 0
  %1266 = vmatpush1.bf16.msra.mxu0 0
  %1267 = vmatprep.subr.bf16.mxu0 0
  %1268 = vmatpush1.bf16.msra.mxu0 0
  %1269 = vmatprep.mubr.bf16.mxu0 0
  %1270 = vmatmul.mubr.bf16.gmra.mrb[0].mxu0 %v1235
  %v1271 = vpop.f32.mrb[0].mxu0
  %v1272 = vadd.f32 0.0, %v1271
  %v1273 = vpop.f32.mrb[0].mxu0
  %v1274 = vadd.f32 0.0, %v1273
  %v1275 = vpop.f32.mrb[0].mxu0
  %v1276 = vpop.f32.mrb[0].mxu0
  %1277 = vdwg.mxu0
  %v1278 = vld [vmem:[%s355] sm:$0xff]
  %v1279 = vunpack.c.l.bf16 %v1278
  %v1280 = vadd.f32 %v1279, %v1272
  %v1281 = vld [vmem:[#allocation2] sm:$0xff]
  %v1283 = vrot.slane %v1281, 4
  %v1285 = vunpack.c.l.bf16 %v1283
  %v1286 = vadd.f32 %v1285, %v1274
  %v1287 = vxor.u32 %v1280, 2147483648
  %v1288 = vmul.f32 %v1287, 1.442695
  %v1289 = vpow.pop %v1288
  %v1290 = vadd.f32 %v1289, 1.0
  %v1291 = vrcp.pop %v1290
  %v1292 = vmul.f32 1.0, %v1291
  %v1293 = vtanh.pop %v1280
  %v1294 = vxor.u32 %v1286, 2147483648
  %v1295 = vmul.f32 %v1294, 1.442695
  %v1296 = vpow.pop %v1295
  %v1297 = vadd.f32 %v1296, 1.0
  %v1298 = vrcp.pop %v1297
  %v1299 = vmul.f32 1.0, %v1298
  %v1300 = vtanh.pop %v1286
  %v1301 = vld [vmem:[%s377] sm:$0xff]
  %v1302 = vld [vmem:[%s1] sm:$0xff]
  %v1303 = vmul.f32 %v1292, %v1190
  %1305 = vrot.lane.b32.xlu0 %v1293, 32
  %v1306 = vpop.permute.xlu0 %1305
  %v1308 = vmul.f32 %v1292, %v1306
  %1310 = vrot.lane.b32.xlu0 %v1308, 32
  %v1311 = vpop.permute.xlu0 %1310
  %v1313 = vadd.f32 %v1303, %v1311
  %1315 = vset.pattern.permute.xlu0 0
  %1316 = vperm.xlu0 %1315, %v1301
  %v1317 = vpop.permute.xlu0 %1316
  %v1319 = vmul.f32 %v1313, %v1317
  %v1320 = vmul.f32 %v1299, %v1207
  %1322 = vrot.lane.b32.xlu0 %v1300, 32
  %v1323 = vpop.permute.xlu0 %1322
  %v1325 = vmul.f32 %v1299, %v1323
  %1327 = vrot.lane.b32.xlu0 %v1325, 32
  %v1328 = vpop.permute.xlu0 %1327
  %v1330 = vadd.f32 %v1320, %v1328
  %1332 = vset.pattern.permute.xlu0 0
  %1333 = vperm.xlu0 %1332, %v1302
  %v1334 = vpop.permute.xlu0 %1333
  %v1336 = vmul.f32 %v1330, %v1334
  %v1337 = vtanh.pop %v1319
  %1339 = vrot.lane.b32.xlu0 %v1337, 32
  %v1340 = vpop.permute.xlu0 %1339
  %v1342 = vmul.f32 %v1292, %v1340
  %v1343 = vmul.f32 %v1342, %v1317
  %v1344 = vtanh.pop %v1336
  %1346 = vrot.lane.b32.xlu0 %v1344, 32
  %v1347 = vpop.permute.xlu0 %1346
  %v1349 = vmul.f32 %v1299, %v1347
  %v1350 = vmul.f32 %v1349, %v1334
  %1352 = vrot.lane.b32.xlu0 %v1343, 64
  %v1353 = vpop.permute.xlu0 %1352
  %1355 = vst.msk [vmem:[%s437] sm:$0xff] %vm431, %v1353
  %1357 = vrot.lane.b32.xlu0 %v1350, 96
  %v1358 = vpop.permute.xlu0 %1357
  %1360 = vst.msk [vmem:[%s5] sm:$0xff] %vm438, %v1358
  // Predicated region
  $region22: #{run.6} parent=0 // pred_check
    _
  $region23: #{run.6} parent=0 // pred_check_branch
    %1362 = sbr.rel (0) target = $region25
  $region24: #{run.6} parent=0 // pred_region
    _
  $region25: #{run.6} parent=0 // pred_fallthru
    _
  // Predicated region
  $region26: #{run.6} parent=0 // pred_check
    _
  $region27: #{run.6} parent=0 // pred_check_branch
    %1364 = sbr.rel (0) target = $region29
  $region28: #{run.6} parent=0 // pred_region
    _
  $region29: #{run.6} parent=0 // pred_fallthru
    _

// kernel: run.5
$region0: #{run.5}
  #allocation0 [shape = 'u32[]', space=smem, size = 0x4, offset = 0x4, fixed_abs, tag = 'smem constant byte address 0x4 - core index']
  #allocation1 [shape = 'u32[144,128]{1,0:T(1,128)}', space=vmem, size = 0x12000, scoped, tag = 'internal scratch']
  #allocation2 [shape = 'bf16[8,8,256]{2,1,0:T(8,128)(2,1)}', space=vmem, size = 0x8000, scoped, tag = 'scratch operand']
  %s0 = inlined_call_operand.vmem [shape: f32[8,8,32], index: 0, kind: input, shape index: {}]
  %s1 = inlined_call_operand.vmem [shape: f32[8,8,1], index: 1, kind: input, shape index: {}]
  %s2 = inlined_call_operand.vmem [shape: bf16[32,256], index: 2, kind: input, shape index: {}]
  %s3 = inlined_call_operand.vmem [shape: bf16[64,256], index: 3, kind: input, shape index: {}]
  %s4 = inlined_call_operand.vmem [shape: f32[1,256], index: 4, kind: input, shape index: {}]
  %s5 = inlined_call_operand.vmem [shape: f32[8,8,64], index: 5, kind: output, shape index: {}]
  %s6 = sld [smem:[#allocation0]]
  $region30: #{run.5} parent=0
    _
  %s8 = ssub.s32 1, %s6
  %s9 = scalar_select 0, %s8, %s6
  // Predicated region
  $region2: #{run.5} parent=0 // pred_check
    _
  $region3: #{run.5} parent=0 // pred_check_branch
    %11 = sbr.rel (0) target = $region5
  $region4: #{run.5} parent=0 // pred_region
    _
  $region5: #{run.5} parent=0 // pred_fallthru
    _
  // Predicated region
  $region6: #{run.5} parent=0 // pred_check
    _
  $region7: #{run.5} parent=0 // pred_check_branch
    %13 = sbr.rel (0) target = $region9
  $region8: #{run.5} parent=0 // pred_region
    _
  $region9: #{run.5} parent=0 // pred_fallthru
    _
  // Predicated region
  $region10: #{run.5} parent=0 // pred_check
    _
  $region11: #{run.5} parent=0 // pred_check_branch
    %15 = sbr.rel (0) target = $region13
  $region12: #{run.5} parent=0 // pred_region
    _
  $region13: #{run.5} parent=0 // pred_fallthru
    _
  // Predicated region
  $region14: #{run.5} parent=0 // pred_check
    _
  $region15: #{run.5} parent=0 // pred_check_branch
    %17 = sbr.rel (0) target = $region17
  $region16: #{run.5} parent=0 // pred_region
    _
  $region17: #{run.5} parent=0 // pred_fallthru
    _
  // Predicated region
  $region18: #{run.5} parent=0 // pred_check
    _
  $region19: #{run.5} parent=0 // pred_check_branch
    %19 = sbr.rel (0) target = $region21
  $region20: #{run.5} parent=0 // pred_region
    _
  $region21: #{run.5} parent=0 // pred_fallthru
    _
  %v21 = vld [vmem:[%s0] sm:$0xff]
  %v22 = vld [vmem:[%s0 + $0x8] sm:$0xff]
  %v23 = vld [vmem:[%s0 + $0x10] sm:$0xff]
  %v24 = vld [vmem:[%s0 + $0x18] sm:$0xff]
  %v25 = vld [vmem:[%s0 + $0x20] sm:$0xff]
  %v26 = vld [vmem:[%s0 + $0x28] sm:$0xff]
  %v27 = vld [vmem:[%s0 + $0x30] sm:$0xff]
  %v28 = vld [vmem:[%s0 + $0x38] sm:$0xff]
  %v29 = vpack.c.bf16 %v21, %v21
  %v30 = vpack.c.bf16 %v22, %v22
  %v31 = vpack.c.bf16 %v23, %v23
  %v32 = vpack.c.bf16 %v24, %v24
  %v33 = vpack.c.bf16 %v25, %v25
  %v34 = vpack.c.bf16 %v26, %v26
  %v35 = vpack.c.bf16 %v27, %v27
  %v36 = vpack.c.bf16 %v28, %v28
  %v37 = vld [vmem:[%s2] sm:$0xff]
  %v38 = vld [vmem:[%s2 + $0x8] sm:$0xff]
  %v39 = vld [vmem:[%s2 + $0x10] sm:$0xff]
  %v40 = vld [vmem:[%s2 + $0x18] sm:$0xff]
  %v41 = vld [vmem:[%s4] sm:$0x3]
  %v43 = vlaneseq
  %v44 = vshrl.u32 %v43, 7
  %v45 = vsub.s32 0, %v44
  %v46 = vrot.slane %v41, %v45
  %v47 = vlaneseq
  %v48 = vshrl.u32 %v47, 7
  %v49 = vsub.s32 1, %v48
  %v50 = vrot.slane %v41, %v49
  %v61 = vunpack.c.l.b16 %v29
  %v62 = vunpack.c.l.b16 %v30
  %v63 = vunpack.c.l.b16 %v31
  %v64 = vunpack.c.l.b16 %v32
  %v65 = vunpack.c.l.b16 %v33
  %v66 = vunpack.c.l.b16 %v34
  %v67 = vunpack.c.l.b16 %v35
  %v68 = vunpack.c.l.b16 %v36
  %v69 = vpack.c.b16 %v62, %v61
  %v70 = vpack.c.b16 %v64, %v63
  %v71 = vpack.c.b16 %v66, %v65
  %v72 = vpack.c.b16 %v68, %v67
  %v77 = vunpack.c.l.b16 %v37
  %v78 = vunpack.c.h.b16 %v37
  %v79 = vunpack.c.l.b16 %v38
  %v80 = vunpack.c.h.b16 %v38
  %v81 = vunpack.c.l.b16 %v39
  %v82 = vunpack.c.h.b16 %v39
  %v83 = vunpack.c.l.b16 %v40
  %v84 = vunpack.c.h.b16 %v40
  %v85 = vpack.c.b16 %v79, %v77
  %v86 = vpack.c.b16 %v80, %v78
  %v87 = vpack.c.b16 %v83, %v81
  %v88 = vpack.c.b16 %v84, %v82
  %vm93 = vcmask 261120
  %v95 = vsel %vm93, %v69, 0
  %v98 = vsel %vm93, %v70, 0
  %v101 = vsel %vm93, %v71, 0
  %v104 = vsel %vm93, %v72, 0
  %106 = vmatprep.subr.bf16.mxu0 %v86
  %107 = vmatpush1.bf16.msra.mxu0 %v85
  %108 = vmatprep.subr.bf16.mxu0 %v88
  %109 = vmatpush1.bf16.msra.mxu0 %v87
  %110 = vmatprep.subr.bf16.mxu0 0
  %111 = vmatpush1.bf16.msra.mxu0 0
  %112 = vmatprep.subr.bf16.mxu0 0
  %113 = vmatpush1.bf16.msra.mxu0 0
  %114 = vmatprep.subr.bf16.mxu0 0
  %115 = vmatpush1.bf16.msra.mxu0 0
  %116 = vmatprep.subr.bf16.mxu0 0
  %117 = vmatpush1.bf16.msra.mxu0 0
  %118 = vmatprep.subr.bf16.mxu0 0
  %119 = vmatpush1.bf16.msra.mxu0 0
  %120 = vmatprep.subr.bf16.mxu0 0
  %121 = vmatpush1.bf16.msra.mxu0 0
  %122 = vmatprep.subr.bf16.mxu0 0
  %123 = vmatpush1.bf16.msra.mxu0 0
  %124 = vmatprep.subr.bf16.mxu0 0
  %125 = vmatpush1.bf16.msra.mxu0 0
  %126 = vmatprep.subr.bf16.mxu0 0
  %127 = vmatpush1.bf16.msra.mxu0 0
  %128 = vmatprep.subr.bf16.mxu0 0
  %129 = vmatpush1.bf16.msra.mxu0 0
  %130 = vmatprep.subr.bf16.mxu0 0
  %131 = vmatpush1.bf16.msra.mxu0 0
  %132 = vmatprep.subr.bf16.mxu0 0
  %133 = vmatpush1.bf16.msra.mxu0 0
  %134 = vmatprep.subr.bf16.mxu0 0
  %135 = vmatpush1.bf16.msra.mxu0 0
  %136 = vmatprep.subr.bf16.mxu0 0
  %137 = vmatpush1.bf16.msra.mxu0 0
  %138 = vmatprep.mubr.bf16.mxu0 0
  %139 = vmatmul.mubr.bf16.gmra.mrb[0].mxu0 %v95
  %v140 = vpop.f32.mrb[0].mxu0
  %v141 = vadd.f32 %v46, %v140
  %v142 = vpop.f32.mrb[0].mxu0
  %v143 = vadd.f32 %v50, %v142
  %v144 = vpop.f32.mrb[0].mxu0
  %v145 = vadd.f32 %v46, %v144
  %v146 = vpop.f32.mrb[0].mxu0
  %v147 = vadd.f32 %v50, %v146
  %148 = vmatprep.mubr.bf16.mxu0 0
  %149 = vmatmul.mubr.bf16.gmra.mrb[0].mxu0 %v98
  %v150 = vpop.f32.mrb[0].mxu0
  %v151 = vadd.f32 %v46, %v150
  %v152 = vpop.f32.mrb[0].mxu0
  %v153 = vadd.f32 %v50, %v152
  %v154 = vpop.f32.mrb[0].mxu0
  %v155 = vadd.f32 %v46, %v154
  %v156 = vpop.f32.mrb[0].mxu0
  %v157 = vadd.f32 %v50, %v156
  %158 = vmatprep.mubr.bf16.mxu0 0
  %159 = vmatmul.mubr.bf16.gmra.mrb[0].mxu0 %v101
  %v160 = vpop.f32.mrb[0].mxu0
  %v161 = vadd.f32 %v46, %v160
  %v162 = vpop.f32.mrb[0].mxu0
  %v163 = vadd.f32 %v50, %v162
  %v164 = vpop.f32.mrb[0].mxu0
  %v165 = vadd.f32 %v46, %v164
  %v166 = vpop.f32.mrb[0].mxu0
  %v167 = vadd.f32 %v50, %v166
  %168 = vmatprep.mubr.bf16.mxu0 0
  %169 = vmatmul.mubr.bf16.gmra.mrb[0].mxu0 %v104
  %v170 = vpop.f32.mrb[0].mxu0
  %v171 = vadd.f32 %v46, %v170
  %v172 = vpop.f32.mrb[0].mxu0
  %v173 = vadd.f32 %v50, %v172
  %v174 = vpop.f32.mrb[0].mxu0
  %v175 = vadd.f32 %v46, %v174
  %v176 = vpop.f32.mrb[0].mxu0
  %v177 = vadd.f32 %v50, %v176
  %178 = vdwg.mxu0
  %v179 = vpack.c.bf16 %v145, %v141
  %v180 = vpack.c.bf16 %v147, %v143
  %v181 = vpack.c.bf16 %v155, %v151
  %v182 = vpack.c.bf16 %v157, %v153
  %v183 = vpack.c.bf16 %v165, %v161
  %v184 = vpack.c.bf16 %v167, %v163
  %v185 = vpack.c.bf16 %v175, %v171
  %v186 = vpack.c.bf16 %v177, %v173
  %v195 = vunpack.c.l.b16 %v179
  %v196 = vunpack.c.l.b16 %v180
  %v197 = vunpack.c.h.b16 %v179
  %v198 = vunpack.c.h.b16 %v180
  %v199 = vunpack.c.l.b16 %v181
  %v200 = vunpack.c.l.b16 %v182
  %v201 = vunpack.c.h.b16 %v181
  %v202 = vunpack.c.h.b16 %v182
  %v203 = vunpack.c.l.b16 %v183
  %v204 = vunpack.c.l.b16 %v184
  %v205 = vunpack.c.h.b16 %v183
  %v206 = vunpack.c.h.b16 %v184
  %v207 = vunpack.c.l.b16 %v185
  %v208 = vunpack.c.l.b16 %v186
  %v209 = vunpack.c.h.b16 %v185
  %v210 = vunpack.c.h.b16 %v186
  %v211 = vpack.c.b16 %v196, %v195
  %v212 = vpack.c.b16 %v198, %v197
  %v213 = vpack.c.b16 %v200, %v199
  %v214 = vpack.c.b16 %v202, %v201
  %v215 = vpack.c.b16 %v204, %v203
  %v216 = vpack.c.b16 %v206, %v205
  %v217 = vpack.c.b16 %v208, %v207
  %v218 = vpack.c.b16 %v210, %v209
  %227 = vst [vmem:[#allocation2] sm:$0xff] %v211
  %228 = vst [vmem:[#allocation2 + $0x8] sm:$0xff] %v212
  %229 = vst [vmem:[#allocation2 + $0x10] sm:$0xff] %v213
  %230 = vst [vmem:[#allocation2 + $0x18] sm:$0xff] %v214
  %231 = vst [vmem:[#allocation2 + $0x20] sm:$0xff] %v215
  %232 = vst [vmem:[#allocation2 + $0x28] sm:$0xff] %v216
  %233 = vst [vmem:[#allocation2 + $0x30] sm:$0xff] %v217
  %234 = vst [vmem:[#allocation2 + $0x38] sm:$0xff] %v218
  %v235 = vld [vmem:[%s3] sm:$0xff]
  %v236 = vld [vmem:[%s3 + $0x8] sm:$0xff]
  %v237 = vld [vmem:[%s3 + $0x10] sm:$0xff]
  %v238 = vld [vmem:[%s3 + $0x18] sm:$0xff]
  %v239 = vld [vmem:[%s3 + $0x20] sm:$0xff]
  %v240 = vld [vmem:[%s3 + $0x28] sm:$0xff]
  %v241 = vld [vmem:[%s3 + $0x30] sm:$0xff]
  %v242 = vld [vmem:[%s3 + $0x38] sm:$0xff]
  %v243 = vpack.c.bf16 0.0, 0.0
  %v252 = vunpack.c.l.b16 %v235
  %v253 = vunpack.c.h.b16 %v235
  %v254 = vunpack.c.l.b16 %v236
  %v255 = vunpack.c.h.b16 %v236
  %v256 = vunpack.c.l.b16 %v237
  %v257 = vunpack.c.h.b16 %v237
  %v258 = vunpack.c.l.b16 %v238
  %v259 = vunpack.c.h.b16 %v238
  %v260 = vunpack.c.l.b16 %v239
  %v261 = vunpack.c.h.b16 %v239
  %v262 = vunpack.c.l.b16 %v240
  %v263 = vunpack.c.h.b16 %v240
  %v264 = vunpack.c.l.b16 %v241
  %v265 = vunpack.c.h.b16 %v241
  %v266 = vunpack.c.l.b16 %v242
  %v267 = vunpack.c.h.b16 %v242
  %v268 = vpack.c.b16 %v254, %v252
  %v269 = vpack.c.b16 %v255, %v253
  %v270 = vpack.c.b16 %v258, %v256
  %v271 = vpack.c.b16 %v259, %v257
  %v272 = vpack.c.b16 %v262, %v260
  %v273 = vpack.c.b16 %v263, %v261
  %v274 = vpack.c.b16 %v266, %v264
  %v275 = vpack.c.b16 %v267, %v265
  %vm284 = vcmask 523264
  %v286 = vsel %vm284, %v243, 0
  %288 = vmatprep.subr.bf16.mxu0 %v269
  %289 = vmatpush1.bf16.msra.mxu0 %v268
  %290 = vmatprep.subr.bf16.mxu0 %v271
  %291 = vmatpush1.bf16.msra.mxu0 %v270
  %292 = vmatprep.subr.bf16.mxu0 %v273
  %293 = vmatpush1.bf16.msra.mxu0 %v272
  %294 = vmatprep.subr.bf16.mxu0 %v275
  %295 = vmatpush1.bf16.msra.mxu0 %v274
  %296 = vmatprep.subr.bf16.mxu0 0
  %297 = vmatpush1.bf16.msra.mxu0 0
  %298 = vmatprep.subr.bf16.mxu0 0
  %299 = vmatpush1.bf16.msra.mxu0 0
  %300 = vmatprep.subr.bf16.mxu0 0
  %301 = vmatpush1.bf16.msra.mxu0 0
  %302 = vmatprep.subr.bf16.mxu0 0
  %303 = vmatpush1.bf16.msra.mxu0 0
  %304 = vmatprep.subr.bf16.mxu0 0
  %305 = vmatpush1.bf16.msra.mxu0 0
  %306 = vmatprep.subr.bf16.mxu0 0
  %307 = vmatpush1.bf16.msra.mxu0 0
  %308 = vmatprep.subr.bf16.mxu0 0
  %309 = vmatpush1.bf16.msra.mxu0 0
  %310 = vmatprep.subr.bf16.mxu0 0
  %311 = vmatpush1.bf16.msra.mxu0 0
  %312 = vmatprep.subr.bf16.mxu0 0
  %313 = vmatpush1.bf16.msra.mxu0 0
  %314 = vmatprep.subr.bf16.mxu0 0
  %315 = vmatpush1.bf16.msra.mxu0 0
  %316 = vmatprep.subr.bf16.mxu0 0
  %317 = vmatpush1.bf16.msra.mxu0 0
  %318 = vmatprep.subr.bf16.mxu0 0
  %319 = vmatpush1.bf16.msra.mxu0 0
  %320 = vmatprep.mubr.bf16.mxu0 0
  %321 = vmatmul.mubr.bf16.gmra.mrb[0].mxu0 %v286
  %v322 = vpop.f32.mrb[0].mxu0
  %v323 = vadd.f32 0.0, %v322
  %v324 = vpop.f32.mrb[0].mxu0
  %v325 = vadd.f32 0.0, %v324
  %v326 = vpop.f32.mrb[0].mxu0
  %v327 = vpop.f32.mrb[0].mxu0
  %328 = vdwg.mxu0
  %v329 = vld [vmem:[#allocation2] sm:$0xff]
  %v330 = vunpack.c.l.bf16 %v329
  %v331 = vadd.f32 %v330, %v323
  %s332 = scalar_lea.vmem [#allocation2], 56
  %v333 = vld [vmem:[%s332] sm:$0xff]
  %v335 = vrot.slane %v333, 4
  %v337 = vunpack.c.l.bf16 %v335
  %v338 = vadd.f32 %v337, %v325
  %v339 = vxor.u32 %v331, 2147483648
  %v340 = vmul.f32 %v339, 1.442695
  %v341 = vpow.pop %v340
  %v342 = vadd.f32 %v341, 1.0
  %v343 = vrcp.pop %v342
  %v344 = vmul.f32 1.0, %v343
  %v345 = vtanh.pop %v331
  %v346 = vxor.u32 %v338, 2147483648
  %v347 = vmul.f32 %v346, 1.442695
  %v348 = vpow.pop %v347
  %v349 = vadd.f32 %v348, 1.0
  %v350 = vrcp.pop %v349
  %v351 = vmul.f32 1.0, %v350
  %v352 = vtanh.pop %v338
  %v353 = vld [vmem:[%s1] sm:$0xff]
  %s354 = scalar_lea.vmem %s1, 56
  %v355 = vld [vmem:[%s354] sm:$0xff]
  %v356 = vmul.f32 %v344, 0.0
  %358 = vrot.lane.b32.xlu0 %v345, 32
  %v359 = vpop.permute.xlu0 %358
  %v361 = vmul.f32 %v344, %v359
  %363 = vrot.lane.b32.xlu0 %v361, 32
  %v364 = vpop.permute.xlu0 %363
  %v366 = vadd.f32 %v356, %v364
  %368 = vset.pattern.permute.xlu0 0
  %369 = vperm.xlu0 %368, %v353
  %v370 = vpop.permute.xlu0 %369
  %v372 = vmul.f32 %v366, %v370
  %v373 = vmul.f32 %v351, 0.0
  %375 = vrot.lane.b32.xlu0 %v352, 32
  %v376 = vpop.permute.xlu0 %375
  %v378 = vmul.f32 %v351, %v376
  %380 = vrot.lane.b32.xlu0 %v378, 32
  %v381 = vpop.permute.xlu0 %380
  %v383 = vadd.f32 %v373, %v381
  %385 = vset.pattern.permute.xlu0 0
  %386 = vperm.xlu0 %385, %v355
  %v387 = vpop.permute.xlu0 %386
  %v389 = vmul.f32 %v383, %v387
  %v390 = vtanh.pop %v372
  %392 = vrot.lane.b32.xlu0 %v390, 32
  %v393 = vpop.permute.xlu0 %392
  %v395 = vmul.f32 %v344, %v393
  %v396 = vmul.f32 %v395, %v370
  %v397 = vtanh.pop %v389
  %399 = vrot.lane.b32.xlu0 %v397, 32
  %v400 = vpop.permute.xlu0 %399
  %v402 = vmul.f32 %v351, %v400
  %v403 = vmul.f32 %v402, %v387
  %405 = vrot.lane.b32.xlu0 %v396, 64
  %v406 = vpop.permute.xlu0 %405
  %408 = vst.msk [vmem:[%s5] sm:$0xff] %vm93, %v406
  %410 = vrot.lane.b32.xlu0 %v403, 96
  %v411 = vpop.permute.xlu0 %410
  %s413 = scalar_lea.vmem %s5, 56
  %vm414 = vcmask 523520
  %415 = vst.msk [vmem:[%s413] sm:$0xff] %vm414, %v411
  %v416 = vsel %vm93, %v406, %v411
  %v417 = vpack.c.bf16 %v416, %v416
  %v419 = vsel %vm284, %v417, 0
  %421 = vmatprep.subr.bf16.mxu0 %v269
  %422 = vmatpush1.bf16.msra.mxu0 %v268
  %423 = vmatprep.subr.bf16.mxu0 %v271
  %424 = vmatpush1.bf16.msra.mxu0 %v270
  %425 = vmatprep.subr.bf16.mxu0 %v273
  %426 = vmatpush1.bf16.msra.mxu0 %v272
  %427 = vmatprep.subr.bf16.mxu0 %v275
  %428 = vmatpush1.bf16.msra.mxu0 %v274
  %429 = vmatprep.subr.bf16.mxu0 0
  %430 = vmatpush1.bf16.msra.mxu0 0
  %431 = vmatprep.subr.bf16.mxu0 0
  %432 = vmatpush1.bf16.msra.mxu0 0
  %433 = vmatprep.subr.bf16.mxu0 0
  %434 = vmatpush1.bf16.msra.mxu0 0
  %435 = vmatprep.subr.bf16.mxu0 0
  %436 = vmatpush1.bf16.msra.mxu0 0
  %437 = vmatprep.subr.bf16.mxu0 0
  %438 = vmatpush1.bf16.msra.mxu0 0
  %439 = vmatprep.subr.bf16.mxu0 0
  %440 = vmatpush1.bf16.msra.mxu0 0
  %441 = vmatprep.subr.bf16.mxu0 0
  %442 = vmatpush1.bf16.msra.mxu0 0
  %443 = vmatprep.subr.bf16.mxu0 0
  %444 = vmatpush1.bf16.msra.mxu0 0
  %445 = vmatprep.subr.bf16.mxu0 0
  %446 = vmatpush1.bf16.msra.mxu0 0
  %447 = vmatprep.subr.bf16.mxu0 0
  %448 = vmatpush1.bf16.msra.mxu0 0
  %449 = vmatprep.subr.bf16.mxu0 0
  %450 = vmatpush1.bf16.msra.mxu0 0
  %451 = vmatprep.subr.bf16.mxu0 0
  %452 = vmatpush1.bf16.msra.mxu0 0
  %453 = vmatprep.mubr.bf16.mxu0 0
  %454 = vmatmul.mubr.bf16.gmra.mrb[0].mxu0 %v419
  %v455 = vpop.f32.mrb[0].mxu0
  %v456 = vadd.f32 0.0, %v455
  %v457 = vpop.f32.mrb[0].mxu0
  %v458 = vadd.f32 0.0, %v457
  %v459 = vpop.f32.mrb[0].mxu0
  %v460 = vpop.f32.mrb[0].mxu0
  %461 = vdwg.mxu0
  %s462 = scalar_lea.vmem [#allocation2], 8
  %v463 = vld [vmem:[%s462] sm:$0xff]
  %v464 = vunpack.c.l.bf16 %v463
  %v465 = vadd.f32 %v464, %v456
  %s466 = scalar_lea.vmem [#allocation2], 48
  %v467 = vld [vmem:[%s466] sm:$0xff]
  %v469 = vrot.slane %v467, 4
  %v471 = vunpack.c.l.bf16 %v469
  %v472 = vadd.f32 %v471, %v458
  %v473 = vxor.u32 %v465, 2147483648
  %v474 = vmul.f32 %v473, 1.442695
  %v475 = vpow.pop %v474
  %v476 = vadd.f32 %v475, 1.0
  %v477 = vrcp.pop %v476
  %v478 = vmul.f32 1.0, %v477
  %v479 = vtanh.pop %v465
  %v480 = vxor.u32 %v472, 2147483648
  %v481 = vmul.f32 %v480, 1.442695
  %v482 = vpow.pop %v481
  %v483 = vadd.f32 %v482, 1.0
  %v484 = vrcp.pop %v483
  %v485 = vmul.f32 1.0, %v484
  %v486 = vtanh.pop %v472
  %s487 = scalar_lea.vmem %s1, 8
  %v488 = vld [vmem:[%s487] sm:$0xff]
  %s489 = scalar_lea.vmem %s1, 48
  %v490 = vld [vmem:[%s489] sm:$0xff]
  %v491 = vmul.f32 %v478, %v372
  %493 = vrot.lane.b32.xlu0 %v479, 32
  %v494 = vpop.permute.xlu0 %493
  %v496 = vmul.f32 %v478, %v494
  %498 = vrot.lane.b32.xlu0 %v496, 32
  %v499 = vpop.permute.xlu0 %498
  %v501 = vadd.f32 %v491, %v499
  %503 = vset.pattern.permute.xlu0 0
  %504 = vperm.xlu0 %503, %v488
  %v505 = vpop.permute.xlu0 %504
  %v507 = vmul.f32 %v501, %v505
  %v508 = vmul.f32 %v485, %v389
  %510 = vrot.lane.b32.xlu0 %v486, 32
  %v511 = vpop.permute.xlu0 %510
  %v513 = vmul.f32 %v485, %v511
  %515 = vrot.lane.b32.xlu0 %v513, 32
  %v516 = vpop.permute.xlu0 %515
  %v518 = vadd.f32 %v508, %v516
  %520 = vset.pattern.permute.xlu0 0
  %521 = vperm.xlu0 %520, %v490
  %v522 = vpop.permute.xlu0 %521
  %v524 = vmul.f32 %v518, %v522
  %v525 = vtanh.pop %v507
  %527 = vrot.lane.b32.xlu0 %v525, 32
  %v528 = vpop.permute.xlu0 %527
  %v530 = vmul.f32 %v478, %v528
  %v531 = vmul.f32 %v530, %v505
  %v532 = vtanh.pop %v524
  %534 = vrot.lane.b32.xlu0 %v532, 32
  %v535 = vpop.permute.xlu0 %534
  %v537 = vmul.f32 %v485, %v535
  %v538 = vmul.f32 %v537, %v522
  %540 = vrot.lane.b32.xlu0 %v531, 64
  %v541 = vpop.permute.xlu0 %540
  %s543 = scalar_lea.vmem %s5, 8
  %544 = vst.msk [vmem:[%s543] sm:$0xff] %vm93, %v541
  %546 = vrot.lane.b32.xlu0 %v538, 96
  %v547 = vpop.permute.xlu0 %546
  %s549 = scalar_lea.vmem %s5, 48
  %550 = vst.msk [vmem:[%s549] sm:$0xff] %vm414, %v547
  %v551 = vsel %vm93, %v541, %v547
  %v552 = vpack.c.bf16 %v551, %v551
  %v554 = vsel %vm284, %v552, 0
  %556 = vmatprep.subr.bf16.mxu0 %v269
  %557 = vmatpush1.bf16.msra.mxu0 %v268
  %558 = vmatprep.subr.bf16.mxu0 %v271
  %559 = vmatpush1.bf16.msra.mxu0 %v270
  %560 = vmatprep.subr.bf16.mxu0 %v273
  %561 = vmatpush1.bf16.msra.mxu0 %v272
  %562 = vmatprep.subr.bf16.mxu0 %v275
  %563 = vmatpush1.bf16.msra.mxu0 %v274
  %564 = vmatprep.subr.bf16.mxu0 0
  %565 = vmatpush1.bf16.msra.mxu0 0
  %566 = vmatprep.subr.bf16.mxu0 0
  %567 = vmatpush1.bf16.msra.mxu0 0
  %568 = vmatprep.subr.bf16.mxu0 0
  %569 = vmatpush1.bf16.msra.mxu0 0
  %570 = vmatprep.subr.bf16.mxu0 0
  %571 = vmatpush1.bf16.msra.mxu0 0
  %572 = vmatprep.subr.bf16.mxu0 0
  %573 = vmatpush1.bf16.msra.mxu0 0
  %574 = vmatprep.subr.bf16.mxu0 0
  %575 = vmatpush1.bf16.msra.mxu0 0
  %576 = vmatprep.subr.bf16.mxu0 0
  %577 = vmatpush1.bf16.msra.mxu0 0
  %578 = vmatprep.subr.bf16.mxu0 0
  %579 = vmatpush1.bf16.msra.mxu0 0
  %580 = vmatprep.subr.bf16.mxu0 0
  %581 = vmatpush1.bf16.msra.mxu0 0
  %582 = vmatprep.subr.bf16.mxu0 0
  %583 = vmatpush1.bf16.msra.mxu0 0
  %584 = vmatprep.subr.bf16.mxu0 0
  %585 = vmatpush1.bf16.msra.mxu0 0
  %586 = vmatprep.subr.bf16.mxu0 0
  %587 = vmatpush1.bf16.msra.mxu0 0
  %588 = vmatprep.mubr.bf16.mxu0 0
  %589 = vmatmul.mubr.bf16.gmra.mrb[0].mxu0 %v554
  %v590 = vpop.f32.mrb[0].mxu0
  %v591 = vadd.f32 0.0, %v590
  %v592 = vpop.f32.mrb[0].mxu0
  %v593 = vadd.f32 0.0, %v592
  %v594 = vpop.f32.mrb[0].mxu0
  %v595 = vpop.f32.mrb[0].mxu0
  %596 = vdwg.mxu0
  %s597 = scalar_lea.vmem [#allocation2], 16
  %v598 = vld [vmem:[%s597] sm:$0xff]
  %v599 = vunpack.c.l.bf16 %v598
  %v600 = vadd.f32 %v599, %v591
  %s601 = scalar_lea.vmem [#allocation2], 40
  %v602 = vld [vmem:[%s601] sm:$0xff]
  %v604 = vrot.slane %v602, 4
  %v606 = vunpack.c.l.bf16 %v604
  %v607 = vadd.f32 %v606, %v593
  %v608 = vxor.u32 %v600, 2147483648
  %v609 = vmul.f32 %v608, 1.442695
  %v610 = vpow.pop %v609
  %v611 = vadd.f32 %v610, 1.0
  %v612 = vrcp.pop %v611
  %v613 = vmul.f32 1.0, %v612
  %v614 = vtanh.pop %v600
  %v615 = vxor.u32 %v607, 2147483648
  %v616 = vmul.f32 %v615, 1.442695
  %v617 = vpow.pop %v616
  %v618 = vadd.f32 %v617, 1.0
  %v619 = vrcp.pop %v618
  %v620 = vmul.f32 1.0, %v619
  %v621 = vtanh.pop %v607
  %s622 = scalar_lea.vmem %s1, 16
  %v623 = vld [vmem:[%s622] sm:$0xff]
  %s624 = scalar_lea.vmem %s1, 40
  %v625 = vld [vmem:[%s624] sm:$0xff]
  %v626 = vmul.f32 %v613, %v507
  %628 = vrot.lane.b32.xlu0 %v614, 32
  %v629 = vpop.permute.xlu0 %628
  %v631 = vmul.f32 %v613, %v629
  %633 = vrot.lane.b32.xlu0 %v631, 32
  %v634 = vpop.permute.xlu0 %633
  %v636 = vadd.f32 %v626, %v634
  %638 = vset.pattern.permute.xlu0 0
  %639 = vperm.xlu0 %638, %v623
  %v640 = vpop.permute.xlu0 %639
  %v642 = vmul.f32 %v636, %v640
  %v643 = vmul.f32 %v620, %v524
  %645 = vrot.lane.b32.xlu0 %v621, 32
  %v646 = vpop.permute.xlu0 %645
  %v648 = vmul.f32 %v620, %v646
  %650 = vrot.lane.b32.xlu0 %v648, 32
  %v651 = vpop.permute.xlu0 %650
  %v653 = vadd.f32 %v643, %v651
  %655 = vset.pattern.permute.xlu0 0
  %656 = vperm.xlu0 %655, %v625
  %v657 = vpop.permute.xlu0 %656
  %v659 = vmul.f32 %v653, %v657
  %v660 = vtanh.pop %v642
  %662 = vrot.lane.b32.xlu0 %v660, 32
  %v663 = vpop.permute.xlu0 %662
  %v665 = vmul.f32 %v613, %v663
  %v666 = vmul.f32 %v665, %v640
  %v667 = vtanh.pop %v659
  %669 = vrot.lane.b32.xlu0 %v667, 32
  %v670 = vpop.permute.xlu0 %669
  %v672 = vmul.f32 %v620, %v670
  %v673 = vmul.f32 %v672, %v657
  %675 = vrot.lane.b32.xlu0 %v666, 64
  %v676 = vpop.permute.xlu0 %675
  %s678 = scalar_lea.vmem %s5, 16
  %679 = vst.msk [vmem:[%s678] sm:$0xff] %vm93, %v676
  %681 = vrot.lane.b32.xlu0 %v673, 96
  %v682 = vpop.permute.xlu0 %681
  %s684 = scalar_lea.vmem %s5, 40
  %685 = vst.msk [vmem:[%s684] sm:$0xff] %vm414, %v682
  %v686 = vsel %vm93, %v676, %v682
  %v687 = vpack.c.bf16 %v686, %v686
  %v689 = vsel %vm284, %v687, 0
  %691 = vmatprep.subr.bf16.mxu0 %v269
  %692 = vmatpush1.bf16.msra.mxu0 %v268
  %693 = vmatprep.subr.bf16.mxu0 %v271
  %694 = vmatpush1.bf16.msra.mxu0 %v270
  %695 = vmatprep.subr.bf16.mxu0 %v273
  %696 = vmatpush1.bf16.msra.mxu0 %v272
  %697 = vmatprep.subr.bf16.mxu0 %v275
  %698 = vmatpush1.bf16.msra.mxu0 %v274
  %699 = vmatprep.subr.bf16.mxu0 0
  %700 = vmatpush1.bf16.msra.mxu0 0
  %701 = vmatprep.subr.bf16.mxu0 0
  %702 = vmatpush1.bf16.msra.mxu0 0
  %703 = vmatprep.subr.bf16.mxu0 0
  %704 = vmatpush1.bf16.msra.mxu0 0
  %705 = vmatprep.subr.bf16.mxu0 0
  %706 = vmatpush1.bf16.msra.mxu0 0
  %707 = vmatprep.subr.bf16.mxu0 0
  %708 = vmatpush1.bf16.msra.mxu0 0
  %709 = vmatprep.subr.bf16.mxu0 0
  %710 = vmatpush1.bf16.msra.mxu0 0
  %711 = vmatprep.subr.bf16.mxu0 0
  %712 = vmatpush1.bf16.msra.mxu0 0
  %713 = vmatprep.subr.bf16.mxu0 0
  %714 = vmatpush1.bf16.msra.mxu0 0
  %715 = vmatprep.subr.bf16.mxu0 0
  %716 = vmatpush1.bf16.msra.mxu0 0
  %717 = vmatprep.subr.bf16.mxu0 0
  %718 = vmatpush1.bf16.msra.mxu0 0
  %719 = vmatprep.subr.bf16.mxu0 0
  %720 = vmatpush1.bf16.msra.mxu0 0
  %721 = vmatprep.subr.bf16.mxu0 0
  %722 = vmatpush1.bf16.msra.mxu0 0
  %723 = vmatprep.mubr.bf16.mxu0 0
  %724 = vmatmul.mubr.bf16.gmra.mrb[0].mxu0 %v689
  %v725 = vpop.f32.mrb[0].mxu0
  %v726 = vadd.f32 0.0, %v725
  %v727 = vpop.f32.mrb[0].mxu0
  %v728 = vadd.f32 0.0, %v727
  %v729 = vpop.f32.mrb[0].mxu0
  %v730 = vpop.f32.mrb[0].mxu0
  %731 = vdwg.mxu0
  %s732 = scalar_lea.vmem [#allocation2], 24
  %v733 = vld [vmem:[%s732] sm:$0xff]
  %v734 = vunpack.c.l.bf16 %v733
  %v735 = vadd.f32 %v734, %v726
  %s736 = scalar_lea.vmem [#allocation2], 32
  %v737 = vld [vmem:[%s736] sm:$0xff]
  %v739 = vrot.slane %v737, 4
  %v741 = vunpack.c.l.bf16 %v739
  %v742 = vadd.f32 %v741, %v728
  %v743 = vxor.u32 %v735, 2147483648
  %v744 = vmul.f32 %v743, 1.442695
  %v745 = vpow.pop %v744
  %v746 = vadd.f32 %v745, 1.0
  %v747 = vrcp.pop %v746
  %v748 = vmul.f32 1.0, %v747
  %v749 = vtanh.pop %v735
  %v750 = vxor.u32 %v742, 2147483648
  %v751 = vmul.f32 %v750, 1.442695
  %v752 = vpow.pop %v751
  %v753 = vadd.f32 %v752, 1.0
  %v754 = vrcp.pop %v753
  %v755 = vmul.f32 1.0, %v754
  %v756 = vtanh.pop %v742
  %s757 = scalar_lea.vmem %s1, 24
  %v758 = vld [vmem:[%s757] sm:$0xff]
  %s759 = scalar_lea.vmem %s1, 32
  %v760 = vld [vmem:[%s759] sm:$0xff]
  %v761 = vmul.f32 %v748, %v642
  %763 = vrot.lane.b32.xlu0 %v749, 32
  %v764 = vpop.permute.xlu0 %763
  %v766 = vmul.f32 %v748, %v764
  %768 = vrot.lane.b32.xlu0 %v766, 32
  %v769 = vpop.permute.xlu0 %768
  %v771 = vadd.f32 %v761, %v769
  %773 = vset.pattern.permute.xlu0 0
  %774 = vperm.xlu0 %773, %v758
  %v775 = vpop.permute.xlu0 %774
  %v777 = vmul.f32 %v771, %v775
  %v778 = vmul.f32 %v755, %v659
  %780 = vrot.lane.b32.xlu0 %v756, 32
  %v781 = vpop.permute.xlu0 %780
  %v783 = vmul.f32 %v755, %v781
  %785 = vrot.lane.b32.xlu0 %v783, 32
  %v786 = vpop.permute.xlu0 %785
  %v788 = vadd.f32 %v778, %v786
  %790 = vset.pattern.permute.xlu0 0
  %791 = vperm.xlu0 %790, %v760
  %v792 = vpop.permute.xlu0 %791
  %v794 = vmul.f32 %v788, %v792
  %v795 = vtanh.pop %v777
  %797 = vrot.lane.b32.xlu0 %v795, 32
  %v798 = vpop.permute.xlu0 %797
  %v800 = vmul.f32 %v748, %v798
  %v801 = vmul.f32 %v800, %v775
  %v802 = vtanh.pop %v794
  %804 = vrot.lane.b32.xlu0 %v802, 32
  %v805 = vpop.permute.xlu0 %804
  %v807 = vmul.f32 %v755, %v805
  %v808 = vmul.f32 %v807, %v792
  %810 = vrot.lane.b32.xlu0 %v801, 64
  %v811 = vpop.permute.xlu0 %810
  %s813 = scalar_lea.vmem %s5, 24
  %814 = vst.msk [vmem:[%s813] sm:$0xff] %vm93, %v811
  %816 = vrot.lane.b32.xlu0 %v808, 96
  %v817 = vpop.permute.xlu0 %816
  %s819 = scalar_lea.vmem %s5, 32
  %820 = vst.msk [vmem:[%s819] sm:$0xff] %vm414, %v817
  %v821 = vsel %vm93, %v811, %v817
  %v822 = vpack.c.bf16 %v821, %v821
  %v824 = vsel %vm284, %v822, 0
  %826 = vmatprep.subr.bf16.mxu0 %v269
  %827 = vmatpush1.bf16.msra.mxu0 %v268
  %828 = vmatprep.subr.bf16.mxu0 %v271
  %829 = vmatpush1.bf16.msra.mxu0 %v270
  %830 = vmatprep.subr.bf16.mxu0 %v273
  %831 = vmatpush1.bf16.msra.mxu0 %v272
  %832 = vmatprep.subr.bf16.mxu0 %v275
  %833 = vmatpush1.bf16.msra.mxu0 %v274
  %834 = vmatprep.subr.bf16.mxu0 0
  %835 = vmatpush1.bf16.msra.mxu0 0
  %836 = vmatprep.subr.bf16.mxu0 0
  %837 = vmatpush1.bf16.msra.mxu0 0
  %838 = vmatprep.subr.bf16.mxu0 0
  %839 = vmatpush1.bf16.msra.mxu0 0
  %840 = vmatprep.subr.bf16.mxu0 0
  %841 = vmatpush1.bf16.msra.mxu0 0
  %842 = vmatprep.subr.bf16.mxu0 0
  %843 = vmatpush1.bf16.msra.mxu0 0
  %844 = vmatprep.subr.bf16.mxu0 0
  %845 = vmatpush1.bf16.msra.mxu0 0
  %846 = vmatprep.subr.bf16.mxu0 0
  %847 = vmatpush1.bf16.msra.mxu0 0
  %848 = vmatprep.subr.bf16.mxu0 0
  %849 = vmatpush1.bf16.msra.mxu0 0
  %850 = vmatprep.subr.bf16.mxu0 0
  %851 = vmatpush1.bf16.msra.mxu0 0
  %852 = vmatprep.subr.bf16.mxu0 0
  %853 = vmatpush1.bf16.msra.mxu0 0
  %854 = vmatprep.subr.bf16.mxu0 0
  %855 = vmatpush1.bf16.msra.mxu0 0
  %856 = vmatprep.subr.bf16.mxu0 0
  %857 = vmatpush1.bf16.msra.mxu0 0
  %858 = vmatprep.mubr.bf16.mxu0 0
  %859 = vmatmul.mubr.bf16.gmra.mrb[0].mxu0 %v824
  %v860 = vpop.f32.mrb[0].mxu0
  %v861 = vadd.f32 0.0, %v860
  %v862 = vpop.f32.mrb[0].mxu0
  %v863 = vadd.f32 0.0, %v862
  %v864 = vpop.f32.mrb[0].mxu0
  %v865 = vpop.f32.mrb[0].mxu0
  %866 = vdwg.mxu0
  %v867 = vld [vmem:[%s736] sm:$0xff]
  %v868 = vunpack.c.l.bf16 %v867
  %v869 = vadd.f32 %v868, %v861
  %v870 = vld [vmem:[%s732] sm:$0xff]
  %v872 = vrot.slane %v870, 4
  %v874 = vunpack.c.l.bf16 %v872
  %v875 = vadd.f32 %v874, %v863
  %v876 = vxor.u32 %v869, 2147483648
  %v877 = vmul.f32 %v876, 1.442695
  %v878 = vpow.pop %v877
  %v879 = vadd.f32 %v878, 1.0
  %v880 = vrcp.pop %v879
  %v881 = vmul.f32 1.0, %v880
  %v882 = vtanh.pop %v869
  %v883 = vxor.u32 %v875, 2147483648
  %v884 = vmul.f32 %v883, 1.442695
  %v885 = vpow.pop %v884
  %v886 = vadd.f32 %v885, 1.0
  %v887 = vrcp.pop %v886
  %v888 = vmul.f32 1.0, %v887
  %v889 = vtanh.pop %v875
  %v890 = vld [vmem:[%s759] sm:$0xff]
  %v891 = vld [vmem:[%s757] sm:$0xff]
  %v892 = vmul.f32 %v881, %v777
  %894 = vrot.lane.b32.xlu0 %v882, 32
  %v895 = vpop.permute.xlu0 %894
  %v897 = vmul.f32 %v881, %v895
  %899 = vrot.lane.b32.xlu0 %v897, 32
  %v900 = vpop.permute.xlu0 %899
  %v902 = vadd.f32 %v892, %v900
  %904 = vset.pattern.permute.xlu0 0
  %905 = vperm.xlu0 %904, %v890
  %v906 = vpop.permute.xlu0 %905
  %v908 = vmul.f32 %v902, %v906
  %v909 = vmul.f32 %v888, %v794
  %911 = vrot.lane.b32.xlu0 %v889, 32
  %v912 = vpop.permute.xlu0 %911
  %v914 = vmul.f32 %v888, %v912
  %916 = vrot.lane.b32.xlu0 %v914, 32
  %v917 = vpop.permute.xlu0 %916
  %v919 = vadd.f32 %v909, %v917
  %921 = vset.pattern.permute.xlu0 0
  %922 = vperm.xlu0 %921, %v891
  %v923 = vpop.permute.xlu0 %922
  %v925 = vmul.f32 %v919, %v923
  %v926 = vtanh.pop %v908
  %928 = vrot.lane.b32.xlu0 %v926, 32
  %v929 = vpop.permute.xlu0 %928
  %v931 = vmul.f32 %v881, %v929
  %v932 = vmul.f32 %v931, %v906
  %v933 = vtanh.pop %v925
  %935 = vrot.lane.b32.xlu0 %v933, 32
  %v936 = vpop.permute.xlu0 %935
  %v938 = vmul.f32 %v888, %v936
  %v939 = vmul.f32 %v938, %v923
  %941 = vrot.lane.b32.xlu0 %v932, 64
  %v942 = vpop.permute.xlu0 %941
  %944 = vst.msk [vmem:[%s819] sm:$0xff] %vm93, %v942
  %946 = vrot.lane.b32.xlu0 %v939, 96
  %v947 = vpop.permute.xlu0 %946
  %949 = vst.msk [vmem:[%s813] sm:$0xff] %vm414, %v947
  %v950 = vsel %vm93, %v942, %v947
  %v951 = vpack.c.bf16 %v950, %v950
  %v953 = vsel %vm284, %v951, 0
  %955 = vmatprep.subr.bf16.mxu0 %v269
  %956 = vmatpush1.bf16.msra.mxu0 %v268
  %957 = vmatprep.subr.bf16.mxu0 %v271
  %958 = vmatpush1.bf16.msra.mxu0 %v270
  %959 = vmatprep.subr.bf16.mxu0 %v273
  %960 = vmatpush1.bf16.msra.mxu0 %v272
  %961 = vmatprep.subr.bf16.mxu0 %v275
  %962 = vmatpush1.bf16.msra.mxu0 %v274
  %963 = vmatprep.subr.bf16.mxu0 0
  %964 = vmatpush1.bf16.msra.mxu0 0
  %965 = vmatprep.subr.bf16.mxu0 0
  %966 = vmatpush1.bf16.msra.mxu0 0
  %967 = vmatprep.subr.bf16.mxu0 0
  %968 = vmatpush1.bf16.msra.mxu0 0
  %969 = vmatprep.subr.bf16.mxu0 0
  %970 = vmatpush1.bf16.msra.mxu0 0
  %971 = vmatprep.subr.bf16.mxu0 0
  %972 = vmatpush1.bf16.msra.mxu0 0
  %973 = vmatprep.subr.bf16.mxu0 0
  %974 = vmatpush1.bf16.msra.mxu0 0
  %975 = vmatprep.subr.bf16.mxu0 0
  %976 = vmatpush1.bf16.msra.mxu0 0
  %977 = vmatprep.subr.bf16.mxu0 0
  %978 = vmatpush1.bf16.msra.mxu0 0
  %979 = vmatprep.subr.bf16.mxu0 0
  %980 = vmatpush1.bf16.msra.mxu0 0
  %981 = vmatprep.subr.bf16.mxu0 0
  %982 = vmatpush1.bf16.msra.mxu0 0
  %983 = vmatprep.subr.bf16.mxu0 0
  %984 = vmatpush1.bf16.msra.mxu0 0
  %985 = vmatprep.subr.bf16.mxu0 0
  %986 = vmatpush1.bf16.msra.mxu0 0
  %987 = vmatprep.mubr.bf16.mxu0 0
  %988 = vmatmul.mubr.bf16.gmra.mrb[0].mxu0 %v953
  %v989 = vpop.f32.mrb[0].mxu0
  %v990 = vadd.f32 0.0, %v989
  %v991 = vpop.f32.mrb[0].mxu0
  %v992 = vadd.f32 0.0, %v991
  %v993 = vpop.f32.mrb[0].mxu0
  %v994 = vpop.f32.mrb[0].mxu0
  %995 = vdwg.mxu0
  %v996 = vld [vmem:[%s601] sm:$0xff]
  %v997 = vunpack.c.l.bf16 %v996
  %v998 = vadd.f32 %v997, %v990
  %v999 = vld [vmem:[%s597] sm:$0xff]
  %v1001 = vrot.slane %v999, 4
  %v1003 = vunpack.c.l.bf16 %v1001
  %v1004 = vadd.f32 %v1003, %v992
  %v1005 = vxor.u32 %v998, 2147483648
  %v1006 = vmul.f32 %v1005, 1.442695
  %v1007 = vpow.pop %v1006
  %v1008 = vadd.f32 %v1007, 1.0
  %v1009 = vrcp.pop %v1008
  %v1010 = vmul.f32 1.0, %v1009
  %v1011 = vtanh.pop %v998
  %v1012 = vxor.u32 %v1004, 2147483648
  %v1013 = vmul.f32 %v1012, 1.442695
  %v1014 = vpow.pop %v1013
  %v1015 = vadd.f32 %v1014, 1.0
  %v1016 = vrcp.pop %v1015
  %v1017 = vmul.f32 1.0, %v1016
  %v1018 = vtanh.pop %v1004
  %v1019 = vld [vmem:[%s624] sm:$0xff]
  %v1020 = vld [vmem:[%s622] sm:$0xff]
  %v1021 = vmul.f32 %v1010, %v908
  %1023 = vrot.lane.b32.xlu0 %v1011, 32
  %v1024 = vpop.permute.xlu0 %1023
  %v1026 = vmul.f32 %v1010, %v1024
  %1028 = vrot.lane.b32.xlu0 %v1026, 32
  %v1029 = vpop.permute.xlu0 %1028
  %v1031 = vadd.f32 %v1021, %v1029
  %1033 = vset.pattern.permute.xlu0 0
  %1034 = vperm.xlu0 %1033, %v1019
  %v1035 = vpop.permute.xlu0 %1034
  %v1037 = vmul.f32 %v1031, %v1035
  %v1038 = vmul.f32 %v1017, %v925
  %1040 = vrot.lane.b32.xlu0 %v1018, 32
  %v1041 = vpop.permute.xlu0 %1040
  %v1043 = vmul.f32 %v1017, %v1041
  %1045 = vrot.lane.b32.xlu0 %v1043, 32
  %v1046 = vpop.permute.xlu0 %1045
  %v1048 = vadd.f32 %v1038, %v1046
  %1050 = vset.pattern.permute.xlu0 0
  %1051 = vperm.xlu0 %1050, %v1020
  %v1052 = vpop.permute.xlu0 %1051
  %v1054 = vmul.f32 %v1048, %v1052
  %v1055 = vtanh.pop %v1037
  %1057 = vrot.lane.b32.xlu0 %v1055, 32
  %v1058 = vpop.permute.xlu0 %1057
  %v1060 = vmul.f32 %v1010, %v1058
  %v1061 = vmul.f32 %v1060, %v1035
  %v1062 = vtanh.pop %v1054
  %1064 = vrot.lane.b32.xlu0 %v1062, 32
  %v1065 = vpop.permute.xlu0 %1064
  %v1067 = vmul.f32 %v1017, %v1065
  %v1068 = vmul.f32 %v1067, %v1052
  %1070 = vrot.lane.b32.xlu0 %v1061, 64
  %v1071 = vpop.permute.xlu0 %1070
  %1073 = vst.msk [vmem:[%s684] sm:$0xff] %vm93, %v1071
  %1075 = vrot.lane.b32.xlu0 %v1068, 96
  %v1076 = vpop.permute.xlu0 %1075
  %1078 = vst.msk [vmem:[%s678] sm:$0xff] %vm414, %v1076
  %v1079 = vsel %vm93, %v1071, %v1076
  %v1080 = vpack.c.bf16 %v1079, %v1079
  %v1082 = vsel %vm284, %v1080, 0
  %1084 = vmatprep.subr.bf16.mxu0 %v269
  %1085 = vmatpush1.bf16.msra.mxu0 %v268
  %1086 = vmatprep.subr.bf16.mxu0 %v271
  %1087 = vmatpush1.bf16.msra.mxu0 %v270
  %1088 = vmatprep.subr.bf16.mxu0 %v273
  %1089 = vmatpush1.bf16.msra.mxu0 %v272
  %1090 = vmatprep.subr.bf16.mxu0 %v275
  %1091 = vmatpush1.bf16.msra.mxu0 %v274
  %1092 = vmatprep.subr.bf16.mxu0 0
  %1093 = vmatpush1.bf16.msra.mxu0 0
  %1094 = vmatprep.subr.bf16.mxu0 0
  %1095 = vmatpush1.bf16.msra.mxu0 0
  %1096 = vmatprep.subr.bf16.mxu0 0
  %1097 = vmatpush1.bf16.msra.mxu0 0
  %1098 = vmatprep.subr.bf16.mxu0 0
  %1099 = vmatpush1.bf16.msra.mxu0 0
  %1100 = vmatprep.subr.bf16.mxu0 0
  %1101 = vmatpush1.bf16.msra.mxu0 0
  %1102 = vmatprep.subr.bf16.mxu0 0
  %1103 = vmatpush1.bf16.msra.mxu0 0
  %1104 = vmatprep.subr.bf16.mxu0 0
  %1105 = vmatpush1.bf16.msra.mxu0 0
  %1106 = vmatprep.subr.bf16.mxu0 0
  %1107 = vmatpush1.bf16.msra.mxu0 0
  %1108 = vmatprep.subr.bf16.mxu0 0
  %1109 = vmatpush1.bf16.msra.mxu0 0
  %1110 = vmatprep.subr.bf16.mxu0 0
  %1111 = vmatpush1.bf16.msra.mxu0 0
  %1112 = vmatprep.subr.bf16.mxu0 0
  %1113 = vmatpush1.bf16.msra.mxu0 0
  %1114 = vmatprep.subr.bf16.mxu0 0
  %1115 = vmatpush1.bf16.msra.mxu0 0
  %1116 = vmatprep.mubr.bf16.mxu0 0
  %1117 = vmatmul.mubr.bf16.gmra.mrb[0].mxu0 %v1082
  %v1118 = vpop.f32.mrb[0].mxu0
  %v1119 = vadd.f32 0.0, %v1118
  %v1120 = vpop.f32.mrb[0].mxu0
  %v1121 = vadd.f32 0.0, %v1120
  %v1122 = vpop.f32.mrb[0].mxu0
  %v1123 = vpop.f32.mrb[0].mxu0
  %1124 = vdwg.mxu0
  %v1125 = vld [vmem:[%s466] sm:$0xff]
  %v1126 = vunpack.c.l.bf16 %v1125
  %v1127 = vadd.f32 %v1126, %v1119
  %v1128 = vld [vmem:[%s462] sm:$0xff]
  %v1130 = vrot.slane %v1128, 4
  %v1132 = vunpack.c.l.bf16 %v1130
  %v1133 = vadd.f32 %v1132, %v1121
  %v1134 = vxor.u32 %v1127, 2147483648
  %v1135 = vmul.f32 %v1134, 1.442695
  %v1136 = vpow.pop %v1135
  %v1137 = vadd.f32 %v1136, 1.0
  %v1138 = vrcp.pop %v1137
  %v1139 = vmul.f32 1.0, %v1138
  %v1140 = vtanh.pop %v1127
  %v1141 = vxor.u32 %v1133, 2147483648
  %v1142 = vmul.f32 %v1141, 1.442695
  %v1143 = vpow.pop %v1142
  %v1144 = vadd.f32 %v1143, 1.0
  %v1145 = vrcp.pop %v1144
  %v1146 = vmul.f32 1.0, %v1145
  %v1147 = vtanh.pop %v1133
  %v1148 = vld [vmem:[%s489] sm:$0xff]
  %v1149 = vld [vmem:[%s487] sm:$0xff]
  %v1150 = vmul.f32 %v1139, %v1037
  %1152 = vrot.lane.b32.xlu0 %v1140, 32
  %v1153 = vpop.permute.xlu0 %1152
  %v1155 = vmul.f32 %v1139, %v1153
  %1157 = vrot.lane.b32.xlu0 %v1155, 32
  %v1158 = vpop.permute.xlu0 %1157
  %v1160 = vadd.f32 %v1150, %v1158
  %1162 = vset.pattern.permute.xlu0 0
  %1163 = vperm.xlu0 %1162, %v1148
  %v1164 = vpop.permute.xlu0 %1163
  %v1166 = vmul.f32 %v1160, %v1164
  %v1167 = vmul.f32 %v1146, %v1054
  %1169 = vrot.lane.b32.xlu0 %v1147, 32
  %v1170 = vpop.permute.xlu0 %1169
  %v1172 = vmul.f32 %v1146, %v1170
  %1174 = vrot.lane.b32.xlu0 %v1172, 32
  %v1175 = vpop.permute.xlu0 %1174
  %v1177 = vadd.f32 %v1167, %v1175
  %1179 = vset.pattern.permute.xlu0 0
  %1180 = vperm.xlu0 %1179, %v1149
  %v1181 = vpop.permute.xlu0 %1180
  %v1183 = vmul.f32 %v1177, %v1181
  %v1184 = vtanh.pop %v1166
  %1186 = vrot.lane.b32.xlu0 %v1184, 32
  %v1187 = vpop.permute.xlu0 %1186
  %v1189 = vmul.f32 %v1139, %v1187
  %v1190 = vmul.f32 %v1189, %v1164
  %v1191 = vtanh.pop %v1183
  %1193 = vrot.lane.b32.xlu0 %v1191, 32
  %v1194 = vpop.permute.xlu0 %1193
  %v1196 = vmul.f32 %v1146, %v1194
  %v1197 = vmul.f32 %v1196, %v1181
  %1199 = vrot.lane.b32.xlu0 %v1190, 64
  %v1200 = vpop.permute.xlu0 %1199
  %1202 = vst.msk [vmem:[%s549] sm:$0xff] %vm93, %v1200
  %1204 = vrot.lane.b32.xlu0 %v1197, 96
  %v1205 = vpop.permute.xlu0 %1204
  %1207 = vst.msk [vmem:[%s543] sm:$0xff] %vm414, %v1205
  %v1208 = vsel %vm93, %v1200, %v1205
  %v1209 = vpack.c.bf16 %v1208, %v1208
  %v1211 = vsel %vm284, %v1209, 0
  %1213 = vmatprep.subr.bf16.mxu0 %v269
  %1214 = vmatpush1.bf16.msra.mxu0 %v268
  %1215 = vmatprep.subr.bf16.mxu0 %v271
  %1216 = vmatpush1.bf16.msra.mxu0 %v270
  %1217 = vmatprep.subr.bf16.mxu0 %v273
  %1218 = vmatpush1.bf16.msra.mxu0 %v272
  %1219 = vmatprep.subr.bf16.mxu0 %v275
  %1220 = vmatpush1.bf16.msra.mxu0 %v274
  %1221 = vmatprep.subr.bf16.mxu0 0
  %1222 = vmatpush1.bf16.msra.mxu0 0
  %1223 = vmatprep.subr.bf16.mxu0 0
  %1224 = vmatpush1.bf16.msra.mxu0 0
  %1225 = vmatprep.subr.bf16.mxu0 0
  %1226 = vmatpush1.bf16.msra.mxu0 0
  %1227 = vmatprep.subr.bf16.mxu0 0
  %1228 = vmatpush1.bf16.msra.mxu0 0
  %1229 = vmatprep.subr.bf16.mxu0 0
  %1230 = vmatpush1.bf16.msra.mxu0 0
  %1231 = vmatprep.subr.bf16.mxu0 0
  %1232 = vmatpush1.bf16.msra.mxu0 0
  %1233 = vmatprep.subr.bf16.mxu0 0
  %1234 = vmatpush1.bf16.msra.mxu0 0
  %1235 = vmatprep.subr.bf16.mxu0 0
  %1236 = vmatpush1.bf16.msra.mxu0 0
  %1237 = vmatprep.subr.bf16.mxu0 0
  %1238 = vmatpush1.bf16.msra.mxu0 0
  %1239 = vmatprep.subr.bf16.mxu0 0
  %1240 = vmatpush1.bf16.msra.mxu0 0
  %1241 = vmatprep.subr.bf16.mxu0 0
  %1242 = vmatpush1.bf16.msra.mxu0 0
  %1243 = vmatprep.subr.bf16.mxu0 0
  %1244 = vmatpush1.bf16.msra.mxu0 0
  %1245 = vmatprep.mubr.bf16.mxu0 0
  %1246 = vmatmul.mubr.bf16.gmra.mrb[0].mxu0 %v1211
  %v1247 = vpop.f32.mrb[0].mxu0
  %v1248 = vadd.f32 0.0, %v1247
  %v1249 = vpop.f32.mrb[0].mxu0
  %v1250 = vadd.f32 0.0, %v1249
  %v1251 = vpop.f32.mrb[0].mxu0
  %v1252 = vpop.f32.mrb[0].mxu0
  %1253 = vdwg.mxu0
  %v1254 = vld [vmem:[%s332] sm:$0xff]
  %v1255 = vunpack.c.l.bf16 %v1254
  %v1256 = vadd.f32 %v1255, %v1248
  %v1257 = vld [vmem:[#allocation2] sm:$0xff]
  %v1259 = vrot.slane %v1257, 4
  %v1261 = vunpack.c.l.bf16 %v1259
  %v1262 = vadd.f32 %v1261, %v1250
  %v1263 = vxor.u32 %v1256, 2147483648
  %v1264 = vmul.f32 %v1263, 1.442695
  %v1265 = vpow.pop %v1264
  %v1266 = vadd.f32 %v1265, 1.0
  %v1267 = vrcp.pop %v1266
  %v1268 = vmul.f32 1.0, %v1267
  %v1269 = vtanh.pop %v1256
  %v1270 = vxor.u32 %v1262, 2147483648
  %v1271 = vmul.f32 %v1270, 1.442695
  %v1272 = vpow.pop %v1271
  %v1273 = vadd.f32 %v1272, 1.0
  %v1274 = vrcp.pop %v1273
  %v1275 = vmul.f32 1.0, %v1274
  %v1276 = vtanh.pop %v1262
  %v1277 = vld [vmem:[%s354] sm:$0xff]
  %v1278 = vld [vmem:[%s1] sm:$0xff]
  %v1279 = vmul.f32 %v1268, %v1166
  %1281 = vrot.lane.b32.xlu0 %v1269, 32
  %v1282 = vpop.permute.xlu0 %1281
  %v1284 = vmul.f32 %v1268, %v1282
  %1286 = vrot.lane.b32.xlu0 %v1284, 32
  %v1287 = vpop.permute.xlu0 %1286
  %v1289 = vadd.f32 %v1279, %v1287
  %1291 = vset.pattern.permute.xlu0 0
  %1292 = vperm.xlu0 %1291, %v1277
  %v1293 = vpop.permute.xlu0 %1292
  %v1295 = vmul.f32 %v1289, %v1293
  %v1296 = vmul.f32 %v1275, %v1183
  %1298 = vrot.lane.b32.xlu0 %v1276, 32
  %v1299 = vpop.permute.xlu0 %1298
  %v1301 = vmul.f32 %v1275, %v1299
  %1303 = vrot.lane.b32.xlu0 %v1301, 32
  %v1304 = vpop.permute.xlu0 %1303
  %v1306 = vadd.f32 %v1296, %v1304
  %1308 = vset.pattern.permute.xlu0 0
  %1309 = vperm.xlu0 %1308, %v1278
  %v1310 = vpop.permute.xlu0 %1309
  %v1312 = vmul.f32 %v1306, %v1310
  %v1313 = vtanh.pop %v1295
  %1315 = vrot.lane.b32.xlu0 %v1313, 32
  %v1316 = vpop.permute.xlu0 %1315
  %v1318 = vmul.f32 %v1268, %v1316
  %v1319 = vmul.f32 %v1318, %v1293
  %v1320 = vtanh.pop %v1312
  %1322 = vrot.lane.b32.xlu0 %v1320, 32
  %v1323 = vpop.permute.xlu0 %1322
  %v1325 = vmul.f32 %v1275, %v1323
  %v1326 = vmul.f32 %v1325, %v1310
  %1328 = vrot.lane.b32.xlu0 %v1319, 64
  %v1329 = vpop.permute.xlu0 %1328
  %1331 = vst.msk [vmem:[%s413] sm:$0xff] %vm93, %v1329
  %1333 = vrot.lane.b32.xlu0 %v1326, 96
  %v1334 = vpop.permute.xlu0 %1333
  %1336 = vst.msk [vmem:[%s5] sm:$0xff] %vm414, %v1334
  // Predicated region
  $region22: #{run.5} parent=0 // pred_check
    _
  $region23: #{run.5} parent=0 // pred_check_branch
    %1338 = sbr.rel (0) target = $region25
  $region24: #{run.5} parent=0 // pred_region
    _
  $region25: #{run.5} parent=0 // pred_fallthru
    _
  // Predicated region
  $region26: #{run.5} parent=0 // pred_check
    _
  $region27: #{run.5} parent=0 // pred_check_branch
    %1340 = sbr.rel (0) target = $region29
  $region28: #{run.5} parent=0 // pred_region
    _
  $region29: #{run.5} parent=0 // pred_fallthru
    _

// kernel: run.8
$region0: #{run.8}
  #allocation0 [shape = 'u32[]', space=smem, size = 0x4, offset = 0x4, fixed_abs, tag = 'smem constant byte address 0x4 - core index']
  #allocation1 [shape = 'u32[144,128]{1,0:T(1,128)}', space=vmem, size = 0x12000, scoped, tag = 'internal scratch']
  %s0 = inlined_call_operand.vmem [shape: f32[2,8,256], index: 0, kind: input, shape index: {}]
  %s1 = inlined_call_operand.vmem [shape: f32[2,8,256], index: 1, kind: input, shape index: {}]
  %s2 = inlined_call_operand.vmem [shape: bf16[1,256,256], index: 2, kind: input, shape index: {}]
  %s3 = inlined_call_operand.hbm [shape: f32[2,1,8,8], index: 3, kind: output, shape index: {}]
  %s4 = sld [smem:[#allocation0]]
  $region45: #{run.8} parent=0
    _
  %s6 = ssub.s32 1, %s4
  %s7 = scalar_select 0, %s6, %s4
  $region1: #{run.8} parent=0
    #allocation2 [shape = 'u8[8192]{0}', space=vmem, size = 0x2000, scoped, tag = 'output window, operand 0']
    #allocation3 [shape = 's32[2]{0}', space=sflag, size = 0x8, scoped, tag = 'scoped memory for run.8']
    %8 = vsyncpa [#allocation3], 0
    %s9 = scalar_lea.sflag [#allocation3], 1
    %10 = vsyncpa %s9, 0
    loop: start=0, step=1, limit=4
    $region2: #{run.8} parent=1 // loop_pre_header
      _
    $region3: #{run.8} parent=1 // loop_header
      %s12 = sphi 0, %s16
      %p13 = scmp.ge.s32.totalorder %s12, 4
      %s19 = sphi 0, %s31
      %s20 = sphi 0, %s27
      %s21 = sphi 0, %s19
      %s22 = sphi 0, %s20
      %s23 = sphi 0, %s21
      %s24 = sphi 0, %s22
      %s34 = sphi 0, %s36
      %s37 = sphi 0, %s34
      %s38 = sphi 0, %s37
      %s54 = sphi 0, %s38
      %s60 = sphi 0, %s62
      %s63 = sphi 0, %s60
      %s64 = sphi 0, %s63
      %s80 = sphi 0, %s64
      %s86 = sphi 0, %s88
      %s89 = sphi 0, %s86
      %s90 = sphi 0, %s89
      %s106 = sphi 0, %s90
      %s114 = sphi 0, %s116
      %s117 = sphi 0, %s114
      %s118 = sphi 0, %s117
      %s134 = sphi 0, %s118
    $region4: #{run.8} parent=1 // loop_header_branch
      %15 = sbr.rel (%p13) target = $region8
    $region5: #{run.8} parent=1 // loop_body
      %s17 = ssub.s32 %s12, 1
      %s18 = ssub.s32 %s12, 2
      %s25 = sadd.s32 1, %s20
      %p26 = scmp.ge.s32.totalorder %s25, 1
      %s27 = scalar_select %p26, 0, %s25
      %s28 = sadd.s32 1, %s19
      %s29 = scalar_select %p26, %s28, %s19
      %p30 = scmp.ge.s32.totalorder %s29, 2
      %s31 = scalar_select %p30, 0, %s29
      %s32 = ssub.s32 %s19, %s31
      %p33 = scmp.eq.s32.totalorder %s32, 0
      %s35 = sadd.s32 %s34, 1
      %s36 = scalar_select %p33, %s34, %s35
      %p39 = pneg %p33
      %p40 = scmp.eq.s32.totalorder %s12, 1
      %p41 = por %p39, %p40
      %p42 = scmp.ne.s32.totalorder %s34, %s37
      %p43 = scmp.eq.s32.totalorder %s12, 0
      %p44 = por %p42, %p43
      %p45 = scmp.ne.s32.totalorder %s34, %s37
      %p46 = scmp.eq.s32.totalorder %s17, 1
      %p47 = por %p45, %p46
      %p48 = scmp.ne.s32.totalorder %s37, %s38
      %p49 = scmp.eq.s32.totalorder %s17, 0
      %p50 = por %p48, %p49
      %p51 = scmp.ne.s32.totalorder %s37, %s38
      %p52 = scmp.eq.s32.totalorder %s18, 1
      %p53 = por %p51, %p52
      %p55 = scmp.ne.s32.totalorder %s38, %s54
      %p56 = scmp.eq.s32.totalorder %s18, 0
      %p57 = por %p55, %p56
      %s58 = ssub.s32 %s19, %s31
      %p59 = scmp.eq.s32.totalorder %s58, 0
      %s61 = sadd.s32 %s60, 1
      %s62 = scalar_select %p59, %s60, %s61
      %p65 = pneg %p59
      %p66 = scmp.eq.s32.totalorder %s12, 1
      %p67 = por %p65, %p66
      %p68 = scmp.ne.s32.totalorder %s60, %s63
      %p69 = scmp.eq.s32.totalorder %s12, 0
      %p70 = por %p68, %p69
      %p71 = scmp.ne.s32.totalorder %s60, %s63
      %p72 = scmp.eq.s32.totalorder %s17, 1
      %p73 = por %p71, %p72
      %p74 = scmp.ne.s32.totalorder %s63, %s64
      %p75 = scmp.eq.s32.totalorder %s17, 0
      %p76 = por %p74, %p75
      %p77 = scmp.ne.s32.totalorder %s63, %s64
      %p78 = scmp.eq.s32.totalorder %s18, 1
      %p79 = por %p77, %p78
      %p81 = scmp.ne.s32.totalorder %s64, %s80
      %p82 = scmp.eq.s32.totalorder %s18, 0
      %p83 = por %p81, %p82
      %s84 = ssub.s32 %s20, %s27
      %p85 = scmp.eq.s32.totalorder %s84, 0
      %s87 = sadd.s32 %s86, 1
      %s88 = scalar_select %p85, %s86, %s87
      %p91 = pneg %p85
      %p92 = scmp.eq.s32.totalorder %s12, 1
      %p93 = por %p91, %p92
      %p94 = scmp.ne.s32.totalorder %s86, %s89
      %p95 = scmp.eq.s32.totalorder %s12, 0
      %p96 = por %p94, %p95
      %p97 = scmp.ne.s32.totalorder %s86, %s89
      %p98 = scmp.eq.s32.totalorder %s17, 1
      %p99 = por %p97, %p98
      %p100 = scmp.ne.s32.totalorder %s89, %s90
      %p101 = scmp.eq.s32.totalorder %s17, 0
      %p102 = por %p100, %p101
      %p103 = scmp.ne.s32.totalorder %s89, %s90
      %p104 = scmp.eq.s32.totalorder %s18, 1
      %p105 = por %p103, %p104
      %p107 = scmp.ne.s32.totalorder %s90, %s106
      %p108 = scmp.eq.s32.totalorder %s18, 0
      %p109 = por %p107, %p108
      %s110 = ssub.s32 %s19, %s31
      %s111 = ssub.s32 %s20, %s27
      %s112 = sor.u32 %s110, %s111
      %p113 = scmp.eq.s32.totalorder %s112, 0
      %s115 = sadd.s32 %s114, 1
      %s116 = scalar_select %p113, %s114, %s115
      %p119 = pneg %p113
      %p120 = scmp.eq.s32.totalorder %s12, 1
      %p121 = por %p119, %p120
      %p122 = scmp.ne.s32.totalorder %s114, %s117
      %p123 = scmp.eq.s32.totalorder %s12, 0
      %p124 = por %p122, %p123
      %p125 = scmp.ne.s32.totalorder %s114, %s117
      %p126 = scmp.eq.s32.totalorder %s17, 1
      %p127 = por %p125, %p126
      %p128 = scmp.ne.s32.totalorder %s117, %s118
      %p129 = scmp.eq.s32.totalorder %s17, 0
      %p130 = por %p128, %p129
      %p131 = scmp.ne.s32.totalorder %s117, %s118
      %p132 = scmp.eq.s32.totalorder %s18, 1
      %p133 = por %p131, %p132
      %p135 = scmp.ne.s32.totalorder %s118, %s134
      %p136 = scmp.eq.s32.totalorder %s18, 0
      %p137 = por %p135, %p136
      %p138 = scmp.le.s32.totalorder 1, %s12
      %p139 = scmp.lt.s32.totalorder %s12, 3
      %p140 = pnand %p138, %p139
      %p141 = pneg %p140
      // Predicated region
      $region9: #{run.8} parent=5 // pred_check
        _
      $region10: #{run.8} parent=5 // pred_check_branch
        %143 = sbr.rel (%p140) target = $region12
      $region11: #{run.8} parent=5 // pred_region
        %s144 = ssub.s32 %s12, 1
        // Predicated region
        $region13: #{run.8} parent=11 // pred_check
          %p145 = pneg %p102
        $region14: #{run.8} parent=11 // pred_check_branch
          %147 = sbr.rel (%p145) target = $region16
        $region15: #{run.8} parent=11 // pred_region
          %p148 = scmp.lt.s32.totalorder %s22, 0
          %s149 = scalar_select %p148, %s22, 0
          %s150 = smul.addr %s149, 64
          %s151 = smul.addr %s150, 4
          %s152 = scalar_lea.vmem %s2, %s151
        $region16: #{run.8} parent=11 // pred_fallthru
          _
      $region12: #{run.8} parent=5 // pred_fallthru
        _
      %p153 = scmp.lt.s32.totalorder %s12, 2
      // Predicated region
      $region17: #{run.8} parent=5 // pred_check
        %p154 = pneg %p153
      $region18: #{run.8} parent=5 // pred_check_branch
        %156 = sbr.rel (%p154) target = $region20
      $region19: #{run.8} parent=5 // pred_region
        // Predicated region
        $region21: #{run.8} parent=19 // pred_check
          %p157 = pneg %p44
        $region22: #{run.8} parent=19 // pred_check_branch
          %159 = sbr.rel (%p157) target = $region24
        $region23: #{run.8} parent=19 // pred_region
          %p160 = scmp.lt.s32.totalorder %s19, 1
          %s161 = scalar_select %p160, %s19, 1
          %s162 = smul.addr %s161, 2
          %s163 = smul.addr %s162, 8
          %s164 = scalar_lea.vmem %s0, %s163
        $region24: #{run.8} parent=19 // pred_fallthru
          _
        // Predicated region
        $region25: #{run.8} parent=19 // pred_check
          %p165 = pneg %p70
        $region26: #{run.8} parent=19 // pred_check_branch
          %167 = sbr.rel (%p165) target = $region28
        $region27: #{run.8} parent=19 // pred_region
          %p168 = scmp.lt.s32.totalorder %s19, 1
          %s169 = scalar_select %p168, %s19, 1
          %s170 = smul.addr %s169, 2
          %s171 = smul.addr %s170, 8
          %s172 = scalar_lea.vmem %s1, %s171
        $region28: #{run.8} parent=19 // pred_fallthru
          _
      $region20: #{run.8} parent=5 // pred_fallthru
        _
      %p173 = scmp.le.s32.totalorder 1, %s12
      %p174 = scmp.lt.s32.totalorder %s12, 3
      %p175 = pnand %p173, %p174
      %p176 = pneg %p175
      // Predicated region
      $region29: #{run.8} parent=5 // pred_check
        _
      $region30: #{run.8} parent=5 // pred_check_branch
        %178 = sbr.rel (%p175) target = $region32
      $region31: #{run.8} parent=5 // pred_region
        %s179 = ssub.s32 %s12, 1
        %p180 = scmp.lt.s32.totalorder %s21, 1
        %s181 = scalar_select %p180, %s21, 1
        %s182 = smul.addr %s181, 2
        %s183 = smul.addr %s182, 8
        %s184 = scalar_lea.vmem %s0, %s183
        %p185 = pneg %p50
        %p186 = pneg %p47
        %p187 = scmp.lt.s32.totalorder %s21, 1
        %s188 = scalar_select %p187, %s21, 1
        %s189 = smul.addr %s188, 2
        %s190 = smul.addr %s189, 8
        %s191 = scalar_lea.vmem %s1, %s190
        %p192 = pneg %p76
        %p193 = pneg %p73
        %p194 = scmp.lt.s32.totalorder %s22, 0
        %s195 = scalar_select %p194, %s22, 0
        %s196 = smul.addr %s195, 64
        %s197 = smul.addr %s196, 4
        %s198 = scalar_lea.vmem %s2, %s197
        %p199 = pneg %p102
        %p200 = pneg %p99
        %p201 = pneg %p130
        %p202 = pneg %p127
        %s203 = sand.u32 %s117, 1
        %s204 = scalar_lea.sflag [#allocation3], %s203
        %s205 = sand.u32 %s117, 1
        %s206 = smul.addr %s205, 8
        %s207 = scalar_lea.vmem [#allocation2], %s206
        %p208 = scmp.lt.s32.totalorder %s21, 1
        %s209 = scalar_select %p208, %s21, 1
        %s210 = smul.addr %s209, 2
        %s211 = smul.addr %s210, 8
        %s212 = scalar_lea.vmem %s0, %s211
        %p213 = scmp.lt.s32.totalorder %s21, 1
        %s214 = scalar_select %p213, %s21, 1
        %s215 = smul.addr %s214, 2
        %s216 = smul.addr %s215, 8
        %s217 = scalar_lea.vmem %s1, %s216
        %p218 = scmp.lt.s32.totalorder %s22, 0
        %s219 = scalar_select %p218, %s22, 0
        %s220 = smul.addr %s219, 64
        %s221 = smul.addr %s220, 4
        %s222 = scalar_lea.vmem %s2, %s221
        %v224 = vld [vmem:[%s212] sm:$0xff]
        %v225 = vld [vmem:[%s212 + $0x8] sm:$0xff]
        %v226 = vpack.c.bf16 %v224, %v224
        %v227 = vpack.c.bf16 %v225, %v225
        %v228 = vld [vmem:[%s217] sm:$0xff]
        %v229 = vld [vmem:[%s217 + $0x8] sm:$0xff]
        %v230 = vpack.c.bf16 %v228, %v228
        %v231 = vpack.c.bf16 %v229, %v229
        %v232 = vld [vmem:[%s222] sm:$0xff]
        %v233 = vld [vmem:[%s222 + $0x8] sm:$0xff]
        %v234 = vld [vmem:[%s222 + $0x10] sm:$0xff]
        %v235 = vld [vmem:[%s222 + $0x18] sm:$0xff]
        %v236 = vld [vmem:[%s222 + $0x20] sm:$0xff]
        %v237 = vld [vmem:[%s222 + $0x28] sm:$0xff]
        %v238 = vld [vmem:[%s222 + $0x30] sm:$0xff]
        %v239 = vld [vmem:[%s222 + $0x38] sm:$0xff]
        %v240 = vld [vmem:[%s222 + $0x40] sm:$0xff]
        %v241 = vld [vmem:[%s222 + $0x48] sm:$0xff]
        %v242 = vld [vmem:[%s222 + $0x50] sm:$0xff]
        %v243 = vld [vmem:[%s222 + $0x58] sm:$0xff]
        %v244 = vld [vmem:[%s222 + $0x60] sm:$0xff]
        %v245 = vld [vmem:[%s222 + $0x68] sm:$0xff]
        %v246 = vld [vmem:[%s222 + $0x70] sm:$0xff]
        %v247 = vld [vmem:[%s222 + $0x78] sm:$0xff]
        %v248 = vld [vmem:[%s222 + $0x80] sm:$0xff]
        %v249 = vld [vmem:[%s222 + $0x88] sm:$0xff]
        %v250 = vld [vmem:[%s222 + $0x90] sm:$0xff]
        %v251 = vld [vmem:[%s222 + $0x98] sm:$0xff]
        %v252 = vld [vmem:[%s222 + $0xa0] sm:$0xff]
        %v253 = vld [vmem:[%s222 + $0xa8] sm:$0xff]
        %v254 = vld [vmem:[%s222 + $0xb0] sm:$0xff]
        %v255 = vld [vmem:[%s222 + $0xb8] sm:$0xff]
        %v256 = vld [vmem:[%s222 + $0xc0] sm:$0xff]
        %v257 = vld [vmem:[%s222 + $0xc8] sm:$0xff]
        %v258 = vld [vmem:[%s222 + $0xd0] sm:$0xff]
        %v259 = vld [vmem:[%s222 + $0xd8] sm:$0xff]
        %v260 = vld [vmem:[%s222 + $0xe0] sm:$0xff]
        %v261 = vld [vmem:[%s222 + $0xe8] sm:$0xff]
        %v262 = vld [vmem:[%s222 + $0xf0] sm:$0xff]
        %v263 = vld [vmem:[%s222 + $0xf8] sm:$0xff]
        %v296 = vunpack.c.l.b16 %v232
        %v297 = vunpack.c.h.b16 %v232
        %v298 = vunpack.c.l.b16 %v233
        %v299 = vunpack.c.h.b16 %v233
        %v300 = vunpack.c.l.b16 %v234
        %v301 = vunpack.c.h.b16 %v234
        %v302 = vunpack.c.l.b16 %v235
        %v303 = vunpack.c.h.b16 %v235
        %v304 = vunpack.c.l.b16 %v236
        %v305 = vunpack.c.h.b16 %v236
        %v306 = vunpack.c.l.b16 %v237
        %v307 = vunpack.c.h.b16 %v237
        %v308 = vunpack.c.l.b16 %v238
        %v309 = vunpack.c.h.b16 %v238
        %v310 = vunpack.c.l.b16 %v239
        %v311 = vunpack.c.h.b16 %v239
        %v312 = vunpack.c.l.b16 %v240
        %v313 = vunpack.c.h.b16 %v240
        %v314 = vunpack.c.l.b16 %v241
        %v315 = vunpack.c.h.b16 %v241
        %v316 = vunpack.c.l.b16 %v242
        %v317 = vunpack.c.h.b16 %v242
        %v318 = vunpack.c.l.b16 %v243
        %v319 = vunpack.c.h.b16 %v243
        %v320 = vunpack.c.l.b16 %v244
        %v321 = vunpack.c.h.b16 %v244
        %v322 = vunpack.c.l.b16 %v245
        %v323 = vunpack.c.h.b16 %v245
        %v324 = vunpack.c.l.b16 %v246
        %v325 = vunpack.c.h.b16 %v246
        %v326 = vunpack.c.l.b16 %v247
        %v327 = vunpack.c.h.b16 %v247
        %v328 = vunpack.c.l.b16 %v248
        %v329 = vunpack.c.h.b16 %v248
        %v330 = vunpack.c.l.b16 %v249
        %v331 = vunpack.c.h.b16 %v249
        %v332 = vunpack.c.l.b16 %v250
        %v333 = vunpack.c.h.b16 %v250
        %v334 = vunpack.c.l.b16 %v251
        %v335 = vunpack.c.h.b16 %v251
        %v336 = vunpack.c.l.b16 %v252
        %v337 = vunpack.c.h.b16 %v252
        %v338 = vunpack.c.l.b16 %v253
        %v339 = vunpack.c.h.b16 %v253
        %v340 = vunpack.c.l.b16 %v254
        %v341 = vunpack.c.h.b16 %v254
        %v342 = vunpack.c.l.b16 %v255
        %v343 = vunpack.c.h.b16 %v255
        %v344 = vunpack.c.l.b16 %v256
        %v345 = vunpack.c.h.b16 %v256
        %v346 = vunpack.c.l.b16 %v257
        %v347 = vunpack.c.h.b16 %v257
        %v348 = vunpack.c.l.b16 %v258
        %v349 = vunpack.c.h.b16 %v258
        %v350 = vunpack.c.l.b16 %v259
        %v351 = vunpack.c.h.b16 %v259
        %v352 = vunpack.c.l.b16 %v260
        %v353 = vunpack.c.h.b16 %v260
        %v354 = vunpack.c.l.b16 %v261
        %v355 = vunpack.c.h.b16 %v261
        %v356 = vunpack.c.l.b16 %v262
        %v357 = vunpack.c.h.b16 %v262
        %v358 = vunpack.c.l.b16 %v263
        %v359 = vunpack.c.h.b16 %v263
        %v360 = vpack.c.b16 %v298, %v296
        %v361 = vpack.c.b16 %v299, %v297
        %v362 = vpack.c.b16 %v302, %v300
        %v363 = vpack.c.b16 %v303, %v301
        %v364 = vpack.c.b16 %v306, %v304
        %v365 = vpack.c.b16 %v307, %v305
        %v366 = vpack.c.b16 %v310, %v308
        %v367 = vpack.c.b16 %v311, %v309
        %v368 = vpack.c.b16 %v314, %v312
        %v369 = vpack.c.b16 %v315, %v313
        %v370 = vpack.c.b16 %v318, %v316
        %v371 = vpack.c.b16 %v319, %v317
        %v372 = vpack.c.b16 %v322, %v320
        %v373 = vpack.c.b16 %v323, %v321
        %v374 = vpack.c.b16 %v326, %v324
        %v375 = vpack.c.b16 %v327, %v325
        %v376 = vpack.c.b16 %v330, %v328
        %v377 = vpack.c.b16 %v331, %v329
        %v378 = vpack.c.b16 %v334, %v332
        %v379 = vpack.c.b16 %v335, %v333
        %v380 = vpack.c.b16 %v338, %v336
        %v381 = vpack.c.b16 %v339, %v337
        %v382 = vpack.c.b16 %v342, %v340
        %v383 = vpack.c.b16 %v343, %v341
        %v384 = vpack.c.b16 %v346, %v344
        %v385 = vpack.c.b16 %v347, %v345
        %v386 = vpack.c.b16 %v350, %v348
        %v387 = vpack.c.b16 %v351, %v349
        %v388 = vpack.c.b16 %v354, %v352
        %v389 = vpack.c.b16 %v355, %v353
        %v390 = vpack.c.b16 %v358, %v356
        %v391 = vpack.c.b16 %v359, %v357
        %424 = vmatprep.subr.bf16.mxu0 %v361
        %425 = vmatpush1.bf16.msra.mxu0 %v360
        %426 = vmatprep.subr.bf16.mxu0 %v363
        %427 = vmatpush1.bf16.msra.mxu0 %v362
        %428 = vmatprep.subr.bf16.mxu0 %v365
        %429 = vmatpush1.bf16.msra.mxu0 %v364
        %430 = vmatprep.subr.bf16.mxu0 %v367
        %431 = vmatpush1.bf16.msra.mxu0 %v366
        %432 = vmatprep.subr.bf16.mxu0 %v369
        %433 = vmatpush1.bf16.msra.mxu0 %v368
        %434 = vmatprep.subr.bf16.mxu0 %v371
        %435 = vmatpush1.bf16.msra.mxu0 %v370
        %436 = vmatprep.subr.bf16.mxu0 %v373
        %437 = vmatpush1.bf16.msra.mxu0 %v372
        %438 = vmatprep.subr.bf16.mxu0 %v375
        %439 = vmatpush1.bf16.msra.mxu0 %v374
        %440 = vmatprep.subr.bf16.mxu0 %v377
        %441 = vmatpush1.bf16.msra.mxu0 %v376
        %442 = vmatprep.subr.bf16.mxu0 %v379
        %443 = vmatpush1.bf16.msra.mxu0 %v378
        %444 = vmatprep.subr.bf16.mxu0 %v381
        %445 = vmatpush1.bf16.msra.mxu0 %v380
        %446 = vmatprep.subr.bf16.mxu0 %v383
        %447 = vmatpush1.bf16.msra.mxu0 %v382
        %448 = vmatprep.subr.bf16.mxu0 %v385
        %449 = vmatpush1.bf16.msra.mxu0 %v384
        %450 = vmatprep.subr.bf16.mxu0 %v387
        %451 = vmatpush1.bf16.msra.mxu0 %v386
        %452 = vmatprep.subr.bf16.mxu0 %v389
        %453 = vmatpush1.bf16.msra.mxu0 %v388
        %454 = vmatprep.subr.bf16.mxu0 %v391
        %455 = vmatpush1.bf16.msra.mxu0 %v390
        %456 = vmatprep.mubr.bf16.mxu0 %v227
        %457 = vmatmul.mubr.bf16.gmra.mrb[0].mxu0 %v226
        %v458 = vpop.f32.mrb[0].mxu0
        %v459 = vadd.f32 0.0, %v458
        %v460 = vpop.f32.mrb[0].mxu0
        %v461 = vadd.f32 0.0, %v460
        %v462 = vpop.f32.mrb[0].mxu0
        %v463 = vpop.f32.mrb[0].mxu0
        %464 = vdwg.mxu0
        %v465 = vpack.c.bf16 %v459, %v459
        %v466 = vpack.c.bf16 %v461, %v461
        %467 = vmatprep.subr.bf16.mxu0 %v466
        %468 = vmatpush1.bf16.xpose.msra.mxu0 %v465
        %469 = vmatprep.subr.bf16.mxu0 0
        %470 = vmatpush1.bf16.xpose.msra.mxu0 0
        %471 = vmatprep.subr.bf16.mxu0 0
        %472 = vmatpush1.bf16.xpose.msra.mxu0 0
        %473 = vmatprep.subr.bf16.mxu0 0
        %474 = vmatpush1.bf16.xpose.msra.mxu0 0
        %475 = vmatprep.subr.bf16.mxu0 0
        %476 = vmatpush1.bf16.xpose.msra.mxu0 0
        %477 = vmatprep.subr.bf16.mxu0 0
        %478 = vmatpush1.bf16.xpose.msra.mxu0 0
        %479 = vmatprep.subr.bf16.mxu0 0
        %480 = vmatpush1.bf16.xpose.msra.mxu0 0
        %481 = vmatprep.subr.bf16.mxu0 0
        %482 = vmatpush1.bf16.xpose.msra.mxu0 0
        %483 = vmatprep.subr.bf16.mxu0 0
        %484 = vmatpush1.bf16.xpose.msra.mxu0 0
        %485 = vmatprep.subr.bf16.mxu0 0
        %486 = vmatpush1.bf16.xpose.msra.mxu0 0
        %487 = vmatprep.subr.bf16.mxu0 0
        %488 = vmatpush1.bf16.xpose.msra.mxu0 0
        %489 = vmatprep.subr.bf16.mxu0 0
        %490 = vmatpush1.bf16.xpose.msra.mxu0 0
        %491 = vmatprep.subr.bf16.mxu0 0
        %492 = vmatpush1.bf16.xpose.msra.mxu0 0
        %493 = vmatprep.subr.bf16.mxu0 0
        %494 = vmatpush1.bf16.xpose.msra.mxu0 0
        %495 = vmatprep.subr.bf16.mxu0 0
        %496 = vmatpush1.bf16.xpose.msra.mxu0 0
        %497 = vmatprep.subr.bf16.mxu0 0
        %498 = vmatpush1.bf16.xpose.msra.mxu0 0
        %499 = vmatprep.mubr.bf16.mxu0 %v231
        %500 = vmatmul.mubr.bf16.gmra.mrb[0].mxu0 %v230
        %v501 = vpop.f32.mrb[0].mxu0
        %v502 = vadd.f32 0.0, %v501
        %v503 = vpop.f32.mrb[0].mxu0
        %v504 = vpop.f32.mrb[0].mxu0
        %v505 = vpop.f32.mrb[0].mxu0
        %506 = vdwg.mxu0
        %vm507 = vcmask 64512
        %508 = vst.msk [vmem:[%s207] sm:$0xff] %vm507, %v502
        %s509 = sand.u32 %s117, 1
        %s510 = scalar_lea.sflag [#allocation3], %s509
        %s511 = sand.u32 %s117, 1
        %s512 = smul.addr %s511, 8
        %s513 = scalar_lea.vmem [#allocation2], %s512
        // Predicated region
        $region33: #{run.8} parent=31 // pred_check
          %p514 = pneg %p127
        $region34: #{run.8} parent=31 // pred_check_branch
          %516 = sbr.rel (%p514) target = $region36
        $region35: #{run.8} parent=31 // pred_region
          %s518 = ssub.s32 128, 128
          %519 = vsyncadd %s510, %s518
          %s520 = sadd.s32 %s22, %s21
          %s521 = smul.addr %s520, 128
          %s522 = scalar_lea.hbm %s3, %s521
          %s524 = sshll.u32 %s513, 4
          %s525 = int_to_ptr.vmem [resolvable:$true] %s524
          %527 = dma.vmem_to_hbm [thread:$0]  %s525, 128, %s522, %s510
        $region36: #{run.8} parent=31 // pred_fallthru
          _
      $region32: #{run.8} parent=5 // pred_fallthru
        _
      %p528 = scmp.le.s32.totalorder 2, %s12
      // Predicated region
      $region37: #{run.8} parent=5 // pred_check
        %p529 = pneg %p528
      $region38: #{run.8} parent=5 // pred_check_branch
        %531 = sbr.rel (%p529) target = $region40
      $region39: #{run.8} parent=5 // pred_region
        %s532 = ssub.s32 %s12, 2
        // Predicated region
        $region41: #{run.8} parent=39 // pred_check
          %p533 = pneg %p133
        $region42: #{run.8} parent=39 // pred_check_branch
          %535 = sbr.rel (%p533) target = $region44
        $region43: #{run.8} parent=39 // pred_region
          %s536 = sand.u32 %s118, 1
          %s537 = scalar_lea.sflag [#allocation3], %s536
          %s538 = sand.u32 %s118, 1
          %s539 = smul.addr %s538, 8
          %s540 = scalar_lea.vmem [#allocation2], %s539
          %541 = dma.done %s537, 128
        $region44: #{run.8} parent=39 // pred_fallthru
          _
      $region40: #{run.8} parent=5 // pred_fallthru
        _
    $region6: #{run.8} parent=1 // loop_footer
      %s16 = sadd.s32 1, %s12
    $region7: #{run.8} parent=1 // loop_footer_branch
      %11 = sbr.rel target = $region3
    $region8: #{run.8} parent=1 // loop_exit
      _
    %542 = vsyncpa [#allocation3], 1
    %s543 = scalar_lea.sflag [#allocation3], 1
    %544 = vsyncpa %s543, 1

// kernel: run.9
$region0: #{run.9}
  #allocation0 [shape = 'u32[]', space=smem, size = 0x4, offset = 0x4, fixed_abs, tag = 'smem constant byte address 0x4 - core index']
  #allocation1 [shape = 'u32[144,128]{1,0:T(1,128)}', space=vmem, size = 0x12000, scoped, tag = 'internal scratch']
  %s0 = inlined_call_operand.vmem [shape: f32[2,8,128], index: 0, kind: input, shape index: {}]
  %s1 = inlined_call_operand.vmem [shape: f32[2,8,128], index: 1, kind: input, shape index: {}]
  %s2 = inlined_call_operand.vmem [shape: bf16[5,128,128], index: 2, kind: input, shape index: {}]
  %s3 = inlined_call_operand.hbm [shape: f32[2,5,8,8], index: 3, kind: output, shape index: {}]
  %s4 = sld [smem:[#allocation0]]
  $region45: #{run.9} parent=0
    _
  %s6 = ssub.s32 1, %s4
  %s7 = scalar_select 0, %s6, %s4
  $region1: #{run.9} parent=0
    #allocation2 [shape = 'u8[8192]{0}', space=vmem, size = 0x2000, scoped, tag = 'output window, operand 0']
    #allocation3 [shape = 's32[2]{0}', space=sflag, size = 0x8, scoped, tag = 'scoped memory for run.9']
    %8 = vsyncpa [#allocation3], 0
    %s9 = scalar_lea.sflag [#allocation3], 1
    %10 = vsyncpa %s9, 0
    loop: start=0, step=1, limit=12
    $region2: #{run.9} parent=1 // loop_pre_header
      _
    $region3: #{run.9} parent=1 // loop_header
      %s12 = sphi 0, %s16
      %p13 = scmp.ge.s32.totalorder %s12, 12
      %s19 = sphi 0, %s31
      %s20 = sphi 0, %s27
      %s21 = sphi 0, %s19
      %s22 = sphi 0, %s20
      %s23 = sphi 0, %s21
      %s24 = sphi 0, %s22
      %s34 = sphi 0, %s36
      %s37 = sphi 0, %s34
      %s38 = sphi 0, %s37
      %s54 = sphi 0, %s38
      %s60 = sphi 0, %s62
      %s63 = sphi 0, %s60
      %s64 = sphi 0, %s63
      %s80 = sphi 0, %s64
      %s86 = sphi 0, %s88
      %s89 = sphi 0, %s86
      %s90 = sphi 0, %s89
      %s106 = sphi 0, %s90
      %s114 = sphi 0, %s116
      %s117 = sphi 0, %s114
      %s118 = sphi 0, %s117
      %s134 = sphi 0, %s118
    $region4: #{run.9} parent=1 // loop_header_branch
      %15 = sbr.rel (%p13) target = $region8
    $region5: #{run.9} parent=1 // loop_body
      %s17 = ssub.s32 %s12, 1
      %s18 = ssub.s32 %s12, 2
      %s25 = sadd.s32 1, %s20
      %p26 = scmp.ge.s32.totalorder %s25, 5
      %s27 = scalar_select %p26, 0, %s25
      %s28 = sadd.s32 1, %s19
      %s29 = scalar_select %p26, %s28, %s19
      %p30 = scmp.ge.s32.totalorder %s29, 2
      %s31 = scalar_select %p30, 0, %s29
      %s32 = ssub.s32 %s19, %s31
      %p33 = scmp.eq.s32.totalorder %s32, 0
      %s35 = sadd.s32 %s34, 1
      %s36 = scalar_select %p33, %s34, %s35
      %p39 = pneg %p33
      %p40 = scmp.eq.s32.totalorder %s12, 9
      %p41 = por %p39, %p40
      %p42 = scmp.ne.s32.totalorder %s34, %s37
      %p43 = scmp.eq.s32.totalorder %s12, 0
      %p44 = por %p42, %p43
      %p45 = scmp.ne.s32.totalorder %s34, %s37
      %p46 = scmp.eq.s32.totalorder %s17, 9
      %p47 = por %p45, %p46
      %p48 = scmp.ne.s32.totalorder %s37, %s38
      %p49 = scmp.eq.s32.totalorder %s17, 0
      %p50 = por %p48, %p49
      %p51 = scmp.ne.s32.totalorder %s37, %s38
      %p52 = scmp.eq.s32.totalorder %s18, 9
      %p53 = por %p51, %p52
      %p55 = scmp.ne.s32.totalorder %s38, %s54
      %p56 = scmp.eq.s32.totalorder %s18, 0
      %p57 = por %p55, %p56
      %s58 = ssub.s32 %s19, %s31
      %p59 = scmp.eq.s32.totalorder %s58, 0
      %s61 = sadd.s32 %s60, 1
      %s62 = scalar_select %p59, %s60, %s61
      %p65 = pneg %p59
      %p66 = scmp.eq.s32.totalorder %s12, 9
      %p67 = por %p65, %p66
      %p68 = scmp.ne.s32.totalorder %s60, %s63
      %p69 = scmp.eq.s32.totalorder %s12, 0
      %p70 = por %p68, %p69
      %p71 = scmp.ne.s32.totalorder %s60, %s63
      %p72 = scmp.eq.s32.totalorder %s17, 9
      %p73 = por %p71, %p72
      %p74 = scmp.ne.s32.totalorder %s63, %s64
      %p75 = scmp.eq.s32.totalorder %s17, 0
      %p76 = por %p74, %p75
      %p77 = scmp.ne.s32.totalorder %s63, %s64
      %p78 = scmp.eq.s32.totalorder %s18, 9
      %p79 = por %p77, %p78
      %p81 = scmp.ne.s32.totalorder %s64, %s80
      %p82 = scmp.eq.s32.totalorder %s18, 0
      %p83 = por %p81, %p82
      %s84 = ssub.s32 %s20, %s27
      %p85 = scmp.eq.s32.totalorder %s84, 0
      %s87 = sadd.s32 %s86, 1
      %s88 = scalar_select %p85, %s86, %s87
      %p91 = pneg %p85
      %p92 = scmp.eq.s32.totalorder %s12, 9
      %p93 = por %p91, %p92
      %p94 = scmp.ne.s32.totalorder %s86, %s89
      %p95 = scmp.eq.s32.totalorder %s12, 0
      %p96 = por %p94, %p95
      %p97 = scmp.ne.s32.totalorder %s86, %s89
      %p98 = scmp.eq.s32.totalorder %s17, 9
      %p99 = por %p97, %p98
      %p100 = scmp.ne.s32.totalorder %s89, %s90
      %p101 = scmp.eq.s32.totalorder %s17, 0
      %p102 = por %p100, %p101
      %p103 = scmp.ne.s32.totalorder %s89, %s90
      %p104 = scmp.eq.s32.totalorder %s18, 9
      %p105 = por %p103, %p104
      %p107 = scmp.ne.s32.totalorder %s90, %s106
      %p108 = scmp.eq.s32.totalorder %s18, 0
      %p109 = por %p107, %p108
      %s110 = ssub.s32 %s19, %s31
      %s111 = ssub.s32 %s20, %s27
      %s112 = sor.u32 %s110, %s111
      %p113 = scmp.eq.s32.totalorder %s112, 0
      %s115 = sadd.s32 %s114, 1
      %s116 = scalar_select %p113, %s114, %s115
      %p119 = pneg %p113
      %p120 = scmp.eq.s32.totalorder %s12, 9
      %p121 = por %p119, %p120
      %p122 = scmp.ne.s32.totalorder %s114, %s117
      %p123 = scmp.eq.s32.totalorder %s12, 0
      %p124 = por %p122, %p123
      %p125 = scmp.ne.s32.totalorder %s114, %s117
      %p126 = scmp.eq.s32.totalorder %s17, 9
      %p127 = por %p125, %p126
      %p128 = scmp.ne.s32.totalorder %s117, %s118
      %p129 = scmp.eq.s32.totalorder %s17, 0
      %p130 = por %p128, %p129
      %p131 = scmp.ne.s32.totalorder %s117, %s118
      %p132 = scmp.eq.s32.totalorder %s18, 9
      %p133 = por %p131, %p132
      %p135 = scmp.ne.s32.totalorder %s118, %s134
      %p136 = scmp.eq.s32.totalorder %s18, 0
      %p137 = por %p135, %p136
      %p138 = scmp.le.s32.totalorder 1, %s12
      %p139 = scmp.lt.s32.totalorder %s12, 11
      %p140 = pnand %p138, %p139
      %p141 = pneg %p140
      // Predicated region
      $region9: #{run.9} parent=5 // pred_check
        _
      $region10: #{run.9} parent=5 // pred_check_branch
        %143 = sbr.rel (%p140) target = $region12
      $region11: #{run.9} parent=5 // pred_region
        %s144 = ssub.s32 %s12, 1
      $region12: #{run.9} parent=5 // pred_fallthru
        _
      %p145 = scmp.lt.s32.totalorder %s12, 10
      // Predicated region
      $region13: #{run.9} parent=5 // pred_check
        %p146 = pneg %p145
      $region14: #{run.9} parent=5 // pred_check_branch
        %148 = sbr.rel (%p146) target = $region16
      $region15: #{run.9} parent=5 // pred_region
        // Predicated region
        $region17: #{run.9} parent=15 // pred_check
          %p149 = pneg %p44
        $region18: #{run.9} parent=15 // pred_check_branch
          %151 = sbr.rel (%p149) target = $region20
        $region19: #{run.9} parent=15 // pred_region
          %p152 = scmp.lt.s32.totalorder %s19, 1
          %s153 = scalar_select %p152, %s19, 1
          %s154 = smul.addr %s153, 8
          %s155 = scalar_lea.vmem %s0, %s154
        $region20: #{run.9} parent=15 // pred_fallthru
          _
        // Predicated region
        $region21: #{run.9} parent=15 // pred_check
          %p156 = pneg %p70
        $region22: #{run.9} parent=15 // pred_check_branch
          %158 = sbr.rel (%p156) target = $region24
        $region23: #{run.9} parent=15 // pred_region
          %p159 = scmp.lt.s32.totalorder %s19, 1
          %s160 = scalar_select %p159, %s19, 1
          %s161 = smul.addr %s160, 8
          %s162 = scalar_lea.vmem %s1, %s161
        $region24: #{run.9} parent=15 // pred_fallthru
          _
        // Predicated region
        $region25: #{run.9} parent=15 // pred_check
          %p163 = pneg %p96
        $region26: #{run.9} parent=15 // pred_check_branch
          %165 = sbr.rel (%p163) target = $region28
        $region27: #{run.9} parent=15 // pred_region
          %p166 = scmp.lt.s32.totalorder %s20, 4
          %s167 = scalar_select %p166, %s20, 4
          %s168 = smul.addr %s167, 16
          %s169 = smul.addr %s168, 4
          %s170 = scalar_lea.vmem %s2, %s169
        $region28: #{run.9} parent=15 // pred_fallthru
          _
      $region16: #{run.9} parent=5 // pred_fallthru
        _
      %p171 = scmp.le.s32.totalorder 1, %s12
      %p172 = scmp.lt.s32.totalorder %s12, 11
      %p173 = pnand %p171, %p172
      %p174 = pneg %p173
      // Predicated region
      $region29: #{run.9} parent=5 // pred_check
        _
      $region30: #{run.9} parent=5 // pred_check_branch
        %176 = sbr.rel (%p173) target = $region32
      $region31: #{run.9} parent=5 // pred_region
        %s177 = ssub.s32 %s12, 1
        %p178 = scmp.lt.s32.totalorder %s21, 1
        %s179 = scalar_select %p178, %s21, 1
        %s180 = smul.addr %s179, 8
        %s181 = scalar_lea.vmem %s0, %s180
        %p182 = pneg %p50
        %p183 = pneg %p47
        %p184 = scmp.lt.s32.totalorder %s21, 1
        %s185 = scalar_select %p184, %s21, 1
        %s186 = smul.addr %s185, 8
        %s187 = scalar_lea.vmem %s1, %s186
        %p188 = pneg %p76
        %p189 = pneg %p73
        %p190 = scmp.lt.s32.totalorder %s22, 4
        %s191 = scalar_select %p190, %s22, 4
        %s192 = smul.addr %s191, 16
        %s193 = smul.addr %s192, 4
        %s194 = scalar_lea.vmem %s2, %s193
        %p195 = pneg %p102
        %p196 = pneg %p99
        %p197 = pneg %p130
        %p198 = pneg %p127
        %s199 = sand.u32 %s117, 1
        %s200 = scalar_lea.sflag [#allocation3], %s199
        %s201 = sand.u32 %s117, 1
        %s202 = smul.addr %s201, 8
        %s203 = scalar_lea.vmem [#allocation2], %s202
        %p204 = scmp.lt.s32.totalorder %s21, 1
        %s205 = scalar_select %p204, %s21, 1
        %s206 = smul.addr %s205, 8
        %s207 = scalar_lea.vmem %s0, %s206
        %p208 = scmp.lt.s32.totalorder %s21, 1
        %s209 = scalar_select %p208, %s21, 1
        %s210 = smul.addr %s209, 8
        %s211 = scalar_lea.vmem %s1, %s210
        %p212 = scmp.lt.s32.totalorder %s22, 4
        %s213 = scalar_select %p212, %s22, 4
        %s214 = smul.addr %s213, 16
        %s215 = smul.addr %s214, 4
        %s216 = scalar_lea.vmem %s2, %s215
        %v218 = vld [vmem:[%s207] sm:$0xff]
        %v219 = vpack.c.bf16 %v218, %v218
        %v220 = vld [vmem:[%s211] sm:$0xff]
        %v221 = vpack.c.bf16 %v220, %v220
        %v222 = vld [vmem:[%s216] sm:$0xf]
        %v223 = vld [vmem:[%s216 + $0x4] sm:$0xf]
        %v224 = vld [vmem:[%s216 + $0x8] sm:$0xf]
        %v225 = vld [vmem:[%s216 + $0xc] sm:$0xf]
        %v226 = vld [vmem:[%s216 + $0x10] sm:$0xf]
        %v227 = vld [vmem:[%s216 + $0x14] sm:$0xf]
        %v228 = vld [vmem:[%s216 + $0x18] sm:$0xf]
        %v229 = vld [vmem:[%s216 + $0x1c] sm:$0xf]
        %v230 = vld [vmem:[%s216 + $0x20] sm:$0xf]
        %v231 = vld [vmem:[%s216 + $0x24] sm:$0xf]
        %v232 = vld [vmem:[%s216 + $0x28] sm:$0xf]
        %v233 = vld [vmem:[%s216 + $0x2c] sm:$0xf]
        %v234 = vld [vmem:[%s216 + $0x30] sm:$0xf]
        %v235 = vld [vmem:[%s216 + $0x34] sm:$0xf]
        %v236 = vld [vmem:[%s216 + $0x38] sm:$0xf]
        %v237 = vld [vmem:[%s216 + $0x3c] sm:$0xf]
        %v254 = vunpack.c.l.b16 %v222
        %v255 = vunpack.c.l.b16 %v223
        %v256 = vunpack.c.l.b16 %v224
        %v257 = vunpack.c.l.b16 %v225
        %v258 = vunpack.c.l.b16 %v226
        %v259 = vunpack.c.l.b16 %v227
        %v260 = vunpack.c.l.b16 %v228
        %v261 = vunpack.c.l.b16 %v229
        %v262 = vunpack.c.l.b16 %v230
        %v263 = vunpack.c.l.b16 %v231
        %v264 = vunpack.c.l.b16 %v232
        %v265 = vunpack.c.l.b16 %v233
        %v266 = vunpack.c.l.b16 %v234
        %v267 = vunpack.c.l.b16 %v235
        %v268 = vunpack.c.l.b16 %v236
        %v269 = vunpack.c.l.b16 %v237
        %v270 = vpack.c.b16 %v255, %v254
        %v271 = vpack.c.b16 %v257, %v256
        %v272 = vpack.c.b16 %v259, %v258
        %v273 = vpack.c.b16 %v261, %v260
        %v274 = vpack.c.b16 %v263, %v262
        %v275 = vpack.c.b16 %v265, %v264
        %v276 = vpack.c.b16 %v267, %v266
        %v277 = vpack.c.b16 %v269, %v268
        %286 = vmatprep.subr.bf16.mxu0 0
        %287 = vmatpush1.bf16.msra.mxu0 %v270
        %288 = vmatprep.subr.bf16.mxu0 0
        %289 = vmatpush1.bf16.msra.mxu0 %v271
        %290 = vmatprep.subr.bf16.mxu0 0
        %291 = vmatpush1.bf16.msra.mxu0 %v272
        %292 = vmatprep.subr.bf16.mxu0 0
        %293 = vmatpush1.bf16.msra.mxu0 %v273
        %294 = vmatprep.subr.bf16.mxu0 0
        %295 = vmatpush1.bf16.msra.mxu0 %v274
        %296 = vmatprep.subr.bf16.mxu0 0
        %297 = vmatpush1.bf16.msra.mxu0 %v275
        %298 = vmatprep.subr.bf16.mxu0 0
        %299 = vmatpush1.bf16.msra.mxu0 %v276
        %300 = vmatprep.subr.bf16.mxu0 0
        %301 = vmatpush1.bf16.msra.mxu0 %v277
        %302 = vmatprep.subr.bf16.mxu0 0
        %303 = vmatpush1.bf16.msra.mxu0 0
        %304 = vmatprep.subr.bf16.mxu0 0
        %305 = vmatpush1.bf16.msra.mxu0 0
        %306 = vmatprep.subr.bf16.mxu0 0
        %307 = vmatpush1.bf16.msra.mxu0 0
        %308 = vmatprep.subr.bf16.mxu0 0
        %309 = vmatpush1.bf16.msra.mxu0 0
        %310 = vmatprep.subr.bf16.mxu0 0
        %311 = vmatpush1.bf16.msra.mxu0 0
        %312 = vmatprep.subr.bf16.mxu0 0
        %313 = vmatpush1.bf16.msra.mxu0 0
        %314 = vmatprep.subr.bf16.mxu0 0
        %315 = vmatpush1.bf16.msra.mxu0 0
        %316 = vmatprep.subr.bf16.mxu0 0
        %317 = vmatpush1.bf16.msra.mxu0 0
        %318 = vmatprep.mubr.bf16.mxu0 0
        %319 = vmatmul.mubr.bf16.gmra.mrb[0].mxu0 %v219
        %v320 = vpop.f32.mrb[0].mxu0
        %v321 = vadd.f32 0.0, %v320
        %v322 = vpop.f32.mrb[0].mxu0
        %v323 = vpop.f32.mrb[0].mxu0
        %v324 = vpop.f32.mrb[0].mxu0
        %325 = vdwg.mxu0
        %v326 = vpack.c.bf16 %v321, %v321
        %327 = vmatprep.subr.bf16.mxu0 0
        %328 = vmatpush1.bf16.xpose.msra.mxu0 %v326
        %329 = vmatprep.subr.bf16.mxu0 0
        %330 = vmatpush1.bf16.xpose.msra.mxu0 0
        %331 = vmatprep.subr.bf16.mxu0 0
        %332 = vmatpush1.bf16.xpose.msra.mxu0 0
        %333 = vmatprep.subr.bf16.mxu0 0
        %334 = vmatpush1.bf16.xpose.msra.mxu0 0
        %335 = vmatprep.subr.bf16.mxu0 0
        %336 = vmatpush1.bf16.xpose.msra.mxu0 0
        %337 = vmatprep.subr.bf16.mxu0 0
        %338 = vmatpush1.bf16.xpose.msra.mxu0 0
        %339 = vmatprep.subr.bf16.mxu0 0
        %340 = vmatpush1.bf16.xpose.msra.mxu0 0
        %341 = vmatprep.subr.bf16.mxu0 0
        %342 = vmatpush1.bf16.xpose.msra.mxu0 0
        %343 = vmatprep.subr.bf16.mxu0 0
        %344 = vmatpush1.bf16.xpose.msra.mxu0 0
        %345 = vmatprep.subr.bf16.mxu0 0
        %346 = vmatpush1.bf16.xpose.msra.mxu0 0
        %347 = vmatprep.subr.bf16.mxu0 0
        %348 = vmatpush1.bf16.xpose.msra.mxu0 0
        %349 = vmatprep.subr.bf16.mxu0 0
        %350 = vmatpush1.bf16.xpose.msra.mxu0 0
        %351 = vmatprep.subr.bf16.mxu0 0
        %352 = vmatpush1.bf16.xpose.msra.mxu0 0
        %353 = vmatprep.subr.bf16.mxu0 0
        %354 = vmatpush1.bf16.xpose.msra.mxu0 0
        %355 = vmatprep.subr.bf16.mxu0 0
        %356 = vmatpush1.bf16.xpose.msra.mxu0 0
        %357 = vmatprep.subr.bf16.mxu0 0
        %358 = vmatpush1.bf16.xpose.msra.mxu0 0
        %359 = vmatprep.mubr.bf16.mxu0 0
        %360 = vmatmul.mubr.bf16.gmra.mrb[0].mxu0 %v221
        %v361 = vpop.f32.mrb[0].mxu0
        %v362 = vadd.f32 0.0, %v361
        %v363 = vpop.f32.mrb[0].mxu0
        %v364 = vpop.f32.mrb[0].mxu0
        %v365 = vpop.f32.mrb[0].mxu0
        %366 = vdwg.mxu0
        %vm367 = vcmask 64512
        %368 = vst.msk [vmem:[%s203] sm:$0xff] %vm367, %v362
        %s369 = sand.u32 %s117, 1
        %s370 = scalar_lea.sflag [#allocation3], %s369
        %s371 = sand.u32 %s117, 1
        %s372 = smul.addr %s371, 8
        %s373 = scalar_lea.vmem [#allocation2], %s372
        // Predicated region
        $region33: #{run.9} parent=31 // pred_check
          %p374 = pneg %p127
        $region34: #{run.9} parent=31 // pred_check_branch
          %376 = sbr.rel (%p374) target = $region36
        $region35: #{run.9} parent=31 // pred_region
          %s378 = ssub.s32 128, 128
          %379 = vsyncadd %s370, %s378
          %s380 = smul.addr %s21, 5
          %s381 = sadd.s32 %s22, %s380
          %s382 = smul.addr %s381, 128
          %s383 = scalar_lea.hbm %s3, %s382
          %s385 = sshll.u32 %s373, 4
          %s386 = int_to_ptr.vmem [resolvable:$true] %s385
          %388 = dma.vmem_to_hbm [thread:$0]  %s386, 128, %s383, %s370
        $region36: #{run.9} parent=31 // pred_fallthru
          _
      $region32: #{run.9} parent=5 // pred_fallthru
        _
      %p389 = scmp.le.s32.totalorder 2, %s12
      // Predicated region
      $region37: #{run.9} parent=5 // pred_check
        %p390 = pneg %p389
      $region38: #{run.9} parent=5 // pred_check_branch
        %392 = sbr.rel (%p390) target = $region40
      $region39: #{run.9} parent=5 // pred_region
        %s393 = ssub.s32 %s12, 2
        // Predicated region
        $region41: #{run.9} parent=39 // pred_check
          %p394 = pneg %p133
        $region42: #{run.9} parent=39 // pred_check_branch
          %396 = sbr.rel (%p394) target = $region44
        $region43: #{run.9} parent=39 // pred_region
          %s397 = sand.u32 %s118, 1
          %s398 = scalar_lea.sflag [#allocation3], %s397
          %s399 = sand.u32 %s118, 1
          %s400 = smul.addr %s399, 8
          %s401 = scalar_lea.vmem [#allocation2], %s400
          %402 = dma.done %s398, 128
        $region44: #{run.9} parent=39 // pred_fallthru
          _
      $region40: #{run.9} parent=5 // pred_fallthru
        _
    $region6: #{run.9} parent=1 // loop_footer
      %s16 = sadd.s32 1, %s12
    $region7: #{run.9} parent=1 // loop_footer_branch
      %11 = sbr.rel target = $region3
    $region8: #{run.9} parent=1 // loop_exit
      _
    %403 = vsyncpa [#allocation3], 1
    %s404 = scalar_lea.sflag [#allocation3], 1
    %405 = vsyncpa %s404, 1

</llo_original>
